<compile_context>
chip_gen: v6e
topology: v6e:2x2x1
jax: 0.10.0
libtpu: 0.0.40
codegen_flags: <defaults>
</compile_context>

<pallas_src>
import functools

import jax
import jax.numpy as jnp
from jax.experimental import pallas as pl
from jax.experimental.pallas import tpu as pltpu

BN_EPS = 1e-5


def _round_up(v, m):
    return (v + m - 1) // m * m


# ----------------------------- Pallas kernels ------------------------------


def _conv_stats_kernel(x_ref, w_ref, o_ref, stats_ref, *,
                       tap_offsets, m_img, hh, wh, ho, wo):
    """Shifted-tap conv as ONE K=taps*Cin matmul + per-image BN partial sums.

    x_ref     : (R, Cin)         bf16  per-image flattened activation slab
    w_ref     : (taps*Cin, Cout) bf16  flattened conv weights
    o_ref     : (m_img, Cout)    f32   pre-BN conv output (hh*wh rows)
    stats_ref : (2, Cout)        f32   [sum, sum-of-squares] over the ho*wo
                                       valid output positions of this image
    """
    # Stack the tap slices along the lane (K) axis -> one MXU matmul.
    taps = [x_ref[pl.ds(off, m_img), :] for off in tap_offsets]
    patches = taps[0] if len(taps) == 1 else jnp.concatenate(taps, axis=-1)
    acc = jnp.dot(patches, w_ref[...], preferred_element_type=jnp.float32)
    o_ref[...] = acc

    cout = acc.shape[-1]
    if ho == hh and wo == wh:              # every row valid (1x1 conv path)
        s1 = jnp.sum(acc, axis=0, keepdims=True)
        s2 = jnp.sum(acc * acc, axis=0, keepdims=True)
    else:                                  # sum only the valid output rows
        s1 = jnp.zeros((1, cout), jnp.float32)
        s2 = jnp.zeros((1, cout), jnp.float32)
        for oh in range(ho):               # oh*wh is a multiple of 8 (aligned)
            v = acc[oh * wh: oh * wh + wo, :]
            s1 = s1 + jnp.sum(v, axis=0, keepdims=True)
            s2 = s2 + jnp.sum(v * v, axis=0, keepdims=True)
    stats_ref[0:1, :] = s1
    stats_ref[1:2, :] = s2


def _bn_relu_kernel(y_ref, scale_ref, shift_ref, o_ref):
    """y * scale + shift, ReLU, cast to the output dtype."""
    o_ref[...] = jnp.maximum(
        y_ref[...] * scale_ref[...] + shift_ref[...], 0.0).astype(o_ref.dtype)


def _maxpool_kernel(x_ref, o_ref, *, tap_offsets, m_img):
    """9-tap max over the per-image shifted flat layout."""
    r = x_ref[pl.ds(tap_offsets[0], m_img), :]
    for off in tap_offsets[1:]:
        r = jnp.maximum(r, x_ref[pl.ds(off, m_img), :])
    o_ref[...] = r


# --------------------------- layout construction ---------------------------


def _per_image_layout(x, kh, kw, stride, padding):
    """Flatten x (N,H,W,C) so a kh x kw window op becomes static shifted
    row-slices of a per-image slab.

    Returns (x_flat (N, R, C), tap_offsets, hh, wh, ho, wo): output position
    (oh, ow) of image n lives at row  oh*wh + ow  of x_flat[n] (valid iff
    oh < ho and ow < wo; the rest is sliced-away compute waste) and window
    tap (i, j) reads row  oh*wh + ow + tap_offsets[i*kw + j].

    stride 1: one zero-padded ('same') image; stride 2/'valid': the four
    (row, col) parity phases, each cropped/zero-padded to (hh, wh).  Taps for
    valid output positions never touch the zero padding.  wh is rounded up to
    a multiple of 8 so the row component of every tap offset is sublane
    aligned.
    """
    n, h, w, c = x.shape

    if kh == 1 and kw == 1 and stride == 1:
        return x.reshape(n, h * w, c), (0,), h, w, h, w

    if stride == 1:                                          # 'same' padding
        ph, pw = kh // 2, kw // 2
        hh, wh_raw = h + 2 * ph, w + 2 * pw
        wh = _round_up(wh_raw, 8)
        ho, wo = h, w
        xp = jnp.pad(x, ((0, 0), (ph, ph), (pw, pw + wh - wh_raw), (0, 0)))
        phases = [xp]

        def tap(i, j):
            return 0, i * wh + j

    elif stride == 2 and padding == "valid":
        ho, wo = (h - kh) // 2 + 1, (w - kw) // 2 + 1
        hh, wh_raw = ho + (kh - 1) // 2, wo + (kw - 1) // 2
        wh = _round_up(wh_raw, 8)
        phases = []
        for p in range(2):
            for q in range(2):
                ph_arr = x[:, p::2, q::2, :][:, :hh, :wh, :]
                dh, dw = hh - ph_arr.shape[1], wh - ph_arr.shape[2]
                if dh or dw:
                    ph_arr = jnp.pad(ph_arr, ((0, 0), (0, dh), (0, dw), (0, 0)))
                phases.append(ph_arr)

        def tap(i, j):
            return (i % 2) * 2 + (j % 2), (i // 2) * wh + (j // 2)

    else:
        raise NotImplementedError(f"unsupported stride/padding: {stride}, {padding}")

    m_img = hh * wh
    tap_offsets = tuple(tap(i, j)[0] * m_img + tap(i, j)[1]
                        for i in range(kh) for j in range(kw))
    # Keep every in-kernel tap slice [off, off + m_img) inside the slab.
    r_rows = _round_up(max(tap_offsets) + m_img, 8)
    flat = jnp.concatenate([p.reshape(n, m_img, c) for p in phases], axis=1)
    if r_rows > flat.shape[1]:
        flat = jnp.pad(flat, ((0, 0), (0, r_rows - flat.shape[1]), (0, 0)))
    return flat, tap_offsets, hh, wh, ho, wo


# ------------------------------ JAX wrappers --------------------------------


def _compiler_params(*buffer_bytes):
    # Double-buffered pipeline tiles + resident constants + compiler scratch.
    need = 2 * int(sum(buffer_bytes)) + (8 << 20)
    return pltpu.CompilerParams(
        dimension_semantics=("parallel",),
        vmem_limit_bytes=int(min(max(need, 32 << 20), 64 << 20)),
    )


def conv_bn_relu(x, params, *, kernel_size, stride=1, padding="same",
                 out_dtype=jnp.float32, layout=None):
    """Conv2d (no bias) + BatchNorm2d (training-mode batch stats) + ReLU.

    x      : (N, H, W, Cin) (ignored if `layout` is given)
    params : (w (kh,kw,Cin,Cout), gamma (Cout,), beta (Cout,))
    Returns (N, Ho, Wo, Cout) in `out_dtype`.
    """
    w, gamma, beta = params
    kh, kw = kernel_size
    if layout is None:
        layout = _per_image_layout(x, kh, kw, stride, padding)
    x_flat, tap_offsets, hh, wh, ho, wo = layout
    n, r_rows, cin = x_flat.shape
    cout = w.shape[-1]
    m_img = hh * wh

    x_bf16 = x_flat.astype(jnp.bfloat16)                       # MXU-native
    w2d = w.reshape(kh * kw * cin, cout).astype(jnp.bfloat16)

    conv_kernel = functools.partial(
        _conv_stats_kernel, tap_offsets=tap_offsets, m_img=m_img,
        hh=hh, wh=wh, ho=ho, wo=wo)

    # Pass 1: per-image conv tile + BN partial sums (pipelined, parallel).
    conv_out, stats = pl.pallas_call(
        conv_kernel,
        out_shape=(jax.ShapeDtypeStruct((n, m_img, cout), jnp.float32),
                   jax.ShapeDtypeStruct((n, 2, cout), jnp.float32)),
        grid=(n,),
        in_specs=[pl.BlockSpec((None, r_rows, cin), lambda i: (i, 0, 0)),
                  pl.BlockSpec((kh * kw * cin, cout), lambda i: (0, 0))],
        out_specs=(pl.BlockSpec((None, m_img, cout), lambda i: (i, 0, 0)),
                   pl.BlockSpec((None, 2, cout), lambda i: (i, 0, 0))),
        compiler_params=_compiler_params(
            r_rows * cin * 2, w2d.size * 2, m_img * cout * 4, 2 * cout * 4),
    )(x_bf16, w2d)

    # Tiny cross-tile reduction + BN math (biased batch variance, eps=1e-5,
    # exactly PyTorch's train-mode normalization over N*Ho*Wo positions).
    count = float(n * ho * wo)
    total = jnp.sum(stats, axis=0)                              # (2, Cout)
    mean = total[0] / count
    var = jnp.maximum(total[1] / count - mean * mean, 0.0)
    scale = gamma * jax.lax.rsqrt(var + BN_EPS)
    shift = beta - mean * scale

    # Pass 2: normalize + ReLU (pipelined, parallel); intermediates in bf16.
    out_flat = pl.pallas_call(
        _bn_relu_kernel,
        out_shape=jax.ShapeDtypeStruct((n, m_img, cout), out_dtype),
        grid=(n,),
        in_specs=[pl.BlockSpec((None, m_img, cout), lambda i: (i, 0, 0)),
                  pl.BlockSpec((1, cout), lambda i: (0, 0)),
                  pl.BlockSpec((1, cout), lambda i: (0, 0))],
        out_specs=pl.BlockSpec((None, m_img, cout), lambda i: (i, 0, 0)),
        compiler_params=_compiler_params(
            m_img * cout * 4, 2 * cout * 4,
            m_img * cout * jnp.dtype(out_dtype).itemsize),
    )(conv_out,
      scale.reshape(1, cout).astype(jnp.float32),
      shift.reshape(1, cout).astype(jnp.float32))

    return out_flat.reshape(n, hh, wh, cout)[:, :ho, :wo, :]


def maxpool_3x3_s2(x, layout=None):
    """MaxPool2d((3,3), stride=(2,2), padding=0).  x: (N, H, W, C)."""
    if layout is None:
        layout = _per_image_layout(x, 3, 3, 2, "valid")
    x_flat, tap_offsets, hh, wh, ho, wo = layout
    n, r_rows, c = x_flat.shape
    m_img = hh * wh
    itemsize = x_flat.dtype.itemsize

    out = pl.pallas_call(
        functools.partial(_maxpool_kernel, tap_offsets=tap_offsets,
                          m_img=m_img),
        out_shape=jax.ShapeDtypeStruct((n, m_img, c), x_flat.dtype),
        grid=(n,),
        in_specs=[pl.BlockSpec((None, r_rows, c), lambda i: (i, 0, 0))],
        out_specs=pl.BlockSpec((None, m_img, c), lambda i: (i, 0, 0)),
        compiler_params=_compiler_params(
            r_rows * c * itemsize, m_img * c * itemsize),
    )(x_flat)
    return out.reshape(n, hh, wh, c)[:, :ho, :wo, :]


# ----------------------------- InceptionB module ----------------------------


def make_conv_bn_params(key, cin, cout, kh, kw):
    # No conv bias: it is cancelled exactly by train-mode BatchNorm.
    k1, k2, k3 = jax.random.split(key, 3)
    w = 0.1 * jax.random.normal(k1, (kh, kw, cin, cout), jnp.float32)
    gamma = 1.0 + 0.1 * jax.random.normal(k2, (cout,), jnp.float32)
    beta = 0.1 * jax.random.normal(k3, (cout,), jnp.float32)
    return (w, gamma, beta)


def make_inception_b_params(key, in_channels):
    ks = jax.random.split(key, 4)
    return {
        "b3": make_conv_bn_params(ks[0], in_channels, 384, 3, 3),
        "b13_1": make_conv_bn_params(ks[1], in_channels, 64, 1, 1),
        "b13_2": make_conv_bn_params(ks[2], 64, 96, 3, 3),
        "b13_3": make_conv_bn_params(ks[3], 96, 96, 3, 3),
    }


@jax.jit
def inception_b_forward(x_nchw, params):
    x = jnp.transpose(x_nchw, (0, 2, 3, 1)).astype(jnp.float32)  # NCHW -> NHWC

    # Shared stride-2 four-phase layout for the 3x3/s2 conv and the max-pool.
    s2_layout = _per_image_layout(x, 3, 3, 2, "valid")

    branch3x3 = conv_bn_relu(x, params["b3"], kernel_size=(3, 3), stride=2,
                             padding="valid", layout=s2_layout,
                             out_dtype=jnp.float32)

    # Branch 2: 1x1 -> 3x3 -> 3x3/s2.  Intermediates emitted as bf16.
    # NOTE: the 1x1 conv could additionally be fused into the following 3x3
    # kernel to keep the 64-channel intermediate in VMEM; kept separate here.
    b = conv_bn_relu(x, params["b13_1"], kernel_size=(1, 1), stride=1,
                     padding="same", out_dtype=jnp.bfloat16)
    b = conv_bn_relu(b, params["b13_2"], kernel_size=(3, 3), stride=1,
                     padding="same", out_dtype=jnp.bfloat16)
    branch1x1_3x3 = conv_bn_relu(b, params["b13_3"], kernel_size=(3, 3),
                                 stride=2, padding="valid",
                                 out_dtype=jnp.float32)

    branch_pool = maxpool_3x3_s2(x, layout=s2_layout)

    out = jnp.concatenate([branch3x3, branch1x1_3x3, branch_pool], axis=-1)
    return jnp.transpose(out, (0, 3, 1, 2))                      # NHWC -> NCHW


if __name__ == "__main__":
    key = jax.random.PRNGKey(0)
    k_x, k_p = jax.random.split(key)

    in_channels = 4
    x = jax.random.normal(k_x, (2, in_channels, 16, 16), jnp.float32)  # NCHW
    params = make_inception_b_params(k_p, in_channels)

    out = inception_b_forward(x, params)
    out = jax.block_until_ready(out)

    expected = (2, 384 + 96 + in_channels, 7, 7)
    assert out.shape == expected, (out.shape, expected)
    assert bool(jnp.all(jnp.isfinite(out)))
    print("KERNEL_OK")
</pallas_src>

<mosaic_0001>
module attributes {stable_mosaic.version = 11 : i64} {
  func.func @_conv_stats_kernel(%arg0: i32, %arg1: memref<1x256x4xbf16, #tpu.memory_space<vmem>>, %arg2: memref<4x64xbf16, #tpu.memory_space<vmem>>, %arg3: memref<1x256x64xf32, #tpu.memory_space<vmem>>, %arg4: memref<1x2x64xf32, #tpu.memory_space<vmem>>) attributes {dimension_semantics = [#tpu.dimension_semantics<parallel>], iteration_bounds = array<i64: 2>, scalar_prefetch = 0 : i64, scratch_operands = 0 : i64, tpu.core_type = #tpu.core_type<tc>, window_params = [{transform_indices = @transform_0, window_bounds = array<i64: 1, 256, 4>}, {pipeline_mode = #tpu.pipeline_mode<synchronous>, transform_indices = @transform_1, window_bounds = array<i64: 4, 64>}, {transform_indices = @transform_2, window_bounds = array<i64: 1, 256, 64>}, {transform_indices = @transform_3, window_bounds = array<i64: 1, 2, 64>}]} {
    %c0 = arith.constant 0 : index
    %c0_0 = arith.constant 0 : index
    %c0_1 = arith.constant 0 : index
    %0 = vector.load %arg1[%c0, %c0_0, %c0_1] : memref<1x256x4xbf16, #tpu.memory_space<vmem>>, vector<1x256x4xbf16>
    %1 = vector.shape_cast %0 : vector<1x256x4xbf16> to vector<256x4xbf16>
    %c0_2 = arith.constant 0 : index
    %c0_3 = arith.constant 0 : index
    %2 = vector.load %arg2[%c0_2, %c0_3] : memref<4x64xbf16, #tpu.memory_space<vmem>>, vector<4x64xbf16>
    %cst = arith.constant dense<0.000000e+00> : vector<256x64xf32>
    %3 = tpu.matmul %1, %2, %cst {dimension_numbers = #tpu.dot_dimension_numbers<[1], [0], [0], [1], [0, 0, 1, 1], [], []>} : vector<256x4xbf16>, vector<4x64xbf16>, vector<256x64xf32> -> vector<256x64xf32>
    %c0_4 = arith.constant 0 : index
    %c0_5 = arith.constant 0 : index
    %c0_6 = arith.constant 0 : index
    %4 = vector.load %arg3[%c0_4, %c0_5, %c0_6] : memref<1x256x64xf32, #tpu.memory_space<vmem>>, vector<1x256x64xf32>
    %5 = vector.shape_cast %4 : vector<1x256x64xf32> to vector<256x64xf32>
    %6 = vector.shape_cast %3 : vector<256x64xf32> to vector<1x256x64xf32>
    tpu.vector_store %arg3[%c0_4, %c0_5, %c0_6], %6 {strides = array<i32>} : memref<1x256x64xf32, #tpu.memory_space<vmem>>, vector<1x256x64xf32>,
    %cst_7 = arith.constant dense<0.000000e+00> : vector<64xf32>
    %7 = vector.multi_reduction <add>, %3, %cst_7 [0] : vector<256x64xf32> to vector<64xf32>
    %8 = vector.shape_cast %7 : vector<64xf32> to vector<1x64xf32>
    %9 = arith.mulf %3, %3 : vector<256x64xf32>
    %cst_8 = arith.constant dense<0.000000e+00> : vector<64xf32>
    %10 = vector.multi_reduction <add>, %9, %cst_8 [0] : vector<256x64xf32> to vector<64xf32>
    %11 = vector.shape_cast %10 : vector<64xf32> to vector<1x64xf32>
    %c0_9 = arith.constant 0 : index
    %c0_10 = arith.constant 0 : index
    %c0_11 = arith.constant 0 : index
    %12 = vector.load %arg4[%c0_9, %c0_10, %c0_11] : memref<1x2x64xf32, #tpu.memory_space<vmem>>, vector<1x1x64xf32>
    %13 = vector.shape_cast %12 : vector<1x1x64xf32> to vector<1x64xf32>
    %14 = vector.shape_cast %8 : vector<1x64xf32> to vector<1x1x64xf32>
    tpu.vector_store %arg4[%c0_9, %c0_10, %c0_11], %14 {strides = array<i32>} : memref<1x2x64xf32, #tpu.memory_space<vmem>>, vector<1x1x64xf32>,
    %c0_12 = arith.constant 0 : index
    %c1 = arith.constant 1 : index
    %c0_13 = arith.constant 0 : index
    %15 = vector.load %arg4[%c0_12, %c1, %c0_13] : memref<1x2x64xf32, #tpu.memory_space<vmem>>, vector<1x1x64xf32>
    %16 = vector.shape_cast %15 : vector<1x1x64xf32> to vector<1x64xf32>
    %17 = vector.shape_cast %11 : vector<1x64xf32> to vector<1x1x64xf32>
    tpu.vector_store %arg4[%c0_12, %c1, %c0_13], %17 {strides = array<i32>} : memref<1x2x64xf32, #tpu.memory_space<vmem>>, vector<1x1x64xf32>,
    return
  }
  func.func @transform_0(%arg0: i32) -> (i32, i32, i32) {
    %c0_i32 = arith.constant 0 : i32
    %c0_i32_0 = arith.constant 0 : i32
    %c0_i32_1 = arith.constant 0 : i32
    return %arg0, %c0_i32, %c0_i32_0 : i32, i32, i32
  }
  func.func @transform_1(%arg0: i32) -> (i32, i32) {
    %c0_i32 = arith.constant 0 : i32
    %c0_i32_0 = arith.constant 0 : i32
    %c0_i32_1 = arith.constant 0 : i32
    return %c0_i32, %c0_i32_0 : i32, i32
  }
  func.func @transform_2(%arg0: i32) -> (i32, i32, i32) {
    %c0_i32 = arith.constant 0 : i32
    %c0_i32_0 = arith.constant 0 : i32
    %c0_i32_1 = arith.constant 0 : i32
    return %arg0, %c0_i32, %c0_i32_0 : i32, i32, i32
  }
  func.func @transform_3(%arg0: i32) -> (i32, i32, i32) {
    %c0_i32 = arith.constant 0 : i32
    %c0_i32_0 = arith.constant 0 : i32
    %c0_i32_1 = arith.constant 0 : i32
    return %arg0, %c0_i32, %c0_i32_0 : i32, i32, i32
  }
}

module attributes {stable_mosaic.version = 11 : i64} {
  func.func @_bn_relu_kernel(%arg0: i32, %arg1: memref<1x256x64xf32, #tpu.memory_space<vmem>>, %arg2: memref<1x64xf32, #tpu.memory_space<vmem>>, %arg3: memref<1x64xf32, #tpu.memory_space<vmem>>, %arg4: memref<1x256x64xbf16, #tpu.memory_space<vmem>>) attributes {dimension_semantics = [#tpu.dimension_semantics<parallel>], iteration_bounds = array<i64: 2>, scalar_prefetch = 0 : i64, scratch_operands = 0 : i64, tpu.core_type = #tpu.core_type<tc>, window_params = [{transform_indices = @transform_0, window_bounds = array<i64: 1, 256, 64>}, {pipeline_mode = #tpu.pipeline_mode<synchronous>, transform_indices = @transform_1, window_bounds = array<i64: 1, 64>}, {pipeline_mode = #tpu.pipeline_mode<synchronous>, transform_indices = @transform_2, window_bounds = array<i64: 1, 64>}, {transform_indices = @transform_3, window_bounds = array<i64: 1, 256, 64>}]} {
    %c0 = arith.constant 0 : index
    %c0_0 = arith.constant 0 : index
    %c0_1 = arith.constant 0 : index
    %0 = vector.load %arg1[%c0, %c0_0, %c0_1] : memref<1x256x64xf32, #tpu.memory_space<vmem>>, vector<1x256x64xf32>
    %1 = vector.shape_cast %0 : vector<1x256x64xf32> to vector<256x64xf32>
    %c0_2 = arith.constant 0 : index
    %c0_3 = arith.constant 0 : index
    %2 = vector.load %arg2[%c0_2, %c0_3] : memref<1x64xf32, #tpu.memory_space<vmem>>, vector<1x64xf32>
    %3 = vector.broadcast %2 : vector<1x64xf32> to vector<256x64xf32>
    %4 = arith.mulf %1, %3 : vector<256x64xf32>
    %c0_4 = arith.constant 0 : index
    %c0_5 = arith.constant 0 : index
    %5 = vector.load %arg3[%c0_4, %c0_5] : memref<1x64xf32, #tpu.memory_space<vmem>>, vector<1x64xf32>
    %6 = vector.broadcast %5 : vector<1x64xf32> to vector<256x64xf32>
    %7 = arith.addf %4, %6 : vector<256x64xf32>
    %cst = arith.constant 0.000000e+00 : f32
    %8 = vector.broadcast %cst : f32 to vector<256x64xf32>
    %9 = arith.maximumf %7, %8 : vector<256x64xf32>
    %10 = arith.truncf %9 : vector<256x64xf32> to vector<256x64xbf16>
    %c0_6 = arith.constant 0 : index
    %c0_7 = arith.constant 0 : index
    %c0_8 = arith.constant 0 : index
    %11 = vector.load %arg4[%c0_6, %c0_7, %c0_8] : memref<1x256x64xbf16, #tpu.memory_space<vmem>>, vector<1x256x64xbf16>
    %12 = vector.shape_cast %11 : vector<1x256x64xbf16> to vector<256x64xbf16>
    %13 = vector.shape_cast %10 : vector<256x64xbf16> to vector<1x256x64xbf16>
    tpu.vector_store %arg4[%c0_6, %c0_7, %c0_8], %13 {strides = array<i32>} : memref<1x256x64xbf16, #tpu.memory_space<vmem>>, vector<1x256x64xbf16>,
    return
  }
  func.func @transform_0(%arg0: i32) -> (i32, i32, i32) {
    %c0_i32 = arith.constant 0 : i32
    %c0_i32_0 = arith.constant 0 : i32
    %c0_i32_1 = arith.constant 0 : i32
    return %arg0, %c0_i32, %c0_i32_0 : i32, i32, i32
  }
  func.func @transform_1(%arg0: i32) -> (i32, i32) {
    %c0_i32 = arith.constant 0 : i32
    %c0_i32_0 = arith.constant 0 : i32
    %c0_i32_1 = arith.constant 0 : i32
    return %c0_i32, %c0_i32_0 : i32, i32
  }
  func.func @transform_2(%arg0: i32) -> (i32, i32) {
    %c0_i32 = arith.constant 0 : i32
    %c0_i32_0 = arith.constant 0 : i32
    %c0_i32_1 = arith.constant 0 : i32
    return %c0_i32, %c0_i32_0 : i32, i32
  }
  func.func @transform_3(%arg0: i32) -> (i32, i32, i32) {
    %c0_i32 = arith.constant 0 : i32
    %c0_i32_0 = arith.constant 0 : i32
    %c0_i32_1 = arith.constant 0 : i32
    return %arg0, %c0_i32, %c0_i32_0 : i32, i32, i32
  }
}

module attributes {stable_mosaic.version = 11 : i64} {
  func.func @_conv_stats_kernel(%arg0: i32, %arg1: memref<1x488x64xbf16, #tpu.memory_space<vmem>>, %arg2: memref<576x96xbf16, #tpu.memory_space<vmem>>, %arg3: memref<1x432x96xf32, #tpu.memory_space<vmem>>, %arg4: memref<1x2x96xf32, #tpu.memory_space<vmem>>) attributes {dimension_semantics = [#tpu.dimension_semantics<parallel>], iteration_bounds = array<i64: 2>, scalar_prefetch = 0 : i64, scratch_operands = 0 : i64, tpu.core_type = #tpu.core_type<tc>, window_params = [{transform_indices = @transform_0, window_bounds = array<i64: 1, 488, 64>}, {pipeline_mode = #tpu.pipeline_mode<synchronous>, transform_indices = @transform_1, window_bounds = array<i64: 576, 96>}, {transform_indices = @transform_2, window_bounds = array<i64: 1, 432, 96>}, {transform_indices = @transform_3, window_bounds = array<i64: 1, 2, 96>}]} {
    %c0 = arith.constant 0 : index
    %c0_0 = arith.constant 0 : index
    %c0_1 = arith.constant 0 : index
    %0 = vector.load %arg1[%c0, %c0_0, %c0_1] : memref<1x488x64xbf16, #tpu.memory_space<vmem>>, vector<1x432x64xbf16>
    %1 = vector.shape_cast %0 : vector<1x432x64xbf16> to vector<432x64xbf16>
    %c0_2 = arith.constant 0 : index
    %c1 = arith.constant 1 : index
    %c0_3 = arith.constant 0 : index
    %2 = vector.load %arg1[%c0_2, %c1, %c0_3] : memref<1x488x64xbf16, #tpu.memory_space<vmem>>, vector<1x432x64xbf16>
    %3 = vector.shape_cast %2 : vector<1x432x64xbf16> to vector<432x64xbf16>
    %c0_4 = arith.constant 0 : index
    %c2 = arith.constant 2 : index
    %c0_5 = arith.constant 0 : index
    %4 = vector.load %arg1[%c0_4, %c2, %c0_5] : memref<1x488x64xbf16, #tpu.memory_space<vmem>>, vector<1x432x64xbf16>
    %5 = vector.shape_cast %4 : vector<1x432x64xbf16> to vector<432x64xbf16>
    %c0_6 = arith.constant 0 : index
    %c24 = arith.constant 24 : index
    %c0_7 = arith.constant 0 : index
    %6 = vector.load %arg1[%c0_6, %c24, %c0_7] : memref<1x488x64xbf16, #tpu.memory_space<vmem>>, vector<1x432x64xbf16>
    %7 = vector.shape_cast %6 : vector<1x432x64xbf16> to vector<432x64xbf16>
    %c0_8 = arith.constant 0 : index
    %c25 = arith.constant 25 : index
    %c0_9 = arith.constant 0 : index
    %8 = vector.load %arg1[%c0_8, %c25, %c0_9] : memref<1x488x64xbf16, #tpu.memory_space<vmem>>, vector<1x432x64xbf16>
    %9 = vector.shape_cast %8 : vector<1x432x64xbf16> to vector<432x64xbf16>
    %c0_10 = arith.constant 0 : index
    %c26 = arith.constant 26 : index
    %c0_11 = arith.constant 0 : index
    %10 = vector.load %arg1[%c0_10, %c26, %c0_11] : memref<1x488x64xbf16, #tpu.memory_space<vmem>>, vector<1x432x64xbf16>
    %11 = vector.shape_cast %10 : vector<1x432x64xbf16> to vector<432x64xbf16>
    %c0_12 = arith.constant 0 : index
    %c48 = arith.constant 48 : index
    %c0_13 = arith.constant 0 : index
    %12 = vector.load %arg1[%c0_12, %c48, %c0_13] : memref<1x488x64xbf16, #tpu.memory_space<vmem>>, vector<1x432x64xbf16>
    %13 = vector.shape_cast %12 : vector<1x432x64xbf16> to vector<432x64xbf16>
    %c0_14 = arith.constant 0 : index
    %c49 = arith.constant 49 : index
    %c0_15 = arith.constant 0 : index
    %14 = vector.load %arg1[%c0_14, %c49, %c0_15] : memref<1x488x64xbf16, #tpu.memory_space<vmem>>, vector<1x432x64xbf16>
    %15 = vector.shape_cast %14 : vector<1x432x64xbf16> to vector<432x64xbf16>
    %c0_16 = arith.constant 0 : index
    %c50 = arith.constant 50 : index
    %c0_17 = arith.constant 0 : index
    %16 = vector.load %arg1[%c0_16, %c50, %c0_17] : memref<1x488x64xbf16, #tpu.memory_space<vmem>>, vector<1x432x64xbf16>
    %17 = vector.shape_cast %16 : vector<1x432x64xbf16> to vector<432x64xbf16>
    %18 = tpu.concatenate %1, %3, %5, %7, %9, %11, %13, %15, %17 in 1 : vector<432x64xbf16>, vector<432x64xbf16>, vector<432x64xbf16>, vector<432x64xbf16>, vector<432x64xbf16>, vector<432x64xbf16>, vector<432x64xbf16>, vector<432x64xbf16>, vector<432x64xbf16> -> vector<432x576xbf16>
    %c0_18 = arith.constant 0 : index
    %c0_19 = arith.constant 0 : index
    %19 = vector.load %arg2[%c0_18, %c0_19] : memref<576x96xbf16, #tpu.memory_space<vmem>>, vector<576x96xbf16>
    %cst = arith.constant dense<0.000000e+00> : vector<432x96xf32>
    %20 = tpu.matmul %18, %19, %cst {dimension_numbers = #tpu.dot_dimension_numbers<[1], [0], [0], [1], [0, 0, 1, 1], [], []>} : vector<432x576xbf16>, vector<576x96xbf16>, vector<432x96xf32> -> vector<432x96xf32>
    %c0_20 = arith.constant 0 : index
    %c0_21 = arith.constant 0 : index
    %c0_22 = arith.constant 0 : index
    %21 = vector.load %arg3[%c0_20, %c0_21, %c0_22] : memref<1x432x96xf32, #tpu.memory_space<vmem>>, vector<1x432x96xf32>
    %22 = vector.shape_cast %21 : vector<1x432x96xf32> to vector<432x96xf32>
    %23 = vector.shape_cast %20 : vector<432x96xf32> to vector<1x432x96xf32>
    tpu.vector_store %arg3[%c0_20, %c0_21, %c0_22], %23 {strides = array<i32>} : memref<1x432x96xf32, #tpu.memory_space<vmem>>, vector<1x432x96xf32>,
    %cst_23 = arith.constant 0.000000e+00 : f32
    %24 = vector.broadcast %cst_23 : f32 to vector<1x96xf32>
    %cst_24 = arith.constant 0.000000e+00 : f32
    %25 = vector.broadcast %cst_24 : f32 to vector<1x96xf32>
    %26 = vector.extract_strided_slice %20 {offsets = [0, 0], sizes = [16, 96], strides = [1, 1]} : vector<432x96xf32> to vector<16x96xf32>
    %cst_25 = arith.constant dense<0.000000e+00> : vector<96xf32>
    %27 = vector.multi_reduction <add>, %26, %cst_25 [0] : vector<16x96xf32> to vector<96xf32>
    %28 = vector.shape_cast %27 : vector<96xf32> to vector<1x96xf32>
    %29 = arith.addf %24, %28 : vector<1x96xf32>
    %30 = arith.mulf %26, %26 : vector<16x96xf32>
    %cst_26 = arith.constant dense<0.000000e+00> : vector<96xf32>
    %31 = vector.multi_reduction <add>, %30, %cst_26 [0] : vector<16x96xf32> to vector<96xf32>
    %32 = vector.shape_cast %31 : vector<96xf32> to vector<1x96xf32>
    %33 = arith.addf %25, %32 : vector<1x96xf32>
    %34 = vector.extract_strided_slice %20 {offsets = [24, 0], sizes = [16, 96], strides = [1, 1]} : vector<432x96xf32> to vector<16x96xf32>
    %cst_27 = arith.constant dense<0.000000e+00> : vector<96xf32>
    %35 = vector.multi_reduction <add>, %34, %cst_27 [0] : vector<16x96xf32> to vector<96xf32>
    %36 = vector.shape_cast %35 : vector<96xf32> to vector<1x96xf32>
    %37 = arith.addf %29, %36 : vector<1x96xf32>
    %38 = arith.mulf %34, %34 : vector<16x96xf32>
    %cst_28 = arith.constant dense<0.000000e+00> : vector<96xf32>
    %39 = vector.multi_reduction <add>, %38, %cst_28 [0] : vector<16x96xf32> to vector<96xf32>
    %40 = vector.shape_cast %39 : vector<96xf32> to vector<1x96xf32>
    %41 = arith.addf %33, %40 : vector<1x96xf32>
    %42 = vector.extract_strided_slice %20 {offsets = [48, 0], sizes = [16, 96], strides = [1, 1]} : vector<432x96xf32> to vector<16x96xf32>
    %cst_29 = arith.constant dense<0.000000e+00> : vector<96xf32>
    %43 = vector.multi_reduction <add>, %42, %cst_29 [0] : vector<16x96xf32> to vector<96xf32>
    %44 = vector.shape_cast %43 : vector<96xf32> to vector<1x96xf32>
    %45 = arith.addf %37, %44 : vector<1x96xf32>
    %46 = arith.mulf %42, %42 : vector<16x96xf32>
    %cst_30 = arith.constant dense<0.000000e+00> : vector<96xf32>
    %47 = vector.multi_reduction <add>, %46, %cst_30 [0] : vector<16x96xf32> to vector<96xf32>
    %48 = vector.shape_cast %47 : vector<96xf32> to vector<1x96xf32>
    %49 = arith.addf %41, %48 : vector<1x96xf32>
    %50 = vector.extract_strided_slice %20 {offsets = [72, 0], sizes = [16, 96], strides = [1, 1]} : vector<432x96xf32> to vector<16x96xf32>
    %cst_31 = arith.constant dense<0.000000e+00> : vector<96xf32>
    %51 = vector.multi_reduction <add>, %50, %cst_31 [0] : vector<16x96xf32> to vector<96xf32>
    %52 = vector.shape_cast %51 : vector<96xf32> to vector<1x96xf32>
    %53 = arith.addf %45, %52 : vector<1x96xf32>
    %54 = arith.mulf %50, %50 : vector<16x96xf32>
    %cst_32 = arith.constant dense<0.000000e+00> : vector<96xf32>
    %55 = vector.multi_reduction <add>, %54, %cst_32 [0] : vector<16x96xf32> to vector<96xf32>
    %56 = vector.shape_cast %55 : vector<96xf32> to vector<1x96xf32>
    %57 = arith.addf %49, %56 : vector<1x96xf32>
    %58 = vector.extract_strided_slice %20 {offsets = [96, 0], sizes = [16, 96], strides = [1, 1]} : vector<432x96xf32> to vector<16x96xf32>
    %cst_33 = arith.constant dense<0.000000e+00> : vector<96xf32>
    %59 = vector.multi_reduction <add>, %58, %cst_33 [0] : vector<16x96xf32> to vector<96xf32>
    %60 = vector.shape_cast %59 : vector<96xf32> to vector<1x96xf32>
    %61 = arith.addf %53, %60 : vector<1x96xf32>
    %62 = arith.mulf %58, %58 : vector<16x96xf32>
    %cst_34 = arith.constant dense<0.000000e+00> : vector<96xf32>
    %63 = vector.multi_reduction <add>, %62, %cst_34 [0] : vector<16x96xf32> to vector<96xf32>
    %64 = vector.shape_cast %63 : vector<96xf32> to vector<1x96xf32>
    %65 = arith.addf %57, %64 : vector<1x96xf32>
    %66 = vector.extract_strided_slice %20 {offsets = [120, 0], sizes = [16, 96], strides = [1, 1]} : vector<432x96xf32> to vector<16x96xf32>
    %cst_35 = arith.constant dense<0.000000e+00> : vector<96xf32>
    %67 = vector.multi_reduction <add>, %66, %cst_35 [0] : vector<16x96xf32> to vector<96xf32>
    %68 = vector.shape_cast %67 : vector<96xf32> to vector<1x96xf32>
    %69 = arith.addf %61, %68 : vector<1x96xf32>
    %70 = arith.mulf %66, %66 : vector<16x96xf32>
    %cst_36 = arith.constant dense<0.000000e+00> : vector<96xf32>
    %71 = vector.multi_reduction <add>, %70, %cst_36 [0] : vector<16x96xf32> to vector<96xf32>
    %72 = vector.shape_cast %71 : vector<96xf32> to vector<1x96xf32>
    %73 = arith.addf %65, %72 : vector<1x96xf32>
    %74 = vector.extract_strided_slice %20 {offsets = [144, 0], sizes = [16, 96], strides = [1, 1]} : vector<432x96xf32> to vector<16x96xf32>
    %cst_37 = arith.constant dense<0.000000e+00> : vector<96xf32>
    %75 = vector.multi_reduction <add>, %74, %cst_37 [0] : vector<16x96xf32> to vector<96xf32>
    %76 = vector.shape_cast %75 : vector<96xf32> to vector<1x96xf32>
    %77 = arith.addf %69, %76 : vector<1x96xf32>
    %78 = arith.mulf %74, %74 : vector<16x96xf32>
    %cst_38 = arith.constant dense<0.000000e+00> : vector<96xf32>
    %79 = vector.multi_reduction <add>, %78, %cst_38 [0] : vector<16x96xf32> to vector<96xf32>
    %80 = vector.shape_cast %79 : vector<96xf32> to vector<1x96xf32>
    %81 = arith.addf %73, %80 : vector<1x96xf32>
    %82 = vector.extract_strided_slice %20 {offsets = [168, 0], sizes = [16, 96], strides = [1, 1]} : vector<432x96xf32> to vector<16x96xf32>
    %cst_39 = arith.constant dense<0.000000e+00> : vector<96xf32>
    %83 = vector.multi_reduction <add>, %82, %cst_39 [0] : vector<16x96xf32> to vector<96xf32>
    %84 = vector.shape_cast %83 : vector<96xf32> to vector<1x96xf32>
    %85 = arith.addf %77, %84 : vector<1x96xf32>
    %86 = arith.mulf %82, %82 : vector<16x96xf32>
    %cst_40 = arith.constant dense<0.000000e+00> : vector<96xf32>
    %87 = vector.multi_reduction <add>, %86, %cst_40 [0] : vector<16x96xf32> to vector<96xf32>
    %88 = vector.shape_cast %87 : vector<96xf32> to vector<1x96xf32>
    %89 = arith.addf %81, %88 : vector<1x96xf32>
    %90 = vector.extract_strided_slice %20 {offsets = [192, 0], sizes = [16, 96], strides = [1, 1]} : vector<432x96xf32> to vector<16x96xf32>
    %cst_41 = arith.constant dense<0.000000e+00> : vector<96xf32>
    %91 = vector.multi_reduction <add>, %90, %cst_41 [0] : vector<16x96xf32> to vector<96xf32>
    %92 = vector.shape_cast %91 : vector<96xf32> to vector<1x96xf32>
    %93 = arith.addf %85, %92 : vector<1x96xf32>
    %94 = arith.mulf %90, %90 : vector<16x96xf32>
    %cst_42 = arith.constant dense<0.000000e+00> : vector<96xf32>
    %95 = vector.multi_reduction <add>, %94, %cst_42 [0] : vector<16x96xf32> to vector<96xf32>
    %96 = vector.shape_cast %95 : vector<96xf32> to vector<1x96xf32>
    %97 = arith.addf %89, %96 : vector<1x96xf32>
    %98 = vector.extract_strided_slice %20 {offsets = [216, 0], sizes = [16, 96], strides = [1, 1]} : vector<432x96xf32> to vector<16x96xf32>
    %cst_43 = arith.constant dense<0.000000e+00> : vector<96xf32>
    %99 = vector.multi_reduction <add>, %98, %cst_43 [0] : vector<16x96xf32> to vector<96xf32>
    %100 = vector.shape_cast %99 : vector<96xf32> to vector<1x96xf32>
    %101 = arith.addf %93, %100 : vector<1x96xf32>
    %102 = arith.mulf %98, %98 : vector<16x96xf32>
    %cst_44 = arith.constant dense<0.000000e+00> : vector<96xf32>
    %103 = vector.multi_reduction <add>, %102, %cst_44 [0] : vector<16x96xf32> to vector<96xf32>
    %104 = vector.shape_cast %103 : vector<96xf32> to vector<1x96xf32>
    %105 = arith.addf %97, %104 : vector<1x96xf32>
    %106 = vector.extract_strided_slice %20 {offsets = [240, 0], sizes = [16, 96], strides = [1, 1]} : vector<432x96xf32> to vector<16x96xf32>
    %cst_45 = arith.constant dense<0.000000e+00> : vector<96xf32>
    %107 = vector.multi_reduction <add>, %106, %cst_45 [0] : vector<16x96xf32> to vector<96xf32>
    %108 = vector.shape_cast %107 : vector<96xf32> to vector<1x96xf32>
    %109 = arith.addf %101, %108 : vector<1x96xf32>
    %110 = arith.mulf %106, %106 : vector<16x96xf32>
    %cst_46 = arith.constant dense<0.000000e+00> : vector<96xf32>
    %111 = vector.multi_reduction <add>, %110, %cst_46 [0] : vector<16x96xf32> to vector<96xf32>
    %112 = vector.shape_cast %111 : vector<96xf32> to vector<1x96xf32>
    %113 = arith.addf %105, %112 : vector<1x96xf32>
    %114 = vector.extract_strided_slice %20 {offsets = [264, 0], sizes = [16, 96], strides = [1, 1]} : vector<432x96xf32> to vector<16x96xf32>
    %cst_47 = arith.constant dense<0.000000e+00> : vector<96xf32>
    %115 = vector.multi_reduction <add>, %114, %cst_47 [0] : vector<16x96xf32> to vector<96xf32>
    %116 = vector.shape_cast %115 : vector<96xf32> to vector<1x96xf32>
    %117 = arith.addf %109, %116 : vector<1x96xf32>
    %118 = arith.mulf %114, %114 : vector<16x96xf32>
    %cst_48 = arith.constant dense<0.000000e+00> : vector<96xf32>
    %119 = vector.multi_reduction <add>, %118, %cst_48 [0] : vector<16x96xf32> to vector<96xf32>
    %120 = vector.shape_cast %119 : vector<96xf32> to vector<1x96xf32>
    %121 = arith.addf %113, %120 : vector<1x96xf32>
    %122 = vector.extract_strided_slice %20 {offsets = [288, 0], sizes = [16, 96], strides = [1, 1]} : vector<432x96xf32> to vector<16x96xf32>
    %cst_49 = arith.constant dense<0.000000e+00> : vector<96xf32>
    %123 = vector.multi_reduction <add>, %122, %cst_49 [0] : vector<16x96xf32> to vector<96xf32>
    %124 = vector.shape_cast %123 : vector<96xf32> to vector<1x96xf32>
    %125 = arith.addf %117, %124 : vector<1x96xf32>
    %126 = arith.mulf %122, %122 : vector<16x96xf32>
    %cst_50 = arith.constant dense<0.000000e+00> : vector<96xf32>
    %127 = vector.multi_reduction <add>, %126, %cst_50 [0] : vector<16x96xf32> to vector<96xf32>
    %128 = vector.shape_cast %127 : vector<96xf32> to vector<1x96xf32>
    %129 = arith.addf %121, %128 : vector<1x96xf32>
    %130 = vector.extract_strided_slice %20 {offsets = [312, 0], sizes = [16, 96], strides = [1, 1]} : vector<432x96xf32> to vector<16x96xf32>
    %cst_51 = arith.constant dense<0.000000e+00> : vector<96xf32>
    %131 = vector.multi_reduction <add>, %130, %cst_51 [0] : vector<16x96xf32> to vector<96xf32>
    %132 = vector.shape_cast %131 : vector<96xf32> to vector<1x96xf32>
    %133 = arith.addf %125, %132 : vector<1x96xf32>
    %134 = arith.mulf %130, %130 : vector<16x96xf32>
    %cst_52 = arith.constant dense<0.000000e+00> : vector<96xf32>
    %135 = vector.multi_reduction <add>, %134, %cst_52 [0] : vector<16x96xf32> to vector<96xf32>
    %136 = vector.shape_cast %135 : vector<96xf32> to vector<1x96xf32>
    %137 = arith.addf %129, %136 : vector<1x96xf32>
    %138 = vector.extract_strided_slice %20 {offsets = [336, 0], sizes = [16, 96], strides = [1, 1]} : vector<432x96xf32> to vector<16x96xf32>
    %cst_53 = arith.constant dense<0.000000e+00> : vector<96xf32>
    %139 = vector.multi_reduction <add>, %138, %cst_53 [0] : vector<16x96xf32> to vector<96xf32>
    %140 = vector.shape_cast %139 : vector<96xf32> to vector<1x96xf32>
    %141 = arith.addf %133, %140 : vector<1x96xf32>
    %142 = arith.mulf %138, %138 : vector<16x96xf32>
    %cst_54 = arith.constant dense<0.000000e+00> : vector<96xf32>
    %143 = vector.multi_reduction <add>, %142, %cst_54 [0] : vector<16x96xf32> to vector<96xf32>
    %144 = vector.shape_cast %143 : vector<96xf32> to vector<1x96xf32>
    %145 = arith.addf %137, %144 : vector<1x96xf32>
    %146 = vector.extract_strided_slice %20 {offsets = [360, 0], sizes = [16, 96], strides = [1, 1]} : vector<432x96xf32> to vector<16x96xf32>
    %cst_55 = arith.constant dense<0.000000e+00> : vector<96xf32>
    %147 = vector.multi_reduction <add>, %146, %cst_55 [0] : vector<16x96xf32> to vector<96xf32>
    %148 = vector.shape_cast %147 : vector<96xf32> to vector<1x96xf32>
    %149 = arith.addf %141, %148 : vector<1x96xf32>
    %150 = arith.mulf %146, %146 : vector<16x96xf32>
    %cst_56 = arith.constant dense<0.000000e+00> : vector<96xf32>
    %151 = vector.multi_reduction <add>, %150, %cst_56 [0] : vector<16x96xf32> to vector<96xf32>
    %152 = vector.shape_cast %151 : vector<96xf32> to vector<1x96xf32>
    %153 = arith.addf %145, %152 : vector<1x96xf32>
    %c0_57 = arith.constant 0 : index
    %c0_58 = arith.constant 0 : index
    %c0_59 = arith.constant 0 : index
    %154 = vector.load %arg4[%c0_57, %c0_58, %c0_59] : memref<1x2x96xf32, #tpu.memory_space<vmem>>, vector<1x1x96xf32>
    %155 = vector.shape_cast %154 : vector<1x1x96xf32> to vector<1x96xf32>
    %156 = vector.shape_cast %149 : vector<1x96xf32> to vector<1x1x96xf32>
    tpu.vector_store %arg4[%c0_57, %c0_58, %c0_59], %156 {strides = array<i32>} : memref<1x2x96xf32, #tpu.memory_space<vmem>>, vector<1x1x96xf32>,
    %c0_60 = arith.constant 0 : index
    %c1_61 = arith.constant 1 : index
    %c0_62 = arith.constant 0 : index
    %157 = vector.load %arg4[%c0_60, %c1_61, %c0_62] : memref<1x2x96xf32, #tpu.memory_space<vmem>>, vector<1x1x96xf32>
    %158 = vector.shape_cast %157 : vector<1x1x96xf32> to vector<1x96xf32>
    %159 = vector.shape_cast %153 : vector<1x96xf32> to vector<1x1x96xf32>
    tpu.vector_store %arg4[%c0_60, %c1_61, %c0_62], %159 {strides = array<i32>} : memref<1x2x96xf32, #tpu.memory_space<vmem>>, vector<1x1x96xf32>,
    return
  }
  func.func @transform_0(%arg0: i32) -> (i32, i32, i32) {
    %c0_i32 = arith.constant 0 : i32
    %c0_i32_0 = arith.constant 0 : i32
    %c0_i32_1 = arith.constant 0 : i32
    return %arg0, %c0_i32, %c0_i32_0 : i32, i32, i32
  }
  func.func @transform_1(%arg0: i32) -> (i32, i32) {
    %c0_i32 = arith.constant 0 : i32
    %c0_i32_0 = arith.constant 0 : i32
    %c0_i32_1 = arith.constant 0 : i32
    return %c0_i32, %c0_i32_0 : i32, i32
  }
  func.func @transform_2(%arg0: i32) -> (i32, i32, i32) {
    %c0_i32 = arith.constant 0 : i32
    %c0_i32_0 = arith.constant 0 : i32
    %c0_i32_1 = arith.constant 0 : i32
    return %arg0, %c0_i32, %c0_i32_0 : i32, i32, i32
  }
  func.func @transform_3(%arg0: i32) -> (i32, i32, i32) {
    %c0_i32 = arith.constant 0 : i32
    %c0_i32_0 = arith.constant 0 : i32
    %c0_i32_1 = arith.constant 0 : i32
    return %arg0, %c0_i32, %c0_i32_0 : i32, i32, i32
  }
}

module attributes {stable_mosaic.version = 11 : i64} {
  func.func @_bn_relu_kernel(%arg0: i32, %arg1: memref<1x432x96xf32, #tpu.memory_space<vmem>>, %arg2: memref<1x96xf32, #tpu.memory_space<vmem>>, %arg3: memref<1x96xf32, #tpu.memory_space<vmem>>, %arg4: memref<1x432x96xbf16, #tpu.memory_space<vmem>>) attributes {dimension_semantics = [#tpu.dimension_semantics<parallel>], iteration_bounds = array<i64: 2>, scalar_prefetch = 0 : i64, scratch_operands = 0 : i64, tpu.core_type = #tpu.core_type<tc>, window_params = [{transform_indices = @transform_0, window_bounds = array<i64: 1, 432, 96>}, {pipeline_mode = #tpu.pipeline_mode<synchronous>, transform_indices = @transform_1, window_bounds = array<i64: 1, 96>}, {pipeline_mode = #tpu.pipeline_mode<synchronous>, transform_indices = @transform_2, window_bounds = array<i64: 1, 96>}, {transform_indices = @transform_3, window_bounds = array<i64: 1, 432, 96>}]} {
    %c0 = arith.constant 0 : index
    %c0_0 = arith.constant 0 : index
    %c0_1 = arith.constant 0 : index
    %0 = vector.load %arg1[%c0, %c0_0, %c0_1] : memref<1x432x96xf32, #tpu.memory_space<vmem>>, vector<1x432x96xf32>
    %1 = vector.shape_cast %0 : vector<1x432x96xf32> to vector<432x96xf32>
    %c0_2 = arith.constant 0 : index
    %c0_3 = arith.constant 0 : index
    %2 = vector.load %arg2[%c0_2, %c0_3] : memref<1x96xf32, #tpu.memory_space<vmem>>, vector<1x96xf32>
    %3 = vector.broadcast %2 : vector<1x96xf32> to vector<432x96xf32>
    %4 = arith.mulf %1, %3 : vector<432x96xf32>
    %c0_4 = arith.constant 0 : index
    %c0_5 = arith.constant 0 : index
    %5 = vector.load %arg3[%c0_4, %c0_5] : memref<1x96xf32, #tpu.memory_space<vmem>>, vector<1x96xf32>
    %6 = vector.broadcast %5 : vector<1x96xf32> to vector<432x96xf32>
    %7 = arith.addf %4, %6 : vector<432x96xf32>
    %cst = arith.constant 0.000000e+00 : f32
    %8 = vector.broadcast %cst : f32 to vector<432x96xf32>
    %9 = arith.maximumf %7, %8 : vector<432x96xf32>
    %10 = arith.truncf %9 : vector<432x96xf32> to vector<432x96xbf16>
    %c0_6 = arith.constant 0 : index
    %c0_7 = arith.constant 0 : index
    %c0_8 = arith.constant 0 : index
    %11 = vector.load %arg4[%c0_6, %c0_7, %c0_8] : memref<1x432x96xbf16, #tpu.memory_space<vmem>>, vector<1x432x96xbf16>
    %12 = vector.shape_cast %11 : vector<1x432x96xbf16> to vector<432x96xbf16>
    %13 = vector.shape_cast %10 : vector<432x96xbf16> to vector<1x432x96xbf16>
    tpu.vector_store %arg4[%c0_6, %c0_7, %c0_8], %13 {strides = array<i32>} : memref<1x432x96xbf16, #tpu.memory_space<vmem>>, vector<1x432x96xbf16>,
    return
  }
  func.func @transform_0(%arg0: i32) -> (i32, i32, i32) {
    %c0_i32 = arith.constant 0 : i32
    %c0_i32_0 = arith.constant 0 : i32
    %c0_i32_1 = arith.constant 0 : i32
    return %arg0, %c0_i32, %c0_i32_0 : i32, i32, i32
  }
  func.func @transform_1(%arg0: i32) -> (i32, i32) {
    %c0_i32 = arith.constant 0 : i32
    %c0_i32_0 = arith.constant 0 : i32
    %c0_i32_1 = arith.constant 0 : i32
    return %c0_i32, %c0_i32_0 : i32, i32
  }
  func.func @transform_2(%arg0: i32) -> (i32, i32) {
    %c0_i32 = arith.constant 0 : i32
    %c0_i32_0 = arith.constant 0 : i32
    %c0_i32_1 = arith.constant 0 : i32
    return %c0_i32, %c0_i32_0 : i32, i32
  }
  func.func @transform_3(%arg0: i32) -> (i32, i32, i32) {
    %c0_i32 = arith.constant 0 : i32
    %c0_i32_0 = arith.constant 0 : i32
    %c0_i32_1 = arith.constant 0 : i32
    return %arg0, %c0_i32, %c0_i32_0 : i32, i32, i32
  }
}

module attributes {stable_mosaic.version = 11 : i64} {
  func.func @_conv_stats_kernel(%arg0: i32, %arg1: memref<1x256x96xbf16, #tpu.memory_space<vmem>>, %arg2: memref<864x96xbf16, #tpu.memory_space<vmem>>, %arg3: memref<1x64x96xf32, #tpu.memory_space<vmem>>, %arg4: memref<1x2x96xf32, #tpu.memory_space<vmem>>) attributes {dimension_semantics = [#tpu.dimension_semantics<parallel>], iteration_bounds = array<i64: 2>, scalar_prefetch = 0 : i64, scratch_operands = 0 : i64, tpu.core_type = #tpu.core_type<tc>, window_params = [{transform_indices = @transform_0, window_bounds = array<i64: 1, 256, 96>}, {pipeline_mode = #tpu.pipeline_mode<synchronous>, transform_indices = @transform_1, window_bounds = array<i64: 864, 96>}, {transform_indices = @transform_2, window_bounds = array<i64: 1, 64, 96>}, {transform_indices = @transform_3, window_bounds = array<i64: 1, 2, 96>}]} {
    %c0 = arith.constant 0 : index
    %c0_0 = arith.constant 0 : index
    %c0_1 = arith.constant 0 : index
    %0 = vector.load %arg1[%c0, %c0_0, %c0_1] : memref<1x256x96xbf16, #tpu.memory_space<vmem>>, vector<1x64x96xbf16>
    %1 = vector.shape_cast %0 : vector<1x64x96xbf16> to vector<64x96xbf16>
    %c0_2 = arith.constant 0 : index
    %c64 = arith.constant 64 : index
    %c0_3 = arith.constant 0 : index
    %2 = vector.load %arg1[%c0_2, %c64, %c0_3] : memref<1x256x96xbf16, #tpu.memory_space<vmem>>, vector<1x64x96xbf16>
    %3 = vector.shape_cast %2 : vector<1x64x96xbf16> to vector<64x96xbf16>
    %c0_4 = arith.constant 0 : index
    %c1 = arith.constant 1 : index
    %c0_5 = arith.constant 0 : index
    %4 = vector.load %arg1[%c0_4, %c1, %c0_5] : memref<1x256x96xbf16, #tpu.memory_space<vmem>>, vector<1x64x96xbf16>
    %5 = vector.shape_cast %4 : vector<1x64x96xbf16> to vector<64x96xbf16>
    %c0_6 = arith.constant 0 : index
    %c128 = arith.constant 128 : index
    %c0_7 = arith.constant 0 : index
    %6 = vector.load %arg1[%c0_6, %c128, %c0_7] : memref<1x256x96xbf16, #tpu.memory_space<vmem>>, vector<1x64x96xbf16>
    %7 = vector.shape_cast %6 : vector<1x64x96xbf16> to vector<64x96xbf16>
    %c0_8 = arith.constant 0 : index
    %c192 = arith.constant 192 : index
    %c0_9 = arith.constant 0 : index
    %8 = vector.load %arg1[%c0_8, %c192, %c0_9] : memref<1x256x96xbf16, #tpu.memory_space<vmem>>, vector<1x64x96xbf16>
    %9 = vector.shape_cast %8 : vector<1x64x96xbf16> to vector<64x96xbf16>
    %c0_10 = arith.constant 0 : index
    %c129 = arith.constant 129 : index
    %c0_11 = arith.constant 0 : index
    %10 = vector.load %arg1[%c0_10, %c129, %c0_11] : memref<1x256x96xbf16, #tpu.memory_space<vmem>>, vector<1x64x96xbf16>
    %11 = vector.shape_cast %10 : vector<1x64x96xbf16> to vector<64x96xbf16>
    %c0_12 = arith.constant 0 : index
    %c8 = arith.constant 8 : index
    %c0_13 = arith.constant 0 : index
    %12 = vector.load %arg1[%c0_12, %c8, %c0_13] : memref<1x256x96xbf16, #tpu.memory_space<vmem>>, vector<1x64x96xbf16>
    %13 = vector.shape_cast %12 : vector<1x64x96xbf16> to vector<64x96xbf16>
    %c0_14 = arith.constant 0 : index
    %c72 = arith.constant 72 : index
    %c0_15 = arith.constant 0 : index
    %14 = vector.load %arg1[%c0_14, %c72, %c0_15] : memref<1x256x96xbf16, #tpu.memory_space<vmem>>, vector<1x64x96xbf16>
    %15 = vector.shape_cast %14 : vector<1x64x96xbf16> to vector<64x96xbf16>
    %c0_16 = arith.constant 0 : index
    %c9 = arith.constant 9 : index
    %c0_17 = arith.constant 0 : index
    %16 = vector.load %arg1[%c0_16, %c9, %c0_17] : memref<1x256x96xbf16, #tpu.memory_space<vmem>>, vector<1x64x96xbf16>
    %17 = vector.shape_cast %16 : vector<1x64x96xbf16> to vector<64x96xbf16>
    %18 = tpu.concatenate %1, %3, %5, %7, %9, %11, %13, %15, %17 in 1 : vector<64x96xbf16>, vector<64x96xbf16>, vector<64x96xbf16>, vector<64x96xbf16>, vector<64x96xbf16>, vector<64x96xbf16>, vector<64x96xbf16>, vector<64x96xbf16>, vector<64x96xbf16> -> vector<64x864xbf16>
    %c0_18 = arith.constant 0 : index
    %c0_19 = arith.constant 0 : index
    %19 = vector.load %arg2[%c0_18, %c0_19] : memref<864x96xbf16, #tpu.memory_space<vmem>>, vector<864x96xbf16>
    %cst = arith.constant dense<0.000000e+00> : vector<64x96xf32>
    %20 = tpu.matmul %18, %19, %cst {dimension_numbers = #tpu.dot_dimension_numbers<[1], [0], [0], [1], [0, 0, 1, 1], [], []>} : vector<64x864xbf16>, vector<864x96xbf16>, vector<64x96xf32> -> vector<64x96xf32>
    %c0_20 = arith.constant 0 : index
    %c0_21 = arith.constant 0 : index
    %c0_22 = arith.constant 0 : index
    %21 = vector.load %arg3[%c0_20, %c0_21, %c0_22] : memref<1x64x96xf32, #tpu.memory_space<vmem>>, vector<1x64x96xf32>
    %22 = vector.shape_cast %21 : vector<1x64x96xf32> to vector<64x96xf32>
    %23 = vector.shape_cast %20 : vector<64x96xf32> to vector<1x64x96xf32>
    tpu.vector_store %arg3[%c0_20, %c0_21, %c0_22], %23 {strides = array<i32>} : memref<1x64x96xf32, #tpu.memory_space<vmem>>, vector<1x64x96xf32>,
    %cst_23 = arith.constant 0.000000e+00 : f32
    %24 = vector.broadcast %cst_23 : f32 to vector<1x96xf32>
    %cst_24 = arith.constant 0.000000e+00 : f32
    %25 = vector.broadcast %cst_24 : f32 to vector<1x96xf32>
    %26 = vector.extract_strided_slice %20 {offsets = [0, 0], sizes = [7, 96], strides = [1, 1]} : vector<64x96xf32> to vector<7x96xf32>
    %cst_25 = arith.constant dense<0.000000e+00> : vector<96xf32>
    %27 = vector.multi_reduction <add>, %26, %cst_25 [0] : vector<7x96xf32> to vector<96xf32>
    %28 = vector.shape_cast %27 : vector<96xf32> to vector<1x96xf32>
    %29 = arith.addf %24, %28 : vector<1x96xf32>
    %30 = arith.mulf %26, %26 : vector<7x96xf32>
    %cst_26 = arith.constant dense<0.000000e+00> : vector<96xf32>
    %31 = vector.multi_reduction <add>, %30, %cst_26 [0] : vector<7x96xf32> to vector<96xf32>
    %32 = vector.shape_cast %31 : vector<96xf32> to vector<1x96xf32>
    %33 = arith.addf %25, %32 : vector<1x96xf32>
    %34 = vector.extract_strided_slice %20 {offsets = [8, 0], sizes = [7, 96], strides = [1, 1]} : vector<64x96xf32> to vector<7x96xf32>
    %cst_27 = arith.constant dense<0.000000e+00> : vector<96xf32>
    %35 = vector.multi_reduction <add>, %34, %cst_27 [0] : vector<7x96xf32> to vector<96xf32>
    %36 = vector.shape_cast %35 : vector<96xf32> to vector<1x96xf32>
    %37 = arith.addf %29, %36 : vector<1x96xf32>
    %38 = arith.mulf %34, %34 : vector<7x96xf32>
    %cst_28 = arith.constant dense<0.000000e+00> : vector<96xf32>
    %39 = vector.multi_reduction <add>, %38, %cst_28 [0] : vector<7x96xf32> to vector<96xf32>
    %40 = vector.shape_cast %39 : vector<96xf32> to vector<1x96xf32>
    %41 = arith.addf %33, %40 : vector<1x96xf32>
    %42 = vector.extract_strided_slice %20 {offsets = [16, 0], sizes = [7, 96], strides = [1, 1]} : vector<64x96xf32> to vector<7x96xf32>
    %cst_29 = arith.constant dense<0.000000e+00> : vector<96xf32>
    %43 = vector.multi_reduction <add>, %42, %cst_29 [0] : vector<7x96xf32> to vector<96xf32>
    %44 = vector.shape_cast %43 : vector<96xf32> to vector<1x96xf32>
    %45 = arith.addf %37, %44 : vector<1x96xf32>
    %46 = arith.mulf %42, %42 : vector<7x96xf32>
    %cst_30 = arith.constant dense<0.000000e+00> : vector<96xf32>
    %47 = vector.multi_reduction <add>, %46, %cst_30 [0] : vector<7x96xf32> to vector<96xf32>
    %48 = vector.shape_cast %47 : vector<96xf32> to vector<1x96xf32>
    %49 = arith.addf %41, %48 : vector<1x96xf32>
    %50 = vector.extract_strided_slice %20 {offsets = [24, 0], sizes = [7, 96], strides = [1, 1]} : vector<64x96xf32> to vector<7x96xf32>
    %cst_31 = arith.constant dense<0.000000e+00> : vector<96xf32>
    %51 = vector.multi_reduction <add>, %50, %cst_31 [0] : vector<7x96xf32> to vector<96xf32>
    %52 = vector.shape_cast %51 : vector<96xf32> to vector<1x96xf32>
    %53 = arith.addf %45, %52 : vector<1x96xf32>
    %54 = arith.mulf %50, %50 : vector<7x96xf32>
    %cst_32 = arith.constant dense<0.000000e+00> : vector<96xf32>
    %55 = vector.multi_reduction <add>, %54, %cst_32 [0] : vector<7x96xf32> to vector<96xf32>
    %56 = vector.shape_cast %55 : vector<96xf32> to vector<1x96xf32>
    %57 = arith.addf %49, %56 : vector<1x96xf32>
    %58 = vector.extract_strided_slice %20 {offsets = [32, 0], sizes = [7, 96], strides = [1, 1]} : vector<64x96xf32> to vector<7x96xf32>
    %cst_33 = arith.constant dense<0.000000e+00> : vector<96xf32>
    %59 = vector.multi_reduction <add>, %58, %cst_33 [0] : vector<7x96xf32> to vector<96xf32>
    %60 = vector.shape_cast %59 : vector<96xf32> to vector<1x96xf32>
    %61 = arith.addf %53, %60 : vector<1x96xf32>
    %62 = arith.mulf %58, %58 : vector<7x96xf32>
    %cst_34 = arith.constant dense<0.000000e+00> : vector<96xf32>
    %63 = vector.multi_reduction <add>, %62, %cst_34 [0] : vector<7x96xf32> to vector<96xf32>
    %64 = vector.shape_cast %63 : vector<96xf32> to vector<1x96xf32>
    %65 = arith.addf %57, %64 : vector<1x96xf32>
    %66 = vector.extract_strided_slice %20 {offsets = [40, 0], sizes = [7, 96], strides = [1, 1]} : vector<64x96xf32> to vector<7x96xf32>
    %cst_35 = arith.constant dense<0.000000e+00> : vector<96xf32>
    %67 = vector.multi_reduction <add>, %66, %cst_35 [0] : vector<7x96xf32> to vector<96xf32>
    %68 = vector.shape_cast %67 : vector<96xf32> to vector<1x96xf32>
    %69 = arith.addf %61, %68 : vector<1x96xf32>
    %70 = arith.mulf %66, %66 : vector<7x96xf32>
    %cst_36 = arith.constant dense<0.000000e+00> : vector<96xf32>
    %71 = vector.multi_reduction <add>, %70, %cst_36 [0] : vector<7x96xf32> to vector<96xf32>
    %72 = vector.shape_cast %71 : vector<96xf32> to vector<1x96xf32>
    %73 = arith.addf %65, %72 : vector<1x96xf32>
    %74 = vector.extract_strided_slice %20 {offsets = [48, 0], sizes = [7, 96], strides = [1, 1]} : vector<64x96xf32> to vector<7x96xf32>
    %cst_37 = arith.constant dense<0.000000e+00> : vector<96xf32>
    %75 = vector.multi_reduction <add>, %74, %cst_37 [0] : vector<7x96xf32> to vector<96xf32>
    %76 = vector.shape_cast %75 : vector<96xf32> to vector<1x96xf32>
    %77 = arith.addf %69, %76 : vector<1x96xf32>
    %78 = arith.mulf %74, %74 : vector<7x96xf32>
    %cst_38 = arith.constant dense<0.000000e+00> : vector<96xf32>
    %79 = vector.multi_reduction <add>, %78, %cst_38 [0] : vector<7x96xf32> to vector<96xf32>
    %80 = vector.shape_cast %79 : vector<96xf32> to vector<1x96xf32>
    %81 = arith.addf %73, %80 : vector<1x96xf32>
    %c0_39 = arith.constant 0 : index
    %c0_40 = arith.constant 0 : index
    %c0_41 = arith.constant 0 : index
    %82 = vector.load %arg4[%c0_39, %c0_40, %c0_41] : memref<1x2x96xf32, #tpu.memory_space<vmem>>, vector<1x1x96xf32>
    %83 = vector.shape_cast %82 : vector<1x1x96xf32> to vector<1x96xf32>
    %84 = vector.shape_cast %77 : vector<1x96xf32> to vector<1x1x96xf32>
    tpu.vector_store %arg4[%c0_39, %c0_40, %c0_41], %84 {strides = array<i32>} : memref<1x2x96xf32, #tpu.memory_space<vmem>>, vector<1x1x96xf32>,
    %c0_42 = arith.constant 0 : index
    %c1_43 = arith.constant 1 : index
    %c0_44 = arith.constant 0 : index
    %85 = vector.load %arg4[%c0_42, %c1_43, %c0_44] : memref<1x2x96xf32, #tpu.memory_space<vmem>>, vector<1x1x96xf32>
    %86 = vector.shape_cast %85 : vector<1x1x96xf32> to vector<1x96xf32>
    %87 = vector.shape_cast %81 : vector<1x96xf32> to vector<1x1x96xf32>
    tpu.vector_store %arg4[%c0_42, %c1_43, %c0_44], %87 {strides = array<i32>} : memref<1x2x96xf32, #tpu.memory_space<vmem>>, vector<1x1x96xf32>,
    return
  }
  func.func @transform_0(%arg0: i32) -> (i32, i32, i32) {
    %c0_i32 = arith.constant 0 : i32
    %c0_i32_0 = arith.constant 0 : i32
    %c0_i32_1 = arith.constant 0 : i32
    return %arg0, %c0_i32, %c0_i32_0 : i32, i32, i32
  }
  func.func @transform_1(%arg0: i32) -> (i32, i32) {
    %c0_i32 = arith.constant 0 : i32
    %c0_i32_0 = arith.constant 0 : i32
    %c0_i32_1 = arith.constant 0 : i32
    return %c0_i32, %c0_i32_0 : i32, i32
  }
  func.func @transform_2(%arg0: i32) -> (i32, i32, i32) {
    %c0_i32 = arith.constant 0 : i32
    %c0_i32_0 = arith.constant 0 : i32
    %c0_i32_1 = arith.constant 0 : i32
    return %arg0, %c0_i32, %c0_i32_0 : i32, i32, i32
  }
  func.func @transform_3(%arg0: i32) -> (i32, i32, i32) {
    %c0_i32 = arith.constant 0 : i32
    %c0_i32_0 = arith.constant 0 : i32
    %c0_i32_1 = arith.constant 0 : i32
    return %arg0, %c0_i32, %c0_i32_0 : i32, i32, i32
  }
}

module attributes {stable_mosaic.version = 11 : i64} {
  func.func @_bn_relu_kernel(%arg0: i32, %arg1: memref<1x64x96xf32, #tpu.memory_space<vmem>>, %arg2: memref<1x96xf32, #tpu.memory_space<vmem>>, %arg3: memref<1x96xf32, #tpu.memory_space<vmem>>, %arg4: memref<1x64x96xf32, #tpu.memory_space<vmem>>) attributes {dimension_semantics = [#tpu.dimension_semantics<parallel>], iteration_bounds = array<i64: 2>, scalar_prefetch = 0 : i64, scratch_operands = 0 : i64, tpu.core_type = #tpu.core_type<tc>, window_params = [{transform_indices = @transform_0, window_bounds = array<i64: 1, 64, 96>}, {pipeline_mode = #tpu.pipeline_mode<synchronous>, transform_indices = @transform_1, window_bounds = array<i64: 1, 96>}, {pipeline_mode = #tpu.pipeline_mode<synchronous>, transform_indices = @transform_2, window_bounds = array<i64: 1, 96>}, {transform_indices = @transform_3, window_bounds = array<i64: 1, 64, 96>}]} {
    %c0 = arith.constant 0 : index
    %c0_0 = arith.constant 0 : index
    %c0_1 = arith.constant 0 : index
    %0 = vector.load %arg1[%c0, %c0_0, %c0_1] : memref<1x64x96xf32, #tpu.memory_space<vmem>>, vector<1x64x96xf32>
    %1 = vector.shape_cast %0 : vector<1x64x96xf32> to vector<64x96xf32>
    %c0_2 = arith.constant 0 : index
    %c0_3 = arith.constant 0 : index
    %2 = vector.load %arg2[%c0_2, %c0_3] : memref<1x96xf32, #tpu.memory_space<vmem>>, vector<1x96xf32>
    %3 = vector.broadcast %2 : vector<1x96xf32> to vector<64x96xf32>
    %4 = arith.mulf %1, %3 : vector<64x96xf32>
    %c0_4 = arith.constant 0 : index
    %c0_5 = arith.constant 0 : index
    %5 = vector.load %arg3[%c0_4, %c0_5] : memref<1x96xf32, #tpu.memory_space<vmem>>, vector<1x96xf32>
    %6 = vector.broadcast %5 : vector<1x96xf32> to vector<64x96xf32>
    %7 = arith.addf %4, %6 : vector<64x96xf32>
    %cst = arith.constant 0.000000e+00 : f32
    %8 = vector.broadcast %cst : f32 to vector<64x96xf32>
    %9 = arith.maximumf %7, %8 : vector<64x96xf32>
    %c0_6 = arith.constant 0 : index
    %c0_7 = arith.constant 0 : index
    %c0_8 = arith.constant 0 : index
    %10 = vector.load %arg4[%c0_6, %c0_7, %c0_8] : memref<1x64x96xf32, #tpu.memory_space<vmem>>, vector<1x64x96xf32>
    %11 = vector.shape_cast %10 : vector<1x64x96xf32> to vector<64x96xf32>
    %12 = vector.shape_cast %9 : vector<64x96xf32> to vector<1x64x96xf32>
    tpu.vector_store %arg4[%c0_6, %c0_7, %c0_8], %12 {strides = array<i32>} : memref<1x64x96xf32, #tpu.memory_space<vmem>>, vector<1x64x96xf32>,
    return
  }
  func.func @transform_0(%arg0: i32) -> (i32, i32, i32) {
    %c0_i32 = arith.constant 0 : i32
    %c0_i32_0 = arith.constant 0 : i32
    %c0_i32_1 = arith.constant 0 : i32
    return %arg0, %c0_i32, %c0_i32_0 : i32, i32, i32
  }
  func.func @transform_1(%arg0: i32) -> (i32, i32) {
    %c0_i32 = arith.constant 0 : i32
    %c0_i32_0 = arith.constant 0 : i32
    %c0_i32_1 = arith.constant 0 : i32
    return %c0_i32, %c0_i32_0 : i32, i32
  }
  func.func @transform_2(%arg0: i32) -> (i32, i32) {
    %c0_i32 = arith.constant 0 : i32
    %c0_i32_0 = arith.constant 0 : i32
    %c0_i32_1 = arith.constant 0 : i32
    return %c0_i32, %c0_i32_0 : i32, i32
  }
  func.func @transform_3(%arg0: i32) -> (i32, i32, i32) {
    %c0_i32 = arith.constant 0 : i32
    %c0_i32_0 = arith.constant 0 : i32
    %c0_i32_1 = arith.constant 0 : i32
    return %arg0, %c0_i32, %c0_i32_0 : i32, i32, i32
  }
}

module attributes {stable_mosaic.version = 11 : i64} {
  func.func @_bn_relu_kernel(%arg0: i32, %arg1: memref<1x64x384xf32, #tpu.memory_space<vmem>>, %arg2: memref<1x384xf32, #tpu.memory_space<vmem>>, %arg3: memref<1x384xf32, #tpu.memory_space<vmem>>, %arg4: memref<1x64x384xf32, #tpu.memory_space<vmem>>) attributes {dimension_semantics = [#tpu.dimension_semantics<parallel>], iteration_bounds = array<i64: 2>, scalar_prefetch = 0 : i64, scratch_operands = 0 : i64, tpu.core_type = #tpu.core_type<tc>, window_params = [{transform_indices = @transform_0, window_bounds = array<i64: 1, 64, 384>}, {pipeline_mode = #tpu.pipeline_mode<synchronous>, transform_indices = @transform_1, window_bounds = array<i64: 1, 384>}, {pipeline_mode = #tpu.pipeline_mode<synchronous>, transform_indices = @transform_2, window_bounds = array<i64: 1, 384>}, {transform_indices = @transform_3, window_bounds = array<i64: 1, 64, 384>}]} {
    %c0 = arith.constant 0 : index
    %c0_0 = arith.constant 0 : index
    %c0_1 = arith.constant 0 : index
    %0 = vector.load %arg1[%c0, %c0_0, %c0_1] : memref<1x64x384xf32, #tpu.memory_space<vmem>>, vector<1x64x384xf32>
    %1 = vector.shape_cast %0 : vector<1x64x384xf32> to vector<64x384xf32>
    %c0_2 = arith.constant 0 : index
    %c0_3 = arith.constant 0 : index
    %2 = vector.load %arg2[%c0_2, %c0_3] : memref<1x384xf32, #tpu.memory_space<vmem>>, vector<1x384xf32>
    %3 = vector.broadcast %2 : vector<1x384xf32> to vector<64x384xf32>
    %4 = arith.mulf %1, %3 : vector<64x384xf32>
    %c0_4 = arith.constant 0 : index
    %c0_5 = arith.constant 0 : index
    %5 = vector.load %arg3[%c0_4, %c0_5] : memref<1x384xf32, #tpu.memory_space<vmem>>, vector<1x384xf32>
    %6 = vector.broadcast %5 : vector<1x384xf32> to vector<64x384xf32>
    %7 = arith.addf %4, %6 : vector<64x384xf32>
    %cst = arith.constant 0.000000e+00 : f32
    %8 = vector.broadcast %cst : f32 to vector<64x384xf32>
    %9 = arith.maximumf %7, %8 : vector<64x384xf32>
    %c0_6 = arith.constant 0 : index
    %c0_7 = arith.constant 0 : index
    %c0_8 = arith.constant 0 : index
    %10 = vector.load %arg4[%c0_6, %c0_7, %c0_8] : memref<1x64x384xf32, #tpu.memory_space<vmem>>, vector<1x64x384xf32>
    %11 = vector.shape_cast %10 : vector<1x64x384xf32> to vector<64x384xf32>
    %12 = vector.shape_cast %9 : vector<64x384xf32> to vector<1x64x384xf32>
    tpu.vector_store %arg4[%c0_6, %c0_7, %c0_8], %12 {strides = array<i32>} : memref<1x64x384xf32, #tpu.memory_space<vmem>>, vector<1x64x384xf32>,
    return
  }
  func.func @transform_0(%arg0: i32) -> (i32, i32, i32) {
    %c0_i32 = arith.constant 0 : i32
    %c0_i32_0 = arith.constant 0 : i32
    %c0_i32_1 = arith.constant 0 : i32
    return %arg0, %c0_i32, %c0_i32_0 : i32, i32, i32
  }
  func.func @transform_1(%arg0: i32) -> (i32, i32) {
    %c0_i32 = arith.constant 0 : i32
    %c0_i32_0 = arith.constant 0 : i32
    %c0_i32_1 = arith.constant 0 : i32
    return %c0_i32, %c0_i32_0 : i32, i32
  }
  func.func @transform_2(%arg0: i32) -> (i32, i32) {
    %c0_i32 = arith.constant 0 : i32
    %c0_i32_0 = arith.constant 0 : i32
    %c0_i32_1 = arith.constant 0 : i32
    return %c0_i32, %c0_i32_0 : i32, i32
  }
  func.func @transform_3(%arg0: i32) -> (i32, i32, i32) {
    %c0_i32 = arith.constant 0 : i32
    %c0_i32_0 = arith.constant 0 : i32
    %c0_i32_1 = arith.constant 0 : i32
    return %arg0, %c0_i32, %c0_i32_0 : i32, i32, i32
  }
}

module attributes {stable_mosaic.version = 11 : i64} {
  func.func @_conv_stats_kernel(%arg0: i32, %arg1: memref<1x256x4xbf16, #tpu.memory_space<vmem>>, %arg2: memref<36x384xbf16, #tpu.memory_space<vmem>>, %arg3: memref<1x64x384xf32, #tpu.memory_space<vmem>>, %arg4: memref<1x2x384xf32, #tpu.memory_space<vmem>>) attributes {dimension_semantics = [#tpu.dimension_semantics<parallel>], iteration_bounds = array<i64: 2>, scalar_prefetch = 0 : i64, scratch_operands = 0 : i64, tpu.core_type = #tpu.core_type<tc>, window_params = [{transform_indices = @transform_0, window_bounds = array<i64: 1, 256, 4>}, {pipeline_mode = #tpu.pipeline_mode<synchronous>, transform_indices = @transform_1, window_bounds = array<i64: 36, 384>}, {transform_indices = @transform_2, window_bounds = array<i64: 1, 64, 384>}, {transform_indices = @transform_3, window_bounds = array<i64: 1, 2, 384>}]} {
    %c0 = arith.constant 0 : index
    %c0_0 = arith.constant 0 : index
    %c0_1 = arith.constant 0 : index
    %0 = vector.load %arg1[%c0, %c0_0, %c0_1] : memref<1x256x4xbf16, #tpu.memory_space<vmem>>, vector<1x64x4xbf16>
    %1 = vector.shape_cast %0 : vector<1x64x4xbf16> to vector<64x4xbf16>
    %c0_2 = arith.constant 0 : index
    %c64 = arith.constant 64 : index
    %c0_3 = arith.constant 0 : index
    %2 = vector.load %arg1[%c0_2, %c64, %c0_3] : memref<1x256x4xbf16, #tpu.memory_space<vmem>>, vector<1x64x4xbf16>
    %3 = vector.shape_cast %2 : vector<1x64x4xbf16> to vector<64x4xbf16>
    %c0_4 = arith.constant 0 : index
    %c1 = arith.constant 1 : index
    %c0_5 = arith.constant 0 : index
    %4 = vector.load %arg1[%c0_4, %c1, %c0_5] : memref<1x256x4xbf16, #tpu.memory_space<vmem>>, vector<1x64x4xbf16>
    %5 = vector.shape_cast %4 : vector<1x64x4xbf16> to vector<64x4xbf16>
    %c0_6 = arith.constant 0 : index
    %c128 = arith.constant 128 : index
    %c0_7 = arith.constant 0 : index
    %6 = vector.load %arg1[%c0_6, %c128, %c0_7] : memref<1x256x4xbf16, #tpu.memory_space<vmem>>, vector<1x64x4xbf16>
    %7 = vector.shape_cast %6 : vector<1x64x4xbf16> to vector<64x4xbf16>
    %c0_8 = arith.constant 0 : index
    %c192 = arith.constant 192 : index
    %c0_9 = arith.constant 0 : index
    %8 = vector.load %arg1[%c0_8, %c192, %c0_9] : memref<1x256x4xbf16, #tpu.memory_space<vmem>>, vector<1x64x4xbf16>
    %9 = vector.shape_cast %8 : vector<1x64x4xbf16> to vector<64x4xbf16>
    %c0_10 = arith.constant 0 : index
    %c129 = arith.constant 129 : index
    %c0_11 = arith.constant 0 : index
    %10 = vector.load %arg1[%c0_10, %c129, %c0_11] : memref<1x256x4xbf16, #tpu.memory_space<vmem>>, vector<1x64x4xbf16>
    %11 = vector.shape_cast %10 : vector<1x64x4xbf16> to vector<64x4xbf16>
    %c0_12 = arith.constant 0 : index
    %c8 = arith.constant 8 : index
    %c0_13 = arith.constant 0 : index
    %12 = vector.load %arg1[%c0_12, %c8, %c0_13] : memref<1x256x4xbf16, #tpu.memory_space<vmem>>, vector<1x64x4xbf16>
    %13 = vector.shape_cast %12 : vector<1x64x4xbf16> to vector<64x4xbf16>
    %c0_14 = arith.constant 0 : index
    %c72 = arith.constant 72 : index
    %c0_15 = arith.constant 0 : index
    %14 = vector.load %arg1[%c0_14, %c72, %c0_15] : memref<1x256x4xbf16, #tpu.memory_space<vmem>>, vector<1x64x4xbf16>
    %15 = vector.shape_cast %14 : vector<1x64x4xbf16> to vector<64x4xbf16>
    %c0_16 = arith.constant 0 : index
    %c9 = arith.constant 9 : index
    %c0_17 = arith.constant 0 : index
    %16 = vector.load %arg1[%c0_16, %c9, %c0_17] : memref<1x256x4xbf16, #tpu.memory_space<vmem>>, vector<1x64x4xbf16>
    %17 = vector.shape_cast %16 : vector<1x64x4xbf16> to vector<64x4xbf16>
    %18 = tpu.concatenate %1, %3, %5, %7, %9, %11, %13, %15, %17 in 1 : vector<64x4xbf16>, vector<64x4xbf16>, vector<64x4xbf16>, vector<64x4xbf16>, vector<64x4xbf16>, vector<64x4xbf16>, vector<64x4xbf16>, vector<64x4xbf16>, vector<64x4xbf16> -> vector<64x36xbf16>
    %c0_18 = arith.constant 0 : index
    %c0_19 = arith.constant 0 : index
    %19 = vector.load %arg2[%c0_18, %c0_19] : memref<36x384xbf16, #tpu.memory_space<vmem>>, vector<36x384xbf16>
    %cst = arith.constant dense<0.000000e+00> : vector<64x384xf32>
    %20 = tpu.matmul %18, %19, %cst {dimension_numbers = #tpu.dot_dimension_numbers<[1], [0], [0], [1], [0, 0, 1, 1], [], []>} : vector<64x36xbf16>, vector<36x384xbf16>, vector<64x384xf32> -> vector<64x384xf32>
    %c0_20 = arith.constant 0 : index
    %c0_21 = arith.constant 0 : index
    %c0_22 = arith.constant 0 : index
    %21 = vector.load %arg3[%c0_20, %c0_21, %c0_22] : memref<1x64x384xf32, #tpu.memory_space<vmem>>, vector<1x64x384xf32>
    %22 = vector.shape_cast %21 : vector<1x64x384xf32> to vector<64x384xf32>
    %23 = vector.shape_cast %20 : vector<64x384xf32> to vector<1x64x384xf32>
    tpu.vector_store %arg3[%c0_20, %c0_21, %c0_22], %23 {strides = array<i32>} : memref<1x64x384xf32, #tpu.memory_space<vmem>>, vector<1x64x384xf32>,
    %cst_23 = arith.constant 0.000000e+00 : f32
    %24 = vector.broadcast %cst_23 : f32 to vector<1x384xf32>
    %cst_24 = arith.constant 0.000000e+00 : f32
    %25 = vector.broadcast %cst_24 : f32 to vector<1x384xf32>
    %26 = vector.extract_strided_slice %20 {offsets = [0, 0], sizes = [7, 384], strides = [1, 1]} : vector<64x384xf32> to vector<7x384xf32>
    %cst_25 = arith.constant dense<0.000000e+00> : vector<384xf32>
    %27 = vector.multi_reduction <add>, %26, %cst_25 [0] : vector<7x384xf32> to vector<384xf32>
    %28 = vector.shape_cast %27 : vector<384xf32> to vector<1x384xf32>
    %29 = arith.addf %24, %28 : vector<1x384xf32>
    %30 = arith.mulf %26, %26 : vector<7x384xf32>
    %cst_26 = arith.constant dense<0.000000e+00> : vector<384xf32>
    %31 = vector.multi_reduction <add>, %30, %cst_26 [0] : vector<7x384xf32> to vector<384xf32>
    %32 = vector.shape_cast %31 : vector<384xf32> to vector<1x384xf32>
    %33 = arith.addf %25, %32 : vector<1x384xf32>
    %34 = vector.extract_strided_slice %20 {offsets = [8, 0], sizes = [7, 384], strides = [1, 1]} : vector<64x384xf32> to vector<7x384xf32>
    %cst_27 = arith.constant dense<0.000000e+00> : vector<384xf32>
    %35 = vector.multi_reduction <add>, %34, %cst_27 [0] : vector<7x384xf32> to vector<384xf32>
    %36 = vector.shape_cast %35 : vector<384xf32> to vector<1x384xf32>
    %37 = arith.addf %29, %36 : vector<1x384xf32>
    %38 = arith.mulf %34, %34 : vector<7x384xf32>
    %cst_28 = arith.constant dense<0.000000e+00> : vector<384xf32>
    %39 = vector.multi_reduction <add>, %38, %cst_28 [0] : vector<7x384xf32> to vector<384xf32>
    %40 = vector.shape_cast %39 : vector<384xf32> to vector<1x384xf32>
    %41 = arith.addf %33, %40 : vector<1x384xf32>
    %42 = vector.extract_strided_slice %20 {offsets = [16, 0], sizes = [7, 384], strides = [1, 1]} : vector<64x384xf32> to vector<7x384xf32>
    %cst_29 = arith.constant dense<0.000000e+00> : vector<384xf32>
    %43 = vector.multi_reduction <add>, %42, %cst_29 [0] : vector<7x384xf32> to vector<384xf32>
    %44 = vector.shape_cast %43 : vector<384xf32> to vector<1x384xf32>
    %45 = arith.addf %37, %44 : vector<1x384xf32>
    %46 = arith.mulf %42, %42 : vector<7x384xf32>
    %cst_30 = arith.constant dense<0.000000e+00> : vector<384xf32>
    %47 = vector.multi_reduction <add>, %46, %cst_30 [0] : vector<7x384xf32> to vector<384xf32>
    %48 = vector.shape_cast %47 : vector<384xf32> to vector<1x384xf32>
    %49 = arith.addf %41, %48 : vector<1x384xf32>
    %50 = vector.extract_strided_slice %20 {offsets = [24, 0], sizes = [7, 384], strides = [1, 1]} : vector<64x384xf32> to vector<7x384xf32>
    %cst_31 = arith.constant dense<0.000000e+00> : vector<384xf32>
    %51 = vector.multi_reduction <add>, %50, %cst_31 [0] : vector<7x384xf32> to vector<384xf32>
    %52 = vector.shape_cast %51 : vector<384xf32> to vector<1x384xf32>
    %53 = arith.addf %45, %52 : vector<1x384xf32>
    %54 = arith.mulf %50, %50 : vector<7x384xf32>
    %cst_32 = arith.constant dense<0.000000e+00> : vector<384xf32>
    %55 = vector.multi_reduction <add>, %54, %cst_32 [0] : vector<7x384xf32> to vector<384xf32>
    %56 = vector.shape_cast %55 : vector<384xf32> to vector<1x384xf32>
    %57 = arith.addf %49, %56 : vector<1x384xf32>
    %58 = vector.extract_strided_slice %20 {offsets = [32, 0], sizes = [7, 384], strides = [1, 1]} : vector<64x384xf32> to vector<7x384xf32>
    %cst_33 = arith.constant dense<0.000000e+00> : vector<384xf32>
    %59 = vector.multi_reduction <add>, %58, %cst_33 [0] : vector<7x384xf32> to vector<384xf32>
    %60 = vector.shape_cast %59 : vector<384xf32> to vector<1x384xf32>
    %61 = arith.addf %53, %60 : vector<1x384xf32>
    %62 = arith.mulf %58, %58 : vector<7x384xf32>
    %cst_34 = arith.constant dense<0.000000e+00> : vector<384xf32>
    %63 = vector.multi_reduction <add>, %62, %cst_34 [0] : vector<7x384xf32> to vector<384xf32>
    %64 = vector.shape_cast %63 : vector<384xf32> to vector<1x384xf32>
    %65 = arith.addf %57, %64 : vector<1x384xf32>
    %66 = vector.extract_strided_slice %20 {offsets = [40, 0], sizes = [7, 384], strides = [1, 1]} : vector<64x384xf32> to vector<7x384xf32>
    %cst_35 = arith.constant dense<0.000000e+00> : vector<384xf32>
    %67 = vector.multi_reduction <add>, %66, %cst_35 [0] : vector<7x384xf32> to vector<384xf32>
    %68 = vector.shape_cast %67 : vector<384xf32> to vector<1x384xf32>
    %69 = arith.addf %61, %68 : vector<1x384xf32>
    %70 = arith.mulf %66, %66 : vector<7x384xf32>
    %cst_36 = arith.constant dense<0.000000e+00> : vector<384xf32>
    %71 = vector.multi_reduction <add>, %70, %cst_36 [0] : vector<7x384xf32> to vector<384xf32>
    %72 = vector.shape_cast %71 : vector<384xf32> to vector<1x384xf32>
    %73 = arith.addf %65, %72 : vector<1x384xf32>
    %74 = vector.extract_strided_slice %20 {offsets = [48, 0], sizes = [7, 384], strides = [1, 1]} : vector<64x384xf32> to vector<7x384xf32>
    %cst_37 = arith.constant dense<0.000000e+00> : vector<384xf32>
    %75 = vector.multi_reduction <add>, %74, %cst_37 [0] : vector<7x384xf32> to vector<384xf32>
    %76 = vector.shape_cast %75 : vector<384xf32> to vector<1x384xf32>
    %77 = arith.addf %69, %76 : vector<1x384xf32>
    %78 = arith.mulf %74, %74 : vector<7x384xf32>
    %cst_38 = arith.constant dense<0.000000e+00> : vector<384xf32>
    %79 = vector.multi_reduction <add>, %78, %cst_38 [0] : vector<7x384xf32> to vector<384xf32>
    %80 = vector.shape_cast %79 : vector<384xf32> to vector<1x384xf32>
    %81 = arith.addf %73, %80 : vector<1x384xf32>
    %c0_39 = arith.constant 0 : index
    %c0_40 = arith.constant 0 : index
    %c0_41 = arith.constant 0 : index
    %82 = vector.load %arg4[%c0_39, %c0_40, %c0_41] : memref<1x2x384xf32, #tpu.memory_space<vmem>>, vector<1x1x384xf32>
    %83 = vector.shape_cast %82 : vector<1x1x384xf32> to vector<1x384xf32>
    %84 = vector.shape_cast %77 : vector<1x384xf32> to vector<1x1x384xf32>
    tpu.vector_store %arg4[%c0_39, %c0_40, %c0_41], %84 {strides = array<i32>} : memref<1x2x384xf32, #tpu.memory_space<vmem>>, vector<1x1x384xf32>,
    %c0_42 = arith.constant 0 : index
    %c1_43 = arith.constant 1 : index
    %c0_44 = arith.constant 0 : index
    %85 = vector.load %arg4[%c0_42, %c1_43, %c0_44] : memref<1x2x384xf32, #tpu.memory_space<vmem>>, vector<1x1x384xf32>
    %86 = vector.shape_cast %85 : vector<1x1x384xf32> to vector<1x384xf32>
    %87 = vector.shape_cast %81 : vector<1x384xf32> to vector<1x1x384xf32>
    tpu.vector_store %arg4[%c0_42, %c1_43, %c0_44], %87 {strides = array<i32>} : memref<1x2x384xf32, #tpu.memory_space<vmem>>, vector<1x1x384xf32>,
    return
  }
  func.func @transform_0(%arg0: i32) -> (i32, i32, i32) {
    %c0_i32 = arith.constant 0 : i32
    %c0_i32_0 = arith.constant 0 : i32
    %c0_i32_1 = arith.constant 0 : i32
    return %arg0, %c0_i32, %c0_i32_0 : i32, i32, i32
  }
  func.func @transform_1(%arg0: i32) -> (i32, i32) {
    %c0_i32 = arith.constant 0 : i32
    %c0_i32_0 = arith.constant 0 : i32
    %c0_i32_1 = arith.constant 0 : i32
    return %c0_i32, %c0_i32_0 : i32, i32
  }
  func.func @transform_2(%arg0: i32) -> (i32, i32, i32) {
    %c0_i32 = arith.constant 0 : i32
    %c0_i32_0 = arith.constant 0 : i32
    %c0_i32_1 = arith.constant 0 : i32
    return %arg0, %c0_i32, %c0_i32_0 : i32, i32, i32
  }
  func.func @transform_3(%arg0: i32) -> (i32, i32, i32) {
    %c0_i32 = arith.constant 0 : i32
    %c0_i32_0 = arith.constant 0 : i32
    %c0_i32_1 = arith.constant 0 : i32
    return %arg0, %c0_i32, %c0_i32_0 : i32, i32, i32
  }
}

module attributes {stable_mosaic.version = 11 : i64} {
  func.func @_maxpool_kernel(%arg0: i32, %arg1: memref<1x256x4xf32, #tpu.memory_space<vmem>>, %arg2: memref<1x64x4xf32, #tpu.memory_space<vmem>>) attributes {dimension_semantics = [#tpu.dimension_semantics<parallel>], iteration_bounds = array<i64: 2>, scalar_prefetch = 0 : i64, scratch_operands = 0 : i64, tpu.core_type = #tpu.core_type<tc>, window_params = [{transform_indices = @transform_0, window_bounds = array<i64: 1, 256, 4>}, {transform_indices = @transform_1, window_bounds = array<i64: 1, 64, 4>}]} {
    %c0 = arith.constant 0 : index
    %c0_0 = arith.constant 0 : index
    %c0_1 = arith.constant 0 : index
    %0 = vector.load %arg1[%c0, %c0_0, %c0_1] : memref<1x256x4xf32, #tpu.memory_space<vmem>>, vector<1x64x4xf32>
    %1 = vector.shape_cast %0 : vector<1x64x4xf32> to vector<64x4xf32>
    %c0_2 = arith.constant 0 : index
    %c64 = arith.constant 64 : index
    %c0_3 = arith.constant 0 : index
    %2 = vector.load %arg1[%c0_2, %c64, %c0_3] : memref<1x256x4xf32, #tpu.memory_space<vmem>>, vector<1x64x4xf32>
    %3 = vector.shape_cast %2 : vector<1x64x4xf32> to vector<64x4xf32>
    %4 = arith.maximumf %1, %3 : vector<64x4xf32>
    %c0_4 = arith.constant 0 : index
    %c1 = arith.constant 1 : index
    %c0_5 = arith.constant 0 : index
    %5 = vector.load %arg1[%c0_4, %c1, %c0_5] : memref<1x256x4xf32, #tpu.memory_space<vmem>>, vector<1x64x4xf32>
    %6 = vector.shape_cast %5 : vector<1x64x4xf32> to vector<64x4xf32>
    %7 = arith.maximumf %4, %6 : vector<64x4xf32>
    %c0_6 = arith.constant 0 : index
    %c128 = arith.constant 128 : index
    %c0_7 = arith.constant 0 : index
    %8 = vector.load %arg1[%c0_6, %c128, %c0_7] : memref<1x256x4xf32, #tpu.memory_space<vmem>>, vector<1x64x4xf32>
    %9 = vector.shape_cast %8 : vector<1x64x4xf32> to vector<64x4xf32>
    %10 = arith.maximumf %7, %9 : vector<64x4xf32>
    %c0_8 = arith.constant 0 : index
    %c192 = arith.constant 192 : index
    %c0_9 = arith.constant 0 : index
    %11 = vector.load %arg1[%c0_8, %c192, %c0_9] : memref<1x256x4xf32, #tpu.memory_space<vmem>>, vector<1x64x4xf32>
    %12 = vector.shape_cast %11 : vector<1x64x4xf32> to vector<64x4xf32>
    %13 = arith.maximumf %10, %12 : vector<64x4xf32>
    %c0_10 = arith.constant 0 : index
    %c129 = arith.constant 129 : index
    %c0_11 = arith.constant 0 : index
    %14 = vector.load %arg1[%c0_10, %c129, %c0_11] : memref<1x256x4xf32, #tpu.memory_space<vmem>>, vector<1x64x4xf32>
    %15 = vector.shape_cast %14 : vector<1x64x4xf32> to vector<64x4xf32>
    %16 = arith.maximumf %13, %15 : vector<64x4xf32>
    %c0_12 = arith.constant 0 : index
    %c8 = arith.constant 8 : index
    %c0_13 = arith.constant 0 : index
    %17 = vector.load %arg1[%c0_12, %c8, %c0_13] : memref<1x256x4xf32, #tpu.memory_space<vmem>>, vector<1x64x4xf32>
    %18 = vector.shape_cast %17 : vector<1x64x4xf32> to vector<64x4xf32>
    %19 = arith.maximumf %16, %18 : vector<64x4xf32>
    %c0_14 = arith.constant 0 : index
    %c72 = arith.constant 72 : index
    %c0_15 = arith.constant 0 : index
    %20 = vector.load %arg1[%c0_14, %c72, %c0_15] : memref<1x256x4xf32, #tpu.memory_space<vmem>>, vector<1x64x4xf32>
    %21 = vector.shape_cast %20 : vector<1x64x4xf32> to vector<64x4xf32>
    %22 = arith.maximumf %19, %21 : vector<64x4xf32>
    %c0_16 = arith.constant 0 : index
    %c9 = arith.constant 9 : index
    %c0_17 = arith.constant 0 : index
    %23 = vector.load %arg1[%c0_16, %c9, %c0_17] : memref<1x256x4xf32, #tpu.memory_space<vmem>>, vector<1x64x4xf32>
    %24 = vector.shape_cast %23 : vector<1x64x4xf32> to vector<64x4xf32>
    %25 = arith.maximumf %22, %24 : vector<64x4xf32>
    %c0_18 = arith.constant 0 : index
    %c0_19 = arith.constant 0 : index
    %c0_20 = arith.constant 0 : index
    %26 = vector.load %arg2[%c0_18, %c0_19, %c0_20] : memref<1x64x4xf32, #tpu.memory_space<vmem>>, vector<1x64x4xf32>
    %27 = vector.shape_cast %26 : vector<1x64x4xf32> to vector<64x4xf32>
    %28 = vector.shape_cast %25 : vector<64x4xf32> to vector<1x64x4xf32>
    tpu.vector_store %arg2[%c0_18, %c0_19, %c0_20], %28 {strides = array<i32>} : memref<1x64x4xf32, #tpu.memory_space<vmem>>, vector<1x64x4xf32>,
    return
  }
  func.func @transform_0(%arg0: i32) -> (i32, i32, i32) {
    %c0_i32 = arith.constant 0 : i32
    %c0_i32_0 = arith.constant 0 : i32
    %c0_i32_1 = arith.constant 0 : i32
    return %arg0, %c0_i32, %c0_i32_0 : i32, i32, i32
  }
  func.func @transform_1(%arg0: i32) -> (i32, i32, i32) {
    %c0_i32 = arith.constant 0 : i32
    %c0_i32_0 = arith.constant 0 : i32
    %c0_i32_1 = arith.constant 0 : i32
    return %arg0, %c0_i32, %c0_i32_0 : i32, i32, i32
  }
}

</mosaic_0001>

<llo_original>
// kernel: inception_b_forward.11
$region0: #{inception_b_forward.11}
  #allocation0 [shape = 'u32[]', space=smem, size = 0x4, offset = 0x4, fixed_abs, tag = 'smem constant byte address 0x4 - core index']
  #allocation1 [shape = 'u32[144,128]{1,0:T(1,128)}', space=vmem, size = 0x12000, scoped, tag = 'internal scratch']
  %s0 = inlined_call_operand.vmem [shape: bf16[2,256,4], index: 0, kind: input, shape index: {}]
  %s1 = inlined_call_operand.vmem [shape: bf16[4,64], index: 1, kind: input, shape index: {}]
  %s2 = inlined_call_operand.vmem [shape: f32[2,256,64], index: 2, kind: output, shape index: {0}]
  %s3 = inlined_call_operand.vmem [shape: f32[2,2,64], index: 3, kind: output, shape index: {1}]
  %4 = xla_tuple %s2, %s3
  %s5 = sld [smem:[#allocation0]]
  $region49: #{inception_b_forward.11} parent=0
    _
  %s7 = ssub.s32 1, %s5
  %s8 = scalar_select 0, %s7, %s5
  loop: start=0, step=1, limit=4
  $region2: #{inception_b_forward.11} parent=0 // loop_pre_header
    _
  $region3: #{inception_b_forward.11} parent=0 // loop_header
    %s10 = sphi 0, %s14
    %p11 = scmp.ge.s32.totalorder %s10, 4
    %s20 = sphi 0, %s22
    %s23 = sphi 0, %s20
    %s24 = sphi 0, %s23
    %s40 = sphi 0, %s24
    %s44 = sphi 0, %s44
    %s46 = sphi 0, %s44
    %s47 = sphi 0, %s46
    %s61 = sphi 0, %s47
    %s67 = sphi 0, %s69
    %s70 = sphi 0, %s67
    %s71 = sphi 0, %s70
    %s87 = sphi 0, %s71
    %s93 = sphi 0, %s95
    %s96 = sphi 0, %s93
    %s97 = sphi 0, %s96
    %s113 = sphi 0, %s97
  $region4: #{inception_b_forward.11} parent=0 // loop_header_branch
    %13 = sbr.rel (%p11) target = $region8
  $region5: #{inception_b_forward.11} parent=0 // loop_body
    %s15 = ssub.s32 %s10, 1
    %s16 = ssub.s32 %s10, 2
    %s17 = sadd.s32 %s10, 1
    %s18 = ssub.s32 %s10, %s17
    %p19 = scmp.eq.s32.totalorder %s18, 0
    %s21 = sadd.s32 %s20, 1
    %s22 = scalar_select %p19, %s20, %s21
    %p25 = pneg %p19
    %p26 = scmp.eq.s32.totalorder %s10, 1
    %p27 = por %p25, %p26
    %p28 = scmp.ne.s32.totalorder %s20, %s23
    %p29 = scmp.eq.s32.totalorder %s10, 0
    %p30 = por %p28, %p29
    %p31 = scmp.ne.s32.totalorder %s20, %s23
    %p32 = scmp.eq.s32.totalorder %s15, 1
    %p33 = por %p31, %p32
    %p34 = scmp.ne.s32.totalorder %s23, %s24
    %p35 = scmp.eq.s32.totalorder %s15, 0
    %p36 = por %p34, %p35
    %p37 = scmp.ne.s32.totalorder %s23, %s24
    %p38 = scmp.eq.s32.totalorder %s16, 1
    %p39 = por %p37, %p38
    %p41 = scmp.ne.s32.totalorder %s24, %s40
    %p42 = scmp.eq.s32.totalorder %s16, 0
    %p43 = por %p41, %p42
    %s45 = sadd.s32 %s44, 1
    %p48 = scmp.eq.s32.totalorder %s10, 1
    %p49 = scmp.ne.s32.totalorder %s44, %s46
    %p50 = scmp.eq.s32.totalorder %s10, 0
    %p51 = por %p49, %p50
    %p52 = scmp.ne.s32.totalorder %s44, %s46
    %p53 = scmp.eq.s32.totalorder %s15, 1
    %p54 = por %p52, %p53
    %p55 = scmp.ne.s32.totalorder %s46, %s47
    %p56 = scmp.eq.s32.totalorder %s15, 0
    %p57 = por %p55, %p56
    %p58 = scmp.ne.s32.totalorder %s46, %s47
    %p59 = scmp.eq.s32.totalorder %s16, 1
    %p60 = por %p58, %p59
    %p62 = scmp.ne.s32.totalorder %s47, %s61
    %p63 = scmp.eq.s32.totalorder %s16, 0
    %p64 = por %p62, %p63
    %s65 = ssub.s32 %s10, %s17
    %p66 = scmp.eq.s32.totalorder %s65, 0
    %s68 = sadd.s32 %s67, 1
    %s69 = scalar_select %p66, %s67, %s68
    %p72 = pneg %p66
    %p73 = scmp.eq.s32.totalorder %s10, 1
    %p74 = por %p72, %p73
    %p75 = scmp.ne.s32.totalorder %s67, %s70
    %p76 = scmp.eq.s32.totalorder %s10, 0
    %p77 = por %p75, %p76
    %p78 = scmp.ne.s32.totalorder %s67, %s70
    %p79 = scmp.eq.s32.totalorder %s15, 1
    %p80 = por %p78, %p79
    %p81 = scmp.ne.s32.totalorder %s70, %s71
    %p82 = scmp.eq.s32.totalorder %s15, 0
    %p83 = por %p81, %p82
    %p84 = scmp.ne.s32.totalorder %s70, %s71
    %p85 = scmp.eq.s32.totalorder %s16, 1
    %p86 = por %p84, %p85
    %p88 = scmp.ne.s32.totalorder %s71, %s87
    %p89 = scmp.eq.s32.totalorder %s16, 0
    %p90 = por %p88, %p89
    %s91 = ssub.s32 %s10, %s17
    %p92 = scmp.eq.s32.totalorder %s91, 0
    %s94 = sadd.s32 %s93, 1
    %s95 = scalar_select %p92, %s93, %s94
    %p98 = pneg %p92
    %p99 = scmp.eq.s32.totalorder %s10, 1
    %p100 = por %p98, %p99
    %p101 = scmp.ne.s32.totalorder %s93, %s96
    %p102 = scmp.eq.s32.totalorder %s10, 0
    %p103 = por %p101, %p102
    %p104 = scmp.ne.s32.totalorder %s93, %s96
    %p105 = scmp.eq.s32.totalorder %s15, 1
    %p106 = por %p104, %p105
    %p107 = scmp.ne.s32.totalorder %s96, %s97
    %p108 = scmp.eq.s32.totalorder %s15, 0
    %p109 = por %p107, %p108
    %p110 = scmp.ne.s32.totalorder %s96, %s97
    %p111 = scmp.eq.s32.totalorder %s16, 1
    %p112 = por %p110, %p111
    %p114 = scmp.ne.s32.totalorder %s97, %s113
    %p115 = scmp.eq.s32.totalorder %s16, 0
    %p116 = por %p114, %p115
    %p117 = scmp.le.s32.totalorder 1, %s10
    %p118 = scmp.lt.s32.totalorder %s10, 3
    %p119 = pnand %p117, %p118
    %p120 = pneg %p119
    // Predicated region
    $region9: #{inception_b_forward.11} parent=5 // pred_check
      _
    $region10: #{inception_b_forward.11} parent=5 // pred_check_branch
      %122 = sbr.rel (%p119) target = $region12
    $region11: #{inception_b_forward.11} parent=5 // pred_region
      %s123 = ssub.s32 %s10, 1
      // Predicated region
      $region13: #{inception_b_forward.11} parent=11 // pred_check
        %p124 = pneg %p57
      $region14: #{inception_b_forward.11} parent=11 // pred_check_branch
        %126 = sbr.rel (%p124) target = $region16
      $region15: #{inception_b_forward.11} parent=11 // pred_region
        _
      $region16: #{inception_b_forward.11} parent=11 // pred_fallthru
        _
    $region12: #{inception_b_forward.11} parent=5 // pred_fallthru
      _
    %p127 = scmp.lt.s32.totalorder %s10, 2
    // Predicated region
    $region17: #{inception_b_forward.11} parent=5 // pred_check
      %p128 = pneg %p127
    $region18: #{inception_b_forward.11} parent=5 // pred_check_branch
      %130 = sbr.rel (%p128) target = $region20
    $region19: #{inception_b_forward.11} parent=5 // pred_region
      // Predicated region
      $region21: #{inception_b_forward.11} parent=19 // pred_check
        %p131 = pneg %p30
      $region22: #{inception_b_forward.11} parent=19 // pred_check_branch
        %133 = sbr.rel (%p131) target = $region24
      $region23: #{inception_b_forward.11} parent=19 // pred_region
        %p134 = scmp.lt.s32.totalorder %s10, 1
        %s135 = scalar_select %p134, %s10, 1
        %s136 = smul.addr %s135, 32
        %s137 = smul.addr %s136, 4
        %s138 = scalar_lea.vmem %s0, %s137
      $region24: #{inception_b_forward.11} parent=19 // pred_fallthru
        _
    $region20: #{inception_b_forward.11} parent=5 // pred_fallthru
      _
    %p139 = scmp.le.s32.totalorder 1, %s10
    %p140 = scmp.lt.s32.totalorder %s10, 3
    %p141 = pnand %p139, %p140
    %p142 = pneg %p141
    // Predicated region
    $region25: #{inception_b_forward.11} parent=5 // pred_check
      _
    $region26: #{inception_b_forward.11} parent=5 // pred_check_branch
      %144 = sbr.rel (%p141) target = $region28
    $region27: #{inception_b_forward.11} parent=5 // pred_region
      %s145 = ssub.s32 %s10, 1
      %p146 = scmp.lt.s32.totalorder %s15, 1
      %s147 = scalar_select %p146, %s15, 1
      %s148 = smul.addr %s147, 32
      %s149 = smul.addr %s148, 4
      %s150 = scalar_lea.vmem %s0, %s149
      %p151 = pneg %p36
      %p152 = pneg %p33
      %p153 = pneg %p57
      %p154 = pneg %p54
      %p155 = pneg %p83
      %p156 = pneg %p80
      %p157 = scmp.lt.s32.totalorder %s15, 1
      %s158 = scalar_select %p157, %s15, 1
      %s159 = smul.addr %s158, 32
      %s160 = smul.addr %s159, 8
      %s161 = scalar_lea.vmem %s2, %s160
      %p162 = pneg %p109
      %p163 = pneg %p106
      %p164 = scmp.lt.s32.totalorder %s15, 1
      %s165 = scalar_select %p164, %s15, 1
      %s166 = smul.addr %s165, 2
      %s167 = scalar_lea.vmem %s3, %s166
      %p168 = scmp.lt.s32.totalorder %s15, 1
      %s169 = scalar_select %p168, %s15, 1
      %s170 = smul.addr %s169, 32
      %s171 = smul.addr %s170, 4
      %s172 = scalar_lea.vmem %s0, %s171
      %p173 = scmp.lt.s32.totalorder %s15, 1
      %s174 = scalar_select %p173, %s15, 1
      %s175 = smul.addr %s174, 32
      %s176 = smul.addr %s175, 8
      %s177 = scalar_lea.vmem %s2, %s176
      %p178 = scmp.lt.s32.totalorder %s15, 1
      %s179 = scalar_select %p178, %s15, 1
      %s180 = smul.addr %s179, 2
      %s181 = scalar_lea.vmem %s3, %s180
      %v183 = vld [vmem:[%s172] sm:$0xf]
      %v184 = vld [vmem:[%s172 + $0x4] sm:$0xf]
      %v185 = vld [vmem:[%s172 + $0x8] sm:$0xf]
      %v186 = vld [vmem:[%s172 + $0xc] sm:$0xf]
      %v187 = vld [vmem:[%s172 + $0x10] sm:$0xf]
      %v188 = vld [vmem:[%s172 + $0x14] sm:$0xf]
      %v189 = vld [vmem:[%s172 + $0x18] sm:$0xf]
      %v190 = vld [vmem:[%s172 + $0x1c] sm:$0xf]
      %v191 = vld [vmem:[%s172 + $0x20] sm:$0xf]
      %v192 = vld [vmem:[%s172 + $0x24] sm:$0xf]
      %v193 = vld [vmem:[%s172 + $0x28] sm:$0xf]
      %v194 = vld [vmem:[%s172 + $0x2c] sm:$0xf]
      %v195 = vld [vmem:[%s172 + $0x30] sm:$0xf]
      %v196 = vld [vmem:[%s172 + $0x34] sm:$0xf]
      %v197 = vld [vmem:[%s172 + $0x38] sm:$0xf]
      %v198 = vld [vmem:[%s172 + $0x3c] sm:$0xf]
      %v199 = vld [vmem:[%s172 + $0x40] sm:$0xf]
      %v200 = vld [vmem:[%s172 + $0x44] sm:$0xf]
      %v201 = vld [vmem:[%s172 + $0x48] sm:$0xf]
      %v202 = vld [vmem:[%s172 + $0x4c] sm:$0xf]
      %v203 = vld [vmem:[%s172 + $0x50] sm:$0xf]
      %v204 = vld [vmem:[%s172 + $0x54] sm:$0xf]
      %v205 = vld [vmem:[%s172 + $0x58] sm:$0xf]
      %v206 = vld [vmem:[%s172 + $0x5c] sm:$0xf]
      %v207 = vld [vmem:[%s172 + $0x60] sm:$0xf]
      %v208 = vld [vmem:[%s172 + $0x64] sm:$0xf]
      %v209 = vld [vmem:[%s172 + $0x68] sm:$0xf]
      %v210 = vld [vmem:[%s172 + $0x6c] sm:$0xf]
      %v211 = vld [vmem:[%s172 + $0x70] sm:$0xf]
      %v212 = vld [vmem:[%s172 + $0x74] sm:$0xf]
      %v213 = vld [vmem:[%s172 + $0x78] sm:$0xf]
      %v214 = vld [vmem:[%s172 + $0x7c] sm:$0xf]
      %v215 = vld [vmem:[%s1] sm:$0x3]
      %v248 = vunpack.c.l.b16 %v183
      %v249 = vunpack.c.l.b16 %v184
      %v250 = vunpack.c.l.b16 %v185
      %v251 = vunpack.c.l.b16 %v186
      %v252 = vunpack.c.l.b16 %v187
      %v253 = vunpack.c.l.b16 %v188
      %v254 = vunpack.c.l.b16 %v189
      %v255 = vunpack.c.l.b16 %v190
      %v256 = vunpack.c.l.b16 %v191
      %v257 = vunpack.c.l.b16 %v192
      %v258 = vunpack.c.l.b16 %v193
      %v259 = vunpack.c.l.b16 %v194
      %v260 = vunpack.c.l.b16 %v195
      %v261 = vunpack.c.l.b16 %v196
      %v262 = vunpack.c.l.b16 %v197
      %v263 = vunpack.c.l.b16 %v198
      %v264 = vunpack.c.l.b16 %v199
      %v265 = vunpack.c.l.b16 %v200
      %v266 = vunpack.c.l.b16 %v201
      %v267 = vunpack.c.l.b16 %v202
      %v268 = vunpack.c.l.b16 %v203
      %v269 = vunpack.c.l.b16 %v204
      %v270 = vunpack.c.l.b16 %v205
      %v271 = vunpack.c.l.b16 %v206
      %v272 = vunpack.c.l.b16 %v207
      %v273 = vunpack.c.l.b16 %v208
      %v274 = vunpack.c.l.b16 %v209
      %v275 = vunpack.c.l.b16 %v210
      %v276 = vunpack.c.l.b16 %v211
      %v277 = vunpack.c.l.b16 %v212
      %v278 = vunpack.c.l.b16 %v213
      %v279 = vunpack.c.l.b16 %v214
      %v280 = vpack.c.b16 %v249, %v248
      %v281 = vpack.c.b16 %v251, %v250
      %v282 = vpack.c.b16 %v253, %v252
      %v283 = vpack.c.b16 %v255, %v254
      %v284 = vpack.c.b16 %v257, %v256
      %v285 = vpack.c.b16 %v259, %v258
      %v286 = vpack.c.b16 %v261, %v260
      %v287 = vpack.c.b16 %v263, %v262
      %v288 = vpack.c.b16 %v265, %v264
      %v289 = vpack.c.b16 %v267, %v266
      %v290 = vpack.c.b16 %v269, %v268
      %v291 = vpack.c.b16 %v271, %v270
      %v292 = vpack.c.b16 %v273, %v272
      %v293 = vpack.c.b16 %v275, %v274
      %v294 = vpack.c.b16 %v277, %v276
      %v295 = vpack.c.b16 %v279, %v278
      %vm296 = vcmask 31744
      %v298 = vsel %vm296, %v280, 0
      %v301 = vsel %vm296, %v281, 0
      %v304 = vsel %vm296, %v282, 0
      %v307 = vsel %vm296, %v283, 0
      %v310 = vsel %vm296, %v284, 0
      %v313 = vsel %vm296, %v285, 0
      %v316 = vsel %vm296, %v286, 0
      %v319 = vsel %vm296, %v287, 0
      %v322 = vsel %vm296, %v288, 0
      %v325 = vsel %vm296, %v289, 0
      %v328 = vsel %vm296, %v290, 0
      %v331 = vsel %vm296, %v291, 0
      %v334 = vsel %vm296, %v292, 0
      %v337 = vsel %vm296, %v293, 0
      %v340 = vsel %vm296, %v294, 0
      %v343 = vsel %vm296, %v295, 0
      %vm345 = vcmask 1041408
      %v347 = vsel %vm345, %v215, 0
      %349 = vmatprep.subr.bf16.mxu0 0
      %350 = vmatpush1.bf16.msra.mxu0 0
      %351 = vmatprep.subr.bf16.mxu0 0
      %352 = vmatpush1.bf16.msra.mxu0 0
      %353 = vmatprep.subr.bf16.mxu0 0
      %354 = vmatpush1.bf16.msra.mxu0 0
      %355 = vmatprep.subr.bf16.mxu0 0
      %356 = vmatpush1.bf16.msra.mxu0 0
      %357 = vmatprep.subr.bf16.mxu0 0
      %358 = vmatpush1.bf16.msra.mxu0 0
      %359 = vmatprep.subr.bf16.mxu0 0
      %360 = vmatpush1.bf16.msra.mxu0 0
      %361 = vmatprep.subr.bf16.mxu0 0
      %362 = vmatpush1.bf16.msra.mxu0 0
      %363 = vmatprep.subr.bf16.mxu0 0
      %364 = vmatpush1.bf16.msra.mxu0 %v347
      %365 = vmatprep.subr.bf16.mxu0 0
      %366 = vmatpush2.bf16.msra.mxu0 0
      %367 = vmatprep.subr.bf16.mxu0 0
      %368 = vmatpush2.bf16.msra.mxu0 0
      %369 = vmatprep.subr.bf16.mxu0 0
      %370 = vmatpush2.bf16.msra.mxu0 0
      %371 = vmatprep.subr.bf16.mxu0 0
      %372 = vmatpush2.bf16.msra.mxu0 0
      %373 = vmatprep.subr.bf16.mxu0 0
      %374 = vmatpush2.bf16.msra.mxu0 0
      %375 = vmatprep.subr.bf16.mxu0 0
      %376 = vmatpush2.bf16.msra.mxu0 0
      %377 = vmatprep.subr.bf16.mxu0 0
      %378 = vmatpush2.bf16.msra.mxu0 0
      %379 = vmatprep.subr.bf16.mxu0 0
      %380 = vmatpush2.bf16.msra.mxu0 0
      %381 = vmatprep.mubr.bf16.mxu0 0
      %382 = vmatmul.mubr.bf16.gmra.mxu0 %v298
      %v383 = vpop.f32.mrf.mxu0
      %v384 = vadd.f32 0.0, %v383
      %v385 = vpop.f32.mrf.mxu0
      %v386 = vpop.f32.mrf.mxu0
      %v387 = vadd.f32 0.0, %v386
      %v388 = vpop.f32.mrf.mxu0
      %389 = vmatprep.mubr.bf16.mxu0 0
      %390 = vmatmul.mubr.bf16.gmra.mxu0 %v301
      %v391 = vpop.f32.mrf.mxu0
      %v392 = vadd.f32 0.0, %v391
      %v393 = vpop.f32.mrf.mxu0
      %v394 = vpop.f32.mrf.mxu0
      %v395 = vadd.f32 0.0, %v394
      %v396 = vpop.f32.mrf.mxu0
      %397 = vmatprep.mubr.bf16.mxu0 0
      %398 = vmatmul.mubr.bf16.gmra.mxu0 %v304
      %v399 = vpop.f32.mrf.mxu0
      %v400 = vadd.f32 0.0, %v399
      %v401 = vpop.f32.mrf.mxu0
      %v402 = vpop.f32.mrf.mxu0
      %v403 = vadd.f32 0.0, %v402
      %v404 = vpop.f32.mrf.mxu0
      %405 = vmatprep.mubr.bf16.mxu0 0
      %406 = vmatmul.mubr.bf16.gmra.mxu0 %v307
      %v407 = vpop.f32.mrf.mxu0
      %v408 = vadd.f32 0.0, %v407
      %v409 = vpop.f32.mrf.mxu0
      %v410 = vpop.f32.mrf.mxu0
      %v411 = vadd.f32 0.0, %v410
      %v412 = vpop.f32.mrf.mxu0
      %413 = vmatprep.mubr.bf16.mxu0 0
      %414 = vmatmul.mubr.bf16.gmra.mxu0 %v310
      %v415 = vpop.f32.mrf.mxu0
      %v416 = vadd.f32 0.0, %v415
      %v417 = vpop.f32.mrf.mxu0
      %v418 = vpop.f32.mrf.mxu0
      %v419 = vadd.f32 0.0, %v418
      %v420 = vpop.f32.mrf.mxu0
      %421 = vmatprep.mubr.bf16.mxu0 0
      %422 = vmatmul.mubr.bf16.gmra.mxu0 %v313
      %v423 = vpop.f32.mrf.mxu0
      %v424 = vadd.f32 0.0, %v423
      %v425 = vpop.f32.mrf.mxu0
      %v426 = vpop.f32.mrf.mxu0
      %v427 = vadd.f32 0.0, %v426
      %v428 = vpop.f32.mrf.mxu0
      %429 = vmatprep.mubr.bf16.mxu0 0
      %430 = vmatmul.mubr.bf16.gmra.mxu0 %v316
      %v431 = vpop.f32.mrf.mxu0
      %v432 = vadd.f32 0.0, %v431
      %v433 = vpop.f32.mrf.mxu0
      %v434 = vpop.f32.mrf.mxu0
      %v435 = vadd.f32 0.0, %v434
      %v436 = vpop.f32.mrf.mxu0
      %437 = vmatprep.mubr.bf16.mxu0 0
      %438 = vmatmul.mubr.bf16.gmra.mxu0 %v319
      %v439 = vpop.f32.mrf.mxu0
      %v440 = vadd.f32 0.0, %v439
      %v441 = vpop.f32.mrf.mxu0
      %v442 = vpop.f32.mrf.mxu0
      %v443 = vadd.f32 0.0, %v442
      %v444 = vpop.f32.mrf.mxu0
      %445 = vmatprep.mubr.bf16.mxu0 0
      %446 = vmatmul.mubr.bf16.gmra.mxu0 %v322
      %v447 = vpop.f32.mrf.mxu0
      %v448 = vadd.f32 0.0, %v447
      %v449 = vpop.f32.mrf.mxu0
      %v450 = vpop.f32.mrf.mxu0
      %v451 = vadd.f32 0.0, %v450
      %v452 = vpop.f32.mrf.mxu0
      %453 = vmatprep.mubr.bf16.mxu0 0
      %454 = vmatmul.mubr.bf16.gmra.mxu0 %v325
      %v455 = vpop.f32.mrf.mxu0
      %v456 = vadd.f32 0.0, %v455
      %v457 = vpop.f32.mrf.mxu0
      %v458 = vpop.f32.mrf.mxu0
      %v459 = vadd.f32 0.0, %v458
      %v460 = vpop.f32.mrf.mxu0
      %461 = vmatprep.mubr.bf16.mxu0 0
      %462 = vmatmul.mubr.bf16.gmra.mxu0 %v328
      %v463 = vpop.f32.mrf.mxu0
      %v464 = vadd.f32 0.0, %v463
      %v465 = vpop.f32.mrf.mxu0
      %v466 = vpop.f32.mrf.mxu0
      %v467 = vadd.f32 0.0, %v466
      %v468 = vpop.f32.mrf.mxu0
      %469 = vmatprep.mubr.bf16.mxu0 0
      %470 = vmatmul.mubr.bf16.gmra.mxu0 %v331
      %v471 = vpop.f32.mrf.mxu0
      %v472 = vadd.f32 0.0, %v471
      %v473 = vpop.f32.mrf.mxu0
      %v474 = vpop.f32.mrf.mxu0
      %v475 = vadd.f32 0.0, %v474
      %v476 = vpop.f32.mrf.mxu0
      %477 = vmatprep.mubr.bf16.mxu0 0
      %478 = vmatmul.mubr.bf16.gmra.mxu0 %v334
      %v479 = vpop.f32.mrf.mxu0
      %v480 = vadd.f32 0.0, %v479
      %v481 = vpop.f32.mrf.mxu0
      %v482 = vpop.f32.mrf.mxu0
      %v483 = vadd.f32 0.0, %v482
      %v484 = vpop.f32.mrf.mxu0
      %485 = vmatprep.mubr.bf16.mxu0 0
      %486 = vmatmul.mubr.bf16.gmra.mxu0 %v337
      %v487 = vpop.f32.mrf.mxu0
      %v488 = vadd.f32 0.0, %v487
      %v489 = vpop.f32.mrf.mxu0
      %v490 = vpop.f32.mrf.mxu0
      %v491 = vadd.f32 0.0, %v490
      %v492 = vpop.f32.mrf.mxu0
      %493 = vmatprep.mubr.bf16.mxu0 0
      %494 = vmatmul.mubr.bf16.gmra.mxu0 %v340
      %v495 = vpop.f32.mrf.mxu0
      %v496 = vadd.f32 0.0, %v495
      %v497 = vpop.f32.mrf.mxu0
      %v498 = vpop.f32.mrf.mxu0
      %v499 = vadd.f32 0.0, %v498
      %v500 = vpop.f32.mrf.mxu0
      %501 = vmatprep.mubr.bf16.mxu0 0
      %502 = vmatmul.mubr.bf16.gmra.mxu0 %v343
      %v503 = vpop.f32.mrf.mxu0
      %v504 = vadd.f32 0.0, %v503
      %v505 = vpop.f32.mrf.mxu0
      %v506 = vpop.f32.mrf.mxu0
      %v507 = vadd.f32 0.0, %v506
      %v508 = vpop.f32.mrf.mxu0
      %509 = vdwg.mxu0
      %vm510 = vcmask 523264
      %511 = vst.msk [vmem:[%s177] sm:$0xff] %vm510, %v384
      %512 = vst.msk [vmem:[%s177 + $0x8] sm:$0xff] %vm510, %v387
      %513 = vst.msk [vmem:[%s177 + $0x10] sm:$0xff] %vm510, %v392
      %514 = vst.msk [vmem:[%s177 + $0x18] sm:$0xff] %vm510, %v395
      %515 = vst.msk [vmem:[%s177 + $0x20] sm:$0xff] %vm510, %v400
      %516 = vst.msk [vmem:[%s177 + $0x28] sm:$0xff] %vm510, %v403
      %517 = vst.msk [vmem:[%s177 + $0x30] sm:$0xff] %vm510, %v408
      %518 = vst.msk [vmem:[%s177 + $0x38] sm:$0xff] %vm510, %v411
      %519 = vst.msk [vmem:[%s177 + $0x40] sm:$0xff] %vm510, %v416
      %520 = vst.msk [vmem:[%s177 + $0x48] sm:$0xff] %vm510, %v419
      %521 = vst.msk [vmem:[%s177 + $0x50] sm:$0xff] %vm510, %v424
      %522 = vst.msk [vmem:[%s177 + $0x58] sm:$0xff] %vm510, %v427
      %523 = vst.msk [vmem:[%s177 + $0x60] sm:$0xff] %vm510, %v432
      %524 = vst.msk [vmem:[%s177 + $0x68] sm:$0xff] %vm510, %v435
      %525 = vst.msk [vmem:[%s177 + $0x70] sm:$0xff] %vm510, %v440
      %526 = vst.msk [vmem:[%s177 + $0x78] sm:$0xff] %vm510, %v443
      %527 = vst.msk [vmem:[%s177 + $0x80] sm:$0xff] %vm510, %v448
      %528 = vst.msk [vmem:[%s177 + $0x88] sm:$0xff] %vm510, %v451
      %529 = vst.msk [vmem:[%s177 + $0x90] sm:$0xff] %vm510, %v456
      %530 = vst.msk [vmem:[%s177 + $0x98] sm:$0xff] %vm510, %v459
      %531 = vst.msk [vmem:[%s177 + $0xa0] sm:$0xff] %vm510, %v464
      %532 = vst.msk [vmem:[%s177 + $0xa8] sm:$0xff] %vm510, %v467
      %533 = vst.msk [vmem:[%s177 + $0xb0] sm:$0xff] %vm510, %v472
      %534 = vst.msk [vmem:[%s177 + $0xb8] sm:$0xff] %vm510, %v475
      %535 = vst.msk [vmem:[%s177 + $0xc0] sm:$0xff] %vm510, %v480
      %536 = vst.msk [vmem:[%s177 + $0xc8] sm:$0xff] %vm510, %v483
      %537 = vst.msk [vmem:[%s177 + $0xd0] sm:$0xff] %vm510, %v488
      %538 = vst.msk [vmem:[%s177 + $0xd8] sm:$0xff] %vm510, %v491
      %539 = vst.msk [vmem:[%s177 + $0xe0] sm:$0xff] %vm510, %v496
      %540 = vst.msk [vmem:[%s177 + $0xe8] sm:$0xff] %vm510, %v499
      %541 = vst.msk [vmem:[%s177 + $0xf0] sm:$0xff] %vm510, %v504
      %542 = vst.msk [vmem:[%s177 + $0xf8] sm:$0xff] %vm510, %v507
      %v543 = vsel %vm510, %v384, 0.0
      %v544 = vsel %vm510, %v387, 0.0
      %v545 = vadd.f32 %v543, %v544
      %v546 = vsel %vm510, %v392, 0.0
      %v547 = vadd.f32 %v545, %v546
      %v548 = vsel %vm510, %v395, 0.0
      %v549 = vadd.f32 %v547, %v548
      %v550 = vsel %vm510, %v400, 0.0
      %v551 = vadd.f32 %v549, %v550
      %v552 = vsel %vm510, %v403, 0.0
      %v553 = vadd.f32 %v551, %v552
      %v554 = vsel %vm510, %v408, 0.0
      %v555 = vadd.f32 %v553, %v554
      %v556 = vsel %vm510, %v411, 0.0
      %v557 = vadd.f32 %v555, %v556
      %v558 = vsel %vm510, %v416, 0.0
      %v559 = vadd.f32 %v557, %v558
      %v560 = vsel %vm510, %v419, 0.0
      %v561 = vadd.f32 %v559, %v560
      %v562 = vsel %vm510, %v424, 0.0
      %v563 = vadd.f32 %v561, %v562
      %v564 = vsel %vm510, %v427, 0.0
      %v565 = vadd.f32 %v563, %v564
      %v566 = vsel %vm510, %v432, 0.0
      %v567 = vadd.f32 %v565, %v566
      %v568 = vsel %vm510, %v435, 0.0
      %v569 = vadd.f32 %v567, %v568
      %v570 = vsel %vm510, %v440, 0.0
      %v571 = vadd.f32 %v569, %v570
      %v572 = vsel %vm510, %v443, 0.0
      %v573 = vadd.f32 %v571, %v572
      %v574 = vsel %vm510, %v448, 0.0
      %v575 = vadd.f32 %v573, %v574
      %v576 = vsel %vm510, %v451, 0.0
      %v577 = vadd.f32 %v575, %v576
      %v578 = vsel %vm510, %v456, 0.0
      %v579 = vadd.f32 %v577, %v578
      %v580 = vsel %vm510, %v459, 0.0
      %v581 = vadd.f32 %v579, %v580
      %v582 = vsel %vm510, %v464, 0.0
      %v583 = vadd.f32 %v581, %v582
      %v584 = vsel %vm510, %v467, 0.0
      %v585 = vadd.f32 %v583, %v584
      %v586 = vsel %vm510, %v472, 0.0
      %v587 = vadd.f32 %v585, %v586
      %v588 = vsel %vm510, %v475, 0.0
      %v589 = vadd.f32 %v587, %v588
      %v590 = vsel %vm510, %v480, 0.0
      %v591 = vadd.f32 %v589, %v590
      %v592 = vsel %vm510, %v483, 0.0
      %v593 = vadd.f32 %v591, %v592
      %v594 = vsel %vm510, %v488, 0.0
      %v595 = vadd.f32 %v593, %v594
      %v596 = vsel %vm510, %v491, 0.0
      %v597 = vadd.f32 %v595, %v596
      %v598 = vsel %vm510, %v496, 0.0
      %v599 = vadd.f32 %v597, %v598
      %v600 = vsel %vm510, %v499, 0.0
      %v601 = vadd.f32 %v599, %v600
      %v602 = vsel %vm510, %v504, 0.0
      %v603 = vadd.f32 %v601, %v602
      %v604 = vsel %vm510, %v507, 0.0
      %v605 = vadd.f32 %v603, %v604
      %v606 = vrot.slane %v605, 4
      %v607 = vadd.f32 %v605, %v606
      %v608 = vrot.slane %v607, 2
      %v609 = vadd.f32 %v607, %v608
      %v610 = vrot.slane %v609, 1
      %v611 = vadd.f32 %v609, %v610
      %v612 = vmul.f32 %v384, %v384
      %v613 = vmul.f32 %v387, %v387
      %v614 = vmul.f32 %v392, %v392
      %v615 = vmul.f32 %v395, %v395
      %v616 = vmul.f32 %v400, %v400
      %v617 = vmul.f32 %v403, %v403
      %v618 = vmul.f32 %v408, %v408
      %v619 = vmul.f32 %v411, %v411
      %v620 = vmul.f32 %v416, %v416
      %v621 = vmul.f32 %v419, %v419
      %v622 = vmul.f32 %v424, %v424
      %v623 = vmul.f32 %v427, %v427
      %v624 = vmul.f32 %v432, %v432
      %v625 = vmul.f32 %v435, %v435
      %v626 = vmul.f32 %v440, %v440
      %v627 = vmul.f32 %v443, %v443
      %v628 = vmul.f32 %v448, %v448
      %v629 = vmul.f32 %v451, %v451
      %v630 = vmul.f32 %v456, %v456
      %v631 = vmul.f32 %v459, %v459
      %v632 = vmul.f32 %v464, %v464
      %v633 = vmul.f32 %v467, %v467
      %v634 = vmul.f32 %v472, %v472
      %v635 = vmul.f32 %v475, %v475
      %v636 = vmul.f32 %v480, %v480
      %v637 = vmul.f32 %v483, %v483
      %v638 = vmul.f32 %v488, %v488
      %v639 = vmul.f32 %v491, %v491
      %v640 = vmul.f32 %v496, %v496
      %v641 = vmul.f32 %v499, %v499
      %v642 = vmul.f32 %v504, %v504
      %v643 = vmul.f32 %v507, %v507
      %v644 = vsel %vm510, %v612, 0.0
      %v645 = vsel %vm510, %v613, 0.0
      %v646 = vadd.f32 %v644, %v645
      %v647 = vsel %vm510, %v614, 0.0
      %v648 = vadd.f32 %v646, %v647
      %v649 = vsel %vm510, %v615, 0.0
      %v650 = vadd.f32 %v648, %v649
      %v651 = vsel %vm510, %v616, 0.0
      %v652 = vadd.f32 %v650, %v651
      %v653 = vsel %vm510, %v617, 0.0
      %v654 = vadd.f32 %v652, %v653
      %v655 = vsel %vm510, %v618, 0.0
      %v656 = vadd.f32 %v654, %v655
      %v657 = vsel %vm510, %v619, 0.0
      %v658 = vadd.f32 %v656, %v657
      %v659 = vsel %vm510, %v620, 0.0
      %v660 = vadd.f32 %v658, %v659
      %v661 = vsel %vm510, %v621, 0.0
      %v662 = vadd.f32 %v660, %v661
      %v663 = vsel %vm510, %v622, 0.0
      %v664 = vadd.f32 %v662, %v663
      %v665 = vsel %vm510, %v623, 0.0
      %v666 = vadd.f32 %v664, %v665
      %v667 = vsel %vm510, %v624, 0.0
      %v668 = vadd.f32 %v666, %v667
      %v669 = vsel %vm510, %v625, 0.0
      %v670 = vadd.f32 %v668, %v669
      %v671 = vsel %vm510, %v626, 0.0
      %v672 = vadd.f32 %v670, %v671
      %v673 = vsel %vm510, %v627, 0.0
      %v674 = vadd.f32 %v672, %v673
      %v675 = vsel %vm510, %v628, 0.0
      %v676 = vadd.f32 %v674, %v675
      %v677 = vsel %vm510, %v629, 0.0
      %v678 = vadd.f32 %v676, %v677
      %v679 = vsel %vm510, %v630, 0.0
      %v680 = vadd.f32 %v678, %v679
      %v681 = vsel %vm510, %v631, 0.0
      %v682 = vadd.f32 %v680, %v681
      %v683 = vsel %vm510, %v632, 0.0
      %v684 = vadd.f32 %v682, %v683
      %v685 = vsel %vm510, %v633, 0.0
      %v686 = vadd.f32 %v684, %v685
      %v687 = vsel %vm510, %v634, 0.0
      %v688 = vadd.f32 %v686, %v687
      %v689 = vsel %vm510, %v635, 0.0
      %v690 = vadd.f32 %v688, %v689
      %v691 = vsel %vm510, %v636, 0.0
      %v692 = vadd.f32 %v690, %v691
      %v693 = vsel %vm510, %v637, 0.0
      %v694 = vadd.f32 %v692, %v693
      %v695 = vsel %vm510, %v638, 0.0
      %v696 = vadd.f32 %v694, %v695
      %v697 = vsel %vm510, %v639, 0.0
      %v698 = vadd.f32 %v696, %v697
      %v699 = vsel %vm510, %v640, 0.0
      %v700 = vadd.f32 %v698, %v699
      %v701 = vsel %vm510, %v641, 0.0
      %v702 = vadd.f32 %v700, %v701
      %v703 = vsel %vm510, %v642, 0.0
      %v704 = vadd.f32 %v702, %v703
      %v705 = vsel %vm510, %v643, 0.0
      %v706 = vadd.f32 %v704, %v705
      %v707 = vrot.slane %v706, 4
      %v708 = vadd.f32 %v706, %v707
      %v709 = vrot.slane %v708, 2
      %v710 = vadd.f32 %v708, %v709
      %v711 = vrot.slane %v710, 1
      %v712 = vadd.f32 %v710, %v711
      %vm713 = vcmask 516096
      %714 = vst.msk [vmem:[%s181] sm:$0x1] %vm713, %v611
      %715 = vst.msk [vmem:[%s181 + $0x1] sm:$0x1] %vm713, %v712
      %p716 = scmp.lt.s32.totalorder %s15, 1
      %s717 = scalar_select %p716, %s15, 1
      %s718 = smul.addr %s717, 32
      %s719 = smul.addr %s718, 8
      %s720 = scalar_lea.vmem %s2, %s719
      %p721 = scmp.lt.s32.totalorder %s15, 1
      %s722 = scalar_select %p721, %s15, 1
      %s723 = smul.addr %s722, 2
      %s724 = scalar_lea.vmem %s3, %s723
      // Predicated region
      $region29: #{inception_b_forward.11} parent=27 // pred_check
        %p725 = pneg %p80
      $region30: #{inception_b_forward.11} parent=27 // pred_check_branch
        %727 = sbr.rel (%p725) target = $region32
      $region31: #{inception_b_forward.11} parent=27 // pred_region
        _
      $region32: #{inception_b_forward.11} parent=27 // pred_fallthru
        _
      // Predicated region
      $region33: #{inception_b_forward.11} parent=27 // pred_check
        %p728 = pneg %p106
      $region34: #{inception_b_forward.11} parent=27 // pred_check_branch
        %730 = sbr.rel (%p728) target = $region36
      $region35: #{inception_b_forward.11} parent=27 // pred_region
        _
      $region36: #{inception_b_forward.11} parent=27 // pred_fallthru
        _
    $region28: #{inception_b_forward.11} parent=5 // pred_fallthru
      _
    %p731 = scmp.le.s32.totalorder 2, %s10
    // Predicated region
    $region37: #{inception_b_forward.11} parent=5 // pred_check
      %p732 = pneg %p731
    $region38: #{inception_b_forward.11} parent=5 // pred_check_branch
      %734 = sbr.rel (%p732) target = $region40
    $region39: #{inception_b_forward.11} parent=5 // pred_region
      %s735 = ssub.s32 %s10, 2
      // Predicated region
      $region41: #{inception_b_forward.11} parent=39 // pred_check
        %p736 = pneg %p86
      $region42: #{inception_b_forward.11} parent=39 // pred_check_branch
        %738 = sbr.rel (%p736) target = $region44
      $region43: #{inception_b_forward.11} parent=39 // pred_region
        %p739 = scmp.lt.s32.totalorder %s16, 1
        %s740 = scalar_select %p739, %s16, 1
        %s741 = smul.addr %s740, 32
        %s742 = smul.addr %s741, 8
        %s743 = scalar_lea.vmem %s2, %s742
      $region44: #{inception_b_forward.11} parent=39 // pred_fallthru
        _
      // Predicated region
      $region45: #{inception_b_forward.11} parent=39 // pred_check
        %p744 = pneg %p112
      $region46: #{inception_b_forward.11} parent=39 // pred_check_branch
        %746 = sbr.rel (%p744) target = $region48
      $region47: #{inception_b_forward.11} parent=39 // pred_region
        %p747 = scmp.lt.s32.totalorder %s16, 1
        %s748 = scalar_select %p747, %s16, 1
        %s749 = smul.addr %s748, 2
        %s750 = scalar_lea.vmem %s3, %s749
      $region48: #{inception_b_forward.11} parent=39 // pred_fallthru
        _
    $region40: #{inception_b_forward.11} parent=5 // pred_fallthru
      _
  $region6: #{inception_b_forward.11} parent=0 // loop_footer
    %s14 = sadd.s32 1, %s10
  $region7: #{inception_b_forward.11} parent=0 // loop_footer_branch
    %9 = sbr.rel target = $region3
  $region8: #{inception_b_forward.11} parent=0 // loop_exit
    _

// kernel: inception_b_forward.12
$region0: #{inception_b_forward.12}
  #allocation0 [shape = 'u32[]', space=smem, size = 0x4, offset = 0x4, fixed_abs, tag = 'smem constant byte address 0x4 - core index']
  #allocation1 [shape = 'u32[144,128]{1,0:T(1,128)}', space=vmem, size = 0x12000, scoped, tag = 'internal scratch']
  %s0 = inlined_call_operand.vmem [shape: f32[2,256,64], index: 0, kind: input, shape index: {}]
  %s1 = inlined_call_operand.vmem [shape: f32[1,64], index: 1, kind: input, shape index: {}]
  %s2 = inlined_call_operand.vmem [shape: f32[1,64], index: 2, kind: input, shape index: {}]
  %s3 = inlined_call_operand.vmem [shape: bf16[2,256,64], index: 3, kind: output, shape index: {}]
  %s4 = sld [smem:[#allocation0]]
  $region45: #{inception_b_forward.12} parent=0
    _
  %s6 = ssub.s32 1, %s4
  %s7 = scalar_select 0, %s6, %s4
  loop: start=0, step=1, limit=4
  $region2: #{inception_b_forward.12} parent=0 // loop_pre_header
    _
  $region3: #{inception_b_forward.12} parent=0 // loop_header
    %s9 = sphi 0, %s13
    %p10 = scmp.ge.s32.totalorder %s9, 4
    %s19 = sphi 0, %s21
    %s22 = sphi 0, %s19
    %s23 = sphi 0, %s22
    %s39 = sphi 0, %s23
    %s43 = sphi 0, %s43
    %s45 = sphi 0, %s43
    %s46 = sphi 0, %s45
    %s60 = sphi 0, %s46
    %s64 = sphi 0, %s64
    %s66 = sphi 0, %s64
    %s67 = sphi 0, %s66
    %s81 = sphi 0, %s67
    %s87 = sphi 0, %s89
    %s90 = sphi 0, %s87
    %s91 = sphi 0, %s90
    %s107 = sphi 0, %s91
  $region4: #{inception_b_forward.12} parent=0 // loop_header_branch
    %12 = sbr.rel (%p10) target = $region8
  $region5: #{inception_b_forward.12} parent=0 // loop_body
    %s14 = ssub.s32 %s9, 1
    %s15 = ssub.s32 %s9, 2
    %s16 = sadd.s32 %s9, 1
    %s17 = ssub.s32 %s9, %s16
    %p18 = scmp.eq.s32.totalorder %s17, 0
    %s20 = sadd.s32 %s19, 1
    %s21 = scalar_select %p18, %s19, %s20
    %p24 = pneg %p18
    %p25 = scmp.eq.s32.totalorder %s9, 1
    %p26 = por %p24, %p25
    %p27 = scmp.ne.s32.totalorder %s19, %s22
    %p28 = scmp.eq.s32.totalorder %s9, 0
    %p29 = por %p27, %p28
    %p30 = scmp.ne.s32.totalorder %s19, %s22
    %p31 = scmp.eq.s32.totalorder %s14, 1
    %p32 = por %p30, %p31
    %p33 = scmp.ne.s32.totalorder %s22, %s23
    %p34 = scmp.eq.s32.totalorder %s14, 0
    %p35 = por %p33, %p34
    %p36 = scmp.ne.s32.totalorder %s22, %s23
    %p37 = scmp.eq.s32.totalorder %s15, 1
    %p38 = por %p36, %p37
    %p40 = scmp.ne.s32.totalorder %s23, %s39
    %p41 = scmp.eq.s32.totalorder %s15, 0
    %p42 = por %p40, %p41
    %s44 = sadd.s32 %s43, 1
    %p47 = scmp.eq.s32.totalorder %s9, 1
    %p48 = scmp.ne.s32.totalorder %s43, %s45
    %p49 = scmp.eq.s32.totalorder %s9, 0
    %p50 = por %p48, %p49
    %p51 = scmp.ne.s32.totalorder %s43, %s45
    %p52 = scmp.eq.s32.totalorder %s14, 1
    %p53 = por %p51, %p52
    %p54 = scmp.ne.s32.totalorder %s45, %s46
    %p55 = scmp.eq.s32.totalorder %s14, 0
    %p56 = por %p54, %p55
    %p57 = scmp.ne.s32.totalorder %s45, %s46
    %p58 = scmp.eq.s32.totalorder %s15, 1
    %p59 = por %p57, %p58
    %p61 = scmp.ne.s32.totalorder %s46, %s60
    %p62 = scmp.eq.s32.totalorder %s15, 0
    %p63 = por %p61, %p62
    %s65 = sadd.s32 %s64, 1
    %p68 = scmp.eq.s32.totalorder %s9, 1
    %p69 = scmp.ne.s32.totalorder %s64, %s66
    %p70 = scmp.eq.s32.totalorder %s9, 0
    %p71 = por %p69, %p70
    %p72 = scmp.ne.s32.totalorder %s64, %s66
    %p73 = scmp.eq.s32.totalorder %s14, 1
    %p74 = por %p72, %p73
    %p75 = scmp.ne.s32.totalorder %s66, %s67
    %p76 = scmp.eq.s32.totalorder %s14, 0
    %p77 = por %p75, %p76
    %p78 = scmp.ne.s32.totalorder %s66, %s67
    %p79 = scmp.eq.s32.totalorder %s15, 1
    %p80 = por %p78, %p79
    %p82 = scmp.ne.s32.totalorder %s67, %s81
    %p83 = scmp.eq.s32.totalorder %s15, 0
    %p84 = por %p82, %p83
    %s85 = ssub.s32 %s9, %s16
    %p86 = scmp.eq.s32.totalorder %s85, 0
    %s88 = sadd.s32 %s87, 1
    %s89 = scalar_select %p86, %s87, %s88
    %p92 = pneg %p86
    %p93 = scmp.eq.s32.totalorder %s9, 1
    %p94 = por %p92, %p93
    %p95 = scmp.ne.s32.totalorder %s87, %s90
    %p96 = scmp.eq.s32.totalorder %s9, 0
    %p97 = por %p95, %p96
    %p98 = scmp.ne.s32.totalorder %s87, %s90
    %p99 = scmp.eq.s32.totalorder %s14, 1
    %p100 = por %p98, %p99
    %p101 = scmp.ne.s32.totalorder %s90, %s91
    %p102 = scmp.eq.s32.totalorder %s14, 0
    %p103 = por %p101, %p102
    %p104 = scmp.ne.s32.totalorder %s90, %s91
    %p105 = scmp.eq.s32.totalorder %s15, 1
    %p106 = por %p104, %p105
    %p108 = scmp.ne.s32.totalorder %s91, %s107
    %p109 = scmp.eq.s32.totalorder %s15, 0
    %p110 = por %p108, %p109
    %p111 = scmp.le.s32.totalorder 1, %s9
    %p112 = scmp.lt.s32.totalorder %s9, 3
    %p113 = pnand %p111, %p112
    %p114 = pneg %p113
    // Predicated region
    $region9: #{inception_b_forward.12} parent=5 // pred_check
      _
    $region10: #{inception_b_forward.12} parent=5 // pred_check_branch
      %116 = sbr.rel (%p113) target = $region12
    $region11: #{inception_b_forward.12} parent=5 // pred_region
      %s117 = ssub.s32 %s9, 1
      // Predicated region
      $region13: #{inception_b_forward.12} parent=11 // pred_check
        %p118 = pneg %p56
      $region14: #{inception_b_forward.12} parent=11 // pred_check_branch
        %120 = sbr.rel (%p118) target = $region16
      $region15: #{inception_b_forward.12} parent=11 // pred_region
        _
      $region16: #{inception_b_forward.12} parent=11 // pred_fallthru
        _
      // Predicated region
      $region17: #{inception_b_forward.12} parent=11 // pred_check
        %p121 = pneg %p77
      $region18: #{inception_b_forward.12} parent=11 // pred_check_branch
        %123 = sbr.rel (%p121) target = $region20
      $region19: #{inception_b_forward.12} parent=11 // pred_region
        _
      $region20: #{inception_b_forward.12} parent=11 // pred_fallthru
        _
    $region12: #{inception_b_forward.12} parent=5 // pred_fallthru
      _
    %p124 = scmp.lt.s32.totalorder %s9, 2
    // Predicated region
    $region21: #{inception_b_forward.12} parent=5 // pred_check
      %p125 = pneg %p124
    $region22: #{inception_b_forward.12} parent=5 // pred_check_branch
      %127 = sbr.rel (%p125) target = $region24
    $region23: #{inception_b_forward.12} parent=5 // pred_region
      // Predicated region
      $region25: #{inception_b_forward.12} parent=23 // pred_check
        %p128 = pneg %p29
      $region26: #{inception_b_forward.12} parent=23 // pred_check_branch
        %130 = sbr.rel (%p128) target = $region28
      $region27: #{inception_b_forward.12} parent=23 // pred_region
        %p131 = scmp.lt.s32.totalorder %s9, 1
        %s132 = scalar_select %p131, %s9, 1
        %s133 = smul.addr %s132, 32
        %s134 = smul.addr %s133, 8
        %s135 = scalar_lea.vmem %s0, %s134
      $region28: #{inception_b_forward.12} parent=23 // pred_fallthru
        _
    $region24: #{inception_b_forward.12} parent=5 // pred_fallthru
      _
    %p136 = scmp.le.s32.totalorder 1, %s9
    %p137 = scmp.lt.s32.totalorder %s9, 3
    %p138 = pnand %p136, %p137
    %p139 = pneg %p138
    // Predicated region
    $region29: #{inception_b_forward.12} parent=5 // pred_check
      _
    $region30: #{inception_b_forward.12} parent=5 // pred_check_branch
      %141 = sbr.rel (%p138) target = $region32
    $region31: #{inception_b_forward.12} parent=5 // pred_region
      %s142 = ssub.s32 %s9, 1
      %p143 = scmp.lt.s32.totalorder %s14, 1
      %s144 = scalar_select %p143, %s14, 1
      %s145 = smul.addr %s144, 32
      %s146 = smul.addr %s145, 8
      %s147 = scalar_lea.vmem %s0, %s146
      %p148 = pneg %p35
      %p149 = pneg %p32
      %p150 = pneg %p56
      %p151 = pneg %p53
      %p152 = pneg %p77
      %p153 = pneg %p74
      %p154 = pneg %p103
      %p155 = pneg %p100
      %p156 = scmp.lt.s32.totalorder %s14, 1
      %s157 = scalar_select %p156, %s14, 1
      %s158 = smul.addr %s157, 32
      %s159 = smul.addr %s158, 4
      %s160 = scalar_lea.vmem %s3, %s159
      %p161 = scmp.lt.s32.totalorder %s14, 1
      %s162 = scalar_select %p161, %s14, 1
      %s163 = smul.addr %s162, 32
      %s164 = smul.addr %s163, 8
      %s165 = scalar_lea.vmem %s0, %s164
      %p166 = scmp.lt.s32.totalorder %s14, 1
      %s167 = scalar_select %p166, %s14, 1
      %s168 = smul.addr %s167, 32
      %s169 = smul.addr %s168, 4
      %s170 = scalar_lea.vmem %s3, %s169
      %v171 = vld [vmem:[%s165] sm:$0xff]
      %v172 = vld [vmem:[%s165 + $0x8] sm:$0xff]
      %v173 = vld [vmem:[%s165 + $0x10] sm:$0xff]
      %v174 = vld [vmem:[%s165 + $0x18] sm:$0xff]
      %v175 = vld [vmem:[%s165 + $0x20] sm:$0xff]
      %v176 = vld [vmem:[%s165 + $0x28] sm:$0xff]
      %v177 = vld [vmem:[%s165 + $0x30] sm:$0xff]
      %v178 = vld [vmem:[%s165 + $0x38] sm:$0xff]
      %v179 = vld [vmem:[%s165 + $0x40] sm:$0xff]
      %v180 = vld [vmem:[%s165 + $0x48] sm:$0xff]
      %v181 = vld [vmem:[%s165 + $0x50] sm:$0xff]
      %v182 = vld [vmem:[%s165 + $0x58] sm:$0xff]
      %v183 = vld [vmem:[%s165 + $0x60] sm:$0xff]
      %v184 = vld [vmem:[%s165 + $0x68] sm:$0xff]
      %v185 = vld [vmem:[%s165 + $0x70] sm:$0xff]
      %v186 = vld [vmem:[%s165 + $0x78] sm:$0xff]
      %v187 = vld [vmem:[%s165 + $0x80] sm:$0xff]
      %v188 = vld [vmem:[%s165 + $0x88] sm:$0xff]
      %v189 = vld [vmem:[%s165 + $0x90] sm:$0xff]
      %v190 = vld [vmem:[%s165 + $0x98] sm:$0xff]
      %v191 = vld [vmem:[%s165 + $0xa0] sm:$0xff]
      %v192 = vld [vmem:[%s165 + $0xa8] sm:$0xff]
      %v193 = vld [vmem:[%s165 + $0xb0] sm:$0xff]
      %v194 = vld [vmem:[%s165 + $0xb8] sm:$0xff]
      %v195 = vld [vmem:[%s165 + $0xc0] sm:$0xff]
      %v196 = vld [vmem:[%s165 + $0xc8] sm:$0xff]
      %v197 = vld [vmem:[%s165 + $0xd0] sm:$0xff]
      %v198 = vld [vmem:[%s165 + $0xd8] sm:$0xff]
      %v199 = vld [vmem:[%s165 + $0xe0] sm:$0xff]
      %v200 = vld [vmem:[%s165 + $0xe8] sm:$0xff]
      %v201 = vld [vmem:[%s165 + $0xf0] sm:$0xff]
      %v202 = vld [vmem:[%s165 + $0xf8] sm:$0xff]
      %v203 = vld [vmem:[%s1] sm:$0x1]
      %v205 = vlaneseq
      %v206 = vshrl.u32 %v205, 7
      %v207 = vsub.s32 0, %v206
      %v208 = vrot.slane %v203, %v207
      %v210 = vmul.f32 %v171, %v208
      %v211 = vmul.f32 %v172, %v208
      %v212 = vmul.f32 %v173, %v208
      %v213 = vmul.f32 %v174, %v208
      %v214 = vmul.f32 %v175, %v208
      %v215 = vmul.f32 %v176, %v208
      %v216 = vmul.f32 %v177, %v208
      %v217 = vmul.f32 %v178, %v208
      %v218 = vmul.f32 %v179, %v208
      %v219 = vmul.f32 %v180, %v208
      %v220 = vmul.f32 %v181, %v208
      %v221 = vmul.f32 %v182, %v208
      %v222 = vmul.f32 %v183, %v208
      %v223 = vmul.f32 %v184, %v208
      %v224 = vmul.f32 %v185, %v208
      %v225 = vmul.f32 %v186, %v208
      %v226 = vmul.f32 %v187, %v208
      %v227 = vmul.f32 %v188, %v208
      %v228 = vmul.f32 %v189, %v208
      %v229 = vmul.f32 %v190, %v208
      %v230 = vmul.f32 %v191, %v208
      %v231 = vmul.f32 %v192, %v208
      %v232 = vmul.f32 %v193, %v208
      %v233 = vmul.f32 %v194, %v208
      %v234 = vmul.f32 %v195, %v208
      %v235 = vmul.f32 %v196, %v208
      %v236 = vmul.f32 %v197, %v208
      %v237 = vmul.f32 %v198, %v208
      %v238 = vmul.f32 %v199, %v208
      %v239 = vmul.f32 %v200, %v208
      %v240 = vmul.f32 %v201, %v208
      %v241 = vmul.f32 %v202, %v208
      %v242 = vld [vmem:[%s2] sm:$0x1]
      %v244 = vlaneseq
      %v245 = vshrl.u32 %v244, 7
      %v246 = vsub.s32 0, %v245
      %v247 = vrot.slane %v242, %v246
      %v249 = vadd.f32 %v210, %v247
      %v250 = vadd.f32 %v211, %v247
      %v251 = vadd.f32 %v212, %v247
      %v252 = vadd.f32 %v213, %v247
      %v253 = vadd.f32 %v214, %v247
      %v254 = vadd.f32 %v215, %v247
      %v255 = vadd.f32 %v216, %v247
      %v256 = vadd.f32 %v217, %v247
      %v257 = vadd.f32 %v218, %v247
      %v258 = vadd.f32 %v219, %v247
      %v259 = vadd.f32 %v220, %v247
      %v260 = vadd.f32 %v221, %v247
      %v261 = vadd.f32 %v222, %v247
      %v262 = vadd.f32 %v223, %v247
      %v263 = vadd.f32 %v224, %v247
      %v264 = vadd.f32 %v225, %v247
      %v265 = vadd.f32 %v226, %v247
      %v266 = vadd.f32 %v227, %v247
      %v267 = vadd.f32 %v228, %v247
      %v268 = vadd.f32 %v229, %v247
      %v269 = vadd.f32 %v230, %v247
      %v270 = vadd.f32 %v231, %v247
      %v271 = vadd.f32 %v232, %v247
      %v272 = vadd.f32 %v233, %v247
      %v273 = vadd.f32 %v234, %v247
      %v274 = vadd.f32 %v235, %v247
      %v275 = vadd.f32 %v236, %v247
      %v276 = vadd.f32 %v237, %v247
      %v277 = vadd.f32 %v238, %v247
      %v278 = vadd.f32 %v239, %v247
      %v279 = vadd.f32 %v240, %v247
      %v280 = vadd.f32 %v241, %v247
      %v281 = vmax.f32 %v249, 0.0
      %v282 = vmax.f32 %v250, 0.0
      %v283 = vmax.f32 %v251, 0.0
      %v284 = vmax.f32 %v252, 0.0
      %v285 = vmax.f32 %v253, 0.0
      %v286 = vmax.f32 %v254, 0.0
      %v287 = vmax.f32 %v255, 0.0
      %v288 = vmax.f32 %v256, 0.0
      %v289 = vmax.f32 %v257, 0.0
      %v290 = vmax.f32 %v258, 0.0
      %v291 = vmax.f32 %v259, 0.0
      %v292 = vmax.f32 %v260, 0.0
      %v293 = vmax.f32 %v261, 0.0
      %v294 = vmax.f32 %v262, 0.0
      %v295 = vmax.f32 %v263, 0.0
      %v296 = vmax.f32 %v264, 0.0
      %v297 = vmax.f32 %v265, 0.0
      %v298 = vmax.f32 %v266, 0.0
      %v299 = vmax.f32 %v267, 0.0
      %v300 = vmax.f32 %v268, 0.0
      %v301 = vmax.f32 %v269, 0.0
      %v302 = vmax.f32 %v270, 0.0
      %v303 = vmax.f32 %v271, 0.0
      %v304 = vmax.f32 %v272, 0.0
      %v305 = vmax.f32 %v273, 0.0
      %v306 = vmax.f32 %v274, 0.0
      %v307 = vmax.f32 %v275, 0.0
      %v308 = vmax.f32 %v276, 0.0
      %v309 = vmax.f32 %v277, 0.0
      %v310 = vmax.f32 %v278, 0.0
      %v311 = vmax.f32 %v279, 0.0
      %v312 = vmax.f32 %v280, 0.0
      %v313 = vpack.c.bf16 %v282, %v281
      %v314 = vpack.c.bf16 %v284, %v283
      %v315 = vpack.c.bf16 %v286, %v285
      %v316 = vpack.c.bf16 %v288, %v287
      %v317 = vpack.c.bf16 %v290, %v289
      %v318 = vpack.c.bf16 %v292, %v291
      %v319 = vpack.c.bf16 %v294, %v293
      %v320 = vpack.c.bf16 %v296, %v295
      %v321 = vpack.c.bf16 %v298, %v297
      %v322 = vpack.c.bf16 %v300, %v299
      %v323 = vpack.c.bf16 %v302, %v301
      %v324 = vpack.c.bf16 %v304, %v303
      %v325 = vpack.c.bf16 %v306, %v305
      %v326 = vpack.c.bf16 %v308, %v307
      %v327 = vpack.c.bf16 %v310, %v309
      %v328 = vpack.c.bf16 %v312, %v311
      %v345 = vunpack.c.l.b16 %v313
      %v346 = vunpack.c.h.b16 %v313
      %v347 = vunpack.c.l.b16 %v314
      %v348 = vunpack.c.h.b16 %v314
      %v349 = vunpack.c.l.b16 %v315
      %v350 = vunpack.c.h.b16 %v315
      %v351 = vunpack.c.l.b16 %v316
      %v352 = vunpack.c.h.b16 %v316
      %v353 = vunpack.c.l.b16 %v317
      %v354 = vunpack.c.h.b16 %v317
      %v355 = vunpack.c.l.b16 %v318
      %v356 = vunpack.c.h.b16 %v318
      %v357 = vunpack.c.l.b16 %v319
      %v358 = vunpack.c.h.b16 %v319
      %v359 = vunpack.c.l.b16 %v320
      %v360 = vunpack.c.h.b16 %v320
      %v361 = vunpack.c.l.b16 %v321
      %v362 = vunpack.c.h.b16 %v321
      %v363 = vunpack.c.l.b16 %v322
      %v364 = vunpack.c.h.b16 %v322
      %v365 = vunpack.c.l.b16 %v323
      %v366 = vunpack.c.h.b16 %v323
      %v367 = vunpack.c.l.b16 %v324
      %v368 = vunpack.c.h.b16 %v324
      %v369 = vunpack.c.l.b16 %v325
      %v370 = vunpack.c.h.b16 %v325
      %v371 = vunpack.c.l.b16 %v326
      %v372 = vunpack.c.h.b16 %v326
      %v373 = vunpack.c.l.b16 %v327
      %v374 = vunpack.c.h.b16 %v327
      %v375 = vunpack.c.l.b16 %v328
      %v376 = vunpack.c.h.b16 %v328
      %v377 = vpack.c.b16 %v345, %v345
      %v378 = vpack.c.b16 %v346, %v346
      %v379 = vpack.c.b16 %v347, %v347
      %v380 = vpack.c.b16 %v348, %v348
      %v381 = vpack.c.b16 %v349, %v349
      %v382 = vpack.c.b16 %v350, %v350
      %v383 = vpack.c.b16 %v351, %v351
      %v384 = vpack.c.b16 %v352, %v352
      %v385 = vpack.c.b16 %v353, %v353
      %v386 = vpack.c.b16 %v354, %v354
      %v387 = vpack.c.b16 %v355, %v355
      %v388 = vpack.c.b16 %v356, %v356
      %v389 = vpack.c.b16 %v357, %v357
      %v390 = vpack.c.b16 %v358, %v358
      %v391 = vpack.c.b16 %v359, %v359
      %v392 = vpack.c.b16 %v360, %v360
      %v393 = vpack.c.b16 %v361, %v361
      %v394 = vpack.c.b16 %v362, %v362
      %v395 = vpack.c.b16 %v363, %v363
      %v396 = vpack.c.b16 %v364, %v364
      %v397 = vpack.c.b16 %v365, %v365
      %v398 = vpack.c.b16 %v366, %v366
      %v399 = vpack.c.b16 %v367, %v367
      %v400 = vpack.c.b16 %v368, %v368
      %v401 = vpack.c.b16 %v369, %v369
      %v402 = vpack.c.b16 %v370, %v370
      %v403 = vpack.c.b16 %v371, %v371
      %v404 = vpack.c.b16 %v372, %v372
      %v405 = vpack.c.b16 %v373, %v373
      %v406 = vpack.c.b16 %v374, %v374
      %v407 = vpack.c.b16 %v375, %v375
      %v408 = vpack.c.b16 %v376, %v376
      %vm441 = vcmask 519168
      %442 = vst.msk [vmem:[%s170] sm:$0xf] %vm441, %v377
      %443 = vst.msk [vmem:[%s170 + $0x4] sm:$0xf] %vm441, %v378
      %444 = vst.msk [vmem:[%s170 + $0x8] sm:$0xf] %vm441, %v379
      %445 = vst.msk [vmem:[%s170 + $0xc] sm:$0xf] %vm441, %v380
      %446 = vst.msk [vmem:[%s170 + $0x10] sm:$0xf] %vm441, %v381
      %447 = vst.msk [vmem:[%s170 + $0x14] sm:$0xf] %vm441, %v382
      %448 = vst.msk [vmem:[%s170 + $0x18] sm:$0xf] %vm441, %v383
      %449 = vst.msk [vmem:[%s170 + $0x1c] sm:$0xf] %vm441, %v384
      %450 = vst.msk [vmem:[%s170 + $0x20] sm:$0xf] %vm441, %v385
      %451 = vst.msk [vmem:[%s170 + $0x24] sm:$0xf] %vm441, %v386
      %452 = vst.msk [vmem:[%s170 + $0x28] sm:$0xf] %vm441, %v387
      %453 = vst.msk [vmem:[%s170 + $0x2c] sm:$0xf] %vm441, %v388
      %454 = vst.msk [vmem:[%s170 + $0x30] sm:$0xf] %vm441, %v389
      %455 = vst.msk [vmem:[%s170 + $0x34] sm:$0xf] %vm441, %v390
      %456 = vst.msk [vmem:[%s170 + $0x38] sm:$0xf] %vm441, %v391
      %457 = vst.msk [vmem:[%s170 + $0x3c] sm:$0xf] %vm441, %v392
      %458 = vst.msk [vmem:[%s170 + $0x40] sm:$0xf] %vm441, %v393
      %459 = vst.msk [vmem:[%s170 + $0x44] sm:$0xf] %vm441, %v394
      %460 = vst.msk [vmem:[%s170 + $0x48] sm:$0xf] %vm441, %v395
      %461 = vst.msk [vmem:[%s170 + $0x4c] sm:$0xf] %vm441, %v396
      %462 = vst.msk [vmem:[%s170 + $0x50] sm:$0xf] %vm441, %v397
      %463 = vst.msk [vmem:[%s170 + $0x54] sm:$0xf] %vm441, %v398
      %464 = vst.msk [vmem:[%s170 + $0x58] sm:$0xf] %vm441, %v399
      %465 = vst.msk [vmem:[%s170 + $0x5c] sm:$0xf] %vm441, %v400
      %466 = vst.msk [vmem:[%s170 + $0x60] sm:$0xf] %vm441, %v401
      %467 = vst.msk [vmem:[%s170 + $0x64] sm:$0xf] %vm441, %v402
      %468 = vst.msk [vmem:[%s170 + $0x68] sm:$0xf] %vm441, %v403
      %469 = vst.msk [vmem:[%s170 + $0x6c] sm:$0xf] %vm441, %v404
      %470 = vst.msk [vmem:[%s170 + $0x70] sm:$0xf] %vm441, %v405
      %471 = vst.msk [vmem:[%s170 + $0x74] sm:$0xf] %vm441, %v406
      %472 = vst.msk [vmem:[%s170 + $0x78] sm:$0xf] %vm441, %v407
      %473 = vst.msk [vmem:[%s170 + $0x7c] sm:$0xf] %vm441, %v408
      %p474 = scmp.lt.s32.totalorder %s14, 1
      %s475 = scalar_select %p474, %s14, 1
      %s476 = smul.addr %s475, 32
      %s477 = smul.addr %s476, 4
      %s478 = scalar_lea.vmem %s3, %s477
      // Predicated region
      $region33: #{inception_b_forward.12} parent=31 // pred_check
        %p479 = pneg %p100
      $region34: #{inception_b_forward.12} parent=31 // pred_check_branch
        %481 = sbr.rel (%p479) target = $region36
      $region35: #{inception_b_forward.12} parent=31 // pred_region
        _
      $region36: #{inception_b_forward.12} parent=31 // pred_fallthru
        _
    $region32: #{inception_b_forward.12} parent=5 // pred_fallthru
      _
    %p482 = scmp.le.s32.totalorder 2, %s9
    // Predicated region
    $region37: #{inception_b_forward.12} parent=5 // pred_check
      %p483 = pneg %p482
    $region38: #{inception_b_forward.12} parent=5 // pred_check_branch
      %485 = sbr.rel (%p483) target = $region40
    $region39: #{inception_b_forward.12} parent=5 // pred_region
      %s486 = ssub.s32 %s9, 2
      // Predicated region
      $region41: #{inception_b_forward.12} parent=39 // pred_check
        %p487 = pneg %p106
      $region42: #{inception_b_forward.12} parent=39 // pred_check_branch
        %489 = sbr.rel (%p487) target = $region44
      $region43: #{inception_b_forward.12} parent=39 // pred_region
        %p490 = scmp.lt.s32.totalorder %s15, 1
        %s491 = scalar_select %p490, %s15, 1
        %s492 = smul.addr %s491, 32
        %s493 = smul.addr %s492, 4
        %s494 = scalar_lea.vmem %s3, %s493
      $region44: #{inception_b_forward.12} parent=39 // pred_fallthru
        _
    $region40: #{inception_b_forward.12} parent=5 // pred_fallthru
      _
  $region6: #{inception_b_forward.12} parent=0 // loop_footer
    %s13 = sadd.s32 1, %s9
  $region7: #{inception_b_forward.12} parent=0 // loop_footer_branch
    %8 = sbr.rel target = $region3
  $region8: #{inception_b_forward.12} parent=0 // loop_exit
    _

// kernel: inception_b_forward.14
$region0: #{inception_b_forward.14}
  #allocation0 [shape = 'u32[]', space=smem, size = 0x4, offset = 0x4, fixed_abs, tag = 'smem constant byte address 0x4 - core index']
  #allocation1 [shape = 'u32[144,128]{1,0:T(1,128)}', space=vmem, size = 0x12000, scoped, tag = 'internal scratch']
  %s0 = inlined_call_operand.vmem [shape: f32[2,432,96], index: 0, kind: input, shape index: {}]
  %s1 = inlined_call_operand.vmem [shape: f32[1,96], index: 1, kind: input, shape index: {}]
  %s2 = inlined_call_operand.vmem [shape: f32[1,96], index: 2, kind: input, shape index: {}]
  %s3 = inlined_call_operand.vmem [shape: bf16[2,432,96], index: 3, kind: output, shape index: {}]
  %s4 = sld [smem:[#allocation0]]
  $region45: #{inception_b_forward.14} parent=0
    _
  %s6 = ssub.s32 1, %s4
  %s7 = scalar_select 0, %s6, %s4
  loop: start=0, step=1, limit=4
  $region2: #{inception_b_forward.14} parent=0 // loop_pre_header
    _
  $region3: #{inception_b_forward.14} parent=0 // loop_header
    %s9 = sphi 0, %s13
    %p10 = scmp.ge.s32.totalorder %s9, 4
    %s19 = sphi 0, %s21
    %s22 = sphi 0, %s19
    %s23 = sphi 0, %s22
    %s39 = sphi 0, %s23
    %s43 = sphi 0, %s43
    %s45 = sphi 0, %s43
    %s46 = sphi 0, %s45
    %s60 = sphi 0, %s46
    %s64 = sphi 0, %s64
    %s66 = sphi 0, %s64
    %s67 = sphi 0, %s66
    %s81 = sphi 0, %s67
    %s87 = sphi 0, %s89
    %s90 = sphi 0, %s87
    %s91 = sphi 0, %s90
    %s107 = sphi 0, %s91
  $region4: #{inception_b_forward.14} parent=0 // loop_header_branch
    %12 = sbr.rel (%p10) target = $region8
  $region5: #{inception_b_forward.14} parent=0 // loop_body
    %s14 = ssub.s32 %s9, 1
    %s15 = ssub.s32 %s9, 2
    %s16 = sadd.s32 %s9, 1
    %s17 = ssub.s32 %s9, %s16
    %p18 = scmp.eq.s32.totalorder %s17, 0
    %s20 = sadd.s32 %s19, 1
    %s21 = scalar_select %p18, %s19, %s20
    %p24 = pneg %p18
    %p25 = scmp.eq.s32.totalorder %s9, 1
    %p26 = por %p24, %p25
    %p27 = scmp.ne.s32.totalorder %s19, %s22
    %p28 = scmp.eq.s32.totalorder %s9, 0
    %p29 = por %p27, %p28
    %p30 = scmp.ne.s32.totalorder %s19, %s22
    %p31 = scmp.eq.s32.totalorder %s14, 1
    %p32 = por %p30, %p31
    %p33 = scmp.ne.s32.totalorder %s22, %s23
    %p34 = scmp.eq.s32.totalorder %s14, 0
    %p35 = por %p33, %p34
    %p36 = scmp.ne.s32.totalorder %s22, %s23
    %p37 = scmp.eq.s32.totalorder %s15, 1
    %p38 = por %p36, %p37
    %p40 = scmp.ne.s32.totalorder %s23, %s39
    %p41 = scmp.eq.s32.totalorder %s15, 0
    %p42 = por %p40, %p41
    %s44 = sadd.s32 %s43, 1
    %p47 = scmp.eq.s32.totalorder %s9, 1
    %p48 = scmp.ne.s32.totalorder %s43, %s45
    %p49 = scmp.eq.s32.totalorder %s9, 0
    %p50 = por %p48, %p49
    %p51 = scmp.ne.s32.totalorder %s43, %s45
    %p52 = scmp.eq.s32.totalorder %s14, 1
    %p53 = por %p51, %p52
    %p54 = scmp.ne.s32.totalorder %s45, %s46
    %p55 = scmp.eq.s32.totalorder %s14, 0
    %p56 = por %p54, %p55
    %p57 = scmp.ne.s32.totalorder %s45, %s46
    %p58 = scmp.eq.s32.totalorder %s15, 1
    %p59 = por %p57, %p58
    %p61 = scmp.ne.s32.totalorder %s46, %s60
    %p62 = scmp.eq.s32.totalorder %s15, 0
    %p63 = por %p61, %p62
    %s65 = sadd.s32 %s64, 1
    %p68 = scmp.eq.s32.totalorder %s9, 1
    %p69 = scmp.ne.s32.totalorder %s64, %s66
    %p70 = scmp.eq.s32.totalorder %s9, 0
    %p71 = por %p69, %p70
    %p72 = scmp.ne.s32.totalorder %s64, %s66
    %p73 = scmp.eq.s32.totalorder %s14, 1
    %p74 = por %p72, %p73
    %p75 = scmp.ne.s32.totalorder %s66, %s67
    %p76 = scmp.eq.s32.totalorder %s14, 0
    %p77 = por %p75, %p76
    %p78 = scmp.ne.s32.totalorder %s66, %s67
    %p79 = scmp.eq.s32.totalorder %s15, 1
    %p80 = por %p78, %p79
    %p82 = scmp.ne.s32.totalorder %s67, %s81
    %p83 = scmp.eq.s32.totalorder %s15, 0
    %p84 = por %p82, %p83
    %s85 = ssub.s32 %s9, %s16
    %p86 = scmp.eq.s32.totalorder %s85, 0
    %s88 = sadd.s32 %s87, 1
    %s89 = scalar_select %p86, %s87, %s88
    %p92 = pneg %p86
    %p93 = scmp.eq.s32.totalorder %s9, 1
    %p94 = por %p92, %p93
    %p95 = scmp.ne.s32.totalorder %s87, %s90
    %p96 = scmp.eq.s32.totalorder %s9, 0
    %p97 = por %p95, %p96
    %p98 = scmp.ne.s32.totalorder %s87, %s90
    %p99 = scmp.eq.s32.totalorder %s14, 1
    %p100 = por %p98, %p99
    %p101 = scmp.ne.s32.totalorder %s90, %s91
    %p102 = scmp.eq.s32.totalorder %s14, 0
    %p103 = por %p101, %p102
    %p104 = scmp.ne.s32.totalorder %s90, %s91
    %p105 = scmp.eq.s32.totalorder %s15, 1
    %p106 = por %p104, %p105
    %p108 = scmp.ne.s32.totalorder %s91, %s107
    %p109 = scmp.eq.s32.totalorder %s15, 0
    %p110 = por %p108, %p109
    %p111 = scmp.le.s32.totalorder 1, %s9
    %p112 = scmp.lt.s32.totalorder %s9, 3
    %p113 = pnand %p111, %p112
    %p114 = pneg %p113
    // Predicated region
    $region9: #{inception_b_forward.14} parent=5 // pred_check
      _
    $region10: #{inception_b_forward.14} parent=5 // pred_check_branch
      %116 = sbr.rel (%p113) target = $region12
    $region11: #{inception_b_forward.14} parent=5 // pred_region
      %s117 = ssub.s32 %s9, 1
      // Predicated region
      $region13: #{inception_b_forward.14} parent=11 // pred_check
        %p118 = pneg %p56
      $region14: #{inception_b_forward.14} parent=11 // pred_check_branch
        %120 = sbr.rel (%p118) target = $region16
      $region15: #{inception_b_forward.14} parent=11 // pred_region
        _
      $region16: #{inception_b_forward.14} parent=11 // pred_fallthru
        _
      // Predicated region
      $region17: #{inception_b_forward.14} parent=11 // pred_check
        %p121 = pneg %p77
      $region18: #{inception_b_forward.14} parent=11 // pred_check_branch
        %123 = sbr.rel (%p121) target = $region20
      $region19: #{inception_b_forward.14} parent=11 // pred_region
        _
      $region20: #{inception_b_forward.14} parent=11 // pred_fallthru
        _
    $region12: #{inception_b_forward.14} parent=5 // pred_fallthru
      _
    %p124 = scmp.lt.s32.totalorder %s9, 2
    // Predicated region
    $region21: #{inception_b_forward.14} parent=5 // pred_check
      %p125 = pneg %p124
    $region22: #{inception_b_forward.14} parent=5 // pred_check_branch
      %127 = sbr.rel (%p125) target = $region24
    $region23: #{inception_b_forward.14} parent=5 // pred_region
      // Predicated region
      $region25: #{inception_b_forward.14} parent=23 // pred_check
        %p128 = pneg %p29
      $region26: #{inception_b_forward.14} parent=23 // pred_check_branch
        %130 = sbr.rel (%p128) target = $region28
      $region27: #{inception_b_forward.14} parent=23 // pred_region
        %p131 = scmp.lt.s32.totalorder %s9, 1
        %s132 = scalar_select %p131, %s9, 1
        %s133 = smul.addr %s132, 54
        %s134 = smul.addr %s133, 8
        %s135 = scalar_lea.vmem %s0, %s134
      $region28: #{inception_b_forward.14} parent=23 // pred_fallthru
        _
    $region24: #{inception_b_forward.14} parent=5 // pred_fallthru
      _
    %p136 = scmp.le.s32.totalorder 1, %s9
    %p137 = scmp.lt.s32.totalorder %s9, 3
    %p138 = pnand %p136, %p137
    %p139 = pneg %p138
    // Predicated region
    $region29: #{inception_b_forward.14} parent=5 // pred_check
      _
    $region30: #{inception_b_forward.14} parent=5 // pred_check_branch
      %141 = sbr.rel (%p138) target = $region32
    $region31: #{inception_b_forward.14} parent=5 // pred_region
      %s142 = ssub.s32 %s9, 1
      %p143 = scmp.lt.s32.totalorder %s14, 1
      %s144 = scalar_select %p143, %s14, 1
      %s145 = smul.addr %s144, 54
      %s146 = smul.addr %s145, 8
      %s147 = scalar_lea.vmem %s0, %s146
      %p148 = pneg %p35
      %p149 = pneg %p32
      %p150 = pneg %p56
      %p151 = pneg %p53
      %p152 = pneg %p77
      %p153 = pneg %p74
      %p154 = pneg %p103
      %p155 = pneg %p100
      %p156 = scmp.lt.s32.totalorder %s14, 1
      %s157 = scalar_select %p156, %s14, 1
      %s158 = smul.addr %s157, 54
      %s159 = smul.addr %s158, 4
      %s160 = scalar_lea.vmem %s3, %s159
      %p161 = scmp.lt.s32.totalorder %s14, 1
      %s162 = scalar_select %p161, %s14, 1
      %s163 = smul.addr %s162, 54
      %s164 = smul.addr %s163, 8
      %s165 = scalar_lea.vmem %s0, %s164
      %p166 = scmp.lt.s32.totalorder %s14, 1
      %s167 = scalar_select %p166, %s14, 1
      %s168 = smul.addr %s167, 54
      %s169 = smul.addr %s168, 4
      %s170 = scalar_lea.vmem %s3, %s169
      %v171 = vld [vmem:[%s165] sm:$0xff]
      %v172 = vld [vmem:[%s165 + $0x8] sm:$0xff]
      %v173 = vld [vmem:[%s165 + $0x10] sm:$0xff]
      %v174 = vld [vmem:[%s165 + $0x18] sm:$0xff]
      %v175 = vld [vmem:[%s165 + $0x20] sm:$0xff]
      %v176 = vld [vmem:[%s165 + $0x28] sm:$0xff]
      %v177 = vld [vmem:[%s165 + $0x30] sm:$0xff]
      %v178 = vld [vmem:[%s165 + $0x38] sm:$0xff]
      %v179 = vld [vmem:[%s165 + $0x40] sm:$0xff]
      %v180 = vld [vmem:[%s165 + $0x48] sm:$0xff]
      %v181 = vld [vmem:[%s165 + $0x50] sm:$0xff]
      %v182 = vld [vmem:[%s165 + $0x58] sm:$0xff]
      %v183 = vld [vmem:[%s165 + $0x60] sm:$0xff]
      %v184 = vld [vmem:[%s165 + $0x68] sm:$0xff]
      %v185 = vld [vmem:[%s165 + $0x70] sm:$0xff]
      %v186 = vld [vmem:[%s165 + $0x78] sm:$0xff]
      %v187 = vld [vmem:[%s165 + $0x80] sm:$0xff]
      %v188 = vld [vmem:[%s165 + $0x88] sm:$0xff]
      %v189 = vld [vmem:[%s165 + $0x90] sm:$0xff]
      %v190 = vld [vmem:[%s165 + $0x98] sm:$0xff]
      %v191 = vld [vmem:[%s165 + $0xa0] sm:$0xff]
      %v192 = vld [vmem:[%s165 + $0xa8] sm:$0xff]
      %v193 = vld [vmem:[%s165 + $0xb0] sm:$0xff]
      %v194 = vld [vmem:[%s165 + $0xb8] sm:$0xff]
      %v195 = vld [vmem:[%s165 + $0xc0] sm:$0xff]
      %v196 = vld [vmem:[%s165 + $0xc8] sm:$0xff]
      %v197 = vld [vmem:[%s165 + $0xd0] sm:$0xff]
      %v198 = vld [vmem:[%s165 + $0xd8] sm:$0xff]
      %v199 = vld [vmem:[%s165 + $0xe0] sm:$0xff]
      %v200 = vld [vmem:[%s165 + $0xe8] sm:$0xff]
      %v201 = vld [vmem:[%s165 + $0xf0] sm:$0xff]
      %v202 = vld [vmem:[%s165 + $0xf8] sm:$0xff]
      %v203 = vld [vmem:[%s165 + $0x100] sm:$0xff]
      %v204 = vld [vmem:[%s165 + $0x108] sm:$0xff]
      %v205 = vld [vmem:[%s165 + $0x110] sm:$0xff]
      %v206 = vld [vmem:[%s165 + $0x118] sm:$0xff]
      %v207 = vld [vmem:[%s165 + $0x120] sm:$0xff]
      %v208 = vld [vmem:[%s165 + $0x128] sm:$0xff]
      %v209 = vld [vmem:[%s165 + $0x130] sm:$0xff]
      %v210 = vld [vmem:[%s165 + $0x138] sm:$0xff]
      %v211 = vld [vmem:[%s165 + $0x140] sm:$0xff]
      %v212 = vld [vmem:[%s165 + $0x148] sm:$0xff]
      %v213 = vld [vmem:[%s165 + $0x150] sm:$0xff]
      %v214 = vld [vmem:[%s165 + $0x158] sm:$0xff]
      %v215 = vld [vmem:[%s165 + $0x160] sm:$0xff]
      %v216 = vld [vmem:[%s165 + $0x168] sm:$0xff]
      %v217 = vld [vmem:[%s165 + $0x170] sm:$0xff]
      %v218 = vld [vmem:[%s165 + $0x178] sm:$0xff]
      %v219 = vld [vmem:[%s165 + $0x180] sm:$0xff]
      %v220 = vld [vmem:[%s165 + $0x188] sm:$0xff]
      %v221 = vld [vmem:[%s165 + $0x190] sm:$0xff]
      %v222 = vld [vmem:[%s165 + $0x198] sm:$0xff]
      %v223 = vld [vmem:[%s165 + $0x1a0] sm:$0xff]
      %v224 = vld [vmem:[%s165 + $0x1a8] sm:$0xff]
      %v225 = vld [vmem:[%s1] sm:$0x1]
      %v227 = vlaneseq
      %v228 = vshrl.u32 %v227, 7
      %v229 = vsub.s32 0, %v228
      %v230 = vrot.slane %v225, %v229
      %v232 = vmul.f32 %v171, %v230
      %v233 = vmul.f32 %v172, %v230
      %v234 = vmul.f32 %v173, %v230
      %v235 = vmul.f32 %v174, %v230
      %v236 = vmul.f32 %v175, %v230
      %v237 = vmul.f32 %v176, %v230
      %v238 = vmul.f32 %v177, %v230
      %v239 = vmul.f32 %v178, %v230
      %v240 = vmul.f32 %v179, %v230
      %v241 = vmul.f32 %v180, %v230
      %v242 = vmul.f32 %v181, %v230
      %v243 = vmul.f32 %v182, %v230
      %v244 = vmul.f32 %v183, %v230
      %v245 = vmul.f32 %v184, %v230
      %v246 = vmul.f32 %v185, %v230
      %v247 = vmul.f32 %v186, %v230
      %v248 = vmul.f32 %v187, %v230
      %v249 = vmul.f32 %v188, %v230
      %v250 = vmul.f32 %v189, %v230
      %v251 = vmul.f32 %v190, %v230
      %v252 = vmul.f32 %v191, %v230
      %v253 = vmul.f32 %v192, %v230
      %v254 = vmul.f32 %v193, %v230
      %v255 = vmul.f32 %v194, %v230
      %v256 = vmul.f32 %v195, %v230
      %v257 = vmul.f32 %v196, %v230
      %v258 = vmul.f32 %v197, %v230
      %v259 = vmul.f32 %v198, %v230
      %v260 = vmul.f32 %v199, %v230
      %v261 = vmul.f32 %v200, %v230
      %v262 = vmul.f32 %v201, %v230
      %v263 = vmul.f32 %v202, %v230
      %v264 = vmul.f32 %v203, %v230
      %v265 = vmul.f32 %v204, %v230
      %v266 = vmul.f32 %v205, %v230
      %v267 = vmul.f32 %v206, %v230
      %v268 = vmul.f32 %v207, %v230
      %v269 = vmul.f32 %v208, %v230
      %v270 = vmul.f32 %v209, %v230
      %v271 = vmul.f32 %v210, %v230
      %v272 = vmul.f32 %v211, %v230
      %v273 = vmul.f32 %v212, %v230
      %v274 = vmul.f32 %v213, %v230
      %v275 = vmul.f32 %v214, %v230
      %v276 = vmul.f32 %v215, %v230
      %v277 = vmul.f32 %v216, %v230
      %v278 = vmul.f32 %v217, %v230
      %v279 = vmul.f32 %v218, %v230
      %v280 = vmul.f32 %v219, %v230
      %v281 = vmul.f32 %v220, %v230
      %v282 = vmul.f32 %v221, %v230
      %v283 = vmul.f32 %v222, %v230
      %v284 = vmul.f32 %v223, %v230
      %v285 = vmul.f32 %v224, %v230
      %v286 = vld [vmem:[%s2] sm:$0x1]
      %v288 = vlaneseq
      %v289 = vshrl.u32 %v288, 7
      %v290 = vsub.s32 0, %v289
      %v291 = vrot.slane %v286, %v290
      %v293 = vadd.f32 %v232, %v291
      %v294 = vadd.f32 %v233, %v291
      %v295 = vadd.f32 %v234, %v291
      %v296 = vadd.f32 %v235, %v291
      %v297 = vadd.f32 %v236, %v291
      %v298 = vadd.f32 %v237, %v291
      %v299 = vadd.f32 %v238, %v291
      %v300 = vadd.f32 %v239, %v291
      %v301 = vadd.f32 %v240, %v291
      %v302 = vadd.f32 %v241, %v291
      %v303 = vadd.f32 %v242, %v291
      %v304 = vadd.f32 %v243, %v291
      %v305 = vadd.f32 %v244, %v291
      %v306 = vadd.f32 %v245, %v291
      %v307 = vadd.f32 %v246, %v291
      %v308 = vadd.f32 %v247, %v291
      %v309 = vadd.f32 %v248, %v291
      %v310 = vadd.f32 %v249, %v291
      %v311 = vadd.f32 %v250, %v291
      %v312 = vadd.f32 %v251, %v291
      %v313 = vadd.f32 %v252, %v291
      %v314 = vadd.f32 %v253, %v291
      %v315 = vadd.f32 %v254, %v291
      %v316 = vadd.f32 %v255, %v291
      %v317 = vadd.f32 %v256, %v291
      %v318 = vadd.f32 %v257, %v291
      %v319 = vadd.f32 %v258, %v291
      %v320 = vadd.f32 %v259, %v291
      %v321 = vadd.f32 %v260, %v291
      %v322 = vadd.f32 %v261, %v291
      %v323 = vadd.f32 %v262, %v291
      %v324 = vadd.f32 %v263, %v291
      %v325 = vadd.f32 %v264, %v291
      %v326 = vadd.f32 %v265, %v291
      %v327 = vadd.f32 %v266, %v291
      %v328 = vadd.f32 %v267, %v291
      %v329 = vadd.f32 %v268, %v291
      %v330 = vadd.f32 %v269, %v291
      %v331 = vadd.f32 %v270, %v291
      %v332 = vadd.f32 %v271, %v291
      %v333 = vadd.f32 %v272, %v291
      %v334 = vadd.f32 %v273, %v291
      %v335 = vadd.f32 %v274, %v291
      %v336 = vadd.f32 %v275, %v291
      %v337 = vadd.f32 %v276, %v291
      %v338 = vadd.f32 %v277, %v291
      %v339 = vadd.f32 %v278, %v291
      %v340 = vadd.f32 %v279, %v291
      %v341 = vadd.f32 %v280, %v291
      %v342 = vadd.f32 %v281, %v291
      %v343 = vadd.f32 %v282, %v291
      %v344 = vadd.f32 %v283, %v291
      %v345 = vadd.f32 %v284, %v291
      %v346 = vadd.f32 %v285, %v291
      %v347 = vmax.f32 %v293, 0.0
      %v348 = vmax.f32 %v294, 0.0
      %v349 = vmax.f32 %v295, 0.0
      %v350 = vmax.f32 %v296, 0.0
      %v351 = vmax.f32 %v297, 0.0
      %v352 = vmax.f32 %v298, 0.0
      %v353 = vmax.f32 %v299, 0.0
      %v354 = vmax.f32 %v300, 0.0
      %v355 = vmax.f32 %v301, 0.0
      %v356 = vmax.f32 %v302, 0.0
      %v357 = vmax.f32 %v303, 0.0
      %v358 = vmax.f32 %v304, 0.0
      %v359 = vmax.f32 %v305, 0.0
      %v360 = vmax.f32 %v306, 0.0
      %v361 = vmax.f32 %v307, 0.0
      %v362 = vmax.f32 %v308, 0.0
      %v363 = vmax.f32 %v309, 0.0
      %v364 = vmax.f32 %v310, 0.0
      %v365 = vmax.f32 %v311, 0.0
      %v366 = vmax.f32 %v312, 0.0
      %v367 = vmax.f32 %v313, 0.0
      %v368 = vmax.f32 %v314, 0.0
      %v369 = vmax.f32 %v315, 0.0
      %v370 = vmax.f32 %v316, 0.0
      %v371 = vmax.f32 %v317, 0.0
      %v372 = vmax.f32 %v318, 0.0
      %v373 = vmax.f32 %v319, 0.0
      %v374 = vmax.f32 %v320, 0.0
      %v375 = vmax.f32 %v321, 0.0
      %v376 = vmax.f32 %v322, 0.0
      %v377 = vmax.f32 %v323, 0.0
      %v378 = vmax.f32 %v324, 0.0
      %v379 = vmax.f32 %v325, 0.0
      %v380 = vmax.f32 %v326, 0.0
      %v381 = vmax.f32 %v327, 0.0
      %v382 = vmax.f32 %v328, 0.0
      %v383 = vmax.f32 %v329, 0.0
      %v384 = vmax.f32 %v330, 0.0
      %v385 = vmax.f32 %v331, 0.0
      %v386 = vmax.f32 %v332, 0.0
      %v387 = vmax.f32 %v333, 0.0
      %v388 = vmax.f32 %v334, 0.0
      %v389 = vmax.f32 %v335, 0.0
      %v390 = vmax.f32 %v336, 0.0
      %v391 = vmax.f32 %v337, 0.0
      %v392 = vmax.f32 %v338, 0.0
      %v393 = vmax.f32 %v339, 0.0
      %v394 = vmax.f32 %v340, 0.0
      %v395 = vmax.f32 %v341, 0.0
      %v396 = vmax.f32 %v342, 0.0
      %v397 = vmax.f32 %v343, 0.0
      %v398 = vmax.f32 %v344, 0.0
      %v399 = vmax.f32 %v345, 0.0
      %v400 = vmax.f32 %v346, 0.0
      %v401 = vpack.c.bf16 %v348, %v347
      %v402 = vpack.c.bf16 %v350, %v349
      %v403 = vpack.c.bf16 %v352, %v351
      %v404 = vpack.c.bf16 %v354, %v353
      %v405 = vpack.c.bf16 %v356, %v355
      %v406 = vpack.c.bf16 %v358, %v357
      %v407 = vpack.c.bf16 %v360, %v359
      %v408 = vpack.c.bf16 %v362, %v361
      %v409 = vpack.c.bf16 %v364, %v363
      %v410 = vpack.c.bf16 %v366, %v365
      %v411 = vpack.c.bf16 %v368, %v367
      %v412 = vpack.c.bf16 %v370, %v369
      %v413 = vpack.c.bf16 %v372, %v371
      %v414 = vpack.c.bf16 %v374, %v373
      %v415 = vpack.c.bf16 %v376, %v375
      %v416 = vpack.c.bf16 %v378, %v377
      %v417 = vpack.c.bf16 %v380, %v379
      %v418 = vpack.c.bf16 %v382, %v381
      %v419 = vpack.c.bf16 %v384, %v383
      %v420 = vpack.c.bf16 %v386, %v385
      %v421 = vpack.c.bf16 %v388, %v387
      %v422 = vpack.c.bf16 %v390, %v389
      %v423 = vpack.c.bf16 %v392, %v391
      %v424 = vpack.c.bf16 %v394, %v393
      %v425 = vpack.c.bf16 %v396, %v395
      %v426 = vpack.c.bf16 %v398, %v397
      %v427 = vpack.c.bf16 %v400, %v399
      %v455 = vunpack.c.l.b16 %v401
      %v456 = vunpack.c.h.b16 %v401
      %v457 = vunpack.c.l.b16 %v402
      %v458 = vunpack.c.h.b16 %v402
      %v459 = vunpack.c.l.b16 %v403
      %v460 = vunpack.c.h.b16 %v403
      %v461 = vunpack.c.l.b16 %v404
      %v462 = vunpack.c.h.b16 %v404
      %v463 = vunpack.c.l.b16 %v405
      %v464 = vunpack.c.h.b16 %v405
      %v465 = vunpack.c.l.b16 %v406
      %v466 = vunpack.c.h.b16 %v406
      %v467 = vunpack.c.l.b16 %v407
      %v468 = vunpack.c.h.b16 %v407
      %v469 = vunpack.c.l.b16 %v408
      %v470 = vunpack.c.h.b16 %v408
      %v471 = vunpack.c.l.b16 %v409
      %v472 = vunpack.c.h.b16 %v409
      %v473 = vunpack.c.l.b16 %v410
      %v474 = vunpack.c.h.b16 %v410
      %v475 = vunpack.c.l.b16 %v411
      %v476 = vunpack.c.h.b16 %v411
      %v477 = vunpack.c.l.b16 %v412
      %v478 = vunpack.c.h.b16 %v412
      %v479 = vunpack.c.l.b16 %v413
      %v480 = vunpack.c.h.b16 %v413
      %v481 = vunpack.c.l.b16 %v414
      %v482 = vunpack.c.h.b16 %v414
      %v483 = vunpack.c.l.b16 %v415
      %v484 = vunpack.c.h.b16 %v415
      %v485 = vunpack.c.l.b16 %v416
      %v486 = vunpack.c.h.b16 %v416
      %v487 = vunpack.c.l.b16 %v417
      %v488 = vunpack.c.h.b16 %v417
      %v489 = vunpack.c.l.b16 %v418
      %v490 = vunpack.c.h.b16 %v418
      %v491 = vunpack.c.l.b16 %v419
      %v492 = vunpack.c.h.b16 %v419
      %v493 = vunpack.c.l.b16 %v420
      %v494 = vunpack.c.h.b16 %v420
      %v495 = vunpack.c.l.b16 %v421
      %v496 = vunpack.c.h.b16 %v421
      %v497 = vunpack.c.l.b16 %v422
      %v498 = vunpack.c.h.b16 %v422
      %v499 = vunpack.c.l.b16 %v423
      %v500 = vunpack.c.h.b16 %v423
      %v501 = vunpack.c.l.b16 %v424
      %v502 = vunpack.c.h.b16 %v424
      %v503 = vunpack.c.l.b16 %v425
      %v504 = vunpack.c.h.b16 %v425
      %v505 = vunpack.c.l.b16 %v426
      %v506 = vunpack.c.h.b16 %v426
      %v507 = vunpack.c.l.b16 %v427
      %v508 = vunpack.c.h.b16 %v427
      %v509 = vpack.c.b16 %v455, %v455
      %v510 = vpack.c.b16 %v456, %v456
      %v511 = vpack.c.b16 %v457, %v457
      %v512 = vpack.c.b16 %v458, %v458
      %v513 = vpack.c.b16 %v459, %v459
      %v514 = vpack.c.b16 %v460, %v460
      %v515 = vpack.c.b16 %v461, %v461
      %v516 = vpack.c.b16 %v462, %v462
      %v517 = vpack.c.b16 %v463, %v463
      %v518 = vpack.c.b16 %v464, %v464
      %v519 = vpack.c.b16 %v465, %v465
      %v520 = vpack.c.b16 %v466, %v466
      %v521 = vpack.c.b16 %v467, %v467
      %v522 = vpack.c.b16 %v468, %v468
      %v523 = vpack.c.b16 %v469, %v469
      %v524 = vpack.c.b16 %v470, %v470
      %v525 = vpack.c.b16 %v471, %v471
      %v526 = vpack.c.b16 %v472, %v472
      %v527 = vpack.c.b16 %v473, %v473
      %v528 = vpack.c.b16 %v474, %v474
      %v529 = vpack.c.b16 %v475, %v475
      %v530 = vpack.c.b16 %v476, %v476
      %v531 = vpack.c.b16 %v477, %v477
      %v532 = vpack.c.b16 %v478, %v478
      %v533 = vpack.c.b16 %v479, %v479
      %v534 = vpack.c.b16 %v480, %v480
      %v535 = vpack.c.b16 %v481, %v481
      %v536 = vpack.c.b16 %v482, %v482
      %v537 = vpack.c.b16 %v483, %v483
      %v538 = vpack.c.b16 %v484, %v484
      %v539 = vpack.c.b16 %v485, %v485
      %v540 = vpack.c.b16 %v486, %v486
      %v541 = vpack.c.b16 %v487, %v487
      %v542 = vpack.c.b16 %v488, %v488
      %v543 = vpack.c.b16 %v489, %v489
      %v544 = vpack.c.b16 %v490, %v490
      %v545 = vpack.c.b16 %v491, %v491
      %v546 = vpack.c.b16 %v492, %v492
      %v547 = vpack.c.b16 %v493, %v493
      %v548 = vpack.c.b16 %v494, %v494
      %v549 = vpack.c.b16 %v495, %v495
      %v550 = vpack.c.b16 %v496, %v496
      %v551 = vpack.c.b16 %v497, %v497
      %v552 = vpack.c.b16 %v498, %v498
      %v553 = vpack.c.b16 %v499, %v499
      %v554 = vpack.c.b16 %v500, %v500
      %v555 = vpack.c.b16 %v501, %v501
      %v556 = vpack.c.b16 %v502, %v502
      %v557 = vpack.c.b16 %v503, %v503
      %v558 = vpack.c.b16 %v504, %v504
      %v559 = vpack.c.b16 %v505, %v505
      %v560 = vpack.c.b16 %v506, %v506
      %v561 = vpack.c.b16 %v507, %v507
      %v562 = vpack.c.b16 %v508, %v508
      %vm617 = vcmask 781312
      %618 = vst.msk [vmem:[%s170] sm:$0xf] %vm617, %v509
      %619 = vst.msk [vmem:[%s170 + $0x4] sm:$0xf] %vm617, %v510
      %620 = vst.msk [vmem:[%s170 + $0x8] sm:$0xf] %vm617, %v511
      %621 = vst.msk [vmem:[%s170 + $0xc] sm:$0xf] %vm617, %v512
      %622 = vst.msk [vmem:[%s170 + $0x10] sm:$0xf] %vm617, %v513
      %623 = vst.msk [vmem:[%s170 + $0x14] sm:$0xf] %vm617, %v514
      %624 = vst.msk [vmem:[%s170 + $0x18] sm:$0xf] %vm617, %v515
      %625 = vst.msk [vmem:[%s170 + $0x1c] sm:$0xf] %vm617, %v516
      %626 = vst.msk [vmem:[%s170 + $0x20] sm:$0xf] %vm617, %v517
      %627 = vst.msk [vmem:[%s170 + $0x24] sm:$0xf] %vm617, %v518
      %628 = vst.msk [vmem:[%s170 + $0x28] sm:$0xf] %vm617, %v519
      %629 = vst.msk [vmem:[%s170 + $0x2c] sm:$0xf] %vm617, %v520
      %630 = vst.msk [vmem:[%s170 + $0x30] sm:$0xf] %vm617, %v521
      %631 = vst.msk [vmem:[%s170 + $0x34] sm:$0xf] %vm617, %v522
      %632 = vst.msk [vmem:[%s170 + $0x38] sm:$0xf] %vm617, %v523
      %633 = vst.msk [vmem:[%s170 + $0x3c] sm:$0xf] %vm617, %v524
      %634 = vst.msk [vmem:[%s170 + $0x40] sm:$0xf] %vm617, %v525
      %635 = vst.msk [vmem:[%s170 + $0x44] sm:$0xf] %vm617, %v526
      %636 = vst.msk [vmem:[%s170 + $0x48] sm:$0xf] %vm617, %v527
      %637 = vst.msk [vmem:[%s170 + $0x4c] sm:$0xf] %vm617, %v528
      %638 = vst.msk [vmem:[%s170 + $0x50] sm:$0xf] %vm617, %v529
      %639 = vst.msk [vmem:[%s170 + $0x54] sm:$0xf] %vm617, %v530
      %640 = vst.msk [vmem:[%s170 + $0x58] sm:$0xf] %vm617, %v531
      %641 = vst.msk [vmem:[%s170 + $0x5c] sm:$0xf] %vm617, %v532
      %642 = vst.msk [vmem:[%s170 + $0x60] sm:$0xf] %vm617, %v533
      %643 = vst.msk [vmem:[%s170 + $0x64] sm:$0xf] %vm617, %v534
      %644 = vst.msk [vmem:[%s170 + $0x68] sm:$0xf] %vm617, %v535
      %645 = vst.msk [vmem:[%s170 + $0x6c] sm:$0xf] %vm617, %v536
      %646 = vst.msk [vmem:[%s170 + $0x70] sm:$0xf] %vm617, %v537
      %647 = vst.msk [vmem:[%s170 + $0x74] sm:$0xf] %vm617, %v538
      %648 = vst.msk [vmem:[%s170 + $0x78] sm:$0xf] %vm617, %v539
      %649 = vst.msk [vmem:[%s170 + $0x7c] sm:$0xf] %vm617, %v540
      %650 = vst.msk [vmem:[%s170 + $0x80] sm:$0xf] %vm617, %v541
      %651 = vst.msk [vmem:[%s170 + $0x84] sm:$0xf] %vm617, %v542
      %652 = vst.msk [vmem:[%s170 + $0x88] sm:$0xf] %vm617, %v543
      %653 = vst.msk [vmem:[%s170 + $0x8c] sm:$0xf] %vm617, %v544
      %654 = vst.msk [vmem:[%s170 + $0x90] sm:$0xf] %vm617, %v545
      %655 = vst.msk [vmem:[%s170 + $0x94] sm:$0xf] %vm617, %v546
      %656 = vst.msk [vmem:[%s170 + $0x98] sm:$0xf] %vm617, %v547
      %657 = vst.msk [vmem:[%s170 + $0x9c] sm:$0xf] %vm617, %v548
      %658 = vst.msk [vmem:[%s170 + $0xa0] sm:$0xf] %vm617, %v549
      %659 = vst.msk [vmem:[%s170 + $0xa4] sm:$0xf] %vm617, %v550
      %660 = vst.msk [vmem:[%s170 + $0xa8] sm:$0xf] %vm617, %v551
      %661 = vst.msk [vmem:[%s170 + $0xac] sm:$0xf] %vm617, %v552
      %662 = vst.msk [vmem:[%s170 + $0xb0] sm:$0xf] %vm617, %v553
      %663 = vst.msk [vmem:[%s170 + $0xb4] sm:$0xf] %vm617, %v554
      %664 = vst.msk [vmem:[%s170 + $0xb8] sm:$0xf] %vm617, %v555
      %665 = vst.msk [vmem:[%s170 + $0xbc] sm:$0xf] %vm617, %v556
      %666 = vst.msk [vmem:[%s170 + $0xc0] sm:$0xf] %vm617, %v557
      %667 = vst.msk [vmem:[%s170 + $0xc4] sm:$0xf] %vm617, %v558
      %668 = vst.msk [vmem:[%s170 + $0xc8] sm:$0xf] %vm617, %v559
      %669 = vst.msk [vmem:[%s170 + $0xcc] sm:$0xf] %vm617, %v560
      %670 = vst.msk [vmem:[%s170 + $0xd0] sm:$0xf] %vm617, %v561
      %671 = vst.msk [vmem:[%s170 + $0xd4] sm:$0xf] %vm617, %v562
      %p672 = scmp.lt.s32.totalorder %s14, 1
      %s673 = scalar_select %p672, %s14, 1
      %s674 = smul.addr %s673, 54
      %s675 = smul.addr %s674, 4
      %s676 = scalar_lea.vmem %s3, %s675
      // Predicated region
      $region33: #{inception_b_forward.14} parent=31 // pred_check
        %p677 = pneg %p100
      $region34: #{inception_b_forward.14} parent=31 // pred_check_branch
        %679 = sbr.rel (%p677) target = $region36
      $region35: #{inception_b_forward.14} parent=31 // pred_region
        _
      $region36: #{inception_b_forward.14} parent=31 // pred_fallthru
        _
    $region32: #{inception_b_forward.14} parent=5 // pred_fallthru
      _
    %p680 = scmp.le.s32.totalorder 2, %s9
    // Predicated region
    $region37: #{inception_b_forward.14} parent=5 // pred_check
      %p681 = pneg %p680
    $region38: #{inception_b_forward.14} parent=5 // pred_check_branch
      %683 = sbr.rel (%p681) target = $region40
    $region39: #{inception_b_forward.14} parent=5 // pred_region
      %s684 = ssub.s32 %s9, 2
      // Predicated region
      $region41: #{inception_b_forward.14} parent=39 // pred_check
        %p685 = pneg %p106
      $region42: #{inception_b_forward.14} parent=39 // pred_check_branch
        %687 = sbr.rel (%p685) target = $region44
      $region43: #{inception_b_forward.14} parent=39 // pred_region
        %p688 = scmp.lt.s32.totalorder %s15, 1
        %s689 = scalar_select %p688, %s15, 1
        %s690 = smul.addr %s689, 54
        %s691 = smul.addr %s690, 4
        %s692 = scalar_lea.vmem %s3, %s691
      $region44: #{inception_b_forward.14} parent=39 // pred_fallthru
        _
    $region40: #{inception_b_forward.14} parent=5 // pred_fallthru
      _
  $region6: #{inception_b_forward.14} parent=0 // loop_footer
    %s13 = sadd.s32 1, %s9
  $region7: #{inception_b_forward.14} parent=0 // loop_footer_branch
    %8 = sbr.rel target = $region3
  $region8: #{inception_b_forward.14} parent=0 // loop_exit
    _

// kernel: inception_b_forward.13
$region0: #{inception_b_forward.13}
  #allocation0 [shape = 'u32[]', space=smem, size = 0x4, offset = 0x4, fixed_abs, tag = 'smem constant byte address 0x4 - core index']
  #allocation1 [shape = 'u32[144,128]{1,0:T(1,128)}', space=vmem, size = 0x12000, scoped, tag = 'internal scratch']
  %s0 = inlined_call_operand.vmem [shape: bf16[2,488,64], index: 0, kind: input, shape index: {}]
  %s1 = inlined_call_operand.vmem [shape: bf16[576,96], index: 1, kind: input, shape index: {}]
  %s2 = inlined_call_operand.vmem [shape: f32[2,432,96], index: 2, kind: output, shape index: {0}]
  %s3 = inlined_call_operand.vmem [shape: f32[2,2,96], index: 3, kind: output, shape index: {1}]
  %4 = xla_tuple %s2, %s3
  %s5 = sld [smem:[#allocation0]]
  $region49: #{inception_b_forward.13} parent=0
    _
  %s7 = ssub.s32 1, %s5
  %s8 = scalar_select 0, %s7, %s5
  loop: start=0, step=1, limit=4
  $region2: #{inception_b_forward.13} parent=0 // loop_pre_header
    _
  $region3: #{inception_b_forward.13} parent=0 // loop_header
    %s10 = sphi 0, %s14
    %p11 = scmp.ge.s32.totalorder %s10, 4
    %s20 = sphi 0, %s22
    %s23 = sphi 0, %s20
    %s24 = sphi 0, %s23
    %s40 = sphi 0, %s24
    %s44 = sphi 0, %s44
    %s46 = sphi 0, %s44
    %s47 = sphi 0, %s46
    %s61 = sphi 0, %s47
    %s67 = sphi 0, %s69
    %s70 = sphi 0, %s67
    %s71 = sphi 0, %s70
    %s87 = sphi 0, %s71
    %s93 = sphi 0, %s95
    %s96 = sphi 0, %s93
    %s97 = sphi 0, %s96
    %s113 = sphi 0, %s97
  $region4: #{inception_b_forward.13} parent=0 // loop_header_branch
    %13 = sbr.rel (%p11) target = $region8
  $region5: #{inception_b_forward.13} parent=0 // loop_body
    %s15 = ssub.s32 %s10, 1
    %s16 = ssub.s32 %s10, 2
    %s17 = sadd.s32 %s10, 1
    %s18 = ssub.s32 %s10, %s17
    %p19 = scmp.eq.s32.totalorder %s18, 0
    %s21 = sadd.s32 %s20, 1
    %s22 = scalar_select %p19, %s20, %s21
    %p25 = pneg %p19
    %p26 = scmp.eq.s32.totalorder %s10, 1
    %p27 = por %p25, %p26
    %p28 = scmp.ne.s32.totalorder %s20, %s23
    %p29 = scmp.eq.s32.totalorder %s10, 0
    %p30 = por %p28, %p29
    %p31 = scmp.ne.s32.totalorder %s20, %s23
    %p32 = scmp.eq.s32.totalorder %s15, 1
    %p33 = por %p31, %p32
    %p34 = scmp.ne.s32.totalorder %s23, %s24
    %p35 = scmp.eq.s32.totalorder %s15, 0
    %p36 = por %p34, %p35
    %p37 = scmp.ne.s32.totalorder %s23, %s24
    %p38 = scmp.eq.s32.totalorder %s16, 1
    %p39 = por %p37, %p38
    %p41 = scmp.ne.s32.totalorder %s24, %s40
    %p42 = scmp.eq.s32.totalorder %s16, 0
    %p43 = por %p41, %p42
    %s45 = sadd.s32 %s44, 1
    %p48 = scmp.eq.s32.totalorder %s10, 1
    %p49 = scmp.ne.s32.totalorder %s44, %s46
    %p50 = scmp.eq.s32.totalorder %s10, 0
    %p51 = por %p49, %p50
    %p52 = scmp.ne.s32.totalorder %s44, %s46
    %p53 = scmp.eq.s32.totalorder %s15, 1
    %p54 = por %p52, %p53
    %p55 = scmp.ne.s32.totalorder %s46, %s47
    %p56 = scmp.eq.s32.totalorder %s15, 0
    %p57 = por %p55, %p56
    %p58 = scmp.ne.s32.totalorder %s46, %s47
    %p59 = scmp.eq.s32.totalorder %s16, 1
    %p60 = por %p58, %p59
    %p62 = scmp.ne.s32.totalorder %s47, %s61
    %p63 = scmp.eq.s32.totalorder %s16, 0
    %p64 = por %p62, %p63
    %s65 = ssub.s32 %s10, %s17
    %p66 = scmp.eq.s32.totalorder %s65, 0
    %s68 = sadd.s32 %s67, 1
    %s69 = scalar_select %p66, %s67, %s68
    %p72 = pneg %p66
    %p73 = scmp.eq.s32.totalorder %s10, 1
    %p74 = por %p72, %p73
    %p75 = scmp.ne.s32.totalorder %s67, %s70
    %p76 = scmp.eq.s32.totalorder %s10, 0
    %p77 = por %p75, %p76
    %p78 = scmp.ne.s32.totalorder %s67, %s70
    %p79 = scmp.eq.s32.totalorder %s15, 1
    %p80 = por %p78, %p79
    %p81 = scmp.ne.s32.totalorder %s70, %s71
    %p82 = scmp.eq.s32.totalorder %s15, 0
    %p83 = por %p81, %p82
    %p84 = scmp.ne.s32.totalorder %s70, %s71
    %p85 = scmp.eq.s32.totalorder %s16, 1
    %p86 = por %p84, %p85
    %p88 = scmp.ne.s32.totalorder %s71, %s87
    %p89 = scmp.eq.s32.totalorder %s16, 0
    %p90 = por %p88, %p89
    %s91 = ssub.s32 %s10, %s17
    %p92 = scmp.eq.s32.totalorder %s91, 0
    %s94 = sadd.s32 %s93, 1
    %s95 = scalar_select %p92, %s93, %s94
    %p98 = pneg %p92
    %p99 = scmp.eq.s32.totalorder %s10, 1
    %p100 = por %p98, %p99
    %p101 = scmp.ne.s32.totalorder %s93, %s96
    %p102 = scmp.eq.s32.totalorder %s10, 0
    %p103 = por %p101, %p102
    %p104 = scmp.ne.s32.totalorder %s93, %s96
    %p105 = scmp.eq.s32.totalorder %s15, 1
    %p106 = por %p104, %p105
    %p107 = scmp.ne.s32.totalorder %s96, %s97
    %p108 = scmp.eq.s32.totalorder %s15, 0
    %p109 = por %p107, %p108
    %p110 = scmp.ne.s32.totalorder %s96, %s97
    %p111 = scmp.eq.s32.totalorder %s16, 1
    %p112 = por %p110, %p111
    %p114 = scmp.ne.s32.totalorder %s97, %s113
    %p115 = scmp.eq.s32.totalorder %s16, 0
    %p116 = por %p114, %p115
    %p117 = scmp.le.s32.totalorder 1, %s10
    %p118 = scmp.lt.s32.totalorder %s10, 3
    %p119 = pnand %p117, %p118
    %p120 = pneg %p119
    // Predicated region
    $region9: #{inception_b_forward.13} parent=5 // pred_check
      _
    $region10: #{inception_b_forward.13} parent=5 // pred_check_branch
      %122 = sbr.rel (%p119) target = $region12
    $region11: #{inception_b_forward.13} parent=5 // pred_region
      %s123 = ssub.s32 %s10, 1
      // Predicated region
      $region13: #{inception_b_forward.13} parent=11 // pred_check
        %p124 = pneg %p57
      $region14: #{inception_b_forward.13} parent=11 // pred_check_branch
        %126 = sbr.rel (%p124) target = $region16
      $region15: #{inception_b_forward.13} parent=11 // pred_region
        _
      $region16: #{inception_b_forward.13} parent=11 // pred_fallthru
        _
    $region12: #{inception_b_forward.13} parent=5 // pred_fallthru
      _
    %p127 = scmp.lt.s32.totalorder %s10, 2
    // Predicated region
    $region17: #{inception_b_forward.13} parent=5 // pred_check
      %p128 = pneg %p127
    $region18: #{inception_b_forward.13} parent=5 // pred_check_branch
      %130 = sbr.rel (%p128) target = $region20
    $region19: #{inception_b_forward.13} parent=5 // pred_region
      // Predicated region
      $region21: #{inception_b_forward.13} parent=19 // pred_check
        %p131 = pneg %p30
      $region22: #{inception_b_forward.13} parent=19 // pred_check_branch
        %133 = sbr.rel (%p131) target = $region24
      $region23: #{inception_b_forward.13} parent=19 // pred_region
        %p134 = scmp.lt.s32.totalorder %s10, 1
        %s135 = scalar_select %p134, %s10, 1
        %s136 = smul.addr %s135, 61
        %s137 = smul.addr %s136, 4
        %s138 = scalar_lea.vmem %s0, %s137
      $region24: #{inception_b_forward.13} parent=19 // pred_fallthru
        _
    $region20: #{inception_b_forward.13} parent=5 // pred_fallthru
      _
    %p139 = scmp.le.s32.totalorder 1, %s10
    %p140 = scmp.lt.s32.totalorder %s10, 3
    %p141 = pnand %p139, %p140
    %p142 = pneg %p141
    // Predicated region
    $region25: #{inception_b_forward.13} parent=5 // pred_check
      _
    $region26: #{inception_b_forward.13} parent=5 // pred_check_branch
      %144 = sbr.rel (%p141) target = $region28
    $region27: #{inception_b_forward.13} parent=5 // pred_region
      %s145 = ssub.s32 %s10, 1
      %p146 = scmp.lt.s32.totalorder %s15, 1
      %s147 = scalar_select %p146, %s15, 1
      %s148 = smul.addr %s147, 61
      %s149 = smul.addr %s148, 4
      %s150 = scalar_lea.vmem %s0, %s149
      %p151 = pneg %p36
      %p152 = pneg %p33
      %p153 = pneg %p57
      %p154 = pneg %p54
      %p155 = pneg %p83
      %p156 = pneg %p80
      %p157 = scmp.lt.s32.totalorder %s15, 1
      %s158 = scalar_select %p157, %s15, 1
      %s159 = smul.addr %s158, 54
      %s160 = smul.addr %s159, 8
      %s161 = scalar_lea.vmem %s2, %s160
      %p162 = pneg %p109
      %p163 = pneg %p106
      %p164 = scmp.lt.s32.totalorder %s15, 1
      %s165 = scalar_select %p164, %s15, 1
      %s166 = smul.addr %s165, 2
      %s167 = scalar_lea.vmem %s3, %s166
      %p168 = scmp.lt.s32.totalorder %s15, 1
      %s169 = scalar_select %p168, %s15, 1
      %s170 = smul.addr %s169, 61
      %s171 = smul.addr %s170, 4
      %s172 = scalar_lea.vmem %s0, %s171
      %p173 = scmp.lt.s32.totalorder %s15, 1
      %s174 = scalar_select %p173, %s15, 1
      %s175 = smul.addr %s174, 54
      %s176 = smul.addr %s175, 8
      %s177 = scalar_lea.vmem %s2, %s176
      %p178 = scmp.lt.s32.totalorder %s15, 1
      %s179 = scalar_select %p178, %s15, 1
      %s180 = smul.addr %s179, 2
      %s181 = scalar_lea.vmem %s3, %s180
      %v183 = vld [vmem:[%s172] sm:$0xf]
      %v184 = vld [vmem:[%s172 + $0x4] sm:$0xf]
      %v185 = vld [vmem:[%s172 + $0x8] sm:$0xf]
      %v186 = vld [vmem:[%s172 + $0xc] sm:$0xf]
      %v187 = vld [vmem:[%s172 + $0x10] sm:$0xf]
      %v188 = vld [vmem:[%s172 + $0x14] sm:$0xf]
      %v189 = vld [vmem:[%s172 + $0x18] sm:$0xf]
      %v190 = vld [vmem:[%s172 + $0x1c] sm:$0xf]
      %v191 = vld [vmem:[%s172 + $0x20] sm:$0xf]
      %v192 = vld [vmem:[%s172 + $0x24] sm:$0xf]
      %v193 = vld [vmem:[%s172 + $0x28] sm:$0xf]
      %v194 = vld [vmem:[%s172 + $0x2c] sm:$0xf]
      %v195 = vld [vmem:[%s172 + $0x30] sm:$0xf]
      %v196 = vld [vmem:[%s172 + $0x34] sm:$0xf]
      %v197 = vld [vmem:[%s172 + $0x38] sm:$0xf]
      %v198 = vld [vmem:[%s172 + $0x3c] sm:$0xf]
      %v199 = vld [vmem:[%s172 + $0x40] sm:$0xf]
      %v200 = vld [vmem:[%s172 + $0x44] sm:$0xf]
      %v201 = vld [vmem:[%s172 + $0x48] sm:$0xf]
      %v202 = vld [vmem:[%s172 + $0x4c] sm:$0xf]
      %v203 = vld [vmem:[%s172 + $0x50] sm:$0xf]
      %v204 = vld [vmem:[%s172 + $0x54] sm:$0xf]
      %v205 = vld [vmem:[%s172 + $0x58] sm:$0xf]
      %v206 = vld [vmem:[%s172 + $0x5c] sm:$0xf]
      %v207 = vld [vmem:[%s172 + $0x60] sm:$0xf]
      %v208 = vld [vmem:[%s172 + $0x64] sm:$0xf]
      %v209 = vld [vmem:[%s172 + $0x68] sm:$0xf]
      %v210 = vld [vmem:[%s172 + $0x6c] sm:$0xf]
      %v211 = vld [vmem:[%s172 + $0x70] sm:$0xf]
      %v212 = vld [vmem:[%s172 + $0x74] sm:$0xf]
      %v213 = vld [vmem:[%s172 + $0x78] sm:$0xf]
      %v214 = vld [vmem:[%s172 + $0x7c] sm:$0xf]
      %v215 = vld [vmem:[%s172 + $0x80] sm:$0xf]
      %v216 = vld [vmem:[%s172 + $0x84] sm:$0xf]
      %v217 = vld [vmem:[%s172 + $0x88] sm:$0xf]
      %v218 = vld [vmem:[%s172 + $0x8c] sm:$0xf]
      %v219 = vld [vmem:[%s172 + $0x90] sm:$0xf]
      %v220 = vld [vmem:[%s172 + $0x94] sm:$0xf]
      %v221 = vld [vmem:[%s172 + $0x98] sm:$0xf]
      %v222 = vld [vmem:[%s172 + $0x9c] sm:$0xf]
      %v223 = vld [vmem:[%s172 + $0xa0] sm:$0xf]
      %v224 = vld [vmem:[%s172 + $0xa4] sm:$0xf]
      %v225 = vld [vmem:[%s172 + $0xa8] sm:$0xf]
      %v226 = vld [vmem:[%s172 + $0xac] sm:$0xf]
      %v227 = vld [vmem:[%s172 + $0xb0] sm:$0xf]
      %v228 = vld [vmem:[%s172 + $0xb4] sm:$0xf]
      %v229 = vld [vmem:[%s172 + $0xb8] sm:$0xf]
      %v230 = vld [vmem:[%s172 + $0xbc] sm:$0xf]
      %v231 = vld [vmem:[%s172 + $0xc0] sm:$0xf]
      %v232 = vld [vmem:[%s172 + $0xc4] sm:$0xf]
      %v233 = vld [vmem:[%s172 + $0xc8] sm:$0xf]
      %v234 = vld [vmem:[%s172 + $0xcc] sm:$0xf]
      %v235 = vld [vmem:[%s172 + $0xd0] sm:$0xf]
      %v236 = vld [vmem:[%s172 + $0xd4] sm:$0xf]
      %v237 = vld [vmem:[%s172 + $0xd8] sm:$0x1]
      %v238 = vld [vmem:[%s172] sm:$0xe]
      %v239 = vld [vmem:[%s172 + $0xd8] sm:$0xf]
      %v240 = vld [vmem:[%s172 + $0xdc] sm:$0xf]
      %v241 = vld [vmem:[%s172 + $0xe0] sm:$0xf]
      %v242 = vld [vmem:[%s172 + $0xe4] sm:$0x1]
      %v243 = vld [vmem:[%s172 + $0xc] sm:$0xe]
      %v244 = vld [vmem:[%s172 + $0xe4] sm:$0xf]
      %v245 = vld [vmem:[%s172 + $0xe8] sm:$0xf]
      %v246 = vld [vmem:[%s172 + $0xec] sm:$0xf]
      %v247 = vld [vmem:[%s172 + $0xf0] sm:$0x1]
      %v248 = vld [vmem:[%s172 + $0x18] sm:$0xe]
      %v303 = vunpack.c.l.b16 %v183
      %v304 = vunpack.c.l.b16 %v184
      %v305 = vunpack.c.l.b16 %v185
      %v306 = vunpack.c.l.b16 %v186
      %v307 = vunpack.c.l.b16 %v187
      %v308 = vunpack.c.l.b16 %v188
      %v309 = vunpack.c.l.b16 %v189
      %v310 = vunpack.c.l.b16 %v190
      %v311 = vunpack.c.l.b16 %v191
      %v312 = vunpack.c.l.b16 %v192
      %v313 = vunpack.c.l.b16 %v193
      %v314 = vunpack.c.l.b16 %v194
      %v315 = vunpack.c.l.b16 %v195
      %v316 = vunpack.c.l.b16 %v196
      %v317 = vunpack.c.l.b16 %v197
      %v318 = vunpack.c.l.b16 %v198
      %v319 = vunpack.c.l.b16 %v199
      %v320 = vunpack.c.l.b16 %v200
      %v321 = vunpack.c.l.b16 %v201
      %v322 = vunpack.c.l.b16 %v202
      %v323 = vunpack.c.l.b16 %v203
      %v324 = vunpack.c.l.b16 %v204
      %v325 = vunpack.c.l.b16 %v205
      %v326 = vunpack.c.l.b16 %v206
      %v327 = vunpack.c.l.b16 %v207
      %v328 = vunpack.c.l.b16 %v208
      %v329 = vunpack.c.l.b16 %v209
      %v330 = vunpack.c.l.b16 %v210
      %v331 = vunpack.c.l.b16 %v211
      %v332 = vunpack.c.l.b16 %v212
      %v333 = vunpack.c.l.b16 %v213
      %v334 = vunpack.c.l.b16 %v214
      %v335 = vunpack.c.l.b16 %v215
      %v336 = vunpack.c.l.b16 %v216
      %v337 = vunpack.c.l.b16 %v217
      %v338 = vunpack.c.l.b16 %v218
      %v339 = vunpack.c.l.b16 %v219
      %v340 = vunpack.c.l.b16 %v220
      %v341 = vunpack.c.l.b16 %v221
      %v342 = vunpack.c.l.b16 %v222
      %v343 = vunpack.c.l.b16 %v223
      %v344 = vunpack.c.l.b16 %v224
      %v345 = vunpack.c.l.b16 %v225
      %v346 = vunpack.c.l.b16 %v226
      %v347 = vunpack.c.l.b16 %v227
      %v348 = vunpack.c.l.b16 %v228
      %v349 = vunpack.c.l.b16 %v229
      %v350 = vunpack.c.l.b16 %v230
      %v351 = vunpack.c.l.b16 %v231
      %v352 = vunpack.c.l.b16 %v232
      %v353 = vunpack.c.l.b16 %v233
      %v354 = vunpack.c.l.b16 %v234
      %v355 = vunpack.c.l.b16 %v235
      %v356 = vunpack.c.l.b16 %v236
      %v357 = vpack.c.b16 %v304, %v303
      %v358 = vpack.c.b16 %v306, %v305
      %v359 = vpack.c.b16 %v308, %v307
      %v360 = vpack.c.b16 %v310, %v309
      %v361 = vpack.c.b16 %v312, %v311
      %v362 = vpack.c.b16 %v314, %v313
      %v363 = vpack.c.b16 %v316, %v315
      %v364 = vpack.c.b16 %v318, %v317
      %v365 = vpack.c.b16 %v320, %v319
      %v366 = vpack.c.b16 %v322, %v321
      %v367 = vpack.c.b16 %v324, %v323
      %v368 = vpack.c.b16 %v326, %v325
      %v369 = vpack.c.b16 %v328, %v327
      %v370 = vpack.c.b16 %v330, %v329
      %v371 = vpack.c.b16 %v332, %v331
      %v372 = vpack.c.b16 %v334, %v333
      %v373 = vpack.c.b16 %v336, %v335
      %v374 = vpack.c.b16 %v338, %v337
      %v375 = vpack.c.b16 %v340, %v339
      %v376 = vpack.c.b16 %v342, %v341
      %v377 = vpack.c.b16 %v344, %v343
      %v378 = vpack.c.b16 %v346, %v345
      %v379 = vpack.c.b16 %v348, %v347
      %v380 = vpack.c.b16 %v350, %v349
      %v381 = vpack.c.b16 %v352, %v351
      %v382 = vpack.c.b16 %v354, %v353
      %v383 = vpack.c.b16 %v356, %v355
      %v385 = vunpack.c.l.b16 %v237
      %v386 = vpack.c.b16 %v385, %v385
      %vm387 = vsmask.f32 7424
      %v389 = vshrl.u32 %v357, 16
      %v391 = vshll.u32 %v357, 16
      %v393 = vrot.slane %v391, 1
      %v394 = vor.u32 %v389, %v393
      %v396 = vshll.u32 %v358, 16
      %v398 = vrot.slane %v396, 1
      %v399 = vsel %vm387, %v394, %v398
      %v400 = vshrl.u32 %v358, 16
      %v402 = vor.u32 %v400, %v398
      %v404 = vshll.u32 %v359, 16
      %v406 = vrot.slane %v404, 1
      %v407 = vsel %vm387, %v402, %v406
      %v408 = vshrl.u32 %v359, 16
      %v410 = vor.u32 %v408, %v406
      %v412 = vshll.u32 %v360, 16
      %v414 = vrot.slane %v412, 1
      %v415 = vsel %vm387, %v410, %v414
      %v416 = vshrl.u32 %v360, 16
      %v418 = vor.u32 %v416, %v414
      %v420 = vshll.u32 %v361, 16
      %v422 = vrot.slane %v420, 1
      %v423 = vsel %vm387, %v418, %v422
      %v424 = vshrl.u32 %v361, 16
      %v426 = vor.u32 %v424, %v422
      %v428 = vshll.u32 %v362, 16
      %v430 = vrot.slane %v428, 1
      %v431 = vsel %vm387, %v426, %v430
      %v432 = vshrl.u32 %v362, 16
      %v434 = vor.u32 %v432, %v430
      %v436 = vshll.u32 %v363, 16
      %v438 = vrot.slane %v436, 1
      %v439 = vsel %vm387, %v434, %v438
      %v440 = vshrl.u32 %v363, 16
      %v442 = vor.u32 %v440, %v438
      %v444 = vshll.u32 %v364, 16
      %v446 = vrot.slane %v444, 1
      %v447 = vsel %vm387, %v442, %v446
      %v448 = vshrl.u32 %v364, 16
      %v450 = vor.u32 %v448, %v446
      %v452 = vshll.u32 %v365, 16
      %v454 = vrot.slane %v452, 1
      %v455 = vsel %vm387, %v450, %v454
      %v456 = vshrl.u32 %v365, 16
      %v458 = vor.u32 %v456, %v454
      %v460 = vshll.u32 %v366, 16
      %v462 = vrot.slane %v460, 1
      %v463 = vsel %vm387, %v458, %v462
      %v464 = vshrl.u32 %v366, 16
      %v466 = vor.u32 %v464, %v462
      %v468 = vshll.u32 %v367, 16
      %v470 = vrot.slane %v468, 1
      %v471 = vsel %vm387, %v466, %v470
      %v472 = vshrl.u32 %v367, 16
      %v474 = vor.u32 %v472, %v470
      %v476 = vshll.u32 %v368, 16
      %v478 = vrot.slane %v476, 1
      %v479 = vsel %vm387, %v474, %v478
      %v480 = vshrl.u32 %v368, 16
      %v482 = vor.u32 %v480, %v478
      %v484 = vshll.u32 %v369, 16
      %v486 = vrot.slane %v484, 1
      %v487 = vsel %vm387, %v482, %v486
      %v488 = vshrl.u32 %v369, 16
      %v490 = vor.u32 %v488, %v486
      %v492 = vshll.u32 %v370, 16
      %v494 = vrot.slane %v492, 1
      %v495 = vsel %vm387, %v490, %v494
      %v496 = vshrl.u32 %v370, 16
      %v498 = vor.u32 %v496, %v494
      %v500 = vshll.u32 %v371, 16
      %v502 = vrot.slane %v500, 1
      %v503 = vsel %vm387, %v498, %v502
      %v504 = vshrl.u32 %v371, 16
      %v506 = vor.u32 %v504, %v502
      %v508 = vshll.u32 %v372, 16
      %v510 = vrot.slane %v508, 1
      %v511 = vsel %vm387, %v506, %v510
      %v512 = vshrl.u32 %v372, 16
      %v514 = vor.u32 %v512, %v510
      %v516 = vshll.u32 %v373, 16
      %v518 = vrot.slane %v516, 1
      %v519 = vsel %vm387, %v514, %v518
      %v520 = vshrl.u32 %v373, 16
      %v522 = vor.u32 %v520, %v518
      %v524 = vshll.u32 %v374, 16
      %v526 = vrot.slane %v524, 1
      %v527 = vsel %vm387, %v522, %v526
      %v528 = vshrl.u32 %v374, 16
      %v530 = vor.u32 %v528, %v526
      %v532 = vshll.u32 %v375, 16
      %v534 = vrot.slane %v532, 1
      %v535 = vsel %vm387, %v530, %v534
      %v536 = vshrl.u32 %v375, 16
      %v538 = vor.u32 %v536, %v534
      %v540 = vshll.u32 %v376, 16
      %v542 = vrot.slane %v540, 1
      %v543 = vsel %vm387, %v538, %v542
      %v544 = vshrl.u32 %v376, 16
      %v546 = vor.u32 %v544, %v542
      %v548 = vshll.u32 %v377, 16
      %v550 = vrot.slane %v548, 1
      %v551 = vsel %vm387, %v546, %v550
      %v552 = vshrl.u32 %v377, 16
      %v554 = vor.u32 %v552, %v550
      %v556 = vshll.u32 %v378, 16
      %v558 = vrot.slane %v556, 1
      %v559 = vsel %vm387, %v554, %v558
      %v560 = vshrl.u32 %v378, 16
      %v562 = vor.u32 %v560, %v558
      %v564 = vshll.u32 %v379, 16
      %v566 = vrot.slane %v564, 1
      %v567 = vsel %vm387, %v562, %v566
      %v568 = vshrl.u32 %v379, 16
      %v570 = vor.u32 %v568, %v566
      %v572 = vshll.u32 %v380, 16
      %v574 = vrot.slane %v572, 1
      %v575 = vsel %vm387, %v570, %v574
      %v576 = vshrl.u32 %v380, 16
      %v578 = vor.u32 %v576, %v574
      %v580 = vshll.u32 %v381, 16
      %v582 = vrot.slane %v580, 1
      %v583 = vsel %vm387, %v578, %v582
      %v584 = vshrl.u32 %v381, 16
      %v586 = vor.u32 %v584, %v582
      %v588 = vshll.u32 %v382, 16
      %v590 = vrot.slane %v588, 1
      %v591 = vsel %vm387, %v586, %v590
      %v592 = vshrl.u32 %v382, 16
      %v594 = vor.u32 %v592, %v590
      %v596 = vshll.u32 %v383, 16
      %v598 = vrot.slane %v596, 1
      %v599 = vsel %vm387, %v594, %v598
      %v600 = vshrl.u32 %v383, 16
      %v602 = vor.u32 %v600, %v598
      %v604 = vshll.u32 %v386, 16
      %v606 = vrot.slane %v604, 1
      %v607 = vsel %vm387, %v602, %v606
      %608 = vrot.lane.b32.xlu0 %v399, 64
      %v609 = vpop.permute.xlu0 %608
      %610 = vrot.lane.b32.xlu0 %v407, 64
      %v611 = vpop.permute.xlu0 %610
      %612 = vrot.lane.b32.xlu0 %v415, 64
      %v613 = vpop.permute.xlu0 %612
      %614 = vrot.lane.b32.xlu0 %v423, 64
      %v615 = vpop.permute.xlu0 %614
      %616 = vrot.lane.b32.xlu0 %v431, 64
      %v617 = vpop.permute.xlu0 %616
      %618 = vrot.lane.b32.xlu0 %v439, 64
      %v619 = vpop.permute.xlu0 %618
      %620 = vrot.lane.b32.xlu0 %v447, 64
      %v621 = vpop.permute.xlu0 %620
      %622 = vrot.lane.b32.xlu0 %v455, 64
      %v623 = vpop.permute.xlu0 %622
      %624 = vrot.lane.b32.xlu0 %v463, 64
      %v625 = vpop.permute.xlu0 %624
      %626 = vrot.lane.b32.xlu0 %v471, 64
      %v627 = vpop.permute.xlu0 %626
      %628 = vrot.lane.b32.xlu0 %v479, 64
      %v629 = vpop.permute.xlu0 %628
      %630 = vrot.lane.b32.xlu0 %v487, 64
      %v631 = vpop.permute.xlu0 %630
      %632 = vrot.lane.b32.xlu0 %v495, 64
      %v633 = vpop.permute.xlu0 %632
      %634 = vrot.lane.b32.xlu0 %v503, 64
      %v635 = vpop.permute.xlu0 %634
      %636 = vrot.lane.b32.xlu0 %v511, 64
      %v637 = vpop.permute.xlu0 %636
      %638 = vrot.lane.b32.xlu0 %v519, 64
      %v639 = vpop.permute.xlu0 %638
      %640 = vrot.lane.b32.xlu0 %v527, 64
      %v641 = vpop.permute.xlu0 %640
      %642 = vrot.lane.b32.xlu0 %v535, 64
      %v643 = vpop.permute.xlu0 %642
      %644 = vrot.lane.b32.xlu0 %v543, 64
      %v645 = vpop.permute.xlu0 %644
      %646 = vrot.lane.b32.xlu0 %v551, 64
      %v647 = vpop.permute.xlu0 %646
      %648 = vrot.lane.b32.xlu0 %v559, 64
      %v649 = vpop.permute.xlu0 %648
      %650 = vrot.lane.b32.xlu0 %v567, 64
      %v651 = vpop.permute.xlu0 %650
      %652 = vrot.lane.b32.xlu0 %v575, 64
      %v653 = vpop.permute.xlu0 %652
      %654 = vrot.lane.b32.xlu0 %v583, 64
      %v655 = vpop.permute.xlu0 %654
      %656 = vrot.lane.b32.xlu0 %v591, 64
      %v657 = vpop.permute.xlu0 %656
      %658 = vrot.lane.b32.xlu0 %v599, 64
      %v659 = vpop.permute.xlu0 %658
      %660 = vrot.lane.b32.xlu0 %v607, 64
      %v661 = vpop.permute.xlu0 %660
      %v663 = vunpack.c.l.b16 %v238
      %v664 = vpack.c.b16 %v304, %v663
      %vm665 = vcmask 1046528
      %v666 = vrot.slane %v664, 1
      %v667 = vrot.slane %v358, 1
      %v668 = vsel %vm665, %v666, %v667
      %v669 = vrot.slane %v359, 1
      %v670 = vsel %vm665, %v667, %v669
      %v671 = vrot.slane %v360, 1
      %v672 = vsel %vm665, %v669, %v671
      %v673 = vrot.slane %v361, 1
      %v674 = vsel %vm665, %v671, %v673
      %v675 = vrot.slane %v362, 1
      %v676 = vsel %vm665, %v673, %v675
      %v677 = vrot.slane %v363, 1
      %v678 = vsel %vm665, %v675, %v677
      %v679 = vrot.slane %v364, 1
      %v680 = vsel %vm665, %v677, %v679
      %v681 = vrot.slane %v365, 1
      %v682 = vsel %vm665, %v679, %v681
      %v683 = vrot.slane %v366, 1
      %v684 = vsel %vm665, %v681, %v683
      %v685 = vrot.slane %v367, 1
      %v686 = vsel %vm665, %v683, %v685
      %v687 = vrot.slane %v368, 1
      %v688 = vsel %vm665, %v685, %v687
      %v689 = vrot.slane %v369, 1
      %v690 = vsel %vm665, %v687, %v689
      %v691 = vrot.slane %v370, 1
      %v692 = vsel %vm665, %v689, %v691
      %v693 = vrot.slane %v371, 1
      %v694 = vsel %vm665, %v691, %v693
      %v695 = vrot.slane %v372, 1
      %v696 = vsel %vm665, %v693, %v695
      %v697 = vrot.slane %v373, 1
      %v698 = vsel %vm665, %v695, %v697
      %v699 = vrot.slane %v374, 1
      %v700 = vsel %vm665, %v697, %v699
      %v701 = vrot.slane %v375, 1
      %v702 = vsel %vm665, %v699, %v701
      %v703 = vrot.slane %v376, 1
      %v704 = vsel %vm665, %v701, %v703
      %v705 = vrot.slane %v377, 1
      %v706 = vsel %vm665, %v703, %v705
      %v707 = vrot.slane %v378, 1
      %v708 = vsel %vm665, %v705, %v707
      %v709 = vrot.slane %v379, 1
      %v710 = vsel %vm665, %v707, %v709
      %v711 = vrot.slane %v380, 1
      %v712 = vsel %vm665, %v709, %v711
      %v713 = vrot.slane %v381, 1
      %v714 = vsel %vm665, %v711, %v713
      %v715 = vrot.slane %v382, 1
      %v716 = vsel %vm665, %v713, %v715
      %v717 = vrot.slane %v383, 1
      %v718 = vsel %vm665, %v715, %v717
      %v719 = vrot.slane %v386, 1
      %v720 = vsel %vm665, %v717, %v719
      %v724 = vunpack.c.l.b16 %v239
      %v725 = vunpack.c.l.b16 %v240
      %v726 = vunpack.c.l.b16 %v241
      %v727 = vpack.c.b16 %v307, %v306
      %v728 = vpack.c.b16 %v309, %v308
      %v729 = vpack.c.b16 %v311, %v310
      %v730 = vpack.c.b16 %v313, %v312
      %v731 = vpack.c.b16 %v315, %v314
      %v732 = vpack.c.b16 %v317, %v316
      %v733 = vpack.c.b16 %v319, %v318
      %v734 = vpack.c.b16 %v321, %v320
      %v735 = vpack.c.b16 %v323, %v322
      %v736 = vpack.c.b16 %v325, %v324
      %v737 = vpack.c.b16 %v327, %v326
      %v738 = vpack.c.b16 %v329, %v328
      %v739 = vpack.c.b16 %v331, %v330
      %v740 = vpack.c.b16 %v333, %v332
      %v741 = vpack.c.b16 %v335, %v334
      %v742 = vpack.c.b16 %v337, %v336
      %v743 = vpack.c.b16 %v339, %v338
      %v744 = vpack.c.b16 %v341, %v340
      %v745 = vpack.c.b16 %v343, %v342
      %v746 = vpack.c.b16 %v345, %v344
      %v747 = vpack.c.b16 %v347, %v346
      %v748 = vpack.c.b16 %v349, %v348
      %v749 = vpack.c.b16 %v351, %v350
      %v750 = vpack.c.b16 %v353, %v352
      %v751 = vpack.c.b16 %v355, %v354
      %v752 = vpack.c.b16 %v724, %v356
      %v753 = vpack.c.b16 %v726, %v725
      %754 = vrot.lane.b32.xlu0 %v727, 64
      %v755 = vpop.permute.xlu0 %754
      %756 = vrot.lane.b32.xlu0 %v728, 64
      %v757 = vpop.permute.xlu0 %756
      %758 = vrot.lane.b32.xlu0 %v729, 64
      %v759 = vpop.permute.xlu0 %758
      %760 = vrot.lane.b32.xlu0 %v730, 64
      %v761 = vpop.permute.xlu0 %760
      %762 = vrot.lane.b32.xlu0 %v731, 64
      %v763 = vpop.permute.xlu0 %762
      %764 = vrot.lane.b32.xlu0 %v732, 64
      %v765 = vpop.permute.xlu0 %764
      %766 = vrot.lane.b32.xlu0 %v733, 64
      %v767 = vpop.permute.xlu0 %766
      %768 = vrot.lane.b32.xlu0 %v734, 64
      %v769 = vpop.permute.xlu0 %768
      %770 = vrot.lane.b32.xlu0 %v735, 64
      %v771 = vpop.permute.xlu0 %770
      %772 = vrot.lane.b32.xlu0 %v736, 64
      %v773 = vpop.permute.xlu0 %772
      %774 = vrot.lane.b32.xlu0 %v737, 64
      %v775 = vpop.permute.xlu0 %774
      %776 = vrot.lane.b32.xlu0 %v738, 64
      %v777 = vpop.permute.xlu0 %776
      %778 = vrot.lane.b32.xlu0 %v739, 64
      %v779 = vpop.permute.xlu0 %778
      %780 = vrot.lane.b32.xlu0 %v740, 64
      %v781 = vpop.permute.xlu0 %780
      %782 = vrot.lane.b32.xlu0 %v741, 64
      %v783 = vpop.permute.xlu0 %782
      %784 = vrot.lane.b32.xlu0 %v742, 64
      %v785 = vpop.permute.xlu0 %784
      %786 = vrot.lane.b32.xlu0 %v743, 64
      %v787 = vpop.permute.xlu0 %786
      %788 = vrot.lane.b32.xlu0 %v744, 64
      %v789 = vpop.permute.xlu0 %788
      %790 = vrot.lane.b32.xlu0 %v745, 64
      %v791 = vpop.permute.xlu0 %790
      %792 = vrot.lane.b32.xlu0 %v746, 64
      %v793 = vpop.permute.xlu0 %792
      %794 = vrot.lane.b32.xlu0 %v747, 64
      %v795 = vpop.permute.xlu0 %794
      %796 = vrot.lane.b32.xlu0 %v748, 64
      %v797 = vpop.permute.xlu0 %796
      %798 = vrot.lane.b32.xlu0 %v749, 64
      %v799 = vpop.permute.xlu0 %798
      %800 = vrot.lane.b32.xlu0 %v750, 64
      %v801 = vpop.permute.xlu0 %800
      %802 = vrot.lane.b32.xlu0 %v751, 64
      %v803 = vpop.permute.xlu0 %802
      %804 = vrot.lane.b32.xlu0 %v752, 64
      %v805 = vpop.permute.xlu0 %804
      %806 = vrot.lane.b32.xlu0 %v753, 64
      %v807 = vpop.permute.xlu0 %806
      %v809 = vunpack.c.l.b16 %v242
      %v810 = vpack.c.b16 %v809, %v809
      %v812 = vshrl.u32 %v727, 16
      %v814 = vshll.u32 %v727, 16
      %v816 = vrot.slane %v814, 1
      %v817 = vor.u32 %v812, %v816
      %v819 = vshll.u32 %v728, 16
      %v821 = vrot.slane %v819, 1
      %v822 = vsel %vm387, %v817, %v821
      %v823 = vshrl.u32 %v728, 16
      %v825 = vor.u32 %v823, %v821
      %v827 = vshll.u32 %v729, 16
      %v829 = vrot.slane %v827, 1
      %v830 = vsel %vm387, %v825, %v829
      %v831 = vshrl.u32 %v729, 16
      %v833 = vor.u32 %v831, %v829
      %v835 = vshll.u32 %v730, 16
      %v837 = vrot.slane %v835, 1
      %v838 = vsel %vm387, %v833, %v837
      %v839 = vshrl.u32 %v730, 16
      %v841 = vor.u32 %v839, %v837
      %v843 = vshll.u32 %v731, 16
      %v845 = vrot.slane %v843, 1
      %v846 = vsel %vm387, %v841, %v845
      %v847 = vshrl.u32 %v731, 16
      %v849 = vor.u32 %v847, %v845
      %v851 = vshll.u32 %v732, 16
      %v853 = vrot.slane %v851, 1
      %v854 = vsel %vm387, %v849, %v853
      %v855 = vshrl.u32 %v732, 16
      %v857 = vor.u32 %v855, %v853
      %v859 = vshll.u32 %v733, 16
      %v861 = vrot.slane %v859, 1
      %v862 = vsel %vm387, %v857, %v861
      %v863 = vshrl.u32 %v733, 16
      %v865 = vor.u32 %v863, %v861
      %v867 = vshll.u32 %v734, 16
      %v869 = vrot.slane %v867, 1
      %v870 = vsel %vm387, %v865, %v869
      %v871 = vshrl.u32 %v734, 16
      %v873 = vor.u32 %v871, %v869
      %v875 = vshll.u32 %v735, 16
      %v877 = vrot.slane %v875, 1
      %v878 = vsel %vm387, %v873, %v877
      %v879 = vshrl.u32 %v735, 16
      %v881 = vor.u32 %v879, %v877
      %v883 = vshll.u32 %v736, 16
      %v885 = vrot.slane %v883, 1
      %v886 = vsel %vm387, %v881, %v885
      %v887 = vshrl.u32 %v736, 16
      %v889 = vor.u32 %v887, %v885
      %v891 = vshll.u32 %v737, 16
      %v893 = vrot.slane %v891, 1
      %v894 = vsel %vm387, %v889, %v893
      %v895 = vshrl.u32 %v737, 16
      %v897 = vor.u32 %v895, %v893
      %v899 = vshll.u32 %v738, 16
      %v901 = vrot.slane %v899, 1
      %v902 = vsel %vm387, %v897, %v901
      %v903 = vshrl.u32 %v738, 16
      %v905 = vor.u32 %v903, %v901
      %v907 = vshll.u32 %v739, 16
      %v909 = vrot.slane %v907, 1
      %v910 = vsel %vm387, %v905, %v909
      %v911 = vshrl.u32 %v739, 16
      %v913 = vor.u32 %v911, %v909
      %v915 = vshll.u32 %v740, 16
      %v917 = vrot.slane %v915, 1
      %v918 = vsel %vm387, %v913, %v917
      %v919 = vshrl.u32 %v740, 16
      %v921 = vor.u32 %v919, %v917
      %v923 = vshll.u32 %v741, 16
      %v925 = vrot.slane %v923, 1
      %v926 = vsel %vm387, %v921, %v925
      %v927 = vshrl.u32 %v741, 16
      %v929 = vor.u32 %v927, %v925
      %v931 = vshll.u32 %v742, 16
      %v933 = vrot.slane %v931, 1
      %v934 = vsel %vm387, %v929, %v933
      %v935 = vshrl.u32 %v742, 16
      %v937 = vor.u32 %v935, %v933
      %v939 = vshll.u32 %v743, 16
      %v941 = vrot.slane %v939, 1
      %v942 = vsel %vm387, %v937, %v941
      %v943 = vshrl.u32 %v743, 16
      %v945 = vor.u32 %v943, %v941
      %v947 = vshll.u32 %v744, 16
      %v949 = vrot.slane %v947, 1
      %v950 = vsel %vm387, %v945, %v949
      %v951 = vshrl.u32 %v744, 16
      %v953 = vor.u32 %v951, %v949
      %v955 = vshll.u32 %v745, 16
      %v957 = vrot.slane %v955, 1
      %v958 = vsel %vm387, %v953, %v957
      %v959 = vshrl.u32 %v745, 16
      %v961 = vor.u32 %v959, %v957
      %v963 = vshll.u32 %v746, 16
      %v965 = vrot.slane %v963, 1
      %v966 = vsel %vm387, %v961, %v965
      %v967 = vshrl.u32 %v746, 16
      %v969 = vor.u32 %v967, %v965
      %v971 = vshll.u32 %v747, 16
      %v973 = vrot.slane %v971, 1
      %v974 = vsel %vm387, %v969, %v973
      %v975 = vshrl.u32 %v747, 16
      %v977 = vor.u32 %v975, %v973
      %v979 = vshll.u32 %v748, 16
      %v981 = vrot.slane %v979, 1
      %v982 = vsel %vm387, %v977, %v981
      %v983 = vshrl.u32 %v748, 16
      %v985 = vor.u32 %v983, %v981
      %v987 = vshll.u32 %v749, 16
      %v989 = vrot.slane %v987, 1
      %v990 = vsel %vm387, %v985, %v989
      %v991 = vshrl.u32 %v749, 16
      %v993 = vor.u32 %v991, %v989
      %v995 = vshll.u32 %v750, 16
      %v997 = vrot.slane %v995, 1
      %v998 = vsel %vm387, %v993, %v997
      %v999 = vshrl.u32 %v750, 16
      %v1001 = vor.u32 %v999, %v997
      %v1003 = vshll.u32 %v751, 16
      %v1005 = vrot.slane %v1003, 1
      %v1006 = vsel %vm387, %v1001, %v1005
      %v1007 = vshrl.u32 %v751, 16
      %v1009 = vor.u32 %v1007, %v1005
      %v1011 = vshll.u32 %v752, 16
      %v1013 = vrot.slane %v1011, 1
      %v1014 = vsel %vm387, %v1009, %v1013
      %v1015 = vshrl.u32 %v752, 16
      %v1017 = vor.u32 %v1015, %v1013
      %v1019 = vshll.u32 %v753, 16
      %v1021 = vrot.slane %v1019, 1
      %v1022 = vsel %vm387, %v1017, %v1021
      %v1023 = vshrl.u32 %v753, 16
      %v1025 = vor.u32 %v1023, %v1021
      %v1027 = vshll.u32 %v810, 16
      %v1029 = vrot.slane %v1027, 1
      %v1030 = vsel %vm387, %v1025, %v1029
      %v1032 = vunpack.c.l.b16 %v243
      %v1033 = vpack.c.b16 %v307, %v1032
      %v1034 = vrot.slane %v1033, 1
      %v1035 = vrot.slane %v728, 1
      %v1036 = vsel %vm665, %v1034, %v1035
      %v1037 = vrot.slane %v729, 1
      %v1038 = vsel %vm665, %v1035, %v1037
      %v1039 = vrot.slane %v730, 1
      %v1040 = vsel %vm665, %v1037, %v1039
      %v1041 = vrot.slane %v731, 1
      %v1042 = vsel %vm665, %v1039, %v1041
      %v1043 = vrot.slane %v732, 1
      %v1044 = vsel %vm665, %v1041, %v1043
      %v1045 = vrot.slane %v733, 1
      %v1046 = vsel %vm665, %v1043, %v1045
      %v1047 = vrot.slane %v734, 1
      %v1048 = vsel %vm665, %v1045, %v1047
      %v1049 = vrot.slane %v735, 1
      %v1050 = vsel %vm665, %v1047, %v1049
      %v1051 = vrot.slane %v736, 1
      %v1052 = vsel %vm665, %v1049, %v1051
      %v1053 = vrot.slane %v737, 1
      %v1054 = vsel %vm665, %v1051, %v1053
      %v1055 = vrot.slane %v738, 1
      %v1056 = vsel %vm665, %v1053, %v1055
      %v1057 = vrot.slane %v739, 1
      %v1058 = vsel %vm665, %v1055, %v1057
      %v1059 = vrot.slane %v740, 1
      %v1060 = vsel %vm665, %v1057, %v1059
      %v1061 = vrot.slane %v741, 1
      %v1062 = vsel %vm665, %v1059, %v1061
      %v1063 = vrot.slane %v742, 1
      %v1064 = vsel %vm665, %v1061, %v1063
      %v1065 = vrot.slane %v743, 1
      %v1066 = vsel %vm665, %v1063, %v1065
      %v1067 = vrot.slane %v744, 1
      %v1068 = vsel %vm665, %v1065, %v1067
      %v1069 = vrot.slane %v745, 1
      %v1070 = vsel %vm665, %v1067, %v1069
      %v1071 = vrot.slane %v746, 1
      %v1072 = vsel %vm665, %v1069, %v1071
      %v1073 = vrot.slane %v747, 1
      %v1074 = vsel %vm665, %v1071, %v1073
      %v1075 = vrot.slane %v748, 1
      %v1076 = vsel %vm665, %v1073, %v1075
      %v1077 = vrot.slane %v749, 1
      %v1078 = vsel %vm665, %v1075, %v1077
      %v1079 = vrot.slane %v750, 1
      %v1080 = vsel %vm665, %v1077, %v1079
      %v1081 = vrot.slane %v751, 1
      %v1082 = vsel %vm665, %v1079, %v1081
      %v1083 = vrot.slane %v752, 1
      %v1084 = vsel %vm665, %v1081, %v1083
      %v1085 = vrot.slane %v753, 1
      %v1086 = vsel %vm665, %v1083, %v1085
      %v1087 = vrot.slane %v810, 1
      %v1088 = vsel %vm665, %v1085, %v1087
      %1089 = vrot.lane.b32.xlu0 %v1036, 64
      %v1090 = vpop.permute.xlu0 %1089
      %1091 = vrot.lane.b32.xlu0 %v1038, 64
      %v1092 = vpop.permute.xlu0 %1091
      %1093 = vrot.lane.b32.xlu0 %v1040, 64
      %v1094 = vpop.permute.xlu0 %1093
      %1095 = vrot.lane.b32.xlu0 %v1042, 64
      %v1096 = vpop.permute.xlu0 %1095
      %1097 = vrot.lane.b32.xlu0 %v1044, 64
      %v1098 = vpop.permute.xlu0 %1097
      %1099 = vrot.lane.b32.xlu0 %v1046, 64
      %v1100 = vpop.permute.xlu0 %1099
      %1101 = vrot.lane.b32.xlu0 %v1048, 64
      %v1102 = vpop.permute.xlu0 %1101
      %1103 = vrot.lane.b32.xlu0 %v1050, 64
      %v1104 = vpop.permute.xlu0 %1103
      %1105 = vrot.lane.b32.xlu0 %v1052, 64
      %v1106 = vpop.permute.xlu0 %1105
      %1107 = vrot.lane.b32.xlu0 %v1054, 64
      %v1108 = vpop.permute.xlu0 %1107
      %1109 = vrot.lane.b32.xlu0 %v1056, 64
      %v1110 = vpop.permute.xlu0 %1109
      %1111 = vrot.lane.b32.xlu0 %v1058, 64
      %v1112 = vpop.permute.xlu0 %1111
      %1113 = vrot.lane.b32.xlu0 %v1060, 64
      %v1114 = vpop.permute.xlu0 %1113
      %1115 = vrot.lane.b32.xlu0 %v1062, 64
      %v1116 = vpop.permute.xlu0 %1115
      %1117 = vrot.lane.b32.xlu0 %v1064, 64
      %v1118 = vpop.permute.xlu0 %1117
      %1119 = vrot.lane.b32.xlu0 %v1066, 64
      %v1120 = vpop.permute.xlu0 %1119
      %1121 = vrot.lane.b32.xlu0 %v1068, 64
      %v1122 = vpop.permute.xlu0 %1121
      %1123 = vrot.lane.b32.xlu0 %v1070, 64
      %v1124 = vpop.permute.xlu0 %1123
      %1125 = vrot.lane.b32.xlu0 %v1072, 64
      %v1126 = vpop.permute.xlu0 %1125
      %1127 = vrot.lane.b32.xlu0 %v1074, 64
      %v1128 = vpop.permute.xlu0 %1127
      %1129 = vrot.lane.b32.xlu0 %v1076, 64
      %v1130 = vpop.permute.xlu0 %1129
      %1131 = vrot.lane.b32.xlu0 %v1078, 64
      %v1132 = vpop.permute.xlu0 %1131
      %1133 = vrot.lane.b32.xlu0 %v1080, 64
      %v1134 = vpop.permute.xlu0 %1133
      %1135 = vrot.lane.b32.xlu0 %v1082, 64
      %v1136 = vpop.permute.xlu0 %1135
      %1137 = vrot.lane.b32.xlu0 %v1084, 64
      %v1138 = vpop.permute.xlu0 %1137
      %1139 = vrot.lane.b32.xlu0 %v1086, 64
      %v1140 = vpop.permute.xlu0 %1139
      %1141 = vrot.lane.b32.xlu0 %v1088, 64
      %v1142 = vpop.permute.xlu0 %1141
      %v1146 = vunpack.c.l.b16 %v244
      %v1147 = vunpack.c.l.b16 %v245
      %v1148 = vunpack.c.l.b16 %v246
      %v1149 = vpack.c.b16 %v725, %v724
      %v1150 = vpack.c.b16 %v1146, %v726
      %v1151 = vpack.c.b16 %v1148, %v1147
      %v1153 = vunpack.c.l.b16 %v247
      %v1154 = vpack.c.b16 %v1153, %v1153
      %v1156 = vshll.u32 %v1149, 16
      %v1158 = vrot.slane %v1156, 1
      %v1159 = vsel %vm387, %v602, %v1158
      %v1160 = vshrl.u32 %v1149, 16
      %v1162 = vor.u32 %v1160, %v1158
      %v1164 = vshll.u32 %v1150, 16
      %v1166 = vrot.slane %v1164, 1
      %v1167 = vsel %vm387, %v1162, %v1166
      %v1168 = vshrl.u32 %v1150, 16
      %v1170 = vor.u32 %v1168, %v1166
      %v1172 = vshll.u32 %v1151, 16
      %v1174 = vrot.slane %v1172, 1
      %v1175 = vsel %vm387, %v1170, %v1174
      %v1176 = vshrl.u32 %v1151, 16
      %v1178 = vor.u32 %v1176, %v1174
      %v1180 = vshll.u32 %v1154, 16
      %v1182 = vrot.slane %v1180, 1
      %v1183 = vsel %vm387, %v1178, %v1182
      %1184 = vrot.lane.b32.xlu0 %v1159, 64
      %v1185 = vpop.permute.xlu0 %1184
      %1186 = vrot.lane.b32.xlu0 %v1167, 64
      %v1187 = vpop.permute.xlu0 %1186
      %1188 = vrot.lane.b32.xlu0 %v1175, 64
      %v1189 = vpop.permute.xlu0 %1188
      %1190 = vrot.lane.b32.xlu0 %v1183, 64
      %v1191 = vpop.permute.xlu0 %1190
      %v1193 = vunpack.c.l.b16 %v248
      %v1194 = vpack.c.b16 %v310, %v1193
      %v1195 = vrot.slane %v1194, 1
      %v1196 = vsel %vm665, %v1195, %v673
      %v1197 = vrot.slane %v1149, 1
      %v1198 = vsel %vm665, %v717, %v1197
      %v1199 = vrot.slane %v1150, 1
      %v1200 = vsel %vm665, %v1197, %v1199
      %v1201 = vrot.slane %v1151, 1
      %v1202 = vsel %vm665, %v1199, %v1201
      %v1203 = vrot.slane %v1154, 1
      %v1204 = vsel %vm665, %v1201, %v1203
      %vm1205 = vcmask 523264
      %v1207 = vsel %vm1205, %v357, %v609
      %v1210 = vsel %vm1205, %v358, %v611
      %v1213 = vsel %vm1205, %v359, %v613
      %v1216 = vsel %vm1205, %v360, %v615
      %v1219 = vsel %vm1205, %v361, %v617
      %v1222 = vsel %vm1205, %v362, %v619
      %v1225 = vsel %vm1205, %v363, %v621
      %v1228 = vsel %vm1205, %v364, %v623
      %v1231 = vsel %vm1205, %v365, %v625
      %v1234 = vsel %vm1205, %v366, %v627
      %v1237 = vsel %vm1205, %v367, %v629
      %v1240 = vsel %vm1205, %v368, %v631
      %v1243 = vsel %vm1205, %v369, %v633
      %v1246 = vsel %vm1205, %v370, %v635
      %v1249 = vsel %vm1205, %v371, %v637
      %v1252 = vsel %vm1205, %v372, %v639
      %v1255 = vsel %vm1205, %v373, %v641
      %v1258 = vsel %vm1205, %v374, %v643
      %v1261 = vsel %vm1205, %v375, %v645
      %v1264 = vsel %vm1205, %v376, %v647
      %v1267 = vsel %vm1205, %v377, %v649
      %v1270 = vsel %vm1205, %v378, %v651
      %v1273 = vsel %vm1205, %v379, %v653
      %v1276 = vsel %vm1205, %v380, %v655
      %v1279 = vsel %vm1205, %v381, %v657
      %v1282 = vsel %vm1205, %v382, %v659
      %v1285 = vsel %vm1205, %v383, %v661
      %v1289 = vsel %vm1205, %v668, %v755
      %v1293 = vsel %vm1205, %v670, %v757
      %v1297 = vsel %vm1205, %v672, %v759
      %v1301 = vsel %vm1205, %v674, %v761
      %v1305 = vsel %vm1205, %v676, %v763
      %v1309 = vsel %vm1205, %v678, %v765
      %v1313 = vsel %vm1205, %v680, %v767
      %v1317 = vsel %vm1205, %v682, %v769
      %v1321 = vsel %vm1205, %v684, %v771
      %v1325 = vsel %vm1205, %v686, %v773
      %v1329 = vsel %vm1205, %v688, %v775
      %v1333 = vsel %vm1205, %v690, %v777
      %v1337 = vsel %vm1205, %v692, %v779
      %v1341 = vsel %vm1205, %v694, %v781
      %v1345 = vsel %vm1205, %v696, %v783
      %v1349 = vsel %vm1205, %v698, %v785
      %v1353 = vsel %vm1205, %v700, %v787
      %v1357 = vsel %vm1205, %v702, %v789
      %v1361 = vsel %vm1205, %v704, %v791
      %v1365 = vsel %vm1205, %v706, %v793
      %v1369 = vsel %vm1205, %v708, %v795
      %v1373 = vsel %vm1205, %v710, %v797
      %v1377 = vsel %vm1205, %v712, %v799
      %v1381 = vsel %vm1205, %v714, %v801
      %v1385 = vsel %vm1205, %v716, %v803
      %v1389 = vsel %vm1205, %v718, %v805
      %v1393 = vsel %vm1205, %v720, %v807
      %v1397 = vsel %vm1205, %v822, %v1090
      %v1401 = vsel %vm1205, %v830, %v1092
      %v1405 = vsel %vm1205, %v838, %v1094
      %v1409 = vsel %vm1205, %v846, %v1096
      %v1413 = vsel %vm1205, %v854, %v1098
      %v1417 = vsel %vm1205, %v862, %v1100
      %v1421 = vsel %vm1205, %v870, %v1102
      %v1425 = vsel %vm1205, %v878, %v1104
      %v1429 = vsel %vm1205, %v886, %v1106
      %v1433 = vsel %vm1205, %v894, %v1108
      %v1437 = vsel %vm1205, %v902, %v1110
      %v1441 = vsel %vm1205, %v910, %v1112
      %v1445 = vsel %vm1205, %v918, %v1114
      %v1449 = vsel %vm1205, %v926, %v1116
      %v1453 = vsel %vm1205, %v934, %v1118
      %v1457 = vsel %vm1205, %v942, %v1120
      %v1461 = vsel %vm1205, %v950, %v1122
      %v1465 = vsel %vm1205, %v958, %v1124
      %v1469 = vsel %vm1205, %v966, %v1126
      %v1473 = vsel %vm1205, %v974, %v1128
      %v1477 = vsel %vm1205, %v982, %v1130
      %v1481 = vsel %vm1205, %v990, %v1132
      %v1485 = vsel %vm1205, %v998, %v1134
      %v1489 = vsel %vm1205, %v1006, %v1136
      %v1493 = vsel %vm1205, %v1014, %v1138
      %v1497 = vsel %vm1205, %v1022, %v1140
      %v1501 = vsel %vm1205, %v1030, %v1142
      %v1504 = vsel %vm1205, %v383, %v1185
      %v1507 = vsel %vm1205, %v1149, %v1187
      %v1510 = vsel %vm1205, %v1150, %v1189
      %v1513 = vsel %vm1205, %v1151, %v1191
      %v1515 = vld [vmem:[%s1] sm:$0xf]
      %v1516 = vld [vmem:[%s1 + $0x4] sm:$0xf]
      %v1517 = vld [vmem:[%s1 + $0x8] sm:$0xf]
      %v1518 = vld [vmem:[%s1 + $0xc] sm:$0xf]
      %v1519 = vld [vmem:[%s1 + $0x10] sm:$0xf]
      %v1520 = vld [vmem:[%s1 + $0x14] sm:$0xf]
      %v1521 = vld [vmem:[%s1 + $0x18] sm:$0xf]
      %v1522 = vld [vmem:[%s1 + $0x1c] sm:$0xf]
      %v1523 = vld [vmem:[%s1 + $0x20] sm:$0xf]
      %v1524 = vld [vmem:[%s1 + $0x24] sm:$0xf]
      %v1525 = vld [vmem:[%s1 + $0x28] sm:$0xf]
      %v1526 = vld [vmem:[%s1 + $0x2c] sm:$0xf]
      %v1527 = vld [vmem:[%s1 + $0x30] sm:$0xf]
      %v1528 = vld [vmem:[%s1 + $0x34] sm:$0xf]
      %v1529 = vld [vmem:[%s1 + $0x38] sm:$0xf]
      %v1530 = vld [vmem:[%s1 + $0x3c] sm:$0xf]
      %v1531 = vld [vmem:[%s1 + $0x40] sm:$0xf]
      %v1532 = vld [vmem:[%s1 + $0x44] sm:$0xf]
      %v1533 = vld [vmem:[%s1 + $0x48] sm:$0xf]
      %v1534 = vld [vmem:[%s1 + $0x4c] sm:$0xf]
      %v1535 = vld [vmem:[%s1 + $0x50] sm:$0xf]
      %v1536 = vld [vmem:[%s1 + $0x54] sm:$0xf]
      %v1537 = vld [vmem:[%s1 + $0x58] sm:$0xf]
      %v1538 = vld [vmem:[%s1 + $0x5c] sm:$0xf]
      %v1539 = vld [vmem:[%s1 + $0x60] sm:$0xf]
      %v1540 = vld [vmem:[%s1 + $0x64] sm:$0xf]
      %v1541 = vld [vmem:[%s1 + $0x68] sm:$0xf]
      %v1542 = vld [vmem:[%s1 + $0x6c] sm:$0xf]
      %v1543 = vld [vmem:[%s1 + $0x70] sm:$0xf]
      %v1544 = vld [vmem:[%s1 + $0x74] sm:$0xf]
      %v1545 = vld [vmem:[%s1 + $0x78] sm:$0xf]
      %v1546 = vld [vmem:[%s1 + $0x7c] sm:$0xf]
      %v1547 = vld [vmem:[%s1 + $0x80] sm:$0xf]
      %v1548 = vld [vmem:[%s1 + $0x84] sm:$0xf]
      %v1549 = vld [vmem:[%s1 + $0x88] sm:$0xf]
      %v1550 = vld [vmem:[%s1 + $0x8c] sm:$0xf]
      %v1551 = vld [vmem:[%s1 + $0x90] sm:$0xf]
      %v1552 = vld [vmem:[%s1 + $0x94] sm:$0xf]
      %v1553 = vld [vmem:[%s1 + $0x98] sm:$0xf]
      %v1554 = vld [vmem:[%s1 + $0x9c] sm:$0xf]
      %v1555 = vld [vmem:[%s1 + $0xa0] sm:$0xf]
      %v1556 = vld [vmem:[%s1 + $0xa4] sm:$0xf]
      %v1557 = vld [vmem:[%s1 + $0xa8] sm:$0xf]
      %v1558 = vld [vmem:[%s1 + $0xac] sm:$0xf]
      %v1559 = vld [vmem:[%s1 + $0xb0] sm:$0xf]
      %v1560 = vld [vmem:[%s1 + $0xb4] sm:$0xf]
      %v1561 = vld [vmem:[%s1 + $0xb8] sm:$0xf]
      %v1562 = vld [vmem:[%s1 + $0xbc] sm:$0xf]
      %v1563 = vld [vmem:[%s1 + $0xc0] sm:$0xf]
      %v1564 = vld [vmem:[%s1 + $0xc4] sm:$0xf]
      %v1565 = vld [vmem:[%s1 + $0xc8] sm:$0xf]
      %v1566 = vld [vmem:[%s1 + $0xcc] sm:$0xf]
      %v1567 = vld [vmem:[%s1 + $0xd0] sm:$0xf]
      %v1568 = vld [vmem:[%s1 + $0xd4] sm:$0xf]
      %v1569 = vld [vmem:[%s1 + $0xd8] sm:$0xf]
      %v1570 = vld [vmem:[%s1 + $0xdc] sm:$0xf]
      %v1571 = vld [vmem:[%s1 + $0xe0] sm:$0xf]
      %v1572 = vld [vmem:[%s1 + $0xe4] sm:$0xf]
      %v1573 = vld [vmem:[%s1 + $0xe8] sm:$0xf]
      %v1574 = vld [vmem:[%s1 + $0xec] sm:$0xf]
      %v1575 = vld [vmem:[%s1 + $0xf0] sm:$0xf]
      %v1576 = vld [vmem:[%s1 + $0xf4] sm:$0xf]
      %v1577 = vld [vmem:[%s1 + $0xf8] sm:$0xf]
      %v1578 = vld [vmem:[%s1 + $0xfc] sm:$0xf]
      %v1579 = vld [vmem:[%s1 + $0x100] sm:$0xf]
      %v1580 = vld [vmem:[%s1 + $0x104] sm:$0xf]
      %v1581 = vld [vmem:[%s1 + $0x108] sm:$0xf]
      %v1582 = vld [vmem:[%s1 + $0x10c] sm:$0xf]
      %v1583 = vld [vmem:[%s1 + $0x110] sm:$0xf]
      %v1584 = vld [vmem:[%s1 + $0x114] sm:$0xf]
      %v1585 = vld [vmem:[%s1 + $0x118] sm:$0xf]
      %v1586 = vld [vmem:[%s1 + $0x11c] sm:$0xf]
      %v1659 = vunpack.c.l.b16 %v1515
      %v1660 = vunpack.c.l.b16 %v1516
      %v1661 = vunpack.c.l.b16 %v1517
      %v1662 = vunpack.c.l.b16 %v1518
      %v1663 = vunpack.c.l.b16 %v1519
      %v1664 = vunpack.c.l.b16 %v1520
      %v1665 = vunpack.c.l.b16 %v1521
      %v1666 = vunpack.c.l.b16 %v1522
      %v1667 = vunpack.c.l.b16 %v1523
      %v1668 = vunpack.c.l.b16 %v1524
      %v1669 = vunpack.c.l.b16 %v1525
      %v1670 = vunpack.c.l.b16 %v1526
      %v1671 = vunpack.c.l.b16 %v1527
      %v1672 = vunpack.c.l.b16 %v1528
      %v1673 = vunpack.c.l.b16 %v1529
      %v1674 = vunpack.c.l.b16 %v1530
      %v1675 = vunpack.c.l.b16 %v1531
      %v1676 = vunpack.c.l.b16 %v1532
      %v1677 = vunpack.c.l.b16 %v1533
      %v1678 = vunpack.c.l.b16 %v1534
      %v1679 = vunpack.c.l.b16 %v1535
      %v1680 = vunpack.c.l.b16 %v1536
      %v1681 = vunpack.c.l.b16 %v1537
      %v1682 = vunpack.c.l.b16 %v1538
      %v1683 = vunpack.c.l.b16 %v1539
      %v1684 = vunpack.c.l.b16 %v1540
      %v1685 = vunpack.c.l.b16 %v1541
      %v1686 = vunpack.c.l.b16 %v1542
      %v1687 = vunpack.c.l.b16 %v1543
      %v1688 = vunpack.c.l.b16 %v1544
      %v1689 = vunpack.c.l.b16 %v1545
      %v1690 = vunpack.c.l.b16 %v1546
      %v1691 = vunpack.c.l.b16 %v1547
      %v1692 = vunpack.c.l.b16 %v1548
      %v1693 = vunpack.c.l.b16 %v1549
      %v1694 = vunpack.c.l.b16 %v1550
      %v1695 = vunpack.c.l.b16 %v1551
      %v1696 = vunpack.c.l.b16 %v1552
      %v1697 = vunpack.c.l.b16 %v1553
      %v1698 = vunpack.c.l.b16 %v1554
      %v1699 = vunpack.c.l.b16 %v1555
      %v1700 = vunpack.c.l.b16 %v1556
      %v1701 = vunpack.c.l.b16 %v1557
      %v1702 = vunpack.c.l.b16 %v1558
      %v1703 = vunpack.c.l.b16 %v1559
      %v1704 = vunpack.c.l.b16 %v1560
      %v1705 = vunpack.c.l.b16 %v1561
      %v1706 = vunpack.c.l.b16 %v1562
      %v1707 = vunpack.c.l.b16 %v1563
      %v1708 = vunpack.c.l.b16 %v1564
      %v1709 = vunpack.c.l.b16 %v1565
      %v1710 = vunpack.c.l.b16 %v1566
      %v1711 = vunpack.c.l.b16 %v1567
      %v1712 = vunpack.c.l.b16 %v1568
      %v1713 = vunpack.c.l.b16 %v1569
      %v1714 = vunpack.c.l.b16 %v1570
      %v1715 = vunpack.c.l.b16 %v1571
      %v1716 = vunpack.c.l.b16 %v1572
      %v1717 = vunpack.c.l.b16 %v1573
      %v1718 = vunpack.c.l.b16 %v1574
      %v1719 = vunpack.c.l.b16 %v1575
      %v1720 = vunpack.c.l.b16 %v1576
      %v1721 = vunpack.c.l.b16 %v1577
      %v1722 = vunpack.c.l.b16 %v1578
      %v1723 = vunpack.c.l.b16 %v1579
      %v1724 = vunpack.c.l.b16 %v1580
      %v1725 = vunpack.c.l.b16 %v1581
      %v1726 = vunpack.c.l.b16 %v1582
      %v1727 = vunpack.c.l.b16 %v1583
      %v1728 = vunpack.c.l.b16 %v1584
      %v1729 = vunpack.c.l.b16 %v1585
      %v1730 = vunpack.c.l.b16 %v1586
      %v1731 = vpack.c.b16 %v1660, %v1659
      %v1732 = vpack.c.b16 %v1662, %v1661
      %v1733 = vpack.c.b16 %v1664, %v1663
      %v1734 = vpack.c.b16 %v1666, %v1665
      %v1735 = vpack.c.b16 %v1668, %v1667
      %v1736 = vpack.c.b16 %v1670, %v1669
      %v1737 = vpack.c.b16 %v1672, %v1671
      %v1738 = vpack.c.b16 %v1674, %v1673
      %v1739 = vpack.c.b16 %v1676, %v1675
      %v1740 = vpack.c.b16 %v1678, %v1677
      %v1741 = vpack.c.b16 %v1680, %v1679
      %v1742 = vpack.c.b16 %v1682, %v1681
      %v1743 = vpack.c.b16 %v1684, %v1683
      %v1744 = vpack.c.b16 %v1686, %v1685
      %v1745 = vpack.c.b16 %v1688, %v1687
      %v1746 = vpack.c.b16 %v1690, %v1689
      %v1747 = vpack.c.b16 %v1692, %v1691
      %v1748 = vpack.c.b16 %v1694, %v1693
      %v1749 = vpack.c.b16 %v1696, %v1695
      %v1750 = vpack.c.b16 %v1698, %v1697
      %v1751 = vpack.c.b16 %v1700, %v1699
      %v1752 = vpack.c.b16 %v1702, %v1701
      %v1753 = vpack.c.b16 %v1704, %v1703
      %v1754 = vpack.c.b16 %v1706, %v1705
      %v1755 = vpack.c.b16 %v1708, %v1707
      %v1756 = vpack.c.b16 %v1710, %v1709
      %v1757 = vpack.c.b16 %v1712, %v1711
      %v1758 = vpack.c.b16 %v1714, %v1713
      %v1759 = vpack.c.b16 %v1716, %v1715
      %v1760 = vpack.c.b16 %v1718, %v1717
      %v1761 = vpack.c.b16 %v1720, %v1719
      %v1762 = vpack.c.b16 %v1722, %v1721
      %v1763 = vpack.c.b16 %v1724, %v1723
      %v1764 = vpack.c.b16 %v1726, %v1725
      %v1765 = vpack.c.b16 %v1728, %v1727
      %v1766 = vpack.c.b16 %v1730, %v1729
      %v1804 = vsel %vm1205, %v1196, 0
      %v1806 = vsel %vm1205, %v676, 0
      %v1808 = vsel %vm1205, %v678, 0
      %v1810 = vsel %vm1205, %v680, 0
      %v1812 = vsel %vm1205, %v682, 0
      %v1814 = vsel %vm1205, %v684, 0
      %v1816 = vsel %vm1205, %v686, 0
      %v1818 = vsel %vm1205, %v688, 0
      %v1820 = vsel %vm1205, %v690, 0
      %v1822 = vsel %vm1205, %v692, 0
      %v1824 = vsel %vm1205, %v694, 0
      %v1826 = vsel %vm1205, %v696, 0
      %v1828 = vsel %vm1205, %v698, 0
      %v1830 = vsel %vm1205, %v700, 0
      %v1832 = vsel %vm1205, %v702, 0
      %v1834 = vsel %vm1205, %v704, 0
      %v1836 = vsel %vm1205, %v706, 0
      %v1838 = vsel %vm1205, %v708, 0
      %v1840 = vsel %vm1205, %v710, 0
      %v1842 = vsel %vm1205, %v712, 0
      %v1844 = vsel %vm1205, %v714, 0
      %v1846 = vsel %vm1205, %v716, 0
      %v1848 = vsel %vm1205, %v718, 0
      %v1851 = vsel %vm1205, %v1198, 0
      %v1854 = vsel %vm1205, %v1200, 0
      %v1857 = vsel %vm1205, %v1202, 0
      %v1860 = vsel %vm1205, %v1204, 0
      %1862 = vmatprep.subr.bf16.mxu0 0
      %1863 = vmatpush1.bf16.msra.mxu0 %v1738
      %1864 = vmatprep.subr.bf16.mxu0 0
      %1865 = vmatpush1.bf16.msra.mxu0 %v1737
      %1866 = vmatprep.subr.bf16.mxu0 0
      %1867 = vmatpush1.bf16.msra.mxu0 %v1736
      %1868 = vmatprep.subr.bf16.mxu0 0
      %1869 = vmatpush1.bf16.msra.mxu0 %v1735
      %1870 = vmatprep.subr.bf16.mxu0 0
      %1871 = vmatpush1.bf16.msra.mxu0 %v1734
      %1872 = vmatprep.subr.bf16.mxu0 0
      %1873 = vmatpush1.bf16.msra.mxu0 %v1733
      %1874 = vmatprep.subr.bf16.mxu0 0
      %1875 = vmatpush1.bf16.msra.mxu0 %v1732
      %1876 = vmatprep.subr.bf16.mxu0 0
      %1877 = vmatpush1.bf16.msra.mxu0 %v1731
      %1878 = vmatprep.subr.bf16.mxu0 0
      %1879 = vmatpush2.bf16.msra.mxu0 %v1746
      %1880 = vmatprep.subr.bf16.mxu0 0
      %1881 = vmatpush2.bf16.msra.mxu0 %v1745
      %1882 = vmatprep.subr.bf16.mxu0 0
      %1883 = vmatpush2.bf16.msra.mxu0 %v1744
      %1884 = vmatprep.subr.bf16.mxu0 0
      %1885 = vmatpush2.bf16.msra.mxu0 %v1743
      %1886 = vmatprep.subr.bf16.mxu0 0
      %1887 = vmatpush2.bf16.msra.mxu0 %v1742
      %1888 = vmatprep.subr.bf16.mxu0 0
      %1889 = vmatpush2.bf16.msra.mxu0 %v1741
      %1890 = vmatprep.subr.bf16.mxu0 0
      %1891 = vmatpush2.bf16.msra.mxu0 %v1740
      %1892 = vmatprep.subr.bf16.mxu0 0
      %1893 = vmatpush2.bf16.msra.mxu0 %v1739
      %1894 = vmatprep.mubr.bf16.mxu0 %v1289
      %1895 = vmatmul.mubr.bf16.gmra.mxu0 %v1207
      %v1896 = vpop.f32.mrf.mxu0
      %v1897 = vadd.f32 0.0, %v1896
      %v1898 = vpop.f32.mrf.mxu0
      %v1899 = vpop.f32.mrf.mxu0
      %v1900 = vadd.f32 0.0, %v1899
      %v1901 = vpop.f32.mrf.mxu0
      %1902 = vmatprep.mubr.bf16.mxu0 %v1293
      %1903 = vmatmul.mubr.bf16.gmra.mxu0 %v1210
      %v1904 = vpop.f32.mrf.mxu0
      %v1905 = vadd.f32 0.0, %v1904
      %v1906 = vpop.f32.mrf.mxu0
      %v1907 = vpop.f32.mrf.mxu0
      %v1908 = vadd.f32 0.0, %v1907
      %v1909 = vpop.f32.mrf.mxu0
      %1910 = vmatprep.mubr.bf16.mxu0 %v1297
      %1911 = vmatmul.mubr.bf16.gmra.mxu0 %v1213
      %v1912 = vpop.f32.mrf.mxu0
      %v1913 = vadd.f32 0.0, %v1912
      %v1914 = vpop.f32.mrf.mxu0
      %v1915 = vpop.f32.mrf.mxu0
      %v1916 = vadd.f32 0.0, %v1915
      %v1917 = vpop.f32.mrf.mxu0
      %1918 = vmatprep.mubr.bf16.mxu0 %v1301
      %1919 = vmatmul.mubr.bf16.gmra.mxu0 %v1216
      %v1920 = vpop.f32.mrf.mxu0
      %v1921 = vadd.f32 0.0, %v1920
      %v1922 = vpop.f32.mrf.mxu0
      %v1923 = vpop.f32.mrf.mxu0
      %v1924 = vadd.f32 0.0, %v1923
      %v1925 = vpop.f32.mrf.mxu0
      %1926 = vmatprep.mubr.bf16.mxu0 %v1305
      %1927 = vmatmul.mubr.bf16.gmra.mxu0 %v1219
      %v1928 = vpop.f32.mrf.mxu0
      %v1929 = vadd.f32 0.0, %v1928
      %v1930 = vpop.f32.mrf.mxu0
      %v1931 = vpop.f32.mrf.mxu0
      %v1932 = vadd.f32 0.0, %v1931
      %v1933 = vpop.f32.mrf.mxu0
      %1934 = vmatprep.mubr.bf16.mxu0 %v1309
      %1935 = vmatmul.mubr.bf16.gmra.mxu0 %v1222
      %v1936 = vpop.f32.mrf.mxu0
      %v1937 = vadd.f32 0.0, %v1936
      %v1938 = vpop.f32.mrf.mxu0
      %v1939 = vpop.f32.mrf.mxu0
      %v1940 = vadd.f32 0.0, %v1939
      %v1941 = vpop.f32.mrf.mxu0
      %1942 = vmatprep.mubr.bf16.mxu0 %v1313
      %1943 = vmatmul.mubr.bf16.gmra.mxu0 %v1225
      %v1944 = vpop.f32.mrf.mxu0
      %v1945 = vadd.f32 0.0, %v1944
      %v1946 = vpop.f32.mrf.mxu0
      %v1947 = vpop.f32.mrf.mxu0
      %v1948 = vadd.f32 0.0, %v1947
      %v1949 = vpop.f32.mrf.mxu0
      %1950 = vmatprep.mubr.bf16.mxu0 %v1317
      %1951 = vmatmul.mubr.bf16.gmra.mxu0 %v1228
      %v1952 = vpop.f32.mrf.mxu0
      %v1953 = vadd.f32 0.0, %v1952
      %v1954 = vpop.f32.mrf.mxu0
      %v1955 = vpop.f32.mrf.mxu0
      %v1956 = vadd.f32 0.0, %v1955
      %v1957 = vpop.f32.mrf.mxu0
      %1958 = vmatprep.mubr.bf16.mxu0 %v1321
      %1959 = vmatmul.mubr.bf16.gmra.mxu0 %v1231
      %v1960 = vpop.f32.mrf.mxu0
      %v1961 = vadd.f32 0.0, %v1960
      %v1962 = vpop.f32.mrf.mxu0
      %v1963 = vpop.f32.mrf.mxu0
      %v1964 = vadd.f32 0.0, %v1963
      %v1965 = vpop.f32.mrf.mxu0
      %1966 = vmatprep.mubr.bf16.mxu0 %v1325
      %1967 = vmatmul.mubr.bf16.gmra.mxu0 %v1234
      %v1968 = vpop.f32.mrf.mxu0
      %v1969 = vadd.f32 0.0, %v1968
      %v1970 = vpop.f32.mrf.mxu0
      %v1971 = vpop.f32.mrf.mxu0
      %v1972 = vadd.f32 0.0, %v1971
      %v1973 = vpop.f32.mrf.mxu0
      %1974 = vmatprep.mubr.bf16.mxu0 %v1329
      %1975 = vmatmul.mubr.bf16.gmra.mxu0 %v1237
      %v1976 = vpop.f32.mrf.mxu0
      %v1977 = vadd.f32 0.0, %v1976
      %v1978 = vpop.f32.mrf.mxu0
      %v1979 = vpop.f32.mrf.mxu0
      %v1980 = vadd.f32 0.0, %v1979
      %v1981 = vpop.f32.mrf.mxu0
      %1982 = vmatprep.mubr.bf16.mxu0 %v1333
      %1983 = vmatmul.mubr.bf16.gmra.mxu0 %v1240
      %v1984 = vpop.f32.mrf.mxu0
      %v1985 = vadd.f32 0.0, %v1984
      %v1986 = vpop.f32.mrf.mxu0
      %v1987 = vpop.f32.mrf.mxu0
      %v1988 = vadd.f32 0.0, %v1987
      %v1989 = vpop.f32.mrf.mxu0
      %1990 = vmatprep.mubr.bf16.mxu0 %v1337
      %1991 = vmatmul.mubr.bf16.gmra.mxu0 %v1243
      %v1992 = vpop.f32.mrf.mxu0
      %v1993 = vadd.f32 0.0, %v1992
      %v1994 = vpop.f32.mrf.mxu0
      %v1995 = vpop.f32.mrf.mxu0
      %v1996 = vadd.f32 0.0, %v1995
      %v1997 = vpop.f32.mrf.mxu0
      %1998 = vmatprep.mubr.bf16.mxu0 %v1341
      %1999 = vmatmul.mubr.bf16.gmra.mxu0 %v1246
      %v2000 = vpop.f32.mrf.mxu0
      %v2001 = vadd.f32 0.0, %v2000
      %v2002 = vpop.f32.mrf.mxu0
      %v2003 = vpop.f32.mrf.mxu0
      %v2004 = vadd.f32 0.0, %v2003
      %v2005 = vpop.f32.mrf.mxu0
      %2006 = vmatprep.mubr.bf16.mxu0 %v1345
      %2007 = vmatmul.mubr.bf16.gmra.mxu0 %v1249
      %v2008 = vpop.f32.mrf.mxu0
      %v2009 = vadd.f32 0.0, %v2008
      %v2010 = vpop.f32.mrf.mxu0
      %v2011 = vpop.f32.mrf.mxu0
      %v2012 = vadd.f32 0.0, %v2011
      %v2013 = vpop.f32.mrf.mxu0
      %2014 = vmatprep.mubr.bf16.mxu0 %v1349
      %2015 = vmatmul.mubr.bf16.gmra.mxu0 %v1252
      %v2016 = vpop.f32.mrf.mxu0
      %v2017 = vadd.f32 0.0, %v2016
      %v2018 = vpop.f32.mrf.mxu0
      %v2019 = vpop.f32.mrf.mxu0
      %v2020 = vadd.f32 0.0, %v2019
      %v2021 = vpop.f32.mrf.mxu0
      %2022 = vmatprep.mubr.bf16.mxu0 %v1353
      %2023 = vmatmul.mubr.bf16.gmra.mxu0 %v1255
      %v2024 = vpop.f32.mrf.mxu0
      %v2025 = vadd.f32 0.0, %v2024
      %v2026 = vpop.f32.mrf.mxu0
      %v2027 = vpop.f32.mrf.mxu0
      %v2028 = vadd.f32 0.0, %v2027
      %v2029 = vpop.f32.mrf.mxu0
      %2030 = vmatprep.mubr.bf16.mxu0 %v1357
      %2031 = vmatmul.mubr.bf16.gmra.mxu0 %v1258
      %v2032 = vpop.f32.mrf.mxu0
      %v2033 = vadd.f32 0.0, %v2032
      %v2034 = vpop.f32.mrf.mxu0
      %v2035 = vpop.f32.mrf.mxu0
      %v2036 = vadd.f32 0.0, %v2035
      %v2037 = vpop.f32.mrf.mxu0
      %2038 = vmatprep.mubr.bf16.mxu0 %v1361
      %2039 = vmatmul.mubr.bf16.gmra.mxu0 %v1261
      %v2040 = vpop.f32.mrf.mxu0
      %v2041 = vadd.f32 0.0, %v2040
      %v2042 = vpop.f32.mrf.mxu0
      %v2043 = vpop.f32.mrf.mxu0
      %v2044 = vadd.f32 0.0, %v2043
      %v2045 = vpop.f32.mrf.mxu0
      %2046 = vmatprep.mubr.bf16.mxu0 %v1365
      %2047 = vmatmul.mubr.bf16.gmra.mxu0 %v1264
      %v2048 = vpop.f32.mrf.mxu0
      %v2049 = vadd.f32 0.0, %v2048
      %v2050 = vpop.f32.mrf.mxu0
      %v2051 = vpop.f32.mrf.mxu0
      %v2052 = vadd.f32 0.0, %v2051
      %v2053 = vpop.f32.mrf.mxu0
      %2054 = vmatprep.mubr.bf16.mxu0 %v1369
      %2055 = vmatmul.mubr.bf16.gmra.mxu0 %v1267
      %v2056 = vpop.f32.mrf.mxu0
      %v2057 = vadd.f32 0.0, %v2056
      %v2058 = vpop.f32.mrf.mxu0
      %v2059 = vpop.f32.mrf.mxu0
      %v2060 = vadd.f32 0.0, %v2059
      %v2061 = vpop.f32.mrf.mxu0
      %2062 = vmatprep.mubr.bf16.mxu0 %v1373
      %2063 = vmatmul.mubr.bf16.gmra.mxu0 %v1270
      %v2064 = vpop.f32.mrf.mxu0
      %v2065 = vadd.f32 0.0, %v2064
      %v2066 = vpop.f32.mrf.mxu0
      %v2067 = vpop.f32.mrf.mxu0
      %v2068 = vadd.f32 0.0, %v2067
      %v2069 = vpop.f32.mrf.mxu0
      %2070 = vmatprep.mubr.bf16.mxu0 %v1377
      %2071 = vmatmul.mubr.bf16.gmra.mxu0 %v1273
      %v2072 = vpop.f32.mrf.mxu0
      %v2073 = vadd.f32 0.0, %v2072
      %v2074 = vpop.f32.mrf.mxu0
      %v2075 = vpop.f32.mrf.mxu0
      %v2076 = vadd.f32 0.0, %v2075
      %v2077 = vpop.f32.mrf.mxu0
      %2078 = vmatprep.mubr.bf16.mxu0 %v1381
      %2079 = vmatmul.mubr.bf16.gmra.mxu0 %v1276
      %v2080 = vpop.f32.mrf.mxu0
      %v2081 = vadd.f32 0.0, %v2080
      %v2082 = vpop.f32.mrf.mxu0
      %v2083 = vpop.f32.mrf.mxu0
      %v2084 = vadd.f32 0.0, %v2083
      %v2085 = vpop.f32.mrf.mxu0
      %2086 = vmatprep.mubr.bf16.mxu0 %v1385
      %2087 = vmatmul.mubr.bf16.gmra.mxu0 %v1279
      %v2088 = vpop.f32.mrf.mxu0
      %v2089 = vadd.f32 0.0, %v2088
      %v2090 = vpop.f32.mrf.mxu0
      %v2091 = vpop.f32.mrf.mxu0
      %v2092 = vadd.f32 0.0, %v2091
      %v2093 = vpop.f32.mrf.mxu0
      %2094 = vmatprep.mubr.bf16.mxu0 %v1389
      %2095 = vmatmul.mubr.bf16.gmra.mxu0 %v1282
      %v2096 = vpop.f32.mrf.mxu0
      %v2097 = vadd.f32 0.0, %v2096
      %v2098 = vpop.f32.mrf.mxu0
      %v2099 = vpop.f32.mrf.mxu0
      %v2100 = vadd.f32 0.0, %v2099
      %v2101 = vpop.f32.mrf.mxu0
      %2102 = vmatprep.mubr.bf16.mxu0 %v1393
      %2103 = vmatmul.mubr.bf16.gmra.mxu0 %v1285
      %v2104 = vpop.f32.mrf.mxu0
      %v2105 = vadd.f32 0.0, %v2104
      %v2106 = vpop.f32.mrf.mxu0
      %v2107 = vpop.f32.mrf.mxu0
      %v2108 = vadd.f32 0.0, %v2107
      %v2109 = vpop.f32.mrf.mxu0
      %2110 = vdwg.mxu0
      %2111 = vmatprep.subr.bf16.mxu0 0
      %2112 = vmatpush1.bf16.msra.mxu0 %v1754
      %2113 = vmatprep.subr.bf16.mxu0 0
      %2114 = vmatpush1.bf16.msra.mxu0 %v1753
      %2115 = vmatprep.subr.bf16.mxu0 0
      %2116 = vmatpush1.bf16.msra.mxu0 %v1752
      %2117 = vmatprep.subr.bf16.mxu0 0
      %2118 = vmatpush1.bf16.msra.mxu0 %v1751
      %2119 = vmatprep.subr.bf16.mxu0 0
      %2120 = vmatpush1.bf16.msra.mxu0 %v1750
      %2121 = vmatprep.subr.bf16.mxu0 0
      %2122 = vmatpush1.bf16.msra.mxu0 %v1749
      %2123 = vmatprep.subr.bf16.mxu0 0
      %2124 = vmatpush1.bf16.msra.mxu0 %v1748
      %2125 = vmatprep.subr.bf16.mxu0 0
      %2126 = vmatpush1.bf16.msra.mxu0 %v1747
      %2127 = vmatprep.subr.bf16.mxu0 0
      %2128 = vmatpush2.bf16.msra.mxu0 %v1762
      %2129 = vmatprep.subr.bf16.mxu0 0
      %2130 = vmatpush2.bf16.msra.mxu0 %v1761
      %2131 = vmatprep.subr.bf16.mxu0 0
      %2132 = vmatpush2.bf16.msra.mxu0 %v1760
      %2133 = vmatprep.subr.bf16.mxu0 0
      %2134 = vmatpush2.bf16.msra.mxu0 %v1759
      %2135 = vmatprep.subr.bf16.mxu0 0
      %2136 = vmatpush2.bf16.msra.mxu0 %v1758
      %2137 = vmatprep.subr.bf16.mxu0 0
      %2138 = vmatpush2.bf16.msra.mxu0 %v1757
      %2139 = vmatprep.subr.bf16.mxu0 0
      %2140 = vmatpush2.bf16.msra.mxu0 %v1756
      %2141 = vmatprep.subr.bf16.mxu0 0
      %2142 = vmatpush2.bf16.msra.mxu0 %v1755
      %2143 = vmatprep.mubr.bf16.mxu0 %v1216
      %2144 = vmatmul.mubr.bf16.gmra.mxu0 %v1397
      %v2145 = vpop.f32.mrf.mxu0
      %v2146 = vadd.f32 %v1897, %v2145
      %v2147 = vpop.f32.mrf.mxu0
      %v2148 = vpop.f32.mrf.mxu0
      %v2149 = vadd.f32 %v1900, %v2148
      %v2150 = vpop.f32.mrf.mxu0
      %2151 = vmatprep.mubr.bf16.mxu0 %v1219
      %2152 = vmatmul.mubr.bf16.gmra.mxu0 %v1401
      %v2153 = vpop.f32.mrf.mxu0
      %v2154 = vadd.f32 %v1905, %v2153
      %v2155 = vpop.f32.mrf.mxu0
      %v2156 = vpop.f32.mrf.mxu0
      %v2157 = vadd.f32 %v1908, %v2156
      %v2158 = vpop.f32.mrf.mxu0
      %2159 = vmatprep.mubr.bf16.mxu0 %v1222
      %2160 = vmatmul.mubr.bf16.gmra.mxu0 %v1405
      %v2161 = vpop.f32.mrf.mxu0
      %v2162 = vadd.f32 %v1913, %v2161
      %v2163 = vpop.f32.mrf.mxu0
      %v2164 = vpop.f32.mrf.mxu0
      %v2165 = vadd.f32 %v1916, %v2164
      %v2166 = vpop.f32.mrf.mxu0
      %2167 = vmatprep.mubr.bf16.mxu0 %v1225
      %2168 = vmatmul.mubr.bf16.gmra.mxu0 %v1409
      %v2169 = vpop.f32.mrf.mxu0
      %v2170 = vadd.f32 %v1921, %v2169
      %v2171 = vpop.f32.mrf.mxu0
      %v2172 = vpop.f32.mrf.mxu0
      %v2173 = vadd.f32 %v1924, %v2172
      %v2174 = vpop.f32.mrf.mxu0
      %2175 = vmatprep.mubr.bf16.mxu0 %v1228
      %2176 = vmatmul.mubr.bf16.gmra.mxu0 %v1413
      %v2177 = vpop.f32.mrf.mxu0
      %v2178 = vadd.f32 %v1929, %v2177
      %v2179 = vpop.f32.mrf.mxu0
      %v2180 = vpop.f32.mrf.mxu0
      %v2181 = vadd.f32 %v1932, %v2180
      %v2182 = vpop.f32.mrf.mxu0
      %2183 = vmatprep.mubr.bf16.mxu0 %v1231
      %2184 = vmatmul.mubr.bf16.gmra.mxu0 %v1417
      %v2185 = vpop.f32.mrf.mxu0
      %v2186 = vadd.f32 %v1937, %v2185
      %v2187 = vpop.f32.mrf.mxu0
      %v2188 = vpop.f32.mrf.mxu0
      %v2189 = vadd.f32 %v1940, %v2188
      %v2190 = vpop.f32.mrf.mxu0
      %2191 = vmatprep.mubr.bf16.mxu0 %v1234
      %2192 = vmatmul.mubr.bf16.gmra.mxu0 %v1421
      %v2193 = vpop.f32.mrf.mxu0
      %v2194 = vadd.f32 %v1945, %v2193
      %v2195 = vpop.f32.mrf.mxu0
      %v2196 = vpop.f32.mrf.mxu0
      %v2197 = vadd.f32 %v1948, %v2196
      %v2198 = vpop.f32.mrf.mxu0
      %2199 = vmatprep.mubr.bf16.mxu0 %v1237
      %2200 = vmatmul.mubr.bf16.gmra.mxu0 %v1425
      %v2201 = vpop.f32.mrf.mxu0
      %v2202 = vadd.f32 %v1953, %v2201
      %v2203 = vpop.f32.mrf.mxu0
      %v2204 = vpop.f32.mrf.mxu0
      %v2205 = vadd.f32 %v1956, %v2204
      %v2206 = vpop.f32.mrf.mxu0
      %2207 = vmatprep.mubr.bf16.mxu0 %v1240
      %2208 = vmatmul.mubr.bf16.gmra.mxu0 %v1429
      %v2209 = vpop.f32.mrf.mxu0
      %v2210 = vadd.f32 %v1961, %v2209
      %v2211 = vpop.f32.mrf.mxu0
      %v2212 = vpop.f32.mrf.mxu0
      %v2213 = vadd.f32 %v1964, %v2212
      %v2214 = vpop.f32.mrf.mxu0
      %2215 = vmatprep.mubr.bf16.mxu0 %v1243
      %2216 = vmatmul.mubr.bf16.gmra.mxu0 %v1433
      %v2217 = vpop.f32.mrf.mxu0
      %v2218 = vadd.f32 %v1969, %v2217
      %v2219 = vpop.f32.mrf.mxu0
      %v2220 = vpop.f32.mrf.mxu0
      %v2221 = vadd.f32 %v1972, %v2220
      %v2222 = vpop.f32.mrf.mxu0
      %2223 = vmatprep.mubr.bf16.mxu0 %v1246
      %2224 = vmatmul.mubr.bf16.gmra.mxu0 %v1437
      %v2225 = vpop.f32.mrf.mxu0
      %v2226 = vadd.f32 %v1977, %v2225
      %v2227 = vpop.f32.mrf.mxu0
      %v2228 = vpop.f32.mrf.mxu0
      %v2229 = vadd.f32 %v1980, %v2228
      %v2230 = vpop.f32.mrf.mxu0
      %2231 = vmatprep.mubr.bf16.mxu0 %v1249
      %2232 = vmatmul.mubr.bf16.gmra.mxu0 %v1441
      %v2233 = vpop.f32.mrf.mxu0
      %v2234 = vadd.f32 %v1985, %v2233
      %v2235 = vpop.f32.mrf.mxu0
      %v2236 = vpop.f32.mrf.mxu0
      %v2237 = vadd.f32 %v1988, %v2236
      %v2238 = vpop.f32.mrf.mxu0
      %2239 = vmatprep.mubr.bf16.mxu0 %v1252
      %2240 = vmatmul.mubr.bf16.gmra.mxu0 %v1445
      %v2241 = vpop.f32.mrf.mxu0
      %v2242 = vadd.f32 %v1993, %v2241
      %v2243 = vpop.f32.mrf.mxu0
      %v2244 = vpop.f32.mrf.mxu0
      %v2245 = vadd.f32 %v1996, %v2244
      %v2246 = vpop.f32.mrf.mxu0
      %2247 = vmatprep.mubr.bf16.mxu0 %v1255
      %2248 = vmatmul.mubr.bf16.gmra.mxu0 %v1449
      %v2249 = vpop.f32.mrf.mxu0
      %v2250 = vadd.f32 %v2001, %v2249
      %v2251 = vpop.f32.mrf.mxu0
      %v2252 = vpop.f32.mrf.mxu0
      %v2253 = vadd.f32 %v2004, %v2252
      %v2254 = vpop.f32.mrf.mxu0
      %2255 = vmatprep.mubr.bf16.mxu0 %v1258
      %2256 = vmatmul.mubr.bf16.gmra.mxu0 %v1453
      %v2257 = vpop.f32.mrf.mxu0
      %v2258 = vadd.f32 %v2009, %v2257
      %v2259 = vpop.f32.mrf.mxu0
      %v2260 = vpop.f32.mrf.mxu0
      %v2261 = vadd.f32 %v2012, %v2260
      %v2262 = vpop.f32.mrf.mxu0
      %2263 = vmatprep.mubr.bf16.mxu0 %v1261
      %2264 = vmatmul.mubr.bf16.gmra.mxu0 %v1457
      %v2265 = vpop.f32.mrf.mxu0
      %v2266 = vadd.f32 %v2017, %v2265
      %v2267 = vpop.f32.mrf.mxu0
      %v2268 = vpop.f32.mrf.mxu0
      %v2269 = vadd.f32 %v2020, %v2268
      %v2270 = vpop.f32.mrf.mxu0
      %2271 = vmatprep.mubr.bf16.mxu0 %v1264
      %2272 = vmatmul.mubr.bf16.gmra.mxu0 %v1461
      %v2273 = vpop.f32.mrf.mxu0
      %v2274 = vadd.f32 %v2025, %v2273
      %v2275 = vpop.f32.mrf.mxu0
      %v2276 = vpop.f32.mrf.mxu0
      %v2277 = vadd.f32 %v2028, %v2276
      %v2278 = vpop.f32.mrf.mxu0
      %2279 = vmatprep.mubr.bf16.mxu0 %v1267
      %2280 = vmatmul.mubr.bf16.gmra.mxu0 %v1465
      %v2281 = vpop.f32.mrf.mxu0
      %v2282 = vadd.f32 %v2033, %v2281
      %v2283 = vpop.f32.mrf.mxu0
      %v2284 = vpop.f32.mrf.mxu0
      %v2285 = vadd.f32 %v2036, %v2284
      %v2286 = vpop.f32.mrf.mxu0
      %2287 = vmatprep.mubr.bf16.mxu0 %v1270
      %2288 = vmatmul.mubr.bf16.gmra.mxu0 %v1469
      %v2289 = vpop.f32.mrf.mxu0
      %v2290 = vadd.f32 %v2041, %v2289
      %v2291 = vpop.f32.mrf.mxu0
      %v2292 = vpop.f32.mrf.mxu0
      %v2293 = vadd.f32 %v2044, %v2292
      %v2294 = vpop.f32.mrf.mxu0
      %2295 = vmatprep.mubr.bf16.mxu0 %v1273
      %2296 = vmatmul.mubr.bf16.gmra.mxu0 %v1473
      %v2297 = vpop.f32.mrf.mxu0
      %v2298 = vadd.f32 %v2049, %v2297
      %v2299 = vpop.f32.mrf.mxu0
      %v2300 = vpop.f32.mrf.mxu0
      %v2301 = vadd.f32 %v2052, %v2300
      %v2302 = vpop.f32.mrf.mxu0
      %2303 = vmatprep.mubr.bf16.mxu0 %v1276
      %2304 = vmatmul.mubr.bf16.gmra.mxu0 %v1477
      %v2305 = vpop.f32.mrf.mxu0
      %v2306 = vadd.f32 %v2057, %v2305
      %v2307 = vpop.f32.mrf.mxu0
      %v2308 = vpop.f32.mrf.mxu0
      %v2309 = vadd.f32 %v2060, %v2308
      %v2310 = vpop.f32.mrf.mxu0
      %2311 = vmatprep.mubr.bf16.mxu0 %v1279
      %2312 = vmatmul.mubr.bf16.gmra.mxu0 %v1481
      %v2313 = vpop.f32.mrf.mxu0
      %v2314 = vadd.f32 %v2065, %v2313
      %v2315 = vpop.f32.mrf.mxu0
      %v2316 = vpop.f32.mrf.mxu0
      %v2317 = vadd.f32 %v2068, %v2316
      %v2318 = vpop.f32.mrf.mxu0
      %2319 = vmatprep.mubr.bf16.mxu0 %v1282
      %2320 = vmatmul.mubr.bf16.gmra.mxu0 %v1485
      %v2321 = vpop.f32.mrf.mxu0
      %v2322 = vadd.f32 %v2073, %v2321
      %v2323 = vpop.f32.mrf.mxu0
      %v2324 = vpop.f32.mrf.mxu0
      %v2325 = vadd.f32 %v2076, %v2324
      %v2326 = vpop.f32.mrf.mxu0
      %2327 = vmatprep.mubr.bf16.mxu0 %v1504
      %2328 = vmatmul.mubr.bf16.gmra.mxu0 %v1489
      %v2329 = vpop.f32.mrf.mxu0
      %v2330 = vadd.f32 %v2081, %v2329
      %v2331 = vpop.f32.mrf.mxu0
      %v2332 = vpop.f32.mrf.mxu0
      %v2333 = vadd.f32 %v2084, %v2332
      %v2334 = vpop.f32.mrf.mxu0
      %2335 = vmatprep.mubr.bf16.mxu0 %v1507
      %2336 = vmatmul.mubr.bf16.gmra.mxu0 %v1493
      %v2337 = vpop.f32.mrf.mxu0
      %v2338 = vadd.f32 %v2089, %v2337
      %v2339 = vpop.f32.mrf.mxu0
      %v2340 = vpop.f32.mrf.mxu0
      %v2341 = vadd.f32 %v2092, %v2340
      %v2342 = vpop.f32.mrf.mxu0
      %2343 = vmatprep.mubr.bf16.mxu0 %v1510
      %2344 = vmatmul.mubr.bf16.gmra.mxu0 %v1497
      %v2345 = vpop.f32.mrf.mxu0
      %v2346 = vadd.f32 %v2097, %v2345
      %v2347 = vpop.f32.mrf.mxu0
      %v2348 = vpop.f32.mrf.mxu0
      %v2349 = vadd.f32 %v2100, %v2348
      %v2350 = vpop.f32.mrf.mxu0
      %2351 = vmatprep.mubr.bf16.mxu0 %v1513
      %2352 = vmatmul.mubr.bf16.gmra.mxu0 %v1501
      %v2353 = vpop.f32.mrf.mxu0
      %v2354 = vadd.f32 %v2105, %v2353
      %v2355 = vpop.f32.mrf.mxu0
      %v2356 = vpop.f32.mrf.mxu0
      %v2357 = vadd.f32 %v2108, %v2356
      %v2358 = vpop.f32.mrf.mxu0
      %2359 = vdwg.mxu0
      %2360 = vmatprep.subr.bf16.mxu0 0
      %2361 = vmatpush1.bf16.msra.mxu0 0
      %2362 = vmatprep.subr.bf16.mxu0 0
      %2363 = vmatpush1.bf16.msra.mxu0 0
      %2364 = vmatprep.subr.bf16.mxu0 0
      %2365 = vmatpush1.bf16.msra.mxu0 0
      %2366 = vmatprep.subr.bf16.mxu0 0
      %2367 = vmatpush1.bf16.msra.mxu0 0
      %2368 = vmatprep.subr.bf16.mxu0 0
      %2369 = vmatpush1.bf16.msra.mxu0 %v1766
      %2370 = vmatprep.subr.bf16.mxu0 0
      %2371 = vmatpush1.bf16.msra.mxu0 %v1765
      %2372 = vmatprep.subr.bf16.mxu0 0
      %2373 = vmatpush1.bf16.msra.mxu0 %v1764
      %2374 = vmatprep.subr.bf16.mxu0 0
      %2375 = vmatpush1.bf16.msra.mxu0 %v1763
      %2376 = vmatprep.subr.bf16.mxu0 0
      %2377 = vmatpush2.bf16.msra.mxu0 0
      %2378 = vmatprep.subr.bf16.mxu0 0
      %2379 = vmatpush2.bf16.msra.mxu0 0
      %2380 = vmatprep.subr.bf16.mxu0 0
      %2381 = vmatpush2.bf16.msra.mxu0 0
      %2382 = vmatprep.subr.bf16.mxu0 0
      %2383 = vmatpush2.bf16.msra.mxu0 0
      %2384 = vmatprep.subr.bf16.mxu0 0
      %2385 = vmatpush2.bf16.msra.mxu0 0
      %2386 = vmatprep.subr.bf16.mxu0 0
      %2387 = vmatpush2.bf16.msra.mxu0 0
      %2388 = vmatprep.subr.bf16.mxu0 0
      %2389 = vmatpush2.bf16.msra.mxu0 0
      %2390 = vmatprep.subr.bf16.mxu0 0
      %2391 = vmatpush2.bf16.msra.mxu0 0
      %2392 = vmatprep.mubr.bf16.mxu0 0
      %2393 = vmatmul.mubr.bf16.gmra.mxu0 %v1804
      %v2394 = vpop.f32.mrf.mxu0
      %v2395 = vadd.f32 %v2146, %v2394
      %v2396 = vpop.f32.mrf.mxu0
      %v2397 = vpop.f32.mrf.mxu0
      %v2398 = vadd.f32 %v2149, %v2397
      %v2399 = vpop.f32.mrf.mxu0
      %2400 = vmatprep.mubr.bf16.mxu0 0
      %2401 = vmatmul.mubr.bf16.gmra.mxu0 %v1806
      %v2402 = vpop.f32.mrf.mxu0
      %v2403 = vadd.f32 %v2154, %v2402
      %v2404 = vpop.f32.mrf.mxu0
      %v2405 = vpop.f32.mrf.mxu0
      %v2406 = vadd.f32 %v2157, %v2405
      %v2407 = vpop.f32.mrf.mxu0
      %2408 = vmatprep.mubr.bf16.mxu0 0
      %2409 = vmatmul.mubr.bf16.gmra.mxu0 %v1808
      %v2410 = vpop.f32.mrf.mxu0
      %v2411 = vadd.f32 %v2162, %v2410
      %v2412 = vpop.f32.mrf.mxu0
      %v2413 = vpop.f32.mrf.mxu0
      %v2414 = vadd.f32 %v2165, %v2413
      %v2415 = vpop.f32.mrf.mxu0
      %2416 = vmatprep.mubr.bf16.mxu0 0
      %2417 = vmatmul.mubr.bf16.gmra.mxu0 %v1810
      %v2418 = vpop.f32.mrf.mxu0
      %v2419 = vadd.f32 %v2170, %v2418
      %v2420 = vpop.f32.mrf.mxu0
      %v2421 = vpop.f32.mrf.mxu0
      %v2422 = vadd.f32 %v2173, %v2421
      %v2423 = vpop.f32.mrf.mxu0
      %2424 = vmatprep.mubr.bf16.mxu0 0
      %2425 = vmatmul.mubr.bf16.gmra.mxu0 %v1812
      %v2426 = vpop.f32.mrf.mxu0
      %v2427 = vadd.f32 %v2178, %v2426
      %v2428 = vpop.f32.mrf.mxu0
      %v2429 = vpop.f32.mrf.mxu0
      %v2430 = vadd.f32 %v2181, %v2429
      %v2431 = vpop.f32.mrf.mxu0
      %2432 = vmatprep.mubr.bf16.mxu0 0
      %2433 = vmatmul.mubr.bf16.gmra.mxu0 %v1814
      %v2434 = vpop.f32.mrf.mxu0
      %v2435 = vadd.f32 %v2186, %v2434
      %v2436 = vpop.f32.mrf.mxu0
      %v2437 = vpop.f32.mrf.mxu0
      %v2438 = vadd.f32 %v2189, %v2437
      %v2439 = vpop.f32.mrf.mxu0
      %2440 = vmatprep.mubr.bf16.mxu0 0
      %2441 = vmatmul.mubr.bf16.gmra.mxu0 %v1816
      %v2442 = vpop.f32.mrf.mxu0
      %v2443 = vadd.f32 %v2194, %v2442
      %v2444 = vpop.f32.mrf.mxu0
      %v2445 = vpop.f32.mrf.mxu0
      %v2446 = vadd.f32 %v2197, %v2445
      %v2447 = vpop.f32.mrf.mxu0
      %2448 = vmatprep.mubr.bf16.mxu0 0
      %2449 = vmatmul.mubr.bf16.gmra.mxu0 %v1818
      %v2450 = vpop.f32.mrf.mxu0
      %v2451 = vadd.f32 %v2202, %v2450
      %v2452 = vpop.f32.mrf.mxu0
      %v2453 = vpop.f32.mrf.mxu0
      %v2454 = vadd.f32 %v2205, %v2453
      %v2455 = vpop.f32.mrf.mxu0
      %2456 = vmatprep.mubr.bf16.mxu0 0
      %2457 = vmatmul.mubr.bf16.gmra.mxu0 %v1820
      %v2458 = vpop.f32.mrf.mxu0
      %v2459 = vadd.f32 %v2210, %v2458
      %v2460 = vpop.f32.mrf.mxu0
      %v2461 = vpop.f32.mrf.mxu0
      %v2462 = vadd.f32 %v2213, %v2461
      %v2463 = vpop.f32.mrf.mxu0
      %2464 = vmatprep.mubr.bf16.mxu0 0
      %2465 = vmatmul.mubr.bf16.gmra.mxu0 %v1822
      %v2466 = vpop.f32.mrf.mxu0
      %v2467 = vadd.f32 %v2218, %v2466
      %v2468 = vpop.f32.mrf.mxu0
      %v2469 = vpop.f32.mrf.mxu0
      %v2470 = vadd.f32 %v2221, %v2469
      %v2471 = vpop.f32.mrf.mxu0
      %2472 = vmatprep.mubr.bf16.mxu0 0
      %2473 = vmatmul.mubr.bf16.gmra.mxu0 %v1824
      %v2474 = vpop.f32.mrf.mxu0
      %v2475 = vadd.f32 %v2226, %v2474
      %v2476 = vpop.f32.mrf.mxu0
      %v2477 = vpop.f32.mrf.mxu0
      %v2478 = vadd.f32 %v2229, %v2477
      %v2479 = vpop.f32.mrf.mxu0
      %2480 = vmatprep.mubr.bf16.mxu0 0
      %2481 = vmatmul.mubr.bf16.gmra.mxu0 %v1826
      %v2482 = vpop.f32.mrf.mxu0
      %v2483 = vadd.f32 %v2234, %v2482
      %v2484 = vpop.f32.mrf.mxu0
      %v2485 = vpop.f32.mrf.mxu0
      %v2486 = vadd.f32 %v2237, %v2485
      %v2487 = vpop.f32.mrf.mxu0
      %2488 = vmatprep.mubr.bf16.mxu0 0
      %2489 = vmatmul.mubr.bf16.gmra.mxu0 %v1828
      %v2490 = vpop.f32.mrf.mxu0
      %v2491 = vadd.f32 %v2242, %v2490
      %v2492 = vpop.f32.mrf.mxu0
      %v2493 = vpop.f32.mrf.mxu0
      %v2494 = vadd.f32 %v2245, %v2493
      %v2495 = vpop.f32.mrf.mxu0
      %2496 = vmatprep.mubr.bf16.mxu0 0
      %2497 = vmatmul.mubr.bf16.gmra.mxu0 %v1830
      %v2498 = vpop.f32.mrf.mxu0
      %v2499 = vadd.f32 %v2250, %v2498
      %v2500 = vpop.f32.mrf.mxu0
      %v2501 = vpop.f32.mrf.mxu0
      %v2502 = vadd.f32 %v2253, %v2501
      %v2503 = vpop.f32.mrf.mxu0
      %2504 = vmatprep.mubr.bf16.mxu0 0
      %2505 = vmatmul.mubr.bf16.gmra.mxu0 %v1832
      %v2506 = vpop.f32.mrf.mxu0
      %v2507 = vadd.f32 %v2258, %v2506
      %v2508 = vpop.f32.mrf.mxu0
      %v2509 = vpop.f32.mrf.mxu0
      %v2510 = vadd.f32 %v2261, %v2509
      %v2511 = vpop.f32.mrf.mxu0
      %2512 = vmatprep.mubr.bf16.mxu0 0
      %2513 = vmatmul.mubr.bf16.gmra.mxu0 %v1834
      %v2514 = vpop.f32.mrf.mxu0
      %v2515 = vadd.f32 %v2266, %v2514
      %v2516 = vpop.f32.mrf.mxu0
      %v2517 = vpop.f32.mrf.mxu0
      %v2518 = vadd.f32 %v2269, %v2517
      %v2519 = vpop.f32.mrf.mxu0
      %2520 = vmatprep.mubr.bf16.mxu0 0
      %2521 = vmatmul.mubr.bf16.gmra.mxu0 %v1836
      %v2522 = vpop.f32.mrf.mxu0
      %v2523 = vadd.f32 %v2274, %v2522
      %v2524 = vpop.f32.mrf.mxu0
      %v2525 = vpop.f32.mrf.mxu0
      %v2526 = vadd.f32 %v2277, %v2525
      %v2527 = vpop.f32.mrf.mxu0
      %2528 = vmatprep.mubr.bf16.mxu0 0
      %2529 = vmatmul.mubr.bf16.gmra.mxu0 %v1838
      %v2530 = vpop.f32.mrf.mxu0
      %v2531 = vadd.f32 %v2282, %v2530
      %v2532 = vpop.f32.mrf.mxu0
      %v2533 = vpop.f32.mrf.mxu0
      %v2534 = vadd.f32 %v2285, %v2533
      %v2535 = vpop.f32.mrf.mxu0
      %2536 = vmatprep.mubr.bf16.mxu0 0
      %2537 = vmatmul.mubr.bf16.gmra.mxu0 %v1840
      %v2538 = vpop.f32.mrf.mxu0
      %v2539 = vadd.f32 %v2290, %v2538
      %v2540 = vpop.f32.mrf.mxu0
      %v2541 = vpop.f32.mrf.mxu0
      %v2542 = vadd.f32 %v2293, %v2541
      %v2543 = vpop.f32.mrf.mxu0
      %2544 = vmatprep.mubr.bf16.mxu0 0
      %2545 = vmatmul.mubr.bf16.gmra.mxu0 %v1842
      %v2546 = vpop.f32.mrf.mxu0
      %v2547 = vadd.f32 %v2298, %v2546
      %v2548 = vpop.f32.mrf.mxu0
      %v2549 = vpop.f32.mrf.mxu0
      %v2550 = vadd.f32 %v2301, %v2549
      %v2551 = vpop.f32.mrf.mxu0
      %2552 = vmatprep.mubr.bf16.mxu0 0
      %2553 = vmatmul.mubr.bf16.gmra.mxu0 %v1844
      %v2554 = vpop.f32.mrf.mxu0
      %v2555 = vadd.f32 %v2306, %v2554
      %v2556 = vpop.f32.mrf.mxu0
      %v2557 = vpop.f32.mrf.mxu0
      %v2558 = vadd.f32 %v2309, %v2557
      %v2559 = vpop.f32.mrf.mxu0
      %2560 = vmatprep.mubr.bf16.mxu0 0
      %2561 = vmatmul.mubr.bf16.gmra.mxu0 %v1846
      %v2562 = vpop.f32.mrf.mxu0
      %v2563 = vadd.f32 %v2314, %v2562
      %v2564 = vpop.f32.mrf.mxu0
      %v2565 = vpop.f32.mrf.mxu0
      %v2566 = vadd.f32 %v2317, %v2565
      %v2567 = vpop.f32.mrf.mxu0
      %2568 = vmatprep.mubr.bf16.mxu0 0
      %2569 = vmatmul.mubr.bf16.gmra.mxu0 %v1848
      %v2570 = vpop.f32.mrf.mxu0
      %v2571 = vadd.f32 %v2322, %v2570
      %v2572 = vpop.f32.mrf.mxu0
      %v2573 = vpop.f32.mrf.mxu0
      %v2574 = vadd.f32 %v2325, %v2573
      %v2575 = vpop.f32.mrf.mxu0
      %2576 = vmatprep.mubr.bf16.mxu0 0
      %2577 = vmatmul.mubr.bf16.gmra.mxu0 %v1851
      %v2578 = vpop.f32.mrf.mxu0
      %v2579 = vadd.f32 %v2330, %v2578
      %v2580 = vpop.f32.mrf.mxu0
      %v2581 = vpop.f32.mrf.mxu0
      %v2582 = vadd.f32 %v2333, %v2581
      %v2583 = vpop.f32.mrf.mxu0
      %2584 = vmatprep.mubr.bf16.mxu0 0
      %2585 = vmatmul.mubr.bf16.gmra.mxu0 %v1854
      %v2586 = vpop.f32.mrf.mxu0
      %v2587 = vadd.f32 %v2338, %v2586
      %v2588 = vpop.f32.mrf.mxu0
      %v2589 = vpop.f32.mrf.mxu0
      %v2590 = vadd.f32 %v2341, %v2589
      %v2591 = vpop.f32.mrf.mxu0
      %2592 = vmatprep.mubr.bf16.mxu0 0
      %2593 = vmatmul.mubr.bf16.gmra.mxu0 %v1857
      %v2594 = vpop.f32.mrf.mxu0
      %v2595 = vadd.f32 %v2346, %v2594
      %v2596 = vpop.f32.mrf.mxu0
      %v2597 = vpop.f32.mrf.mxu0
      %v2598 = vadd.f32 %v2349, %v2597
      %v2599 = vpop.f32.mrf.mxu0
      %2600 = vmatprep.mubr.bf16.mxu0 0
      %2601 = vmatmul.mubr.bf16.gmra.mxu0 %v1860
      %v2602 = vpop.f32.mrf.mxu0
      %v2603 = vadd.f32 %v2354, %v2602
      %v2604 = vpop.f32.mrf.mxu0
      %v2605 = vpop.f32.mrf.mxu0
      %v2606 = vadd.f32 %v2357, %v2605
      %v2607 = vpop.f32.mrf.mxu0
      %2608 = vdwg.mxu0
      %vm2609 = vcmask 785408
      %2610 = vst.msk [vmem:[%s177] sm:$0xff] %vm2609, %v2395
      %2611 = vst.msk [vmem:[%s177 + $0x8] sm:$0xff] %vm2609, %v2398
      %2612 = vst.msk [vmem:[%s177 + $0x10] sm:$0xff] %vm2609, %v2403
      %2613 = vst.msk [vmem:[%s177 + $0x18] sm:$0xff] %vm2609, %v2406
      %2614 = vst.msk [vmem:[%s177 + $0x20] sm:$0xff] %vm2609, %v2411
      %2615 = vst.msk [vmem:[%s177 + $0x28] sm:$0xff] %vm2609, %v2414
      %2616 = vst.msk [vmem:[%s177 + $0x30] sm:$0xff] %vm2609, %v2419
      %2617 = vst.msk [vmem:[%s177 + $0x38] sm:$0xff] %vm2609, %v2422
      %2618 = vst.msk [vmem:[%s177 + $0x40] sm:$0xff] %vm2609, %v2427
      %2619 = vst.msk [vmem:[%s177 + $0x48] sm:$0xff] %vm2609, %v2430
      %2620 = vst.msk [vmem:[%s177 + $0x50] sm:$0xff] %vm2609, %v2435
      %2621 = vst.msk [vmem:[%s177 + $0x58] sm:$0xff] %vm2609, %v2438
      %2622 = vst.msk [vmem:[%s177 + $0x60] sm:$0xff] %vm2609, %v2443
      %2623 = vst.msk [vmem:[%s177 + $0x68] sm:$0xff] %vm2609, %v2446
      %2624 = vst.msk [vmem:[%s177 + $0x70] sm:$0xff] %vm2609, %v2451
      %2625 = vst.msk [vmem:[%s177 + $0x78] sm:$0xff] %vm2609, %v2454
      %2626 = vst.msk [vmem:[%s177 + $0x80] sm:$0xff] %vm2609, %v2459
      %2627 = vst.msk [vmem:[%s177 + $0x88] sm:$0xff] %vm2609, %v2462
      %2628 = vst.msk [vmem:[%s177 + $0x90] sm:$0xff] %vm2609, %v2467
      %2629 = vst.msk [vmem:[%s177 + $0x98] sm:$0xff] %vm2609, %v2470
      %2630 = vst.msk [vmem:[%s177 + $0xa0] sm:$0xff] %vm2609, %v2475
      %2631 = vst.msk [vmem:[%s177 + $0xa8] sm:$0xff] %vm2609, %v2478
      %2632 = vst.msk [vmem:[%s177 + $0xb0] sm:$0xff] %vm2609, %v2483
      %2633 = vst.msk [vmem:[%s177 + $0xb8] sm:$0xff] %vm2609, %v2486
      %2634 = vst.msk [vmem:[%s177 + $0xc0] sm:$0xff] %vm2609, %v2491
      %2635 = vst.msk [vmem:[%s177 + $0xc8] sm:$0xff] %vm2609, %v2494
      %2636 = vst.msk [vmem:[%s177 + $0xd0] sm:$0xff] %vm2609, %v2499
      %2637 = vst.msk [vmem:[%s177 + $0xd8] sm:$0xff] %vm2609, %v2502
      %2638 = vst.msk [vmem:[%s177 + $0xe0] sm:$0xff] %vm2609, %v2507
      %2639 = vst.msk [vmem:[%s177 + $0xe8] sm:$0xff] %vm2609, %v2510
      %2640 = vst.msk [vmem:[%s177 + $0xf0] sm:$0xff] %vm2609, %v2515
      %2641 = vst.msk [vmem:[%s177 + $0xf8] sm:$0xff] %vm2609, %v2518
      %2642 = vst.msk [vmem:[%s177 + $0x100] sm:$0xff] %vm2609, %v2523
      %2643 = vst.msk [vmem:[%s177 + $0x108] sm:$0xff] %vm2609, %v2526
      %2644 = vst.msk [vmem:[%s177 + $0x110] sm:$0xff] %vm2609, %v2531
      %2645 = vst.msk [vmem:[%s177 + $0x118] sm:$0xff] %vm2609, %v2534
      %2646 = vst.msk [vmem:[%s177 + $0x120] sm:$0xff] %vm2609, %v2539
      %2647 = vst.msk [vmem:[%s177 + $0x128] sm:$0xff] %vm2609, %v2542
      %2648 = vst.msk [vmem:[%s177 + $0x130] sm:$0xff] %vm2609, %v2547
      %2649 = vst.msk [vmem:[%s177 + $0x138] sm:$0xff] %vm2609, %v2550
      %2650 = vst.msk [vmem:[%s177 + $0x140] sm:$0xff] %vm2609, %v2555
      %2651 = vst.msk [vmem:[%s177 + $0x148] sm:$0xff] %vm2609, %v2558
      %2652 = vst.msk [vmem:[%s177 + $0x150] sm:$0xff] %vm2609, %v2563
      %2653 = vst.msk [vmem:[%s177 + $0x158] sm:$0xff] %vm2609, %v2566
      %2654 = vst.msk [vmem:[%s177 + $0x160] sm:$0xff] %vm2609, %v2571
      %2655 = vst.msk [vmem:[%s177 + $0x168] sm:$0xff] %vm2609, %v2574
      %2656 = vst.msk [vmem:[%s177 + $0x170] sm:$0xff] %vm2609, %v2579
      %2657 = vst.msk [vmem:[%s177 + $0x178] sm:$0xff] %vm2609, %v2582
      %2658 = vst.msk [vmem:[%s177 + $0x180] sm:$0xff] %vm2609, %v2587
      %2659 = vst.msk [vmem:[%s177 + $0x188] sm:$0xff] %vm2609, %v2590
      %2660 = vst.msk [vmem:[%s177 + $0x190] sm:$0xff] %vm2609, %v2595
      %2661 = vst.msk [vmem:[%s177 + $0x198] sm:$0xff] %vm2609, %v2598
      %2662 = vst.msk [vmem:[%s177 + $0x1a0] sm:$0xff] %vm2609, %v2603
      %2663 = vst.msk [vmem:[%s177 + $0x1a8] sm:$0xff] %vm2609, %v2606
      %v2664 = vsel %vm2609, %v2395, 0.0
      %v2665 = vsel %vm2609, %v2398, 0.0
      %v2666 = vadd.f32 %v2664, %v2665
      %v2667 = vrot.slane %v2666, 4
      %v2668 = vadd.f32 %v2666, %v2667
      %v2669 = vrot.slane %v2668, 2
      %v2670 = vadd.f32 %v2668, %v2669
      %v2671 = vrot.slane %v2670, 1
      %v2672 = vadd.f32 %v2670, %v2671
      %v2673 = vadd.f32 %v2672, 0.0
      %v2674 = vmul.f32 %v2395, %v2395
      %v2675 = vmul.f32 %v2398, %v2398
      %v2676 = vsel %vm2609, %v2674, 0.0
      %v2677 = vsel %vm2609, %v2675, 0.0
      %v2678 = vadd.f32 %v2676, %v2677
      %v2679 = vrot.slane %v2678, 4
      %v2680 = vadd.f32 %v2678, %v2679
      %v2681 = vrot.slane %v2680, 2
      %v2682 = vadd.f32 %v2680, %v2681
      %v2683 = vrot.slane %v2682, 1
      %v2684 = vadd.f32 %v2682, %v2683
      %v2685 = vadd.f32 %v2684, 0.0
      %v2686 = vsel %vm2609, %v2406, 0.0
      %v2687 = vsel %vm2609, %v2411, 0.0
      %v2688 = vadd.f32 %v2686, %v2687
      %v2689 = vrot.slane %v2688, 4
      %v2690 = vadd.f32 %v2688, %v2689
      %v2691 = vrot.slane %v2690, 2
      %v2692 = vadd.f32 %v2690, %v2691
      %v2693 = vrot.slane %v2692, 1
      %v2694 = vadd.f32 %v2692, %v2693
      %v2695 = vadd.f32 %v2673, %v2694
      %v2696 = vmul.f32 %v2406, %v2406
      %v2697 = vmul.f32 %v2411, %v2411
      %v2698 = vsel %vm2609, %v2696, 0.0
      %v2699 = vsel %vm2609, %v2697, 0.0
      %v2700 = vadd.f32 %v2698, %v2699
      %v2701 = vrot.slane %v2700, 4
      %v2702 = vadd.f32 %v2700, %v2701
      %v2703 = vrot.slane %v2702, 2
      %v2704 = vadd.f32 %v2702, %v2703
      %v2705 = vrot.slane %v2704, 1
      %v2706 = vadd.f32 %v2704, %v2705
      %v2707 = vadd.f32 %v2685, %v2706
      %v2708 = vsel %vm2609, %v2419, 0.0
      %v2709 = vsel %vm2609, %v2422, 0.0
      %v2710 = vadd.f32 %v2708, %v2709
      %v2711 = vrot.slane %v2710, 4
      %v2712 = vadd.f32 %v2710, %v2711
      %v2713 = vrot.slane %v2712, 2
      %v2714 = vadd.f32 %v2712, %v2713
      %v2715 = vrot.slane %v2714, 1
      %v2716 = vadd.f32 %v2714, %v2715
      %v2717 = vadd.f32 %v2695, %v2716
      %v2718 = vmul.f32 %v2419, %v2419
      %v2719 = vmul.f32 %v2422, %v2422
      %v2720 = vsel %vm2609, %v2718, 0.0
      %v2721 = vsel %vm2609, %v2719, 0.0
      %v2722 = vadd.f32 %v2720, %v2721
      %v2723 = vrot.slane %v2722, 4
      %v2724 = vadd.f32 %v2722, %v2723
      %v2725 = vrot.slane %v2724, 2
      %v2726 = vadd.f32 %v2724, %v2725
      %v2727 = vrot.slane %v2726, 1
      %v2728 = vadd.f32 %v2726, %v2727
      %v2729 = vadd.f32 %v2707, %v2728
      %v2730 = vsel %vm2609, %v2430, 0.0
      %v2731 = vsel %vm2609, %v2435, 0.0
      %v2732 = vadd.f32 %v2730, %v2731
      %v2733 = vrot.slane %v2732, 4
      %v2734 = vadd.f32 %v2732, %v2733
      %v2735 = vrot.slane %v2734, 2
      %v2736 = vadd.f32 %v2734, %v2735
      %v2737 = vrot.slane %v2736, 1
      %v2738 = vadd.f32 %v2736, %v2737
      %v2739 = vadd.f32 %v2717, %v2738
      %v2740 = vmul.f32 %v2430, %v2430
      %v2741 = vmul.f32 %v2435, %v2435
      %v2742 = vsel %vm2609, %v2740, 0.0
      %v2743 = vsel %vm2609, %v2741, 0.0
      %v2744 = vadd.f32 %v2742, %v2743
      %v2745 = vrot.slane %v2744, 4
      %v2746 = vadd.f32 %v2744, %v2745
      %v2747 = vrot.slane %v2746, 2
      %v2748 = vadd.f32 %v2746, %v2747
      %v2749 = vrot.slane %v2748, 1
      %v2750 = vadd.f32 %v2748, %v2749
      %v2751 = vadd.f32 %v2729, %v2750
      %v2752 = vsel %vm2609, %v2443, 0.0
      %v2753 = vsel %vm2609, %v2446, 0.0
      %v2754 = vadd.f32 %v2752, %v2753
      %v2755 = vrot.slane %v2754, 4
      %v2756 = vadd.f32 %v2754, %v2755
      %v2757 = vrot.slane %v2756, 2
      %v2758 = vadd.f32 %v2756, %v2757
      %v2759 = vrot.slane %v2758, 1
      %v2760 = vadd.f32 %v2758, %v2759
      %v2761 = vadd.f32 %v2739, %v2760
      %v2762 = vmul.f32 %v2443, %v2443
      %v2763 = vmul.f32 %v2446, %v2446
      %v2764 = vsel %vm2609, %v2762, 0.0
      %v2765 = vsel %vm2609, %v2763, 0.0
      %v2766 = vadd.f32 %v2764, %v2765
      %v2767 = vrot.slane %v2766, 4
      %v2768 = vadd.f32 %v2766, %v2767
      %v2769 = vrot.slane %v2768, 2
      %v2770 = vadd.f32 %v2768, %v2769
      %v2771 = vrot.slane %v2770, 1
      %v2772 = vadd.f32 %v2770, %v2771
      %v2773 = vadd.f32 %v2751, %v2772
      %v2774 = vsel %vm2609, %v2454, 0.0
      %v2775 = vsel %vm2609, %v2459, 0.0
      %v2776 = vadd.f32 %v2774, %v2775
      %v2777 = vrot.slane %v2776, 4
      %v2778 = vadd.f32 %v2776, %v2777
      %v2779 = vrot.slane %v2778, 2
      %v2780 = vadd.f32 %v2778, %v2779
      %v2781 = vrot.slane %v2780, 1
      %v2782 = vadd.f32 %v2780, %v2781
      %v2783 = vadd.f32 %v2761, %v2782
      %v2784 = vmul.f32 %v2454, %v2454
      %v2785 = vmul.f32 %v2459, %v2459
      %v2786 = vsel %vm2609, %v2784, 0.0
      %v2787 = vsel %vm2609, %v2785, 0.0
      %v2788 = vadd.f32 %v2786, %v2787
      %v2789 = vrot.slane %v2788, 4
      %v2790 = vadd.f32 %v2788, %v2789
      %v2791 = vrot.slane %v2790, 2
      %v2792 = vadd.f32 %v2790, %v2791
      %v2793 = vrot.slane %v2792, 1
      %v2794 = vadd.f32 %v2792, %v2793
      %v2795 = vadd.f32 %v2773, %v2794
      %v2796 = vsel %vm2609, %v2467, 0.0
      %v2797 = vsel %vm2609, %v2470, 0.0
      %v2798 = vadd.f32 %v2796, %v2797
      %v2799 = vrot.slane %v2798, 4
      %v2800 = vadd.f32 %v2798, %v2799
      %v2801 = vrot.slane %v2800, 2
      %v2802 = vadd.f32 %v2800, %v2801
      %v2803 = vrot.slane %v2802, 1
      %v2804 = vadd.f32 %v2802, %v2803
      %v2805 = vadd.f32 %v2783, %v2804
      %v2806 = vmul.f32 %v2467, %v2467
      %v2807 = vmul.f32 %v2470, %v2470
      %v2808 = vsel %vm2609, %v2806, 0.0
      %v2809 = vsel %vm2609, %v2807, 0.0
      %v2810 = vadd.f32 %v2808, %v2809
      %v2811 = vrot.slane %v2810, 4
      %v2812 = vadd.f32 %v2810, %v2811
      %v2813 = vrot.slane %v2812, 2
      %v2814 = vadd.f32 %v2812, %v2813
      %v2815 = vrot.slane %v2814, 1
      %v2816 = vadd.f32 %v2814, %v2815
      %v2817 = vadd.f32 %v2795, %v2816
      %v2818 = vsel %vm2609, %v2478, 0.0
      %v2819 = vsel %vm2609, %v2483, 0.0
      %v2820 = vadd.f32 %v2818, %v2819
      %v2821 = vrot.slane %v2820, 4
      %v2822 = vadd.f32 %v2820, %v2821
      %v2823 = vrot.slane %v2822, 2
      %v2824 = vadd.f32 %v2822, %v2823
      %v2825 = vrot.slane %v2824, 1
      %v2826 = vadd.f32 %v2824, %v2825
      %v2827 = vadd.f32 %v2805, %v2826
      %v2828 = vmul.f32 %v2478, %v2478
      %v2829 = vmul.f32 %v2483, %v2483
      %v2830 = vsel %vm2609, %v2828, 0.0
      %v2831 = vsel %vm2609, %v2829, 0.0
      %v2832 = vadd.f32 %v2830, %v2831
      %v2833 = vrot.slane %v2832, 4
      %v2834 = vadd.f32 %v2832, %v2833
      %v2835 = vrot.slane %v2834, 2
      %v2836 = vadd.f32 %v2834, %v2835
      %v2837 = vrot.slane %v2836, 1
      %v2838 = vadd.f32 %v2836, %v2837
      %v2839 = vadd.f32 %v2817, %v2838
      %v2840 = vsel %vm2609, %v2491, 0.0
      %v2841 = vsel %vm2609, %v2494, 0.0
      %v2842 = vadd.f32 %v2840, %v2841
      %v2843 = vrot.slane %v2842, 4
      %v2844 = vadd.f32 %v2842, %v2843
      %v2845 = vrot.slane %v2844, 2
      %v2846 = vadd.f32 %v2844, %v2845
      %v2847 = vrot.slane %v2846, 1
      %v2848 = vadd.f32 %v2846, %v2847
      %v2849 = vadd.f32 %v2827, %v2848
      %v2850 = vmul.f32 %v2491, %v2491
      %v2851 = vmul.f32 %v2494, %v2494
      %v2852 = vsel %vm2609, %v2850, 0.0
      %v2853 = vsel %vm2609, %v2851, 0.0
      %v2854 = vadd.f32 %v2852, %v2853
      %v2855 = vrot.slane %v2854, 4
      %v2856 = vadd.f32 %v2854, %v2855
      %v2857 = vrot.slane %v2856, 2
      %v2858 = vadd.f32 %v2856, %v2857
      %v2859 = vrot.slane %v2858, 1
      %v2860 = vadd.f32 %v2858, %v2859
      %v2861 = vadd.f32 %v2839, %v2860
      %v2862 = vsel %vm2609, %v2502, 0.0
      %v2863 = vsel %vm2609, %v2507, 0.0
      %v2864 = vadd.f32 %v2862, %v2863
      %v2865 = vrot.slane %v2864, 4
      %v2866 = vadd.f32 %v2864, %v2865
      %v2867 = vrot.slane %v2866, 2
      %v2868 = vadd.f32 %v2866, %v2867
      %v2869 = vrot.slane %v2868, 1
      %v2870 = vadd.f32 %v2868, %v2869
      %v2871 = vadd.f32 %v2849, %v2870
      %v2872 = vmul.f32 %v2502, %v2502
      %v2873 = vmul.f32 %v2507, %v2507
      %v2874 = vsel %vm2609, %v2872, 0.0
      %v2875 = vsel %vm2609, %v2873, 0.0
      %v2876 = vadd.f32 %v2874, %v2875
      %v2877 = vrot.slane %v2876, 4
      %v2878 = vadd.f32 %v2876, %v2877
      %v2879 = vrot.slane %v2878, 2
      %v2880 = vadd.f32 %v2878, %v2879
      %v2881 = vrot.slane %v2880, 1
      %v2882 = vadd.f32 %v2880, %v2881
      %v2883 = vadd.f32 %v2861, %v2882
      %v2884 = vsel %vm2609, %v2515, 0.0
      %v2885 = vsel %vm2609, %v2518, 0.0
      %v2886 = vadd.f32 %v2884, %v2885
      %v2887 = vrot.slane %v2886, 4
      %v2888 = vadd.f32 %v2886, %v2887
      %v2889 = vrot.slane %v2888, 2
      %v2890 = vadd.f32 %v2888, %v2889
      %v2891 = vrot.slane %v2890, 1
      %v2892 = vadd.f32 %v2890, %v2891
      %v2893 = vadd.f32 %v2871, %v2892
      %v2894 = vmul.f32 %v2515, %v2515
      %v2895 = vmul.f32 %v2518, %v2518
      %v2896 = vsel %vm2609, %v2894, 0.0
      %v2897 = vsel %vm2609, %v2895, 0.0
      %v2898 = vadd.f32 %v2896, %v2897
      %v2899 = vrot.slane %v2898, 4
      %v2900 = vadd.f32 %v2898, %v2899
      %v2901 = vrot.slane %v2900, 2
      %v2902 = vadd.f32 %v2900, %v2901
      %v2903 = vrot.slane %v2902, 1
      %v2904 = vadd.f32 %v2902, %v2903
      %v2905 = vadd.f32 %v2883, %v2904
      %v2906 = vsel %vm2609, %v2526, 0.0
      %v2907 = vsel %vm2609, %v2531, 0.0
      %v2908 = vadd.f32 %v2906, %v2907
      %v2909 = vrot.slane %v2908, 4
      %v2910 = vadd.f32 %v2908, %v2909
      %v2911 = vrot.slane %v2910, 2
      %v2912 = vadd.f32 %v2910, %v2911
      %v2913 = vrot.slane %v2912, 1
      %v2914 = vadd.f32 %v2912, %v2913
      %v2915 = vadd.f32 %v2893, %v2914
      %v2916 = vmul.f32 %v2526, %v2526
      %v2917 = vmul.f32 %v2531, %v2531
      %v2918 = vsel %vm2609, %v2916, 0.0
      %v2919 = vsel %vm2609, %v2917, 0.0
      %v2920 = vadd.f32 %v2918, %v2919
      %v2921 = vrot.slane %v2920, 4
      %v2922 = vadd.f32 %v2920, %v2921
      %v2923 = vrot.slane %v2922, 2
      %v2924 = vadd.f32 %v2922, %v2923
      %v2925 = vrot.slane %v2924, 1
      %v2926 = vadd.f32 %v2924, %v2925
      %v2927 = vadd.f32 %v2905, %v2926
      %v2928 = vsel %vm2609, %v2539, 0.0
      %v2929 = vsel %vm2609, %v2542, 0.0
      %v2930 = vadd.f32 %v2928, %v2929
      %v2931 = vrot.slane %v2930, 4
      %v2932 = vadd.f32 %v2930, %v2931
      %v2933 = vrot.slane %v2932, 2
      %v2934 = vadd.f32 %v2932, %v2933
      %v2935 = vrot.slane %v2934, 1
      %v2936 = vadd.f32 %v2934, %v2935
      %v2937 = vadd.f32 %v2915, %v2936
      %v2938 = vmul.f32 %v2539, %v2539
      %v2939 = vmul.f32 %v2542, %v2542
      %v2940 = vsel %vm2609, %v2938, 0.0
      %v2941 = vsel %vm2609, %v2939, 0.0
      %v2942 = vadd.f32 %v2940, %v2941
      %v2943 = vrot.slane %v2942, 4
      %v2944 = vadd.f32 %v2942, %v2943
      %v2945 = vrot.slane %v2944, 2
      %v2946 = vadd.f32 %v2944, %v2945
      %v2947 = vrot.slane %v2946, 1
      %v2948 = vadd.f32 %v2946, %v2947
      %v2949 = vadd.f32 %v2927, %v2948
      %v2950 = vsel %vm2609, %v2550, 0.0
      %v2951 = vsel %vm2609, %v2555, 0.0
      %v2952 = vadd.f32 %v2950, %v2951
      %v2953 = vrot.slane %v2952, 4
      %v2954 = vadd.f32 %v2952, %v2953
      %v2955 = vrot.slane %v2954, 2
      %v2956 = vadd.f32 %v2954, %v2955
      %v2957 = vrot.slane %v2956, 1
      %v2958 = vadd.f32 %v2956, %v2957
      %v2959 = vadd.f32 %v2937, %v2958
      %v2960 = vmul.f32 %v2550, %v2550
      %v2961 = vmul.f32 %v2555, %v2555
      %v2962 = vsel %vm2609, %v2960, 0.0
      %v2963 = vsel %vm2609, %v2961, 0.0
      %v2964 = vadd.f32 %v2962, %v2963
      %v2965 = vrot.slane %v2964, 4
      %v2966 = vadd.f32 %v2964, %v2965
      %v2967 = vrot.slane %v2966, 2
      %v2968 = vadd.f32 %v2966, %v2967
      %v2969 = vrot.slane %v2968, 1
      %v2970 = vadd.f32 %v2968, %v2969
      %v2971 = vadd.f32 %v2949, %v2970
      %v2972 = vsel %vm2609, %v2563, 0.0
      %v2973 = vsel %vm2609, %v2566, 0.0
      %v2974 = vadd.f32 %v2972, %v2973
      %v2975 = vrot.slane %v2974, 4
      %v2976 = vadd.f32 %v2974, %v2975
      %v2977 = vrot.slane %v2976, 2
      %v2978 = vadd.f32 %v2976, %v2977
      %v2979 = vrot.slane %v2978, 1
      %v2980 = vadd.f32 %v2978, %v2979
      %v2981 = vadd.f32 %v2959, %v2980
      %v2982 = vmul.f32 %v2563, %v2563
      %v2983 = vmul.f32 %v2566, %v2566
      %v2984 = vsel %vm2609, %v2982, 0.0
      %v2985 = vsel %vm2609, %v2983, 0.0
      %v2986 = vadd.f32 %v2984, %v2985
      %v2987 = vrot.slane %v2986, 4
      %v2988 = vadd.f32 %v2986, %v2987
      %v2989 = vrot.slane %v2988, 2
      %v2990 = vadd.f32 %v2988, %v2989
      %v2991 = vrot.slane %v2990, 1
      %v2992 = vadd.f32 %v2990, %v2991
      %v2993 = vadd.f32 %v2971, %v2992
      %v2994 = vsel %vm2609, %v2574, 0.0
      %v2995 = vsel %vm2609, %v2579, 0.0
      %v2996 = vadd.f32 %v2994, %v2995
      %v2997 = vrot.slane %v2996, 4
      %v2998 = vadd.f32 %v2996, %v2997
      %v2999 = vrot.slane %v2998, 2
      %v3000 = vadd.f32 %v2998, %v2999
      %v3001 = vrot.slane %v3000, 1
      %v3002 = vadd.f32 %v3000, %v3001
      %v3003 = vadd.f32 %v2981, %v3002
      %v3004 = vmul.f32 %v2574, %v2574
      %v3005 = vmul.f32 %v2579, %v2579
      %v3006 = vsel %vm2609, %v3004, 0.0
      %v3007 = vsel %vm2609, %v3005, 0.0
      %v3008 = vadd.f32 %v3006, %v3007
      %v3009 = vrot.slane %v3008, 4
      %v3010 = vadd.f32 %v3008, %v3009
      %v3011 = vrot.slane %v3010, 2
      %v3012 = vadd.f32 %v3010, %v3011
      %v3013 = vrot.slane %v3012, 1
      %v3014 = vadd.f32 %v3012, %v3013
      %v3015 = vadd.f32 %v2993, %v3014
      %vm3016 = vcmask 778240
      %3017 = vst.msk [vmem:[%s181] sm:$0x1] %vm3016, %v3003
      %3018 = vst.msk [vmem:[%s181 + $0x1] sm:$0x1] %vm3016, %v3015
      %p3019 = scmp.lt.s32.totalorder %s15, 1
      %s3020 = scalar_select %p3019, %s15, 1
      %s3021 = smul.addr %s3020, 54
      %s3022 = smul.addr %s3021, 8
      %s3023 = scalar_lea.vmem %s2, %s3022
      %p3024 = scmp.lt.s32.totalorder %s15, 1
      %s3025 = scalar_select %p3024, %s15, 1
      %s3026 = smul.addr %s3025, 2
      %s3027 = scalar_lea.vmem %s3, %s3026
      // Predicated region
      $region29: #{inception_b_forward.13} parent=27 // pred_check
        %p3028 = pneg %p80
      $region30: #{inception_b_forward.13} parent=27 // pred_check_branch
        %3030 = sbr.rel (%p3028) target = $region32
      $region31: #{inception_b_forward.13} parent=27 // pred_region
        _
      $region32: #{inception_b_forward.13} parent=27 // pred_fallthru
        _
      // Predicated region
      $region33: #{inception_b_forward.13} parent=27 // pred_check
        %p3031 = pneg %p106
      $region34: #{inception_b_forward.13} parent=27 // pred_check_branch
        %3033 = sbr.rel (%p3031) target = $region36
      $region35: #{inception_b_forward.13} parent=27 // pred_region
        _
      $region36: #{inception_b_forward.13} parent=27 // pred_fallthru
        _
    $region28: #{inception_b_forward.13} parent=5 // pred_fallthru
      _
    %p3034 = scmp.le.s32.totalorder 2, %s10
    // Predicated region
    $region37: #{inception_b_forward.13} parent=5 // pred_check
      %p3035 = pneg %p3034
    $region38: #{inception_b_forward.13} parent=5 // pred_check_branch
      %3037 = sbr.rel (%p3035) target = $region40
    $region39: #{inception_b_forward.13} parent=5 // pred_region
      %s3038 = ssub.s32 %s10, 2
      // Predicated region
      $region41: #{inception_b_forward.13} parent=39 // pred_check
        %p3039 = pneg %p86
      $region42: #{inception_b_forward.13} parent=39 // pred_check_branch
        %3041 = sbr.rel (%p3039) target = $region44
      $region43: #{inception_b_forward.13} parent=39 // pred_region
        %p3042 = scmp.lt.s32.totalorder %s16, 1
        %s3043 = scalar_select %p3042, %s16, 1
        %s3044 = smul.addr %s3043, 54
        %s3045 = smul.addr %s3044, 8
        %s3046 = scalar_lea.vmem %s2, %s3045
      $region44: #{inception_b_forward.13} parent=39 // pred_fallthru
        _
      // Predicated region
      $region45: #{inception_b_forward.13} parent=39 // pred_check
        %p3047 = pneg %p112
      $region46: #{inception_b_forward.13} parent=39 // pred_check_branch
        %3049 = sbr.rel (%p3047) target = $region48
      $region47: #{inception_b_forward.13} parent=39 // pred_region
        %p3050 = scmp.lt.s32.totalorder %s16, 1
        %s3051 = scalar_select %p3050, %s16, 1
        %s3052 = smul.addr %s3051, 2
        %s3053 = scalar_lea.vmem %s3, %s3052
      $region48: #{inception_b_forward.13} parent=39 // pred_fallthru
        _
    $region40: #{inception_b_forward.13} parent=5 // pred_fallthru
      _
  $region6: #{inception_b_forward.13} parent=0 // loop_footer
    %s14 = sadd.s32 1, %s10
  $region7: #{inception_b_forward.13} parent=0 // loop_footer_branch
    %9 = sbr.rel target = $region3
  $region8: #{inception_b_forward.13} parent=0 // loop_exit
    _

// kernel: inception_b_forward.16
$region0: #{inception_b_forward.16}
  #allocation0 [shape = 'u32[]', space=smem, size = 0x4, offset = 0x4, fixed_abs, tag = 'smem constant byte address 0x4 - core index']
  #allocation1 [shape = 'u32[144,128]{1,0:T(1,128)}', space=vmem, size = 0x12000, scoped, tag = 'internal scratch']
  %s0 = inlined_call_operand.vmem [shape: f32[2,64,96], index: 0, kind: input, shape index: {}]
  %s1 = inlined_call_operand.vmem [shape: f32[1,96], index: 1, kind: input, shape index: {}]
  %s2 = inlined_call_operand.vmem [shape: f32[1,96], index: 2, kind: input, shape index: {}]
  %s3 = inlined_call_operand.vmem [shape: f32[2,64,96], index: 3, kind: output, shape index: {}]
  %s4 = sld [smem:[#allocation0]]
  $region45: #{inception_b_forward.16} parent=0
    _
  %s6 = ssub.s32 1, %s4
  %s7 = scalar_select 0, %s6, %s4
  loop: start=0, step=1, limit=4
  $region2: #{inception_b_forward.16} parent=0 // loop_pre_header
    _
  $region3: #{inception_b_forward.16} parent=0 // loop_header
    %s9 = sphi 0, %s13
    %p10 = scmp.ge.s32.totalorder %s9, 4
    %s19 = sphi 0, %s21
    %s22 = sphi 0, %s19
    %s23 = sphi 0, %s22
    %s39 = sphi 0, %s23
    %s43 = sphi 0, %s43
    %s45 = sphi 0, %s43
    %s46 = sphi 0, %s45
    %s60 = sphi 0, %s46
    %s64 = sphi 0, %s64
    %s66 = sphi 0, %s64
    %s67 = sphi 0, %s66
    %s81 = sphi 0, %s67
    %s87 = sphi 0, %s89
    %s90 = sphi 0, %s87
    %s91 = sphi 0, %s90
    %s107 = sphi 0, %s91
  $region4: #{inception_b_forward.16} parent=0 // loop_header_branch
    %12 = sbr.rel (%p10) target = $region8
  $region5: #{inception_b_forward.16} parent=0 // loop_body
    %s14 = ssub.s32 %s9, 1
    %s15 = ssub.s32 %s9, 2
    %s16 = sadd.s32 %s9, 1
    %s17 = ssub.s32 %s9, %s16
    %p18 = scmp.eq.s32.totalorder %s17, 0
    %s20 = sadd.s32 %s19, 1
    %s21 = scalar_select %p18, %s19, %s20
    %p24 = pneg %p18
    %p25 = scmp.eq.s32.totalorder %s9, 1
    %p26 = por %p24, %p25
    %p27 = scmp.ne.s32.totalorder %s19, %s22
    %p28 = scmp.eq.s32.totalorder %s9, 0
    %p29 = por %p27, %p28
    %p30 = scmp.ne.s32.totalorder %s19, %s22
    %p31 = scmp.eq.s32.totalorder %s14, 1
    %p32 = por %p30, %p31
    %p33 = scmp.ne.s32.totalorder %s22, %s23
    %p34 = scmp.eq.s32.totalorder %s14, 0
    %p35 = por %p33, %p34
    %p36 = scmp.ne.s32.totalorder %s22, %s23
    %p37 = scmp.eq.s32.totalorder %s15, 1
    %p38 = por %p36, %p37
    %p40 = scmp.ne.s32.totalorder %s23, %s39
    %p41 = scmp.eq.s32.totalorder %s15, 0
    %p42 = por %p40, %p41
    %s44 = sadd.s32 %s43, 1
    %p47 = scmp.eq.s32.totalorder %s9, 1
    %p48 = scmp.ne.s32.totalorder %s43, %s45
    %p49 = scmp.eq.s32.totalorder %s9, 0
    %p50 = por %p48, %p49
    %p51 = scmp.ne.s32.totalorder %s43, %s45
    %p52 = scmp.eq.s32.totalorder %s14, 1
    %p53 = por %p51, %p52
    %p54 = scmp.ne.s32.totalorder %s45, %s46
    %p55 = scmp.eq.s32.totalorder %s14, 0
    %p56 = por %p54, %p55
    %p57 = scmp.ne.s32.totalorder %s45, %s46
    %p58 = scmp.eq.s32.totalorder %s15, 1
    %p59 = por %p57, %p58
    %p61 = scmp.ne.s32.totalorder %s46, %s60
    %p62 = scmp.eq.s32.totalorder %s15, 0
    %p63 = por %p61, %p62
    %s65 = sadd.s32 %s64, 1
    %p68 = scmp.eq.s32.totalorder %s9, 1
    %p69 = scmp.ne.s32.totalorder %s64, %s66
    %p70 = scmp.eq.s32.totalorder %s9, 0
    %p71 = por %p69, %p70
    %p72 = scmp.ne.s32.totalorder %s64, %s66
    %p73 = scmp.eq.s32.totalorder %s14, 1
    %p74 = por %p72, %p73
    %p75 = scmp.ne.s32.totalorder %s66, %s67
    %p76 = scmp.eq.s32.totalorder %s14, 0
    %p77 = por %p75, %p76
    %p78 = scmp.ne.s32.totalorder %s66, %s67
    %p79 = scmp.eq.s32.totalorder %s15, 1
    %p80 = por %p78, %p79
    %p82 = scmp.ne.s32.totalorder %s67, %s81
    %p83 = scmp.eq.s32.totalorder %s15, 0
    %p84 = por %p82, %p83
    %s85 = ssub.s32 %s9, %s16
    %p86 = scmp.eq.s32.totalorder %s85, 0
    %s88 = sadd.s32 %s87, 1
    %s89 = scalar_select %p86, %s87, %s88
    %p92 = pneg %p86
    %p93 = scmp.eq.s32.totalorder %s9, 1
    %p94 = por %p92, %p93
    %p95 = scmp.ne.s32.totalorder %s87, %s90
    %p96 = scmp.eq.s32.totalorder %s9, 0
    %p97 = por %p95, %p96
    %p98 = scmp.ne.s32.totalorder %s87, %s90
    %p99 = scmp.eq.s32.totalorder %s14, 1
    %p100 = por %p98, %p99
    %p101 = scmp.ne.s32.totalorder %s90, %s91
    %p102 = scmp.eq.s32.totalorder %s14, 0
    %p103 = por %p101, %p102
    %p104 = scmp.ne.s32.totalorder %s90, %s91
    %p105 = scmp.eq.s32.totalorder %s15, 1
    %p106 = por %p104, %p105
    %p108 = scmp.ne.s32.totalorder %s91, %s107
    %p109 = scmp.eq.s32.totalorder %s15, 0
    %p110 = por %p108, %p109
    %p111 = scmp.le.s32.totalorder 1, %s9
    %p112 = scmp.lt.s32.totalorder %s9, 3
    %p113 = pnand %p111, %p112
    %p114 = pneg %p113
    // Predicated region
    $region9: #{inception_b_forward.16} parent=5 // pred_check
      _
    $region10: #{inception_b_forward.16} parent=5 // pred_check_branch
      %116 = sbr.rel (%p113) target = $region12
    $region11: #{inception_b_forward.16} parent=5 // pred_region
      %s117 = ssub.s32 %s9, 1
      // Predicated region
      $region13: #{inception_b_forward.16} parent=11 // pred_check
        %p118 = pneg %p56
      $region14: #{inception_b_forward.16} parent=11 // pred_check_branch
        %120 = sbr.rel (%p118) target = $region16
      $region15: #{inception_b_forward.16} parent=11 // pred_region
        _
      $region16: #{inception_b_forward.16} parent=11 // pred_fallthru
        _
      // Predicated region
      $region17: #{inception_b_forward.16} parent=11 // pred_check
        %p121 = pneg %p77
      $region18: #{inception_b_forward.16} parent=11 // pred_check_branch
        %123 = sbr.rel (%p121) target = $region20
      $region19: #{inception_b_forward.16} parent=11 // pred_region
        _
      $region20: #{inception_b_forward.16} parent=11 // pred_fallthru
        _
    $region12: #{inception_b_forward.16} parent=5 // pred_fallthru
      _
    %p124 = scmp.lt.s32.totalorder %s9, 2
    // Predicated region
    $region21: #{inception_b_forward.16} parent=5 // pred_check
      %p125 = pneg %p124
    $region22: #{inception_b_forward.16} parent=5 // pred_check_branch
      %127 = sbr.rel (%p125) target = $region24
    $region23: #{inception_b_forward.16} parent=5 // pred_region
      // Predicated region
      $region25: #{inception_b_forward.16} parent=23 // pred_check
        %p128 = pneg %p29
      $region26: #{inception_b_forward.16} parent=23 // pred_check_branch
        %130 = sbr.rel (%p128) target = $region28
      $region27: #{inception_b_forward.16} parent=23 // pred_region
        %p131 = scmp.lt.s32.totalorder %s9, 1
        %s132 = scalar_select %p131, %s9, 1
        %s133 = smul.addr %s132, 8
        %s134 = smul.addr %s133, 8
        %s135 = scalar_lea.vmem %s0, %s134
      $region28: #{inception_b_forward.16} parent=23 // pred_fallthru
        _
    $region24: #{inception_b_forward.16} parent=5 // pred_fallthru
      _
    %p136 = scmp.le.s32.totalorder 1, %s9
    %p137 = scmp.lt.s32.totalorder %s9, 3
    %p138 = pnand %p136, %p137
    %p139 = pneg %p138
    // Predicated region
    $region29: #{inception_b_forward.16} parent=5 // pred_check
      _
    $region30: #{inception_b_forward.16} parent=5 // pred_check_branch
      %141 = sbr.rel (%p138) target = $region32
    $region31: #{inception_b_forward.16} parent=5 // pred_region
      %s142 = ssub.s32 %s9, 1
      %p143 = scmp.lt.s32.totalorder %s14, 1
      %s144 = scalar_select %p143, %s14, 1
      %s145 = smul.addr %s144, 8
      %s146 = smul.addr %s145, 8
      %s147 = scalar_lea.vmem %s0, %s146
      %p148 = pneg %p35
      %p149 = pneg %p32
      %p150 = pneg %p56
      %p151 = pneg %p53
      %p152 = pneg %p77
      %p153 = pneg %p74
      %p154 = pneg %p103
      %p155 = pneg %p100
      %p156 = scmp.lt.s32.totalorder %s14, 1
      %s157 = scalar_select %p156, %s14, 1
      %s158 = smul.addr %s157, 8
      %s159 = smul.addr %s158, 8
      %s160 = scalar_lea.vmem %s3, %s159
      %p161 = scmp.lt.s32.totalorder %s14, 1
      %s162 = scalar_select %p161, %s14, 1
      %s163 = smul.addr %s162, 8
      %s164 = smul.addr %s163, 8
      %s165 = scalar_lea.vmem %s0, %s164
      %p166 = scmp.lt.s32.totalorder %s14, 1
      %s167 = scalar_select %p166, %s14, 1
      %s168 = smul.addr %s167, 8
      %s169 = smul.addr %s168, 8
      %s170 = scalar_lea.vmem %s3, %s169
      %v171 = vld [vmem:[%s165] sm:$0xff]
      %v172 = vld [vmem:[%s165 + $0x8] sm:$0xff]
      %v173 = vld [vmem:[%s165 + $0x10] sm:$0xff]
      %v174 = vld [vmem:[%s165 + $0x18] sm:$0xff]
      %v175 = vld [vmem:[%s165 + $0x20] sm:$0xff]
      %v176 = vld [vmem:[%s165 + $0x28] sm:$0xff]
      %v177 = vld [vmem:[%s165 + $0x30] sm:$0xff]
      %v178 = vld [vmem:[%s165 + $0x38] sm:$0xff]
      %v179 = vld [vmem:[%s1] sm:$0x1]
      %v181 = vlaneseq
      %v182 = vshrl.u32 %v181, 7
      %v183 = vsub.s32 0, %v182
      %v184 = vrot.slane %v179, %v183
      %v186 = vmul.f32 %v171, %v184
      %v187 = vmul.f32 %v172, %v184
      %v188 = vmul.f32 %v173, %v184
      %v189 = vmul.f32 %v174, %v184
      %v190 = vmul.f32 %v175, %v184
      %v191 = vmul.f32 %v176, %v184
      %v192 = vmul.f32 %v177, %v184
      %v193 = vmul.f32 %v178, %v184
      %v194 = vld [vmem:[%s2] sm:$0x1]
      %v196 = vlaneseq
      %v197 = vshrl.u32 %v196, 7
      %v198 = vsub.s32 0, %v197
      %v199 = vrot.slane %v194, %v198
      %v201 = vadd.f32 %v186, %v199
      %v202 = vadd.f32 %v187, %v199
      %v203 = vadd.f32 %v188, %v199
      %v204 = vadd.f32 %v189, %v199
      %v205 = vadd.f32 %v190, %v199
      %v206 = vadd.f32 %v191, %v199
      %v207 = vadd.f32 %v192, %v199
      %v208 = vadd.f32 %v193, %v199
      %v209 = vmax.f32 %v201, 0.0
      %v210 = vmax.f32 %v202, 0.0
      %v211 = vmax.f32 %v203, 0.0
      %v212 = vmax.f32 %v204, 0.0
      %v213 = vmax.f32 %v205, 0.0
      %v214 = vmax.f32 %v206, 0.0
      %v215 = vmax.f32 %v207, 0.0
      %v216 = vmax.f32 %v208, 0.0
      %vm217 = vcmask 785408
      %218 = vst.msk [vmem:[%s170] sm:$0xff] %vm217, %v209
      %219 = vst.msk [vmem:[%s170 + $0x8] sm:$0xff] %vm217, %v210
      %220 = vst.msk [vmem:[%s170 + $0x10] sm:$0xff] %vm217, %v211
      %221 = vst.msk [vmem:[%s170 + $0x18] sm:$0xff] %vm217, %v212
      %222 = vst.msk [vmem:[%s170 + $0x20] sm:$0xff] %vm217, %v213
      %223 = vst.msk [vmem:[%s170 + $0x28] sm:$0xff] %vm217, %v214
      %224 = vst.msk [vmem:[%s170 + $0x30] sm:$0xff] %vm217, %v215
      %225 = vst.msk [vmem:[%s170 + $0x38] sm:$0xff] %vm217, %v216
      %p226 = scmp.lt.s32.totalorder %s14, 1
      %s227 = scalar_select %p226, %s14, 1
      %s228 = smul.addr %s227, 8
      %s229 = smul.addr %s228, 8
      %s230 = scalar_lea.vmem %s3, %s229
      // Predicated region
      $region33: #{inception_b_forward.16} parent=31 // pred_check
        %p231 = pneg %p100
      $region34: #{inception_b_forward.16} parent=31 // pred_check_branch
        %233 = sbr.rel (%p231) target = $region36
      $region35: #{inception_b_forward.16} parent=31 // pred_region
        _
      $region36: #{inception_b_forward.16} parent=31 // pred_fallthru
        _
    $region32: #{inception_b_forward.16} parent=5 // pred_fallthru
      _
    %p234 = scmp.le.s32.totalorder 2, %s9
    // Predicated region
    $region37: #{inception_b_forward.16} parent=5 // pred_check
      %p235 = pneg %p234
    $region38: #{inception_b_forward.16} parent=5 // pred_check_branch
      %237 = sbr.rel (%p235) target = $region40
    $region39: #{inception_b_forward.16} parent=5 // pred_region
      %s238 = ssub.s32 %s9, 2
      // Predicated region
      $region41: #{inception_b_forward.16} parent=39 // pred_check
        %p239 = pneg %p106
      $region42: #{inception_b_forward.16} parent=39 // pred_check_branch
        %241 = sbr.rel (%p239) target = $region44
      $region43: #{inception_b_forward.16} parent=39 // pred_region
        %p242 = scmp.lt.s32.totalorder %s15, 1
        %s243 = scalar_select %p242, %s15, 1
        %s244 = smul.addr %s243, 8
        %s245 = smul.addr %s244, 8
        %s246 = scalar_lea.vmem %s3, %s245
      $region44: #{inception_b_forward.16} parent=39 // pred_fallthru
        _
    $region40: #{inception_b_forward.16} parent=5 // pred_fallthru
      _
  $region6: #{inception_b_forward.16} parent=0 // loop_footer
    %s13 = sadd.s32 1, %s9
  $region7: #{inception_b_forward.16} parent=0 // loop_footer_branch
    %8 = sbr.rel target = $region3
  $region8: #{inception_b_forward.16} parent=0 // loop_exit
    _

// kernel: inception_b_forward.15
$region0: #{inception_b_forward.15}
  #allocation0 [shape = 'u32[]', space=smem, size = 0x4, offset = 0x4, fixed_abs, tag = 'smem constant byte address 0x4 - core index']
  #allocation1 [shape = 'u32[144,128]{1,0:T(1,128)}', space=vmem, size = 0x12000, scoped, tag = 'internal scratch']
  %s0 = inlined_call_operand.vmem [shape: bf16[2,256,96], index: 0, kind: input, shape index: {}]
  %s1 = inlined_call_operand.vmem [shape: bf16[864,96], index: 1, kind: input, shape index: {}]
  %s2 = inlined_call_operand.vmem [shape: f32[2,64,96], index: 2, kind: output, shape index: {0}]
  %s3 = inlined_call_operand.vmem [shape: f32[2,2,96], index: 3, kind: output, shape index: {1}]
  %4 = xla_tuple %s2, %s3
  %s5 = sld [smem:[#allocation0]]
  $region49: #{inception_b_forward.15} parent=0
    _
  %s7 = ssub.s32 1, %s5
  %s8 = scalar_select 0, %s7, %s5
  loop: start=0, step=1, limit=4
  $region2: #{inception_b_forward.15} parent=0 // loop_pre_header
    _
  $region3: #{inception_b_forward.15} parent=0 // loop_header
    %s10 = sphi 0, %s14
    %p11 = scmp.ge.s32.totalorder %s10, 4
    %s20 = sphi 0, %s22
    %s23 = sphi 0, %s20
    %s24 = sphi 0, %s23
    %s40 = sphi 0, %s24
    %s44 = sphi 0, %s44
    %s46 = sphi 0, %s44
    %s47 = sphi 0, %s46
    %s61 = sphi 0, %s47
    %s67 = sphi 0, %s69
    %s70 = sphi 0, %s67
    %s71 = sphi 0, %s70
    %s87 = sphi 0, %s71
    %s93 = sphi 0, %s95
    %s96 = sphi 0, %s93
    %s97 = sphi 0, %s96
    %s113 = sphi 0, %s97
  $region4: #{inception_b_forward.15} parent=0 // loop_header_branch
    %13 = sbr.rel (%p11) target = $region8
  $region5: #{inception_b_forward.15} parent=0 // loop_body
    %s15 = ssub.s32 %s10, 1
    %s16 = ssub.s32 %s10, 2
    %s17 = sadd.s32 %s10, 1
    %s18 = ssub.s32 %s10, %s17
    %p19 = scmp.eq.s32.totalorder %s18, 0
    %s21 = sadd.s32 %s20, 1
    %s22 = scalar_select %p19, %s20, %s21
    %p25 = pneg %p19
    %p26 = scmp.eq.s32.totalorder %s10, 1
    %p27 = por %p25, %p26
    %p28 = scmp.ne.s32.totalorder %s20, %s23
    %p29 = scmp.eq.s32.totalorder %s10, 0
    %p30 = por %p28, %p29
    %p31 = scmp.ne.s32.totalorder %s20, %s23
    %p32 = scmp.eq.s32.totalorder %s15, 1
    %p33 = por %p31, %p32
    %p34 = scmp.ne.s32.totalorder %s23, %s24
    %p35 = scmp.eq.s32.totalorder %s15, 0
    %p36 = por %p34, %p35
    %p37 = scmp.ne.s32.totalorder %s23, %s24
    %p38 = scmp.eq.s32.totalorder %s16, 1
    %p39 = por %p37, %p38
    %p41 = scmp.ne.s32.totalorder %s24, %s40
    %p42 = scmp.eq.s32.totalorder %s16, 0
    %p43 = por %p41, %p42
    %s45 = sadd.s32 %s44, 1
    %p48 = scmp.eq.s32.totalorder %s10, 1
    %p49 = scmp.ne.s32.totalorder %s44, %s46
    %p50 = scmp.eq.s32.totalorder %s10, 0
    %p51 = por %p49, %p50
    %p52 = scmp.ne.s32.totalorder %s44, %s46
    %p53 = scmp.eq.s32.totalorder %s15, 1
    %p54 = por %p52, %p53
    %p55 = scmp.ne.s32.totalorder %s46, %s47
    %p56 = scmp.eq.s32.totalorder %s15, 0
    %p57 = por %p55, %p56
    %p58 = scmp.ne.s32.totalorder %s46, %s47
    %p59 = scmp.eq.s32.totalorder %s16, 1
    %p60 = por %p58, %p59
    %p62 = scmp.ne.s32.totalorder %s47, %s61
    %p63 = scmp.eq.s32.totalorder %s16, 0
    %p64 = por %p62, %p63
    %s65 = ssub.s32 %s10, %s17
    %p66 = scmp.eq.s32.totalorder %s65, 0
    %s68 = sadd.s32 %s67, 1
    %s69 = scalar_select %p66, %s67, %s68
    %p72 = pneg %p66
    %p73 = scmp.eq.s32.totalorder %s10, 1
    %p74 = por %p72, %p73
    %p75 = scmp.ne.s32.totalorder %s67, %s70
    %p76 = scmp.eq.s32.totalorder %s10, 0
    %p77 = por %p75, %p76
    %p78 = scmp.ne.s32.totalorder %s67, %s70
    %p79 = scmp.eq.s32.totalorder %s15, 1
    %p80 = por %p78, %p79
    %p81 = scmp.ne.s32.totalorder %s70, %s71
    %p82 = scmp.eq.s32.totalorder %s15, 0
    %p83 = por %p81, %p82
    %p84 = scmp.ne.s32.totalorder %s70, %s71
    %p85 = scmp.eq.s32.totalorder %s16, 1
    %p86 = por %p84, %p85
    %p88 = scmp.ne.s32.totalorder %s71, %s87
    %p89 = scmp.eq.s32.totalorder %s16, 0
    %p90 = por %p88, %p89
    %s91 = ssub.s32 %s10, %s17
    %p92 = scmp.eq.s32.totalorder %s91, 0
    %s94 = sadd.s32 %s93, 1
    %s95 = scalar_select %p92, %s93, %s94
    %p98 = pneg %p92
    %p99 = scmp.eq.s32.totalorder %s10, 1
    %p100 = por %p98, %p99
    %p101 = scmp.ne.s32.totalorder %s93, %s96
    %p102 = scmp.eq.s32.totalorder %s10, 0
    %p103 = por %p101, %p102
    %p104 = scmp.ne.s32.totalorder %s93, %s96
    %p105 = scmp.eq.s32.totalorder %s15, 1
    %p106 = por %p104, %p105
    %p107 = scmp.ne.s32.totalorder %s96, %s97
    %p108 = scmp.eq.s32.totalorder %s15, 0
    %p109 = por %p107, %p108
    %p110 = scmp.ne.s32.totalorder %s96, %s97
    %p111 = scmp.eq.s32.totalorder %s16, 1
    %p112 = por %p110, %p111
    %p114 = scmp.ne.s32.totalorder %s97, %s113
    %p115 = scmp.eq.s32.totalorder %s16, 0
    %p116 = por %p114, %p115
    %p117 = scmp.le.s32.totalorder 1, %s10
    %p118 = scmp.lt.s32.totalorder %s10, 3
    %p119 = pnand %p117, %p118
    %p120 = pneg %p119
    // Predicated region
    $region9: #{inception_b_forward.15} parent=5 // pred_check
      _
    $region10: #{inception_b_forward.15} parent=5 // pred_check_branch
      %122 = sbr.rel (%p119) target = $region12
    $region11: #{inception_b_forward.15} parent=5 // pred_region
      %s123 = ssub.s32 %s10, 1
      // Predicated region
      $region13: #{inception_b_forward.15} parent=11 // pred_check
        %p124 = pneg %p57
      $region14: #{inception_b_forward.15} parent=11 // pred_check_branch
        %126 = sbr.rel (%p124) target = $region16
      $region15: #{inception_b_forward.15} parent=11 // pred_region
        _
      $region16: #{inception_b_forward.15} parent=11 // pred_fallthru
        _
    $region12: #{inception_b_forward.15} parent=5 // pred_fallthru
      _
    %p127 = scmp.lt.s32.totalorder %s10, 2
    // Predicated region
    $region17: #{inception_b_forward.15} parent=5 // pred_check
      %p128 = pneg %p127
    $region18: #{inception_b_forward.15} parent=5 // pred_check_branch
      %130 = sbr.rel (%p128) target = $region20
    $region19: #{inception_b_forward.15} parent=5 // pred_region
      // Predicated region
      $region21: #{inception_b_forward.15} parent=19 // pred_check
        %p131 = pneg %p30
      $region22: #{inception_b_forward.15} parent=19 // pred_check_branch
        %133 = sbr.rel (%p131) target = $region24
      $region23: #{inception_b_forward.15} parent=19 // pred_region
        %p134 = scmp.lt.s32.totalorder %s10, 1
        %s135 = scalar_select %p134, %s10, 1
        %s136 = smul.addr %s135, 32
        %s137 = smul.addr %s136, 4
        %s138 = scalar_lea.vmem %s0, %s137
      $region24: #{inception_b_forward.15} parent=19 // pred_fallthru
        _
    $region20: #{inception_b_forward.15} parent=5 // pred_fallthru
      _
    %p139 = scmp.le.s32.totalorder 1, %s10
    %p140 = scmp.lt.s32.totalorder %s10, 3
    %p141 = pnand %p139, %p140
    %p142 = pneg %p141
    // Predicated region
    $region25: #{inception_b_forward.15} parent=5 // pred_check
      _
    $region26: #{inception_b_forward.15} parent=5 // pred_check_branch
      %144 = sbr.rel (%p141) target = $region28
    $region27: #{inception_b_forward.15} parent=5 // pred_region
      %s145 = ssub.s32 %s10, 1
      %p146 = scmp.lt.s32.totalorder %s15, 1
      %s147 = scalar_select %p146, %s15, 1
      %s148 = smul.addr %s147, 32
      %s149 = smul.addr %s148, 4
      %s150 = scalar_lea.vmem %s0, %s149
      %p151 = pneg %p36
      %p152 = pneg %p33
      %p153 = pneg %p57
      %p154 = pneg %p54
      %p155 = pneg %p83
      %p156 = pneg %p80
      %p157 = scmp.lt.s32.totalorder %s15, 1
      %s158 = scalar_select %p157, %s15, 1
      %s159 = smul.addr %s158, 8
      %s160 = smul.addr %s159, 8
      %s161 = scalar_lea.vmem %s2, %s160
      %p162 = pneg %p109
      %p163 = pneg %p106
      %p164 = scmp.lt.s32.totalorder %s15, 1
      %s165 = scalar_select %p164, %s15, 1
      %s166 = smul.addr %s165, 2
      %s167 = scalar_lea.vmem %s3, %s166
      %p168 = scmp.lt.s32.totalorder %s15, 1
      %s169 = scalar_select %p168, %s15, 1
      %s170 = smul.addr %s169, 32
      %s171 = smul.addr %s170, 4
      %s172 = scalar_lea.vmem %s0, %s171
      %p173 = scmp.lt.s32.totalorder %s15, 1
      %s174 = scalar_select %p173, %s15, 1
      %s175 = smul.addr %s174, 8
      %s176 = smul.addr %s175, 8
      %s177 = scalar_lea.vmem %s2, %s176
      %p178 = scmp.lt.s32.totalorder %s15, 1
      %s179 = scalar_select %p178, %s15, 1
      %s180 = smul.addr %s179, 2
      %s181 = scalar_lea.vmem %s3, %s180
      %v183 = vld [vmem:[%s172] sm:$0xf]
      %v184 = vld [vmem:[%s172 + $0x4] sm:$0xf]
      %v185 = vld [vmem:[%s172 + $0x8] sm:$0xf]
      %v186 = vld [vmem:[%s172 + $0xc] sm:$0xf]
      %v187 = vld [vmem:[%s172 + $0x10] sm:$0xf]
      %v188 = vld [vmem:[%s172 + $0x14] sm:$0xf]
      %v189 = vld [vmem:[%s172 + $0x18] sm:$0xf]
      %v190 = vld [vmem:[%s172 + $0x1c] sm:$0xf]
      %v191 = vld [vmem:[%s172 + $0x20] sm:$0xf]
      %v192 = vld [vmem:[%s172 + $0x24] sm:$0xf]
      %v193 = vld [vmem:[%s172 + $0x28] sm:$0xf]
      %v194 = vld [vmem:[%s172 + $0x2c] sm:$0xf]
      %v195 = vld [vmem:[%s172 + $0x30] sm:$0xf]
      %v196 = vld [vmem:[%s172 + $0x34] sm:$0xf]
      %v197 = vld [vmem:[%s172 + $0x38] sm:$0xf]
      %v198 = vld [vmem:[%s172 + $0x3c] sm:$0xf]
      %v199 = vld [vmem:[%s172 + $0x20] sm:$0x1]
      %v200 = vld [vmem:[%s172 + $0x40] sm:$0xf]
      %v201 = vld [vmem:[%s172 + $0x44] sm:$0xf]
      %v202 = vld [vmem:[%s172 + $0x48] sm:$0xf]
      %v203 = vld [vmem:[%s172 + $0x4c] sm:$0xf]
      %v204 = vld [vmem:[%s172 + $0x50] sm:$0xf]
      %v205 = vld [vmem:[%s172 + $0x54] sm:$0xf]
      %v206 = vld [vmem:[%s172 + $0x58] sm:$0xf]
      %v207 = vld [vmem:[%s172 + $0x5c] sm:$0xf]
      %v208 = vld [vmem:[%s172 + $0x60] sm:$0xf]
      %v209 = vld [vmem:[%s172 + $0x64] sm:$0xf]
      %v210 = vld [vmem:[%s172 + $0x68] sm:$0xf]
      %v211 = vld [vmem:[%s172 + $0x6c] sm:$0xf]
      %v212 = vld [vmem:[%s172 + $0x70] sm:$0xf]
      %v213 = vld [vmem:[%s172 + $0x74] sm:$0xf]
      %v214 = vld [vmem:[%s172 + $0x78] sm:$0xf]
      %v215 = vld [vmem:[%s172 + $0x7c] sm:$0xf]
      %v216 = vld [vmem:[%s172 + $0x60] sm:$0x1]
      %v217 = vld [vmem:[%s172 + $0x24] sm:$0x1]
      %v226 = vunpack.c.l.b16 %v183
      %v227 = vunpack.c.l.b16 %v184
      %v228 = vunpack.c.l.b16 %v185
      %v229 = vunpack.c.l.b16 %v186
      %v230 = vunpack.c.l.b16 %v187
      %v231 = vunpack.c.l.b16 %v188
      %v232 = vunpack.c.l.b16 %v189
      %v233 = vunpack.c.l.b16 %v190
      %v234 = vpack.c.b16 %v227, %v226
      %v235 = vpack.c.b16 %v229, %v228
      %v236 = vpack.c.b16 %v231, %v230
      %v237 = vpack.c.b16 %v233, %v232
      %v246 = vunpack.c.l.b16 %v191
      %v247 = vunpack.c.l.b16 %v192
      %v248 = vunpack.c.l.b16 %v193
      %v249 = vunpack.c.l.b16 %v194
      %v250 = vunpack.c.l.b16 %v195
      %v251 = vunpack.c.l.b16 %v196
      %v252 = vunpack.c.l.b16 %v197
      %v253 = vunpack.c.l.b16 %v198
      %v254 = vpack.c.b16 %v247, %v246
      %v255 = vpack.c.b16 %v249, %v248
      %v256 = vpack.c.b16 %v251, %v250
      %v257 = vpack.c.b16 %v253, %v252
      %258 = vrot.lane.b32.xlu0 %v254, 96
      %v259 = vpop.permute.xlu0 %258
      %260 = vrot.lane.b32.xlu0 %v255, 96
      %v261 = vpop.permute.xlu0 %260
      %262 = vrot.lane.b32.xlu0 %v256, 96
      %v263 = vpop.permute.xlu0 %262
      %264 = vrot.lane.b32.xlu0 %v257, 96
      %v265 = vpop.permute.xlu0 %264
      %v267 = vunpack.c.l.b16 %v199
      %v268 = vpack.c.b16 %v267, %v267
      %vm269 = vsmask.f32 7424
      %v271 = vshrl.u32 %v234, 16
      %v273 = vshll.u32 %v234, 16
      %v275 = vrot.slane %v273, 1
      %v276 = vor.u32 %v271, %v275
      %v278 = vshll.u32 %v235, 16
      %v280 = vrot.slane %v278, 1
      %v281 = vsel %vm269, %v276, %v280
      %v282 = vshrl.u32 %v235, 16
      %v284 = vor.u32 %v282, %v280
      %v286 = vshll.u32 %v236, 16
      %v288 = vrot.slane %v286, 1
      %v289 = vsel %vm269, %v284, %v288
      %v290 = vshrl.u32 %v236, 16
      %v292 = vor.u32 %v290, %v288
      %v294 = vshll.u32 %v237, 16
      %v296 = vrot.slane %v294, 1
      %v297 = vsel %vm269, %v292, %v296
      %v298 = vshrl.u32 %v237, 16
      %v300 = vor.u32 %v298, %v296
      %v302 = vshll.u32 %v268, 16
      %v304 = vrot.slane %v302, 1
      %v305 = vsel %vm269, %v300, %v304
      %306 = vrot.lane.b32.xlu0 %v281, 64
      %v307 = vpop.permute.xlu0 %306
      %308 = vrot.lane.b32.xlu0 %v289, 64
      %v309 = vpop.permute.xlu0 %308
      %310 = vrot.lane.b32.xlu0 %v297, 64
      %v311 = vpop.permute.xlu0 %310
      %312 = vrot.lane.b32.xlu0 %v305, 64
      %v313 = vpop.permute.xlu0 %312
      %v322 = vunpack.c.l.b16 %v200
      %v323 = vunpack.c.l.b16 %v201
      %v324 = vunpack.c.l.b16 %v202
      %v325 = vunpack.c.l.b16 %v203
      %v326 = vunpack.c.l.b16 %v204
      %v327 = vunpack.c.l.b16 %v205
      %v328 = vunpack.c.l.b16 %v206
      %v329 = vunpack.c.l.b16 %v207
      %v330 = vpack.c.b16 %v323, %v322
      %v331 = vpack.c.b16 %v325, %v324
      %v332 = vpack.c.b16 %v327, %v326
      %v333 = vpack.c.b16 %v329, %v328
      %334 = vrot.lane.b32.xlu0 %v330, 32
      %v335 = vpop.permute.xlu0 %334
      %336 = vrot.lane.b32.xlu0 %v331, 32
      %v337 = vpop.permute.xlu0 %336
      %338 = vrot.lane.b32.xlu0 %v332, 32
      %v339 = vpop.permute.xlu0 %338
      %340 = vrot.lane.b32.xlu0 %v333, 32
      %v341 = vpop.permute.xlu0 %340
      %v350 = vunpack.c.l.b16 %v208
      %v351 = vunpack.c.l.b16 %v209
      %v352 = vunpack.c.l.b16 %v210
      %v353 = vunpack.c.l.b16 %v211
      %v354 = vunpack.c.l.b16 %v212
      %v355 = vunpack.c.l.b16 %v213
      %v356 = vunpack.c.l.b16 %v214
      %v357 = vunpack.c.l.b16 %v215
      %v358 = vpack.c.b16 %v351, %v350
      %v359 = vpack.c.b16 %v353, %v352
      %v360 = vpack.c.b16 %v355, %v354
      %v361 = vpack.c.b16 %v357, %v356
      %v363 = vunpack.c.l.b16 %v216
      %v364 = vpack.c.b16 %v363, %v363
      %v366 = vshrl.u32 %v330, 16
      %v368 = vshll.u32 %v330, 16
      %v370 = vrot.slane %v368, 1
      %v371 = vor.u32 %v366, %v370
      %v373 = vshll.u32 %v331, 16
      %v375 = vrot.slane %v373, 1
      %v376 = vsel %vm269, %v371, %v375
      %v377 = vshrl.u32 %v331, 16
      %v379 = vor.u32 %v377, %v375
      %v381 = vshll.u32 %v332, 16
      %v383 = vrot.slane %v381, 1
      %v384 = vsel %vm269, %v379, %v383
      %v385 = vshrl.u32 %v332, 16
      %v387 = vor.u32 %v385, %v383
      %v389 = vshll.u32 %v333, 16
      %v391 = vrot.slane %v389, 1
      %v392 = vsel %vm269, %v387, %v391
      %v393 = vshrl.u32 %v333, 16
      %v395 = vor.u32 %v393, %v391
      %v397 = vshll.u32 %v364, 16
      %v399 = vrot.slane %v397, 1
      %v400 = vsel %vm269, %v395, %v399
      %401 = vrot.lane.b32.xlu0 %v376, 96
      %v402 = vpop.permute.xlu0 %401
      %403 = vrot.lane.b32.xlu0 %v384, 96
      %v404 = vpop.permute.xlu0 %403
      %405 = vrot.lane.b32.xlu0 %v392, 96
      %v406 = vpop.permute.xlu0 %405
      %407 = vrot.lane.b32.xlu0 %v400, 96
      %v408 = vpop.permute.xlu0 %407
      %v409 = vpack.c.b16 %v228, %v227
      %v410 = vpack.c.b16 %v230, %v229
      %v411 = vpack.c.b16 %v232, %v231
      %v412 = vpack.c.b16 %v246, %v233
      %413 = vrot.lane.b32.xlu0 %v409, 64
      %v414 = vpop.permute.xlu0 %413
      %415 = vrot.lane.b32.xlu0 %v410, 64
      %v416 = vpop.permute.xlu0 %415
      %417 = vrot.lane.b32.xlu0 %v411, 64
      %v418 = vpop.permute.xlu0 %417
      %419 = vrot.lane.b32.xlu0 %v412, 64
      %v420 = vpop.permute.xlu0 %419
      %v421 = vpack.c.b16 %v248, %v247
      %v422 = vpack.c.b16 %v250, %v249
      %v423 = vpack.c.b16 %v252, %v251
      %v424 = vpack.c.b16 %v322, %v253
      %425 = vrot.lane.b32.xlu0 %v421, 32
      %v426 = vpop.permute.xlu0 %425
      %427 = vrot.lane.b32.xlu0 %v422, 32
      %v428 = vpop.permute.xlu0 %427
      %429 = vrot.lane.b32.xlu0 %v423, 32
      %v430 = vpop.permute.xlu0 %429
      %431 = vrot.lane.b32.xlu0 %v424, 32
      %v432 = vpop.permute.xlu0 %431
      %v434 = vunpack.c.l.b16 %v217
      %v435 = vpack.c.b16 %v434, %v434
      %v437 = vshrl.u32 %v409, 16
      %v439 = vshll.u32 %v409, 16
      %v441 = vrot.slane %v439, 1
      %v442 = vor.u32 %v437, %v441
      %v444 = vshll.u32 %v410, 16
      %v446 = vrot.slane %v444, 1
      %v447 = vsel %vm269, %v442, %v446
      %v448 = vshrl.u32 %v410, 16
      %v450 = vor.u32 %v448, %v446
      %v452 = vshll.u32 %v411, 16
      %v454 = vrot.slane %v452, 1
      %v455 = vsel %vm269, %v450, %v454
      %v456 = vshrl.u32 %v411, 16
      %v458 = vor.u32 %v456, %v454
      %v460 = vshll.u32 %v412, 16
      %v462 = vrot.slane %v460, 1
      %v463 = vsel %vm269, %v458, %v462
      %v464 = vshrl.u32 %v412, 16
      %v466 = vor.u32 %v464, %v462
      %v468 = vshll.u32 %v435, 16
      %v470 = vrot.slane %v468, 1
      %v471 = vsel %vm269, %v466, %v470
      %vm472 = vcmask 785408
      %v474 = vsel %vm472, %v234, %v259
      %v477 = vsel %vm472, %v235, %v261
      %v480 = vsel %vm472, %v236, %v263
      %v483 = vsel %vm472, %v237, %v265
      %vm485 = vcmask 523264
      %v487 = vsel %vm485, %v259, %v307
      %v490 = vsel %vm485, %v261, %v309
      %v493 = vsel %vm485, %v263, %v311
      %v496 = vsel %vm485, %v265, %v313
      %vm498 = vcmask 261120
      %v500 = vsel %vm498, %v307, %v335
      %v503 = vsel %vm498, %v309, %v337
      %v506 = vsel %vm498, %v311, %v339
      %v509 = vsel %vm498, %v313, %v341
      %v513 = vsel %vm472, %v358, %v402
      %v517 = vsel %vm472, %v359, %v404
      %v521 = vsel %vm472, %v360, %v406
      %v525 = vsel %vm472, %v361, %v408
      %v528 = vsel %vm485, %v402, %v414
      %v531 = vsel %vm485, %v404, %v416
      %v534 = vsel %vm485, %v406, %v418
      %v537 = vsel %vm485, %v408, %v420
      %v540 = vsel %vm498, %v414, %v426
      %v543 = vsel %vm498, %v416, %v428
      %v546 = vsel %vm498, %v418, %v430
      %v549 = vsel %vm498, %v420, %v432
      %v551 = vld [vmem:[%s1] sm:$0xf]
      %v552 = vld [vmem:[%s1 + $0x4] sm:$0xf]
      %v553 = vld [vmem:[%s1 + $0x8] sm:$0xf]
      %v554 = vld [vmem:[%s1 + $0xc] sm:$0xf]
      %v555 = vld [vmem:[%s1 + $0x10] sm:$0xf]
      %v556 = vld [vmem:[%s1 + $0x14] sm:$0xf]
      %v557 = vld [vmem:[%s1 + $0x18] sm:$0xf]
      %v558 = vld [vmem:[%s1 + $0x1c] sm:$0xf]
      %v559 = vld [vmem:[%s1 + $0x20] sm:$0xf]
      %v560 = vld [vmem:[%s1 + $0x24] sm:$0xf]
      %v561 = vld [vmem:[%s1 + $0x28] sm:$0xf]
      %v562 = vld [vmem:[%s1 + $0x2c] sm:$0xf]
      %v563 = vld [vmem:[%s1 + $0x30] sm:$0xf]
      %v564 = vld [vmem:[%s1 + $0x34] sm:$0xf]
      %v565 = vld [vmem:[%s1 + $0x38] sm:$0xf]
      %v566 = vld [vmem:[%s1 + $0x3c] sm:$0xf]
      %v567 = vld [vmem:[%s1 + $0x40] sm:$0xf]
      %v568 = vld [vmem:[%s1 + $0x44] sm:$0xf]
      %v569 = vld [vmem:[%s1 + $0x48] sm:$0xf]
      %v570 = vld [vmem:[%s1 + $0x4c] sm:$0xf]
      %v571 = vld [vmem:[%s1 + $0x50] sm:$0xf]
      %v572 = vld [vmem:[%s1 + $0x54] sm:$0xf]
      %v573 = vld [vmem:[%s1 + $0x58] sm:$0xf]
      %v574 = vld [vmem:[%s1 + $0x5c] sm:$0xf]
      %v575 = vld [vmem:[%s1 + $0x60] sm:$0xf]
      %v576 = vld [vmem:[%s1 + $0x64] sm:$0xf]
      %v577 = vld [vmem:[%s1 + $0x68] sm:$0xf]
      %v578 = vld [vmem:[%s1 + $0x6c] sm:$0xf]
      %v579 = vld [vmem:[%s1 + $0x70] sm:$0xf]
      %v580 = vld [vmem:[%s1 + $0x74] sm:$0xf]
      %v581 = vld [vmem:[%s1 + $0x78] sm:$0xf]
      %v582 = vld [vmem:[%s1 + $0x7c] sm:$0xf]
      %v583 = vld [vmem:[%s1 + $0x80] sm:$0xf]
      %v584 = vld [vmem:[%s1 + $0x84] sm:$0xf]
      %v585 = vld [vmem:[%s1 + $0x88] sm:$0xf]
      %v586 = vld [vmem:[%s1 + $0x8c] sm:$0xf]
      %v587 = vld [vmem:[%s1 + $0x90] sm:$0xf]
      %v588 = vld [vmem:[%s1 + $0x94] sm:$0xf]
      %v589 = vld [vmem:[%s1 + $0x98] sm:$0xf]
      %v590 = vld [vmem:[%s1 + $0x9c] sm:$0xf]
      %v591 = vld [vmem:[%s1 + $0xa0] sm:$0xf]
      %v592 = vld [vmem:[%s1 + $0xa4] sm:$0xf]
      %v593 = vld [vmem:[%s1 + $0xa8] sm:$0xf]
      %v594 = vld [vmem:[%s1 + $0xac] sm:$0xf]
      %v595 = vld [vmem:[%s1 + $0xb0] sm:$0xf]
      %v596 = vld [vmem:[%s1 + $0xb4] sm:$0xf]
      %v597 = vld [vmem:[%s1 + $0xb8] sm:$0xf]
      %v598 = vld [vmem:[%s1 + $0xbc] sm:$0xf]
      %v599 = vld [vmem:[%s1 + $0xc0] sm:$0xf]
      %v600 = vld [vmem:[%s1 + $0xc4] sm:$0xf]
      %v601 = vld [vmem:[%s1 + $0xc8] sm:$0xf]
      %v602 = vld [vmem:[%s1 + $0xcc] sm:$0xf]
      %v603 = vld [vmem:[%s1 + $0xd0] sm:$0xf]
      %v604 = vld [vmem:[%s1 + $0xd4] sm:$0xf]
      %v605 = vld [vmem:[%s1 + $0xd8] sm:$0xf]
      %v606 = vld [vmem:[%s1 + $0xdc] sm:$0xf]
      %v607 = vld [vmem:[%s1 + $0xe0] sm:$0xf]
      %v608 = vld [vmem:[%s1 + $0xe4] sm:$0xf]
      %v609 = vld [vmem:[%s1 + $0xe8] sm:$0xf]
      %v610 = vld [vmem:[%s1 + $0xec] sm:$0xf]
      %v611 = vld [vmem:[%s1 + $0xf0] sm:$0xf]
      %v612 = vld [vmem:[%s1 + $0xf4] sm:$0xf]
      %v613 = vld [vmem:[%s1 + $0xf8] sm:$0xf]
      %v614 = vld [vmem:[%s1 + $0xfc] sm:$0xf]
      %v615 = vld [vmem:[%s1 + $0x100] sm:$0xf]
      %v616 = vld [vmem:[%s1 + $0x104] sm:$0xf]
      %v617 = vld [vmem:[%s1 + $0x108] sm:$0xf]
      %v618 = vld [vmem:[%s1 + $0x10c] sm:$0xf]
      %v619 = vld [vmem:[%s1 + $0x110] sm:$0xf]
      %v620 = vld [vmem:[%s1 + $0x114] sm:$0xf]
      %v621 = vld [vmem:[%s1 + $0x118] sm:$0xf]
      %v622 = vld [vmem:[%s1 + $0x11c] sm:$0xf]
      %v623 = vld [vmem:[%s1 + $0x120] sm:$0xf]
      %v624 = vld [vmem:[%s1 + $0x124] sm:$0xf]
      %v625 = vld [vmem:[%s1 + $0x128] sm:$0xf]
      %v626 = vld [vmem:[%s1 + $0x12c] sm:$0xf]
      %v627 = vld [vmem:[%s1 + $0x130] sm:$0xf]
      %v628 = vld [vmem:[%s1 + $0x134] sm:$0xf]
      %v629 = vld [vmem:[%s1 + $0x138] sm:$0xf]
      %v630 = vld [vmem:[%s1 + $0x13c] sm:$0xf]
      %v631 = vld [vmem:[%s1 + $0x140] sm:$0xf]
      %v632 = vld [vmem:[%s1 + $0x144] sm:$0xf]
      %v633 = vld [vmem:[%s1 + $0x148] sm:$0xf]
      %v634 = vld [vmem:[%s1 + $0x14c] sm:$0xf]
      %v635 = vld [vmem:[%s1 + $0x150] sm:$0xf]
      %v636 = vld [vmem:[%s1 + $0x154] sm:$0xf]
      %v637 = vld [vmem:[%s1 + $0x158] sm:$0xf]
      %v638 = vld [vmem:[%s1 + $0x15c] sm:$0xf]
      %v639 = vld [vmem:[%s1 + $0x160] sm:$0xf]
      %v640 = vld [vmem:[%s1 + $0x164] sm:$0xf]
      %v641 = vld [vmem:[%s1 + $0x168] sm:$0xf]
      %v642 = vld [vmem:[%s1 + $0x16c] sm:$0xf]
      %v643 = vld [vmem:[%s1 + $0x170] sm:$0xf]
      %v644 = vld [vmem:[%s1 + $0x174] sm:$0xf]
      %v645 = vld [vmem:[%s1 + $0x178] sm:$0xf]
      %v646 = vld [vmem:[%s1 + $0x17c] sm:$0xf]
      %v647 = vld [vmem:[%s1 + $0x180] sm:$0xf]
      %v648 = vld [vmem:[%s1 + $0x184] sm:$0xf]
      %v649 = vld [vmem:[%s1 + $0x188] sm:$0xf]
      %v650 = vld [vmem:[%s1 + $0x18c] sm:$0xf]
      %v651 = vld [vmem:[%s1 + $0x190] sm:$0xf]
      %v652 = vld [vmem:[%s1 + $0x194] sm:$0xf]
      %v653 = vld [vmem:[%s1 + $0x198] sm:$0xf]
      %v654 = vld [vmem:[%s1 + $0x19c] sm:$0xf]
      %v655 = vld [vmem:[%s1 + $0x1a0] sm:$0xf]
      %v656 = vld [vmem:[%s1 + $0x1a4] sm:$0xf]
      %v657 = vld [vmem:[%s1 + $0x1a8] sm:$0xf]
      %v658 = vld [vmem:[%s1 + $0x1ac] sm:$0xf]
      %v767 = vunpack.c.l.b16 %v551
      %v768 = vunpack.c.l.b16 %v552
      %v769 = vunpack.c.l.b16 %v553
      %v770 = vunpack.c.l.b16 %v554
      %v771 = vunpack.c.l.b16 %v555
      %v772 = vunpack.c.l.b16 %v556
      %v773 = vunpack.c.l.b16 %v557
      %v774 = vunpack.c.l.b16 %v558
      %v775 = vunpack.c.l.b16 %v559
      %v776 = vunpack.c.l.b16 %v560
      %v777 = vunpack.c.l.b16 %v561
      %v778 = vunpack.c.l.b16 %v562
      %v779 = vunpack.c.l.b16 %v563
      %v780 = vunpack.c.l.b16 %v564
      %v781 = vunpack.c.l.b16 %v565
      %v782 = vunpack.c.l.b16 %v566
      %v783 = vunpack.c.l.b16 %v567
      %v784 = vunpack.c.l.b16 %v568
      %v785 = vunpack.c.l.b16 %v569
      %v786 = vunpack.c.l.b16 %v570
      %v787 = vunpack.c.l.b16 %v571
      %v788 = vunpack.c.l.b16 %v572
      %v789 = vunpack.c.l.b16 %v573
      %v790 = vunpack.c.l.b16 %v574
      %v791 = vunpack.c.l.b16 %v575
      %v792 = vunpack.c.l.b16 %v576
      %v793 = vunpack.c.l.b16 %v577
      %v794 = vunpack.c.l.b16 %v578
      %v795 = vunpack.c.l.b16 %v579
      %v796 = vunpack.c.l.b16 %v580
      %v797 = vunpack.c.l.b16 %v581
      %v798 = vunpack.c.l.b16 %v582
      %v799 = vunpack.c.l.b16 %v583
      %v800 = vunpack.c.l.b16 %v584
      %v801 = vunpack.c.l.b16 %v585
      %v802 = vunpack.c.l.b16 %v586
      %v803 = vunpack.c.l.b16 %v587
      %v804 = vunpack.c.l.b16 %v588
      %v805 = vunpack.c.l.b16 %v589
      %v806 = vunpack.c.l.b16 %v590
      %v807 = vunpack.c.l.b16 %v591
      %v808 = vunpack.c.l.b16 %v592
      %v809 = vunpack.c.l.b16 %v593
      %v810 = vunpack.c.l.b16 %v594
      %v811 = vunpack.c.l.b16 %v595
      %v812 = vunpack.c.l.b16 %v596
      %v813 = vunpack.c.l.b16 %v597
      %v814 = vunpack.c.l.b16 %v598
      %v815 = vunpack.c.l.b16 %v599
      %v816 = vunpack.c.l.b16 %v600
      %v817 = vunpack.c.l.b16 %v601
      %v818 = vunpack.c.l.b16 %v602
      %v819 = vunpack.c.l.b16 %v603
      %v820 = vunpack.c.l.b16 %v604
      %v821 = vunpack.c.l.b16 %v605
      %v822 = vunpack.c.l.b16 %v606
      %v823 = vunpack.c.l.b16 %v607
      %v824 = vunpack.c.l.b16 %v608
      %v825 = vunpack.c.l.b16 %v609
      %v826 = vunpack.c.l.b16 %v610
      %v827 = vunpack.c.l.b16 %v611
      %v828 = vunpack.c.l.b16 %v612
      %v829 = vunpack.c.l.b16 %v613
      %v830 = vunpack.c.l.b16 %v614
      %v831 = vunpack.c.l.b16 %v615
      %v832 = vunpack.c.l.b16 %v616
      %v833 = vunpack.c.l.b16 %v617
      %v834 = vunpack.c.l.b16 %v618
      %v835 = vunpack.c.l.b16 %v619
      %v836 = vunpack.c.l.b16 %v620
      %v837 = vunpack.c.l.b16 %v621
      %v838 = vunpack.c.l.b16 %v622
      %v839 = vunpack.c.l.b16 %v623
      %v840 = vunpack.c.l.b16 %v624
      %v841 = vunpack.c.l.b16 %v625
      %v842 = vunpack.c.l.b16 %v626
      %v843 = vunpack.c.l.b16 %v627
      %v844 = vunpack.c.l.b16 %v628
      %v845 = vunpack.c.l.b16 %v629
      %v846 = vunpack.c.l.b16 %v630
      %v847 = vunpack.c.l.b16 %v631
      %v848 = vunpack.c.l.b16 %v632
      %v849 = vunpack.c.l.b16 %v633
      %v850 = vunpack.c.l.b16 %v634
      %v851 = vunpack.c.l.b16 %v635
      %v852 = vunpack.c.l.b16 %v636
      %v853 = vunpack.c.l.b16 %v637
      %v854 = vunpack.c.l.b16 %v638
      %v855 = vunpack.c.l.b16 %v639
      %v856 = vunpack.c.l.b16 %v640
      %v857 = vunpack.c.l.b16 %v641
      %v858 = vunpack.c.l.b16 %v642
      %v859 = vunpack.c.l.b16 %v643
      %v860 = vunpack.c.l.b16 %v644
      %v861 = vunpack.c.l.b16 %v645
      %v862 = vunpack.c.l.b16 %v646
      %v863 = vunpack.c.l.b16 %v647
      %v864 = vunpack.c.l.b16 %v648
      %v865 = vunpack.c.l.b16 %v649
      %v866 = vunpack.c.l.b16 %v650
      %v867 = vunpack.c.l.b16 %v651
      %v868 = vunpack.c.l.b16 %v652
      %v869 = vunpack.c.l.b16 %v653
      %v870 = vunpack.c.l.b16 %v654
      %v871 = vunpack.c.l.b16 %v655
      %v872 = vunpack.c.l.b16 %v656
      %v873 = vunpack.c.l.b16 %v657
      %v874 = vunpack.c.l.b16 %v658
      %v875 = vpack.c.b16 %v768, %v767
      %v876 = vpack.c.b16 %v770, %v769
      %v877 = vpack.c.b16 %v772, %v771
      %v878 = vpack.c.b16 %v774, %v773
      %v879 = vpack.c.b16 %v776, %v775
      %v880 = vpack.c.b16 %v778, %v777
      %v881 = vpack.c.b16 %v780, %v779
      %v882 = vpack.c.b16 %v782, %v781
      %v883 = vpack.c.b16 %v784, %v783
      %v884 = vpack.c.b16 %v786, %v785
      %v885 = vpack.c.b16 %v788, %v787
      %v886 = vpack.c.b16 %v790, %v789
      %v887 = vpack.c.b16 %v792, %v791
      %v888 = vpack.c.b16 %v794, %v793
      %v889 = vpack.c.b16 %v796, %v795
      %v890 = vpack.c.b16 %v798, %v797
      %v891 = vpack.c.b16 %v800, %v799
      %v892 = vpack.c.b16 %v802, %v801
      %v893 = vpack.c.b16 %v804, %v803
      %v894 = vpack.c.b16 %v806, %v805
      %v895 = vpack.c.b16 %v808, %v807
      %v896 = vpack.c.b16 %v810, %v809
      %v897 = vpack.c.b16 %v812, %v811
      %v898 = vpack.c.b16 %v814, %v813
      %v899 = vpack.c.b16 %v816, %v815
      %v900 = vpack.c.b16 %v818, %v817
      %v901 = vpack.c.b16 %v820, %v819
      %v902 = vpack.c.b16 %v822, %v821
      %v903 = vpack.c.b16 %v824, %v823
      %v904 = vpack.c.b16 %v826, %v825
      %v905 = vpack.c.b16 %v828, %v827
      %v906 = vpack.c.b16 %v830, %v829
      %v907 = vpack.c.b16 %v832, %v831
      %v908 = vpack.c.b16 %v834, %v833
      %v909 = vpack.c.b16 %v836, %v835
      %v910 = vpack.c.b16 %v838, %v837
      %v911 = vpack.c.b16 %v840, %v839
      %v912 = vpack.c.b16 %v842, %v841
      %v913 = vpack.c.b16 %v844, %v843
      %v914 = vpack.c.b16 %v846, %v845
      %v915 = vpack.c.b16 %v848, %v847
      %v916 = vpack.c.b16 %v850, %v849
      %v917 = vpack.c.b16 %v852, %v851
      %v918 = vpack.c.b16 %v854, %v853
      %v919 = vpack.c.b16 %v856, %v855
      %v920 = vpack.c.b16 %v858, %v857
      %v921 = vpack.c.b16 %v860, %v859
      %v922 = vpack.c.b16 %v862, %v861
      %v923 = vpack.c.b16 %v864, %v863
      %v924 = vpack.c.b16 %v866, %v865
      %v925 = vpack.c.b16 %v868, %v867
      %v926 = vpack.c.b16 %v870, %v869
      %v927 = vpack.c.b16 %v872, %v871
      %v928 = vpack.c.b16 %v874, %v873
      %v984 = vsel %vm472, %v447, 0
      %v987 = vsel %vm472, %v455, 0
      %v990 = vsel %vm472, %v463, 0
      %v993 = vsel %vm472, %v471, 0
      %995 = vmatprep.subr.bf16.mxu0 0
      %996 = vmatpush1.bf16.msra.mxu0 %v882
      %997 = vmatprep.subr.bf16.mxu0 0
      %998 = vmatpush1.bf16.msra.mxu0 %v881
      %999 = vmatprep.subr.bf16.mxu0 0
      %1000 = vmatpush1.bf16.msra.mxu0 %v880
      %1001 = vmatprep.subr.bf16.mxu0 0
      %1002 = vmatpush1.bf16.msra.mxu0 %v879
      %1003 = vmatprep.subr.bf16.mxu0 0
      %1004 = vmatpush1.bf16.msra.mxu0 %v878
      %1005 = vmatprep.subr.bf16.mxu0 0
      %1006 = vmatpush1.bf16.msra.mxu0 %v877
      %1007 = vmatprep.subr.bf16.mxu0 0
      %1008 = vmatpush1.bf16.msra.mxu0 %v876
      %1009 = vmatprep.subr.bf16.mxu0 0
      %1010 = vmatpush1.bf16.msra.mxu0 %v875
      %1011 = vmatprep.subr.bf16.mxu0 0
      %1012 = vmatpush2.bf16.msra.mxu0 %v890
      %1013 = vmatprep.subr.bf16.mxu0 0
      %1014 = vmatpush2.bf16.msra.mxu0 %v889
      %1015 = vmatprep.subr.bf16.mxu0 0
      %1016 = vmatpush2.bf16.msra.mxu0 %v888
      %1017 = vmatprep.subr.bf16.mxu0 0
      %1018 = vmatpush2.bf16.msra.mxu0 %v887
      %1019 = vmatprep.subr.bf16.mxu0 0
      %1020 = vmatpush2.bf16.msra.mxu0 %v886
      %1021 = vmatprep.subr.bf16.mxu0 0
      %1022 = vmatpush2.bf16.msra.mxu0 %v885
      %1023 = vmatprep.subr.bf16.mxu0 0
      %1024 = vmatpush2.bf16.msra.mxu0 %v884
      %1025 = vmatprep.subr.bf16.mxu0 0
      %1026 = vmatpush2.bf16.msra.mxu0 %v883
      %1027 = vmatprep.mubr.bf16.mxu0 %v487
      %1028 = vmatmul.mubr.bf16.gmra.mxu0 %v474
      %v1029 = vpop.f32.mrf.mxu0
      %v1030 = vadd.f32 0.0, %v1029
      %v1031 = vpop.f32.mrf.mxu0
      %v1032 = vpop.f32.mrf.mxu0
      %v1033 = vadd.f32 0.0, %v1032
      %v1034 = vpop.f32.mrf.mxu0
      %1035 = vmatprep.mubr.bf16.mxu0 %v490
      %1036 = vmatmul.mubr.bf16.gmra.mxu0 %v477
      %v1037 = vpop.f32.mrf.mxu0
      %v1038 = vadd.f32 0.0, %v1037
      %v1039 = vpop.f32.mrf.mxu0
      %v1040 = vpop.f32.mrf.mxu0
      %v1041 = vadd.f32 0.0, %v1040
      %v1042 = vpop.f32.mrf.mxu0
      %1043 = vmatprep.mubr.bf16.mxu0 %v493
      %1044 = vmatmul.mubr.bf16.gmra.mxu0 %v480
      %v1045 = vpop.f32.mrf.mxu0
      %v1046 = vadd.f32 0.0, %v1045
      %v1047 = vpop.f32.mrf.mxu0
      %v1048 = vpop.f32.mrf.mxu0
      %v1049 = vadd.f32 0.0, %v1048
      %v1050 = vpop.f32.mrf.mxu0
      %1051 = vmatprep.mubr.bf16.mxu0 %v496
      %1052 = vmatmul.mubr.bf16.gmra.mxu0 %v483
      %v1053 = vpop.f32.mrf.mxu0
      %v1054 = vadd.f32 0.0, %v1053
      %v1055 = vpop.f32.mrf.mxu0
      %v1056 = vpop.f32.mrf.mxu0
      %v1057 = vadd.f32 0.0, %v1056
      %v1058 = vpop.f32.mrf.mxu0
      %1059 = vdwg.mxu0
      %1060 = vmatprep.subr.bf16.mxu0 0
      %1061 = vmatpush1.bf16.msra.mxu0 %v898
      %1062 = vmatprep.subr.bf16.mxu0 0
      %1063 = vmatpush1.bf16.msra.mxu0 %v897
      %1064 = vmatprep.subr.bf16.mxu0 0
      %1065 = vmatpush1.bf16.msra.mxu0 %v896
      %1066 = vmatprep.subr.bf16.mxu0 0
      %1067 = vmatpush1.bf16.msra.mxu0 %v895
      %1068 = vmatprep.subr.bf16.mxu0 0
      %1069 = vmatpush1.bf16.msra.mxu0 %v894
      %1070 = vmatprep.subr.bf16.mxu0 0
      %1071 = vmatpush1.bf16.msra.mxu0 %v893
      %1072 = vmatprep.subr.bf16.mxu0 0
      %1073 = vmatpush1.bf16.msra.mxu0 %v892
      %1074 = vmatprep.subr.bf16.mxu0 0
      %1075 = vmatpush1.bf16.msra.mxu0 %v891
      %1076 = vmatprep.subr.bf16.mxu0 0
      %1077 = vmatpush2.bf16.msra.mxu0 %v906
      %1078 = vmatprep.subr.bf16.mxu0 0
      %1079 = vmatpush2.bf16.msra.mxu0 %v905
      %1080 = vmatprep.subr.bf16.mxu0 0
      %1081 = vmatpush2.bf16.msra.mxu0 %v904
      %1082 = vmatprep.subr.bf16.mxu0 0
      %1083 = vmatpush2.bf16.msra.mxu0 %v903
      %1084 = vmatprep.subr.bf16.mxu0 0
      %1085 = vmatpush2.bf16.msra.mxu0 %v902
      %1086 = vmatprep.subr.bf16.mxu0 0
      %1087 = vmatpush2.bf16.msra.mxu0 %v901
      %1088 = vmatprep.subr.bf16.mxu0 0
      %1089 = vmatpush2.bf16.msra.mxu0 %v900
      %1090 = vmatprep.subr.bf16.mxu0 0
      %1091 = vmatpush2.bf16.msra.mxu0 %v899
      %1092 = vmatprep.mubr.bf16.mxu0 %v513
      %1093 = vmatmul.mubr.bf16.gmra.mxu0 %v500
      %v1094 = vpop.f32.mrf.mxu0
      %v1095 = vadd.f32 %v1030, %v1094
      %v1096 = vpop.f32.mrf.mxu0
      %v1097 = vpop.f32.mrf.mxu0
      %v1098 = vadd.f32 %v1033, %v1097
      %v1099 = vpop.f32.mrf.mxu0
      %1100 = vmatprep.mubr.bf16.mxu0 %v517
      %1101 = vmatmul.mubr.bf16.gmra.mxu0 %v503
      %v1102 = vpop.f32.mrf.mxu0
      %v1103 = vadd.f32 %v1038, %v1102
      %v1104 = vpop.f32.mrf.mxu0
      %v1105 = vpop.f32.mrf.mxu0
      %v1106 = vadd.f32 %v1041, %v1105
      %v1107 = vpop.f32.mrf.mxu0
      %1108 = vmatprep.mubr.bf16.mxu0 %v521
      %1109 = vmatmul.mubr.bf16.gmra.mxu0 %v506
      %v1110 = vpop.f32.mrf.mxu0
      %v1111 = vadd.f32 %v1046, %v1110
      %v1112 = vpop.f32.mrf.mxu0
      %v1113 = vpop.f32.mrf.mxu0
      %v1114 = vadd.f32 %v1049, %v1113
      %v1115 = vpop.f32.mrf.mxu0
      %1116 = vmatprep.mubr.bf16.mxu0 %v525
      %1117 = vmatmul.mubr.bf16.gmra.mxu0 %v509
      %v1118 = vpop.f32.mrf.mxu0
      %v1119 = vadd.f32 %v1054, %v1118
      %v1120 = vpop.f32.mrf.mxu0
      %v1121 = vpop.f32.mrf.mxu0
      %v1122 = vadd.f32 %v1057, %v1121
      %v1123 = vpop.f32.mrf.mxu0
      %1124 = vdwg.mxu0
      %1125 = vmatprep.subr.bf16.mxu0 0
      %1126 = vmatpush1.bf16.msra.mxu0 %v914
      %1127 = vmatprep.subr.bf16.mxu0 0
      %1128 = vmatpush1.bf16.msra.mxu0 %v913
      %1129 = vmatprep.subr.bf16.mxu0 0
      %1130 = vmatpush1.bf16.msra.mxu0 %v912
      %1131 = vmatprep.subr.bf16.mxu0 0
      %1132 = vmatpush1.bf16.msra.mxu0 %v911
      %1133 = vmatprep.subr.bf16.mxu0 0
      %1134 = vmatpush1.bf16.msra.mxu0 %v910
      %1135 = vmatprep.subr.bf16.mxu0 0
      %1136 = vmatpush1.bf16.msra.mxu0 %v909
      %1137 = vmatprep.subr.bf16.mxu0 0
      %1138 = vmatpush1.bf16.msra.mxu0 %v908
      %1139 = vmatprep.subr.bf16.mxu0 0
      %1140 = vmatpush1.bf16.msra.mxu0 %v907
      %1141 = vmatprep.subr.bf16.mxu0 0
      %1142 = vmatpush2.bf16.msra.mxu0 %v922
      %1143 = vmatprep.subr.bf16.mxu0 0
      %1144 = vmatpush2.bf16.msra.mxu0 %v921
      %1145 = vmatprep.subr.bf16.mxu0 0
      %1146 = vmatpush2.bf16.msra.mxu0 %v920
      %1147 = vmatprep.subr.bf16.mxu0 0
      %1148 = vmatpush2.bf16.msra.mxu0 %v919
      %1149 = vmatprep.subr.bf16.mxu0 0
      %1150 = vmatpush2.bf16.msra.mxu0 %v918
      %1151 = vmatprep.subr.bf16.mxu0 0
      %1152 = vmatpush2.bf16.msra.mxu0 %v917
      %1153 = vmatprep.subr.bf16.mxu0 0
      %1154 = vmatpush2.bf16.msra.mxu0 %v916
      %1155 = vmatprep.subr.bf16.mxu0 0
      %1156 = vmatpush2.bf16.msra.mxu0 %v915
      %1157 = vmatprep.mubr.bf16.mxu0 %v540
      %1158 = vmatmul.mubr.bf16.gmra.mxu0 %v528
      %v1159 = vpop.f32.mrf.mxu0
      %v1160 = vadd.f32 %v1095, %v1159
      %v1161 = vpop.f32.mrf.mxu0
      %v1162 = vpop.f32.mrf.mxu0
      %v1163 = vadd.f32 %v1098, %v1162
      %v1164 = vpop.f32.mrf.mxu0
      %1165 = vmatprep.mubr.bf16.mxu0 %v543
      %1166 = vmatmul.mubr.bf16.gmra.mxu0 %v531
      %v1167 = vpop.f32.mrf.mxu0
      %v1168 = vadd.f32 %v1103, %v1167
      %v1169 = vpop.f32.mrf.mxu0
      %v1170 = vpop.f32.mrf.mxu0
      %v1171 = vadd.f32 %v1106, %v1170
      %v1172 = vpop.f32.mrf.mxu0
      %1173 = vmatprep.mubr.bf16.mxu0 %v546
      %1174 = vmatmul.mubr.bf16.gmra.mxu0 %v534
      %v1175 = vpop.f32.mrf.mxu0
      %v1176 = vadd.f32 %v1111, %v1175
      %v1177 = vpop.f32.mrf.mxu0
      %v1178 = vpop.f32.mrf.mxu0
      %v1179 = vadd.f32 %v1114, %v1178
      %v1180 = vpop.f32.mrf.mxu0
      %1181 = vmatprep.mubr.bf16.mxu0 %v549
      %1182 = vmatmul.mubr.bf16.gmra.mxu0 %v537
      %v1183 = vpop.f32.mrf.mxu0
      %v1184 = vadd.f32 %v1119, %v1183
      %v1185 = vpop.f32.mrf.mxu0
      %v1186 = vpop.f32.mrf.mxu0
      %v1187 = vadd.f32 %v1122, %v1186
      %v1188 = vpop.f32.mrf.mxu0
      %1189 = vdwg.mxu0
      %1190 = vmatprep.subr.bf16.mxu0 0
      %1191 = vmatpush1.bf16.msra.mxu0 0
      %1192 = vmatprep.subr.bf16.mxu0 0
      %1193 = vmatpush1.bf16.msra.mxu0 0
      %1194 = vmatprep.subr.bf16.mxu0 0
      %1195 = vmatpush1.bf16.msra.mxu0 %v928
      %1196 = vmatprep.subr.bf16.mxu0 0
      %1197 = vmatpush1.bf16.msra.mxu0 %v927
      %1198 = vmatprep.subr.bf16.mxu0 0
      %1199 = vmatpush1.bf16.msra.mxu0 %v926
      %1200 = vmatprep.subr.bf16.mxu0 0
      %1201 = vmatpush1.bf16.msra.mxu0 %v925
      %1202 = vmatprep.subr.bf16.mxu0 0
      %1203 = vmatpush1.bf16.msra.mxu0 %v924
      %1204 = vmatprep.subr.bf16.mxu0 0
      %1205 = vmatpush1.bf16.msra.mxu0 %v923
      %1206 = vmatprep.subr.bf16.mxu0 0
      %1207 = vmatpush2.bf16.msra.mxu0 0
      %1208 = vmatprep.subr.bf16.mxu0 0
      %1209 = vmatpush2.bf16.msra.mxu0 0
      %1210 = vmatprep.subr.bf16.mxu0 0
      %1211 = vmatpush2.bf16.msra.mxu0 0
      %1212 = vmatprep.subr.bf16.mxu0 0
      %1213 = vmatpush2.bf16.msra.mxu0 0
      %1214 = vmatprep.subr.bf16.mxu0 0
      %1215 = vmatpush2.bf16.msra.mxu0 0
      %1216 = vmatprep.subr.bf16.mxu0 0
      %1217 = vmatpush2.bf16.msra.mxu0 0
      %1218 = vmatprep.subr.bf16.mxu0 0
      %1219 = vmatpush2.bf16.msra.mxu0 0
      %1220 = vmatprep.subr.bf16.mxu0 0
      %1221 = vmatpush2.bf16.msra.mxu0 0
      %1222 = vmatprep.mubr.bf16.mxu0 0
      %1223 = vmatmul.mubr.bf16.gmra.mxu0 %v984
      %v1224 = vpop.f32.mrf.mxu0
      %v1225 = vadd.f32 %v1160, %v1224
      %v1226 = vpop.f32.mrf.mxu0
      %v1227 = vpop.f32.mrf.mxu0
      %v1228 = vadd.f32 %v1163, %v1227
      %v1229 = vpop.f32.mrf.mxu0
      %1230 = vmatprep.mubr.bf16.mxu0 0
      %1231 = vmatmul.mubr.bf16.gmra.mxu0 %v987
      %v1232 = vpop.f32.mrf.mxu0
      %v1233 = vadd.f32 %v1168, %v1232
      %v1234 = vpop.f32.mrf.mxu0
      %v1235 = vpop.f32.mrf.mxu0
      %v1236 = vadd.f32 %v1171, %v1235
      %v1237 = vpop.f32.mrf.mxu0
      %1238 = vmatprep.mubr.bf16.mxu0 0
      %1239 = vmatmul.mubr.bf16.gmra.mxu0 %v990
      %v1240 = vpop.f32.mrf.mxu0
      %v1241 = vadd.f32 %v1176, %v1240
      %v1242 = vpop.f32.mrf.mxu0
      %v1243 = vpop.f32.mrf.mxu0
      %v1244 = vadd.f32 %v1179, %v1243
      %v1245 = vpop.f32.mrf.mxu0
      %1246 = vmatprep.mubr.bf16.mxu0 0
      %1247 = vmatmul.mubr.bf16.gmra.mxu0 %v993
      %v1248 = vpop.f32.mrf.mxu0
      %v1249 = vadd.f32 %v1184, %v1248
      %v1250 = vpop.f32.mrf.mxu0
      %v1251 = vpop.f32.mrf.mxu0
      %v1252 = vadd.f32 %v1187, %v1251
      %v1253 = vpop.f32.mrf.mxu0
      %1254 = vdwg.mxu0
      %1255 = vst.msk [vmem:[%s177] sm:$0xff] %vm472, %v1225
      %1256 = vst.msk [vmem:[%s177 + $0x8] sm:$0xff] %vm472, %v1228
      %1257 = vst.msk [vmem:[%s177 + $0x10] sm:$0xff] %vm472, %v1233
      %1258 = vst.msk [vmem:[%s177 + $0x18] sm:$0xff] %vm472, %v1236
      %1259 = vst.msk [vmem:[%s177 + $0x20] sm:$0xff] %vm472, %v1241
      %1260 = vst.msk [vmem:[%s177 + $0x28] sm:$0xff] %vm472, %v1244
      %1261 = vst.msk [vmem:[%s177 + $0x30] sm:$0xff] %vm472, %v1249
      %1262 = vst.msk [vmem:[%s177 + $0x38] sm:$0xff] %vm472, %v1252
      %vm1263 = vcmask 784384
      %v1264 = vsel %vm1263, %v1225, 0.0
      %v1265 = vrot.slane %v1264, 4
      %v1266 = vadd.f32 %v1264, %v1265
      %v1267 = vrot.slane %v1266, 2
      %v1268 = vadd.f32 %v1266, %v1267
      %v1269 = vrot.slane %v1268, 1
      %v1270 = vadd.f32 %v1268, %v1269
      %v1271 = vadd.f32 %v1270, 0.0
      %v1272 = vmul.f32 %v1225, %v1225
      %v1273 = vsel %vm1263, %v1272, 0.0
      %v1274 = vrot.slane %v1273, 4
      %v1275 = vadd.f32 %v1273, %v1274
      %v1276 = vrot.slane %v1275, 2
      %v1277 = vadd.f32 %v1275, %v1276
      %v1278 = vrot.slane %v1277, 1
      %v1279 = vadd.f32 %v1277, %v1278
      %v1280 = vadd.f32 %v1279, 0.0
      %v1281 = vsel %vm1263, %v1228, 0.0
      %v1282 = vrot.slane %v1281, 4
      %v1283 = vadd.f32 %v1281, %v1282
      %v1284 = vrot.slane %v1283, 2
      %v1285 = vadd.f32 %v1283, %v1284
      %v1286 = vrot.slane %v1285, 1
      %v1287 = vadd.f32 %v1285, %v1286
      %v1288 = vadd.f32 %v1271, %v1287
      %v1289 = vmul.f32 %v1228, %v1228
      %v1290 = vsel %vm1263, %v1289, 0.0
      %v1291 = vrot.slane %v1290, 4
      %v1292 = vadd.f32 %v1290, %v1291
      %v1293 = vrot.slane %v1292, 2
      %v1294 = vadd.f32 %v1292, %v1293
      %v1295 = vrot.slane %v1294, 1
      %v1296 = vadd.f32 %v1294, %v1295
      %v1297 = vadd.f32 %v1280, %v1296
      %v1298 = vsel %vm1263, %v1233, 0.0
      %v1299 = vrot.slane %v1298, 4
      %v1300 = vadd.f32 %v1298, %v1299
      %v1301 = vrot.slane %v1300, 2
      %v1302 = vadd.f32 %v1300, %v1301
      %v1303 = vrot.slane %v1302, 1
      %v1304 = vadd.f32 %v1302, %v1303
      %v1305 = vadd.f32 %v1288, %v1304
      %v1306 = vmul.f32 %v1233, %v1233
      %v1307 = vsel %vm1263, %v1306, 0.0
      %v1308 = vrot.slane %v1307, 4
      %v1309 = vadd.f32 %v1307, %v1308
      %v1310 = vrot.slane %v1309, 2
      %v1311 = vadd.f32 %v1309, %v1310
      %v1312 = vrot.slane %v1311, 1
      %v1313 = vadd.f32 %v1311, %v1312
      %v1314 = vadd.f32 %v1297, %v1313
      %v1315 = vsel %vm1263, %v1236, 0.0
      %v1316 = vrot.slane %v1315, 4
      %v1317 = vadd.f32 %v1315, %v1316
      %v1318 = vrot.slane %v1317, 2
      %v1319 = vadd.f32 %v1317, %v1318
      %v1320 = vrot.slane %v1319, 1
      %v1321 = vadd.f32 %v1319, %v1320
      %v1322 = vadd.f32 %v1305, %v1321
      %v1323 = vmul.f32 %v1236, %v1236
      %v1324 = vsel %vm1263, %v1323, 0.0
      %v1325 = vrot.slane %v1324, 4
      %v1326 = vadd.f32 %v1324, %v1325
      %v1327 = vrot.slane %v1326, 2
      %v1328 = vadd.f32 %v1326, %v1327
      %v1329 = vrot.slane %v1328, 1
      %v1330 = vadd.f32 %v1328, %v1329
      %v1331 = vadd.f32 %v1314, %v1330
      %v1332 = vsel %vm1263, %v1241, 0.0
      %v1333 = vrot.slane %v1332, 4
      %v1334 = vadd.f32 %v1332, %v1333
      %v1335 = vrot.slane %v1334, 2
      %v1336 = vadd.f32 %v1334, %v1335
      %v1337 = vrot.slane %v1336, 1
      %v1338 = vadd.f32 %v1336, %v1337
      %v1339 = vadd.f32 %v1322, %v1338
      %v1340 = vmul.f32 %v1241, %v1241
      %v1341 = vsel %vm1263, %v1340, 0.0
      %v1342 = vrot.slane %v1341, 4
      %v1343 = vadd.f32 %v1341, %v1342
      %v1344 = vrot.slane %v1343, 2
      %v1345 = vadd.f32 %v1343, %v1344
      %v1346 = vrot.slane %v1345, 1
      %v1347 = vadd.f32 %v1345, %v1346
      %v1348 = vadd.f32 %v1331, %v1347
      %v1349 = vsel %vm1263, %v1244, 0.0
      %v1350 = vrot.slane %v1349, 4
      %v1351 = vadd.f32 %v1349, %v1350
      %v1352 = vrot.slane %v1351, 2
      %v1353 = vadd.f32 %v1351, %v1352
      %v1354 = vrot.slane %v1353, 1
      %v1355 = vadd.f32 %v1353, %v1354
      %v1356 = vadd.f32 %v1339, %v1355
      %v1357 = vmul.f32 %v1244, %v1244
      %v1358 = vsel %vm1263, %v1357, 0.0
      %v1359 = vrot.slane %v1358, 4
      %v1360 = vadd.f32 %v1358, %v1359
      %v1361 = vrot.slane %v1360, 2
      %v1362 = vadd.f32 %v1360, %v1361
      %v1363 = vrot.slane %v1362, 1
      %v1364 = vadd.f32 %v1362, %v1363
      %v1365 = vadd.f32 %v1348, %v1364
      %v1366 = vsel %vm1263, %v1249, 0.0
      %v1367 = vrot.slane %v1366, 4
      %v1368 = vadd.f32 %v1366, %v1367
      %v1369 = vrot.slane %v1368, 2
      %v1370 = vadd.f32 %v1368, %v1369
      %v1371 = vrot.slane %v1370, 1
      %v1372 = vadd.f32 %v1370, %v1371
      %v1373 = vadd.f32 %v1356, %v1372
      %v1374 = vmul.f32 %v1249, %v1249
      %v1375 = vsel %vm1263, %v1374, 0.0
      %v1376 = vrot.slane %v1375, 4
      %v1377 = vadd.f32 %v1375, %v1376
      %v1378 = vrot.slane %v1377, 2
      %v1379 = vadd.f32 %v1377, %v1378
      %v1380 = vrot.slane %v1379, 1
      %v1381 = vadd.f32 %v1379, %v1380
      %v1382 = vadd.f32 %v1365, %v1381
      %vm1383 = vcmask 778240
      %1384 = vst.msk [vmem:[%s181] sm:$0x1] %vm1383, %v1373
      %1385 = vst.msk [vmem:[%s181 + $0x1] sm:$0x1] %vm1383, %v1382
      %p1386 = scmp.lt.s32.totalorder %s15, 1
      %s1387 = scalar_select %p1386, %s15, 1
      %s1388 = smul.addr %s1387, 8
      %s1389 = smul.addr %s1388, 8
      %s1390 = scalar_lea.vmem %s2, %s1389
      %p1391 = scmp.lt.s32.totalorder %s15, 1
      %s1392 = scalar_select %p1391, %s15, 1
      %s1393 = smul.addr %s1392, 2
      %s1394 = scalar_lea.vmem %s3, %s1393
      // Predicated region
      $region29: #{inception_b_forward.15} parent=27 // pred_check
        %p1395 = pneg %p80
      $region30: #{inception_b_forward.15} parent=27 // pred_check_branch
        %1397 = sbr.rel (%p1395) target = $region32
      $region31: #{inception_b_forward.15} parent=27 // pred_region
        _
      $region32: #{inception_b_forward.15} parent=27 // pred_fallthru
        _
      // Predicated region
      $region33: #{inception_b_forward.15} parent=27 // pred_check
        %p1398 = pneg %p106
      $region34: #{inception_b_forward.15} parent=27 // pred_check_branch
        %1400 = sbr.rel (%p1398) target = $region36
      $region35: #{inception_b_forward.15} parent=27 // pred_region
        _
      $region36: #{inception_b_forward.15} parent=27 // pred_fallthru
        _
    $region28: #{inception_b_forward.15} parent=5 // pred_fallthru
      _
    %p1401 = scmp.le.s32.totalorder 2, %s10
    // Predicated region
    $region37: #{inception_b_forward.15} parent=5 // pred_check
      %p1402 = pneg %p1401
    $region38: #{inception_b_forward.15} parent=5 // pred_check_branch
      %1404 = sbr.rel (%p1402) target = $region40
    $region39: #{inception_b_forward.15} parent=5 // pred_region
      %s1405 = ssub.s32 %s10, 2
      // Predicated region
      $region41: #{inception_b_forward.15} parent=39 // pred_check
        %p1406 = pneg %p86
      $region42: #{inception_b_forward.15} parent=39 // pred_check_branch
        %1408 = sbr.rel (%p1406) target = $region44
      $region43: #{inception_b_forward.15} parent=39 // pred_region
        %p1409 = scmp.lt.s32.totalorder %s16, 1
        %s1410 = scalar_select %p1409, %s16, 1
        %s1411 = smul.addr %s1410, 8
        %s1412 = smul.addr %s1411, 8
        %s1413 = scalar_lea.vmem %s2, %s1412
      $region44: #{inception_b_forward.15} parent=39 // pred_fallthru
        _
      // Predicated region
      $region45: #{inception_b_forward.15} parent=39 // pred_check
        %p1414 = pneg %p112
      $region46: #{inception_b_forward.15} parent=39 // pred_check_branch
        %1416 = sbr.rel (%p1414) target = $region48
      $region47: #{inception_b_forward.15} parent=39 // pred_region
        %p1417 = scmp.lt.s32.totalorder %s16, 1
        %s1418 = scalar_select %p1417, %s16, 1
        %s1419 = smul.addr %s1418, 2
        %s1420 = scalar_lea.vmem %s3, %s1419
      $region48: #{inception_b_forward.15} parent=39 // pred_fallthru
        _
    $region40: #{inception_b_forward.15} parent=5 // pred_fallthru
      _
  $region6: #{inception_b_forward.15} parent=0 // loop_footer
    %s14 = sadd.s32 1, %s10
  $region7: #{inception_b_forward.15} parent=0 // loop_footer_branch
    %9 = sbr.rel target = $region3
  $region8: #{inception_b_forward.15} parent=0 // loop_exit
    _

// kernel: inception_b_forward.10
$region0: #{inception_b_forward.10}
  #allocation0 [shape = 'u32[]', space=smem, size = 0x4, offset = 0x4, fixed_abs, tag = 'smem constant byte address 0x4 - core index']
  #allocation1 [shape = 'u32[144,128]{1,0:T(1,128)}', space=vmem, size = 0x12000, scoped, tag = 'internal scratch']
  %s0 = inlined_call_operand.vmem [shape: f32[2,64,384], index: 0, kind: input, shape index: {}]
  %s1 = inlined_call_operand.vmem [shape: f32[1,384], index: 1, kind: input, shape index: {}]
  %s2 = inlined_call_operand.vmem [shape: f32[1,384], index: 2, kind: input, shape index: {}]
  %s3 = inlined_call_operand.vmem [shape: f32[2,64,384], index: 3, kind: output, shape index: {}]
  %s4 = sld [smem:[#allocation0]]
  $region45: #{inception_b_forward.10} parent=0
    _
  %s6 = ssub.s32 1, %s4
  %s7 = scalar_select 0, %s6, %s4
  loop: start=0, step=1, limit=4
  $region2: #{inception_b_forward.10} parent=0 // loop_pre_header
    _
  $region3: #{inception_b_forward.10} parent=0 // loop_header
    %s9 = sphi 0, %s13
    %p10 = scmp.ge.s32.totalorder %s9, 4
    %s19 = sphi 0, %s21
    %s22 = sphi 0, %s19
    %s23 = sphi 0, %s22
    %s39 = sphi 0, %s23
    %s43 = sphi 0, %s43
    %s45 = sphi 0, %s43
    %s46 = sphi 0, %s45
    %s60 = sphi 0, %s46
    %s64 = sphi 0, %s64
    %s66 = sphi 0, %s64
    %s67 = sphi 0, %s66
    %s81 = sphi 0, %s67
    %s87 = sphi 0, %s89
    %s90 = sphi 0, %s87
    %s91 = sphi 0, %s90
    %s107 = sphi 0, %s91
  $region4: #{inception_b_forward.10} parent=0 // loop_header_branch
    %12 = sbr.rel (%p10) target = $region8
  $region5: #{inception_b_forward.10} parent=0 // loop_body
    %s14 = ssub.s32 %s9, 1
    %s15 = ssub.s32 %s9, 2
    %s16 = sadd.s32 %s9, 1
    %s17 = ssub.s32 %s9, %s16
    %p18 = scmp.eq.s32.totalorder %s17, 0
    %s20 = sadd.s32 %s19, 1
    %s21 = scalar_select %p18, %s19, %s20
    %p24 = pneg %p18
    %p25 = scmp.eq.s32.totalorder %s9, 1
    %p26 = por %p24, %p25
    %p27 = scmp.ne.s32.totalorder %s19, %s22
    %p28 = scmp.eq.s32.totalorder %s9, 0
    %p29 = por %p27, %p28
    %p30 = scmp.ne.s32.totalorder %s19, %s22
    %p31 = scmp.eq.s32.totalorder %s14, 1
    %p32 = por %p30, %p31
    %p33 = scmp.ne.s32.totalorder %s22, %s23
    %p34 = scmp.eq.s32.totalorder %s14, 0
    %p35 = por %p33, %p34
    %p36 = scmp.ne.s32.totalorder %s22, %s23
    %p37 = scmp.eq.s32.totalorder %s15, 1
    %p38 = por %p36, %p37
    %p40 = scmp.ne.s32.totalorder %s23, %s39
    %p41 = scmp.eq.s32.totalorder %s15, 0
    %p42 = por %p40, %p41
    %s44 = sadd.s32 %s43, 1
    %p47 = scmp.eq.s32.totalorder %s9, 1
    %p48 = scmp.ne.s32.totalorder %s43, %s45
    %p49 = scmp.eq.s32.totalorder %s9, 0
    %p50 = por %p48, %p49
    %p51 = scmp.ne.s32.totalorder %s43, %s45
    %p52 = scmp.eq.s32.totalorder %s14, 1
    %p53 = por %p51, %p52
    %p54 = scmp.ne.s32.totalorder %s45, %s46
    %p55 = scmp.eq.s32.totalorder %s14, 0
    %p56 = por %p54, %p55
    %p57 = scmp.ne.s32.totalorder %s45, %s46
    %p58 = scmp.eq.s32.totalorder %s15, 1
    %p59 = por %p57, %p58
    %p61 = scmp.ne.s32.totalorder %s46, %s60
    %p62 = scmp.eq.s32.totalorder %s15, 0
    %p63 = por %p61, %p62
    %s65 = sadd.s32 %s64, 1
    %p68 = scmp.eq.s32.totalorder %s9, 1
    %p69 = scmp.ne.s32.totalorder %s64, %s66
    %p70 = scmp.eq.s32.totalorder %s9, 0
    %p71 = por %p69, %p70
    %p72 = scmp.ne.s32.totalorder %s64, %s66
    %p73 = scmp.eq.s32.totalorder %s14, 1
    %p74 = por %p72, %p73
    %p75 = scmp.ne.s32.totalorder %s66, %s67
    %p76 = scmp.eq.s32.totalorder %s14, 0
    %p77 = por %p75, %p76
    %p78 = scmp.ne.s32.totalorder %s66, %s67
    %p79 = scmp.eq.s32.totalorder %s15, 1
    %p80 = por %p78, %p79
    %p82 = scmp.ne.s32.totalorder %s67, %s81
    %p83 = scmp.eq.s32.totalorder %s15, 0
    %p84 = por %p82, %p83
    %s85 = ssub.s32 %s9, %s16
    %p86 = scmp.eq.s32.totalorder %s85, 0
    %s88 = sadd.s32 %s87, 1
    %s89 = scalar_select %p86, %s87, %s88
    %p92 = pneg %p86
    %p93 = scmp.eq.s32.totalorder %s9, 1
    %p94 = por %p92, %p93
    %p95 = scmp.ne.s32.totalorder %s87, %s90
    %p96 = scmp.eq.s32.totalorder %s9, 0
    %p97 = por %p95, %p96
    %p98 = scmp.ne.s32.totalorder %s87, %s90
    %p99 = scmp.eq.s32.totalorder %s14, 1
    %p100 = por %p98, %p99
    %p101 = scmp.ne.s32.totalorder %s90, %s91
    %p102 = scmp.eq.s32.totalorder %s14, 0
    %p103 = por %p101, %p102
    %p104 = scmp.ne.s32.totalorder %s90, %s91
    %p105 = scmp.eq.s32.totalorder %s15, 1
    %p106 = por %p104, %p105
    %p108 = scmp.ne.s32.totalorder %s91, %s107
    %p109 = scmp.eq.s32.totalorder %s15, 0
    %p110 = por %p108, %p109
    %p111 = scmp.le.s32.totalorder 1, %s9
    %p112 = scmp.lt.s32.totalorder %s9, 3
    %p113 = pnand %p111, %p112
    %p114 = pneg %p113
    // Predicated region
    $region9: #{inception_b_forward.10} parent=5 // pred_check
      _
    $region10: #{inception_b_forward.10} parent=5 // pred_check_branch
      %116 = sbr.rel (%p113) target = $region12
    $region11: #{inception_b_forward.10} parent=5 // pred_region
      %s117 = ssub.s32 %s9, 1
      // Predicated region
      $region13: #{inception_b_forward.10} parent=11 // pred_check
        %p118 = pneg %p56
      $region14: #{inception_b_forward.10} parent=11 // pred_check_branch
        %120 = sbr.rel (%p118) target = $region16
      $region15: #{inception_b_forward.10} parent=11 // pred_region
        _
      $region16: #{inception_b_forward.10} parent=11 // pred_fallthru
        _
      // Predicated region
      $region17: #{inception_b_forward.10} parent=11 // pred_check
        %p121 = pneg %p77
      $region18: #{inception_b_forward.10} parent=11 // pred_check_branch
        %123 = sbr.rel (%p121) target = $region20
      $region19: #{inception_b_forward.10} parent=11 // pred_region
        _
      $region20: #{inception_b_forward.10} parent=11 // pred_fallthru
        _
    $region12: #{inception_b_forward.10} parent=5 // pred_fallthru
      _
    %p124 = scmp.lt.s32.totalorder %s9, 2
    // Predicated region
    $region21: #{inception_b_forward.10} parent=5 // pred_check
      %p125 = pneg %p124
    $region22: #{inception_b_forward.10} parent=5 // pred_check_branch
      %127 = sbr.rel (%p125) target = $region24
    $region23: #{inception_b_forward.10} parent=5 // pred_region
      // Predicated region
      $region25: #{inception_b_forward.10} parent=23 // pred_check
        %p128 = pneg %p29
      $region26: #{inception_b_forward.10} parent=23 // pred_check_branch
        %130 = sbr.rel (%p128) target = $region28
      $region27: #{inception_b_forward.10} parent=23 // pred_region
        %p131 = scmp.lt.s32.totalorder %s9, 1
        %s132 = scalar_select %p131, %s9, 1
        %s133 = smul.addr %s132, 24
        %s134 = smul.addr %s133, 8
        %s135 = scalar_lea.vmem %s0, %s134
      $region28: #{inception_b_forward.10} parent=23 // pred_fallthru
        _
    $region24: #{inception_b_forward.10} parent=5 // pred_fallthru
      _
    %p136 = scmp.le.s32.totalorder 1, %s9
    %p137 = scmp.lt.s32.totalorder %s9, 3
    %p138 = pnand %p136, %p137
    %p139 = pneg %p138
    // Predicated region
    $region29: #{inception_b_forward.10} parent=5 // pred_check
      _
    $region30: #{inception_b_forward.10} parent=5 // pred_check_branch
      %141 = sbr.rel (%p138) target = $region32
    $region31: #{inception_b_forward.10} parent=5 // pred_region
      %s142 = ssub.s32 %s9, 1
      %p143 = scmp.lt.s32.totalorder %s14, 1
      %s144 = scalar_select %p143, %s14, 1
      %s145 = smul.addr %s144, 24
      %s146 = smul.addr %s145, 8
      %s147 = scalar_lea.vmem %s0, %s146
      %p148 = pneg %p35
      %p149 = pneg %p32
      %p150 = pneg %p56
      %p151 = pneg %p53
      %p152 = pneg %p77
      %p153 = pneg %p74
      %p154 = pneg %p103
      %p155 = pneg %p100
      %p156 = scmp.lt.s32.totalorder %s14, 1
      %s157 = scalar_select %p156, %s14, 1
      %s158 = smul.addr %s157, 24
      %s159 = smul.addr %s158, 8
      %s160 = scalar_lea.vmem %s3, %s159
      %p161 = scmp.lt.s32.totalorder %s14, 1
      %s162 = scalar_select %p161, %s14, 1
      %s163 = smul.addr %s162, 24
      %s164 = smul.addr %s163, 8
      %s165 = scalar_lea.vmem %s0, %s164
      %p166 = scmp.lt.s32.totalorder %s14, 1
      %s167 = scalar_select %p166, %s14, 1
      %s168 = smul.addr %s167, 24
      %s169 = smul.addr %s168, 8
      %s170 = scalar_lea.vmem %s3, %s169
      %v171 = vld [vmem:[%s165] sm:$0xff]
      %v172 = vld [vmem:[%s165 + $0x8] sm:$0xff]
      %v173 = vld [vmem:[%s165 + $0x10] sm:$0xff]
      %v174 = vld [vmem:[%s165 + $0x18] sm:$0xff]
      %v175 = vld [vmem:[%s165 + $0x20] sm:$0xff]
      %v176 = vld [vmem:[%s165 + $0x28] sm:$0xff]
      %v177 = vld [vmem:[%s165 + $0x30] sm:$0xff]
      %v178 = vld [vmem:[%s165 + $0x38] sm:$0xff]
      %v179 = vld [vmem:[%s165 + $0x40] sm:$0xff]
      %v180 = vld [vmem:[%s165 + $0x48] sm:$0xff]
      %v181 = vld [vmem:[%s165 + $0x50] sm:$0xff]
      %v182 = vld [vmem:[%s165 + $0x58] sm:$0xff]
      %v183 = vld [vmem:[%s165 + $0x60] sm:$0xff]
      %v184 = vld [vmem:[%s165 + $0x68] sm:$0xff]
      %v185 = vld [vmem:[%s165 + $0x70] sm:$0xff]
      %v186 = vld [vmem:[%s165 + $0x78] sm:$0xff]
      %v187 = vld [vmem:[%s165 + $0x80] sm:$0xff]
      %v188 = vld [vmem:[%s165 + $0x88] sm:$0xff]
      %v189 = vld [vmem:[%s165 + $0x90] sm:$0xff]
      %v190 = vld [vmem:[%s165 + $0x98] sm:$0xff]
      %v191 = vld [vmem:[%s165 + $0xa0] sm:$0xff]
      %v192 = vld [vmem:[%s165 + $0xa8] sm:$0xff]
      %v193 = vld [vmem:[%s165 + $0xb0] sm:$0xff]
      %v194 = vld [vmem:[%s165 + $0xb8] sm:$0xff]
      %v195 = vld [vmem:[%s1] sm:$0x7]
      %v197 = vlaneseq
      %v198 = vshrl.u32 %v197, 7
      %v199 = vsub.s32 0, %v198
      %v200 = vrot.slane %v195, %v199
      %v201 = vlaneseq
      %v202 = vshrl.u32 %v201, 7
      %v203 = vsub.s32 1, %v202
      %v204 = vrot.slane %v195, %v203
      %v205 = vlaneseq
      %v206 = vshrl.u32 %v205, 7
      %v207 = vsub.s32 2, %v206
      %v208 = vrot.slane %v195, %v207
      %v212 = vmul.f32 %v171, %v200
      %v213 = vmul.f32 %v172, %v204
      %v214 = vmul.f32 %v173, %v208
      %v215 = vmul.f32 %v174, %v200
      %v216 = vmul.f32 %v175, %v204
      %v217 = vmul.f32 %v176, %v208
      %v218 = vmul.f32 %v177, %v200
      %v219 = vmul.f32 %v178, %v204
      %v220 = vmul.f32 %v179, %v208
      %v221 = vmul.f32 %v180, %v200
      %v222 = vmul.f32 %v181, %v204
      %v223 = vmul.f32 %v182, %v208
      %v224 = vmul.f32 %v183, %v200
      %v225 = vmul.f32 %v184, %v204
      %v226 = vmul.f32 %v185, %v208
      %v227 = vmul.f32 %v186, %v200
      %v228 = vmul.f32 %v187, %v204
      %v229 = vmul.f32 %v188, %v208
      %v230 = vmul.f32 %v189, %v200
      %v231 = vmul.f32 %v190, %v204
      %v232 = vmul.f32 %v191, %v208
      %v233 = vmul.f32 %v192, %v200
      %v234 = vmul.f32 %v193, %v204
      %v235 = vmul.f32 %v194, %v208
      %v236 = vld [vmem:[%s2] sm:$0x7]
      %v238 = vlaneseq
      %v239 = vshrl.u32 %v238, 7
      %v240 = vsub.s32 0, %v239
      %v241 = vrot.slane %v236, %v240
      %v242 = vlaneseq
      %v243 = vshrl.u32 %v242, 7
      %v244 = vsub.s32 1, %v243
      %v245 = vrot.slane %v236, %v244
      %v246 = vlaneseq
      %v247 = vshrl.u32 %v246, 7
      %v248 = vsub.s32 2, %v247
      %v249 = vrot.slane %v236, %v248
      %v253 = vadd.f32 %v212, %v241
      %v254 = vadd.f32 %v213, %v245
      %v255 = vadd.f32 %v214, %v249
      %v256 = vadd.f32 %v215, %v241
      %v257 = vadd.f32 %v216, %v245
      %v258 = vadd.f32 %v217, %v249
      %v259 = vadd.f32 %v218, %v241
      %v260 = vadd.f32 %v219, %v245
      %v261 = vadd.f32 %v220, %v249
      %v262 = vadd.f32 %v221, %v241
      %v263 = vadd.f32 %v222, %v245
      %v264 = vadd.f32 %v223, %v249
      %v265 = vadd.f32 %v224, %v241
      %v266 = vadd.f32 %v225, %v245
      %v267 = vadd.f32 %v226, %v249
      %v268 = vadd.f32 %v227, %v241
      %v269 = vadd.f32 %v228, %v245
      %v270 = vadd.f32 %v229, %v249
      %v271 = vadd.f32 %v230, %v241
      %v272 = vadd.f32 %v231, %v245
      %v273 = vadd.f32 %v232, %v249
      %v274 = vadd.f32 %v233, %v241
      %v275 = vadd.f32 %v234, %v245
      %v276 = vadd.f32 %v235, %v249
      %v277 = vmax.f32 %v253, 0.0
      %v278 = vmax.f32 %v254, 0.0
      %v279 = vmax.f32 %v255, 0.0
      %v280 = vmax.f32 %v256, 0.0
      %v281 = vmax.f32 %v257, 0.0
      %v282 = vmax.f32 %v258, 0.0
      %v283 = vmax.f32 %v259, 0.0
      %v284 = vmax.f32 %v260, 0.0
      %v285 = vmax.f32 %v261, 0.0
      %v286 = vmax.f32 %v262, 0.0
      %v287 = vmax.f32 %v263, 0.0
      %v288 = vmax.f32 %v264, 0.0
      %v289 = vmax.f32 %v265, 0.0
      %v290 = vmax.f32 %v266, 0.0
      %v291 = vmax.f32 %v267, 0.0
      %v292 = vmax.f32 %v268, 0.0
      %v293 = vmax.f32 %v269, 0.0
      %v294 = vmax.f32 %v270, 0.0
      %v295 = vmax.f32 %v271, 0.0
      %v296 = vmax.f32 %v272, 0.0
      %v297 = vmax.f32 %v273, 0.0
      %v298 = vmax.f32 %v274, 0.0
      %v299 = vmax.f32 %v275, 0.0
      %v300 = vmax.f32 %v276, 0.0
      %301 = vst [vmem:[%s170] sm:$0xff] %v277
      %302 = vst [vmem:[%s170 + $0x8] sm:$0xff] %v278
      %303 = vst [vmem:[%s170 + $0x10] sm:$0xff] %v279
      %304 = vst [vmem:[%s170 + $0x18] sm:$0xff] %v280
      %305 = vst [vmem:[%s170 + $0x20] sm:$0xff] %v281
      %306 = vst [vmem:[%s170 + $0x28] sm:$0xff] %v282
      %307 = vst [vmem:[%s170 + $0x30] sm:$0xff] %v283
      %308 = vst [vmem:[%s170 + $0x38] sm:$0xff] %v284
      %309 = vst [vmem:[%s170 + $0x40] sm:$0xff] %v285
      %310 = vst [vmem:[%s170 + $0x48] sm:$0xff] %v286
      %311 = vst [vmem:[%s170 + $0x50] sm:$0xff] %v287
      %312 = vst [vmem:[%s170 + $0x58] sm:$0xff] %v288
      %313 = vst [vmem:[%s170 + $0x60] sm:$0xff] %v289
      %314 = vst [vmem:[%s170 + $0x68] sm:$0xff] %v290
      %315 = vst [vmem:[%s170 + $0x70] sm:$0xff] %v291
      %316 = vst [vmem:[%s170 + $0x78] sm:$0xff] %v292
      %317 = vst [vmem:[%s170 + $0x80] sm:$0xff] %v293
      %318 = vst [vmem:[%s170 + $0x88] sm:$0xff] %v294
      %319 = vst [vmem:[%s170 + $0x90] sm:$0xff] %v295
      %320 = vst [vmem:[%s170 + $0x98] sm:$0xff] %v296
      %321 = vst [vmem:[%s170 + $0xa0] sm:$0xff] %v297
      %322 = vst [vmem:[%s170 + $0xa8] sm:$0xff] %v298
      %323 = vst [vmem:[%s170 + $0xb0] sm:$0xff] %v299
      %324 = vst [vmem:[%s170 + $0xb8] sm:$0xff] %v300
      %p325 = scmp.lt.s32.totalorder %s14, 1
      %s326 = scalar_select %p325, %s14, 1
      %s327 = smul.addr %s326, 24
      %s328 = smul.addr %s327, 8
      %s329 = scalar_lea.vmem %s3, %s328
      // Predicated region
      $region33: #{inception_b_forward.10} parent=31 // pred_check
        %p330 = pneg %p100
      $region34: #{inception_b_forward.10} parent=31 // pred_check_branch
        %332 = sbr.rel (%p330) target = $region36
      $region35: #{inception_b_forward.10} parent=31 // pred_region
        _
      $region36: #{inception_b_forward.10} parent=31 // pred_fallthru
        _
    $region32: #{inception_b_forward.10} parent=5 // pred_fallthru
      _
    %p333 = scmp.le.s32.totalorder 2, %s9
    // Predicated region
    $region37: #{inception_b_forward.10} parent=5 // pred_check
      %p334 = pneg %p333
    $region38: #{inception_b_forward.10} parent=5 // pred_check_branch
      %336 = sbr.rel (%p334) target = $region40
    $region39: #{inception_b_forward.10} parent=5 // pred_region
      %s337 = ssub.s32 %s9, 2
      // Predicated region
      $region41: #{inception_b_forward.10} parent=39 // pred_check
        %p338 = pneg %p106
      $region42: #{inception_b_forward.10} parent=39 // pred_check_branch
        %340 = sbr.rel (%p338) target = $region44
      $region43: #{inception_b_forward.10} parent=39 // pred_region
        %p341 = scmp.lt.s32.totalorder %s15, 1
        %s342 = scalar_select %p341, %s15, 1
        %s343 = smul.addr %s342, 24
        %s344 = smul.addr %s343, 8
        %s345 = scalar_lea.vmem %s3, %s344
      $region44: #{inception_b_forward.10} parent=39 // pred_fallthru
        _
    $region40: #{inception_b_forward.10} parent=5 // pred_fallthru
      _
  $region6: #{inception_b_forward.10} parent=0 // loop_footer
    %s13 = sadd.s32 1, %s9
  $region7: #{inception_b_forward.10} parent=0 // loop_footer_branch
    %8 = sbr.rel target = $region3
  $region8: #{inception_b_forward.10} parent=0 // loop_exit
    _

// kernel: inception_b_forward.17
$region0: #{inception_b_forward.17}
  #allocation0 [shape = 'u32[]', space=smem, size = 0x4, offset = 0x4, fixed_abs, tag = 'smem constant byte address 0x4 - core index']
  #allocation1 [shape = 'u32[144,128]{1,0:T(1,128)}', space=vmem, size = 0x12000, scoped, tag = 'internal scratch']
  %s0 = inlined_call_operand.vmem [shape: f32[2,256,4], index: 0, kind: input, shape index: {}]
  %s1 = inlined_call_operand.vmem [shape: f32[2,64,4], index: 1, kind: output, shape index: {}]
  %s2 = sld [smem:[#allocation0]]
  $region37: #{inception_b_forward.17} parent=0
    _
  %s4 = ssub.s32 1, %s2
  %s5 = scalar_select 0, %s4, %s2
  loop: start=0, step=1, limit=4
  $region2: #{inception_b_forward.17} parent=0 // loop_pre_header
    _
  $region3: #{inception_b_forward.17} parent=0 // loop_header
    %s7 = sphi 0, %s11
    %p8 = scmp.ge.s32.totalorder %s7, 4
    %s17 = sphi 0, %s19
    %s20 = sphi 0, %s17
    %s21 = sphi 0, %s20
    %s37 = sphi 0, %s21
    %s43 = sphi 0, %s45
    %s46 = sphi 0, %s43
    %s47 = sphi 0, %s46
    %s63 = sphi 0, %s47
  $region4: #{inception_b_forward.17} parent=0 // loop_header_branch
    %10 = sbr.rel (%p8) target = $region8
  $region5: #{inception_b_forward.17} parent=0 // loop_body
    %s12 = ssub.s32 %s7, 1
    %s13 = ssub.s32 %s7, 2
    %s14 = sadd.s32 %s7, 1
    %s15 = ssub.s32 %s7, %s14
    %p16 = scmp.eq.s32.totalorder %s15, 0
    %s18 = sadd.s32 %s17, 1
    %s19 = scalar_select %p16, %s17, %s18
    %p22 = pneg %p16
    %p23 = scmp.eq.s32.totalorder %s7, 1
    %p24 = por %p22, %p23
    %p25 = scmp.ne.s32.totalorder %s17, %s20
    %p26 = scmp.eq.s32.totalorder %s7, 0
    %p27 = por %p25, %p26
    %p28 = scmp.ne.s32.totalorder %s17, %s20
    %p29 = scmp.eq.s32.totalorder %s12, 1
    %p30 = por %p28, %p29
    %p31 = scmp.ne.s32.totalorder %s20, %s21
    %p32 = scmp.eq.s32.totalorder %s12, 0
    %p33 = por %p31, %p32
    %p34 = scmp.ne.s32.totalorder %s20, %s21
    %p35 = scmp.eq.s32.totalorder %s13, 1
    %p36 = por %p34, %p35
    %p38 = scmp.ne.s32.totalorder %s21, %s37
    %p39 = scmp.eq.s32.totalorder %s13, 0
    %p40 = por %p38, %p39
    %s41 = ssub.s32 %s7, %s14
    %p42 = scmp.eq.s32.totalorder %s41, 0
    %s44 = sadd.s32 %s43, 1
    %s45 = scalar_select %p42, %s43, %s44
    %p48 = pneg %p42
    %p49 = scmp.eq.s32.totalorder %s7, 1
    %p50 = por %p48, %p49
    %p51 = scmp.ne.s32.totalorder %s43, %s46
    %p52 = scmp.eq.s32.totalorder %s7, 0
    %p53 = por %p51, %p52
    %p54 = scmp.ne.s32.totalorder %s43, %s46
    %p55 = scmp.eq.s32.totalorder %s12, 1
    %p56 = por %p54, %p55
    %p57 = scmp.ne.s32.totalorder %s46, %s47
    %p58 = scmp.eq.s32.totalorder %s12, 0
    %p59 = por %p57, %p58
    %p60 = scmp.ne.s32.totalorder %s46, %s47
    %p61 = scmp.eq.s32.totalorder %s13, 1
    %p62 = por %p60, %p61
    %p64 = scmp.ne.s32.totalorder %s47, %s63
    %p65 = scmp.eq.s32.totalorder %s13, 0
    %p66 = por %p64, %p65
    %p67 = scmp.le.s32.totalorder 1, %s7
    %p68 = scmp.lt.s32.totalorder %s7, 3
    %p69 = pnand %p67, %p68
    %p70 = pneg %p69
    // Predicated region
    $region9: #{inception_b_forward.17} parent=5 // pred_check
      _
    $region10: #{inception_b_forward.17} parent=5 // pred_check_branch
      %72 = sbr.rel (%p69) target = $region12
    $region11: #{inception_b_forward.17} parent=5 // pred_region
      %s73 = ssub.s32 %s7, 1
    $region12: #{inception_b_forward.17} parent=5 // pred_fallthru
      _
    %p74 = scmp.lt.s32.totalorder %s7, 2
    // Predicated region
    $region13: #{inception_b_forward.17} parent=5 // pred_check
      %p75 = pneg %p74
    $region14: #{inception_b_forward.17} parent=5 // pred_check_branch
      %77 = sbr.rel (%p75) target = $region16
    $region15: #{inception_b_forward.17} parent=5 // pred_region
      // Predicated region
      $region17: #{inception_b_forward.17} parent=15 // pred_check
        %p78 = pneg %p27
      $region18: #{inception_b_forward.17} parent=15 // pred_check_branch
        %80 = sbr.rel (%p78) target = $region20
      $region19: #{inception_b_forward.17} parent=15 // pred_region
        %p81 = scmp.lt.s32.totalorder %s7, 1
        %s82 = scalar_select %p81, %s7, 1
        %s83 = smul.addr %s82, 32
        %s84 = smul.addr %s83, 8
        %s85 = scalar_lea.vmem %s0, %s84
      $region20: #{inception_b_forward.17} parent=15 // pred_fallthru
        _
    $region16: #{inception_b_forward.17} parent=5 // pred_fallthru
      _
    %p86 = scmp.le.s32.totalorder 1, %s7
    %p87 = scmp.lt.s32.totalorder %s7, 3
    %p88 = pnand %p86, %p87
    %p89 = pneg %p88
    // Predicated region
    $region21: #{inception_b_forward.17} parent=5 // pred_check
      _
    $region22: #{inception_b_forward.17} parent=5 // pred_check_branch
      %91 = sbr.rel (%p88) target = $region24
    $region23: #{inception_b_forward.17} parent=5 // pred_region
      %s92 = ssub.s32 %s7, 1
      %p93 = scmp.lt.s32.totalorder %s12, 1
      %s94 = scalar_select %p93, %s12, 1
      %s95 = smul.addr %s94, 32
      %s96 = smul.addr %s95, 8
      %s97 = scalar_lea.vmem %s0, %s96
      %p98 = pneg %p33
      %p99 = pneg %p30
      %p100 = pneg %p59
      %p101 = pneg %p56
      %p102 = scmp.lt.s32.totalorder %s12, 1
      %s103 = scalar_select %p102, %s12, 1
      %s104 = smul.addr %s103, 8
      %s105 = smul.addr %s104, 8
      %s106 = scalar_lea.vmem %s1, %s105
      %p107 = scmp.lt.s32.totalorder %s12, 1
      %s108 = scalar_select %p107, %s12, 1
      %s109 = smul.addr %s108, 32
      %s110 = smul.addr %s109, 8
      %s111 = scalar_lea.vmem %s0, %s110
      %p112 = scmp.lt.s32.totalorder %s12, 1
      %s113 = scalar_select %p112, %s12, 1
      %s114 = smul.addr %s113, 8
      %s115 = smul.addr %s114, 8
      %s116 = scalar_lea.vmem %s1, %s115
      %v117 = vld [vmem:[%s111] sm:$0xff]
      %v118 = vld [vmem:[%s111 + $0x8] sm:$0xff]
      %v119 = vld [vmem:[%s111 + $0x10] sm:$0xff]
      %v120 = vld [vmem:[%s111 + $0x18] sm:$0xff]
      %v121 = vld [vmem:[%s111 + $0x20] sm:$0xff]
      %v122 = vld [vmem:[%s111 + $0x28] sm:$0xff]
      %v123 = vld [vmem:[%s111 + $0x30] sm:$0xff]
      %v124 = vld [vmem:[%s111 + $0x38] sm:$0xff]
      %v125 = vld [vmem:[%s111 + $0x40] sm:$0xff]
      %v126 = vld [vmem:[%s111 + $0x48] sm:$0xff]
      %v127 = vld [vmem:[%s111 + $0x50] sm:$0xff]
      %v128 = vld [vmem:[%s111 + $0x58] sm:$0xff]
      %v129 = vld [vmem:[%s111 + $0x60] sm:$0xff]
      %v130 = vld [vmem:[%s111 + $0x68] sm:$0xff]
      %v131 = vld [vmem:[%s111 + $0x70] sm:$0xff]
      %v132 = vld [vmem:[%s111 + $0x78] sm:$0xff]
      %v133 = vmax.f32 %v117, %v125
      %v134 = vmax.f32 %v118, %v126
      %v135 = vmax.f32 %v119, %v127
      %v136 = vmax.f32 %v120, %v128
      %v137 = vmax.f32 %v121, %v129
      %v138 = vmax.f32 %v122, %v130
      %v139 = vmax.f32 %v123, %v131
      %v140 = vmax.f32 %v124, %v132
      %v141 = vld [vmem:[%s111 + $0x1] sm:$0xff]
      %v142 = vld [vmem:[%s111 + $0x9] sm:$0xff]
      %v143 = vld [vmem:[%s111 + $0x11] sm:$0xff]
      %v144 = vld [vmem:[%s111 + $0x19] sm:$0xff]
      %v145 = vld [vmem:[%s111 + $0x21] sm:$0xff]
      %v146 = vld [vmem:[%s111 + $0x29] sm:$0xff]
      %v147 = vld [vmem:[%s111 + $0x31] sm:$0xff]
      %v148 = vld [vmem:[%s111 + $0x39] sm:$0xff]
      %v149 = vmax.f32 %v133, %v141
      %v150 = vmax.f32 %v134, %v142
      %v151 = vmax.f32 %v135, %v143
      %v152 = vmax.f32 %v136, %v144
      %v153 = vmax.f32 %v137, %v145
      %v154 = vmax.f32 %v138, %v146
      %v155 = vmax.f32 %v139, %v147
      %v156 = vmax.f32 %v140, %v148
      %v157 = vld [vmem:[%s111 + $0x80] sm:$0xff]
      %v158 = vld [vmem:[%s111 + $0x88] sm:$0xff]
      %v159 = vld [vmem:[%s111 + $0x90] sm:$0xff]
      %v160 = vld [vmem:[%s111 + $0x98] sm:$0xff]
      %v161 = vld [vmem:[%s111 + $0xa0] sm:$0xff]
      %v162 = vld [vmem:[%s111 + $0xa8] sm:$0xff]
      %v163 = vld [vmem:[%s111 + $0xb0] sm:$0xff]
      %v164 = vld [vmem:[%s111 + $0xb8] sm:$0xff]
      %v165 = vmax.f32 %v149, %v157
      %v166 = vmax.f32 %v150, %v158
      %v167 = vmax.f32 %v151, %v159
      %v168 = vmax.f32 %v152, %v160
      %v169 = vmax.f32 %v153, %v161
      %v170 = vmax.f32 %v154, %v162
      %v171 = vmax.f32 %v155, %v163
      %v172 = vmax.f32 %v156, %v164
      %v173 = vld [vmem:[%s111 + $0xc0] sm:$0xff]
      %v174 = vld [vmem:[%s111 + $0xc8] sm:$0xff]
      %v175 = vld [vmem:[%s111 + $0xd0] sm:$0xff]
      %v176 = vld [vmem:[%s111 + $0xd8] sm:$0xff]
      %v177 = vld [vmem:[%s111 + $0xe0] sm:$0xff]
      %v178 = vld [vmem:[%s111 + $0xe8] sm:$0xff]
      %v179 = vld [vmem:[%s111 + $0xf0] sm:$0xff]
      %v180 = vld [vmem:[%s111 + $0xf8] sm:$0xff]
      %v181 = vmax.f32 %v165, %v173
      %v182 = vmax.f32 %v166, %v174
      %v183 = vmax.f32 %v167, %v175
      %v184 = vmax.f32 %v168, %v176
      %v185 = vmax.f32 %v169, %v177
      %v186 = vmax.f32 %v170, %v178
      %v187 = vmax.f32 %v171, %v179
      %v188 = vmax.f32 %v172, %v180
      %v189 = vld [vmem:[%s111 + $0x81] sm:$0xff]
      %v190 = vld [vmem:[%s111 + $0x89] sm:$0xff]
      %v191 = vld [vmem:[%s111 + $0x91] sm:$0xff]
      %v192 = vld [vmem:[%s111 + $0x99] sm:$0xff]
      %v193 = vld [vmem:[%s111 + $0xa1] sm:$0xff]
      %v194 = vld [vmem:[%s111 + $0xa9] sm:$0xff]
      %v195 = vld [vmem:[%s111 + $0xb1] sm:$0xff]
      %v196 = vld [vmem:[%s111 + $0xb9] sm:$0xff]
      %v197 = vmax.f32 %v181, %v189
      %v198 = vmax.f32 %v182, %v190
      %v199 = vmax.f32 %v183, %v191
      %v200 = vmax.f32 %v184, %v192
      %v201 = vmax.f32 %v185, %v193
      %v202 = vmax.f32 %v186, %v194
      %v203 = vmax.f32 %v187, %v195
      %v204 = vmax.f32 %v188, %v196
      %v205 = vmax.f32 %v197, %v118
      %v206 = vmax.f32 %v198, %v119
      %v207 = vmax.f32 %v199, %v120
      %v208 = vmax.f32 %v200, %v121
      %v209 = vmax.f32 %v201, %v122
      %v210 = vmax.f32 %v202, %v123
      %v211 = vmax.f32 %v203, %v124
      %v212 = vmax.f32 %v204, %v125
      %v213 = vmax.f32 %v205, %v126
      %v214 = vmax.f32 %v206, %v127
      %v215 = vmax.f32 %v207, %v128
      %v216 = vmax.f32 %v208, %v129
      %v217 = vmax.f32 %v209, %v130
      %v218 = vmax.f32 %v210, %v131
      %v219 = vmax.f32 %v211, %v132
      %v220 = vmax.f32 %v212, %v157
      %v221 = vld [vmem:[%s111 + $0x41] sm:$0xff]
      %v222 = vmax.f32 %v213, %v142
      %v223 = vmax.f32 %v214, %v143
      %v224 = vmax.f32 %v215, %v144
      %v225 = vmax.f32 %v216, %v145
      %v226 = vmax.f32 %v217, %v146
      %v227 = vmax.f32 %v218, %v147
      %v228 = vmax.f32 %v219, %v148
      %v229 = vmax.f32 %v220, %v221
      %vm230 = vcmask 31744
      %231 = vst.msk [vmem:[%s116] sm:$0xff] %vm230, %v222
      %232 = vst.msk [vmem:[%s116 + $0x8] sm:$0xff] %vm230, %v223
      %233 = vst.msk [vmem:[%s116 + $0x10] sm:$0xff] %vm230, %v224
      %234 = vst.msk [vmem:[%s116 + $0x18] sm:$0xff] %vm230, %v225
      %235 = vst.msk [vmem:[%s116 + $0x20] sm:$0xff] %vm230, %v226
      %236 = vst.msk [vmem:[%s116 + $0x28] sm:$0xff] %vm230, %v227
      %237 = vst.msk [vmem:[%s116 + $0x30] sm:$0xff] %vm230, %v228
      %238 = vst.msk [vmem:[%s116 + $0x38] sm:$0xff] %vm230, %v229
      %p239 = scmp.lt.s32.totalorder %s12, 1
      %s240 = scalar_select %p239, %s12, 1
      %s241 = smul.addr %s240, 8
      %s242 = smul.addr %s241, 8
      %s243 = scalar_lea.vmem %s1, %s242
      // Predicated region
      $region25: #{inception_b_forward.17} parent=23 // pred_check
        %p244 = pneg %p56
      $region26: #{inception_b_forward.17} parent=23 // pred_check_branch
        %246 = sbr.rel (%p244) target = $region28
      $region27: #{inception_b_forward.17} parent=23 // pred_region
        _
      $region28: #{inception_b_forward.17} parent=23 // pred_fallthru
        _
    $region24: #{inception_b_forward.17} parent=5 // pred_fallthru
      _
    %p247 = scmp.le.s32.totalorder 2, %s7
    // Predicated region
    $region29: #{inception_b_forward.17} parent=5 // pred_check
      %p248 = pneg %p247
    $region30: #{inception_b_forward.17} parent=5 // pred_check_branch
      %250 = sbr.rel (%p248) target = $region32
    $region31: #{inception_b_forward.17} parent=5 // pred_region
      %s251 = ssub.s32 %s7, 2
      // Predicated region
      $region33: #{inception_b_forward.17} parent=31 // pred_check
        %p252 = pneg %p62
      $region34: #{inception_b_forward.17} parent=31 // pred_check_branch
        %254 = sbr.rel (%p252) target = $region36
      $region35: #{inception_b_forward.17} parent=31 // pred_region
        %p255 = scmp.lt.s32.totalorder %s13, 1
        %s256 = scalar_select %p255, %s13, 1
        %s257 = smul.addr %s256, 8
        %s258 = smul.addr %s257, 8
        %s259 = scalar_lea.vmem %s1, %s258
      $region36: #{inception_b_forward.17} parent=31 // pred_fallthru
        _
    $region32: #{inception_b_forward.17} parent=5 // pred_fallthru
      _
  $region6: #{inception_b_forward.17} parent=0 // loop_footer
    %s11 = sadd.s32 1, %s7
  $region7: #{inception_b_forward.17} parent=0 // loop_footer_branch
    %6 = sbr.rel target = $region3
  $region8: #{inception_b_forward.17} parent=0 // loop_exit
    _

// kernel: inception_b_forward.9
$region0: #{inception_b_forward.9}
  #allocation0 [shape = 'u32[]', space=smem, size = 0x4, offset = 0x4, fixed_abs, tag = 'smem constant byte address 0x4 - core index']
  #allocation1 [shape = 'u32[144,128]{1,0:T(1,128)}', space=vmem, size = 0x12000, scoped, tag = 'internal scratch']
  %s0 = inlined_call_operand.vmem [shape: bf16[2,256,4], index: 0, kind: input, shape index: {}]
  %s1 = inlined_call_operand.vmem [shape: bf16[36,384], index: 1, kind: input, shape index: {}]
  %s2 = inlined_call_operand.vmem [shape: f32[2,64,384], index: 2, kind: output, shape index: {0}]
  %s3 = inlined_call_operand.vmem [shape: f32[2,2,384], index: 3, kind: output, shape index: {1}]
  %4 = xla_tuple %s2, %s3
  %s5 = sld [smem:[#allocation0]]
  $region49: #{inception_b_forward.9} parent=0
    _
  %s7 = ssub.s32 1, %s5
  %s8 = scalar_select 0, %s7, %s5
  loop: start=0, step=1, limit=4
  $region2: #{inception_b_forward.9} parent=0 // loop_pre_header
    _
  $region3: #{inception_b_forward.9} parent=0 // loop_header
    %s10 = sphi 0, %s14
    %p11 = scmp.ge.s32.totalorder %s10, 4
    %s20 = sphi 0, %s22
    %s23 = sphi 0, %s20
    %s24 = sphi 0, %s23
    %s40 = sphi 0, %s24
    %s44 = sphi 0, %s44
    %s46 = sphi 0, %s44
    %s47 = sphi 0, %s46
    %s61 = sphi 0, %s47
    %s67 = sphi 0, %s69
    %s70 = sphi 0, %s67
    %s71 = sphi 0, %s70
    %s87 = sphi 0, %s71
    %s93 = sphi 0, %s95
    %s96 = sphi 0, %s93
    %s97 = sphi 0, %s96
    %s113 = sphi 0, %s97
  $region4: #{inception_b_forward.9} parent=0 // loop_header_branch
    %13 = sbr.rel (%p11) target = $region8
  $region5: #{inception_b_forward.9} parent=0 // loop_body
    %s15 = ssub.s32 %s10, 1
    %s16 = ssub.s32 %s10, 2
    %s17 = sadd.s32 %s10, 1
    %s18 = ssub.s32 %s10, %s17
    %p19 = scmp.eq.s32.totalorder %s18, 0
    %s21 = sadd.s32 %s20, 1
    %s22 = scalar_select %p19, %s20, %s21
    %p25 = pneg %p19
    %p26 = scmp.eq.s32.totalorder %s10, 1
    %p27 = por %p25, %p26
    %p28 = scmp.ne.s32.totalorder %s20, %s23
    %p29 = scmp.eq.s32.totalorder %s10, 0
    %p30 = por %p28, %p29
    %p31 = scmp.ne.s32.totalorder %s20, %s23
    %p32 = scmp.eq.s32.totalorder %s15, 1
    %p33 = por %p31, %p32
    %p34 = scmp.ne.s32.totalorder %s23, %s24
    %p35 = scmp.eq.s32.totalorder %s15, 0
    %p36 = por %p34, %p35
    %p37 = scmp.ne.s32.totalorder %s23, %s24
    %p38 = scmp.eq.s32.totalorder %s16, 1
    %p39 = por %p37, %p38
    %p41 = scmp.ne.s32.totalorder %s24, %s40
    %p42 = scmp.eq.s32.totalorder %s16, 0
    %p43 = por %p41, %p42
    %s45 = sadd.s32 %s44, 1
    %p48 = scmp.eq.s32.totalorder %s10, 1
    %p49 = scmp.ne.s32.totalorder %s44, %s46
    %p50 = scmp.eq.s32.totalorder %s10, 0
    %p51 = por %p49, %p50
    %p52 = scmp.ne.s32.totalorder %s44, %s46
    %p53 = scmp.eq.s32.totalorder %s15, 1
    %p54 = por %p52, %p53
    %p55 = scmp.ne.s32.totalorder %s46, %s47
    %p56 = scmp.eq.s32.totalorder %s15, 0
    %p57 = por %p55, %p56
    %p58 = scmp.ne.s32.totalorder %s46, %s47
    %p59 = scmp.eq.s32.totalorder %s16, 1
    %p60 = por %p58, %p59
    %p62 = scmp.ne.s32.totalorder %s47, %s61
    %p63 = scmp.eq.s32.totalorder %s16, 0
    %p64 = por %p62, %p63
    %s65 = ssub.s32 %s10, %s17
    %p66 = scmp.eq.s32.totalorder %s65, 0
    %s68 = sadd.s32 %s67, 1
    %s69 = scalar_select %p66, %s67, %s68
    %p72 = pneg %p66
    %p73 = scmp.eq.s32.totalorder %s10, 1
    %p74 = por %p72, %p73
    %p75 = scmp.ne.s32.totalorder %s67, %s70
    %p76 = scmp.eq.s32.totalorder %s10, 0
    %p77 = por %p75, %p76
    %p78 = scmp.ne.s32.totalorder %s67, %s70
    %p79 = scmp.eq.s32.totalorder %s15, 1
    %p80 = por %p78, %p79
    %p81 = scmp.ne.s32.totalorder %s70, %s71
    %p82 = scmp.eq.s32.totalorder %s15, 0
    %p83 = por %p81, %p82
    %p84 = scmp.ne.s32.totalorder %s70, %s71
    %p85 = scmp.eq.s32.totalorder %s16, 1
    %p86 = por %p84, %p85
    %p88 = scmp.ne.s32.totalorder %s71, %s87
    %p89 = scmp.eq.s32.totalorder %s16, 0
    %p90 = por %p88, %p89
    %s91 = ssub.s32 %s10, %s17
    %p92 = scmp.eq.s32.totalorder %s91, 0
    %s94 = sadd.s32 %s93, 1
    %s95 = scalar_select %p92, %s93, %s94
    %p98 = pneg %p92
    %p99 = scmp.eq.s32.totalorder %s10, 1
    %p100 = por %p98, %p99
    %p101 = scmp.ne.s32.totalorder %s93, %s96
    %p102 = scmp.eq.s32.totalorder %s10, 0
    %p103 = por %p101, %p102
    %p104 = scmp.ne.s32.totalorder %s93, %s96
    %p105 = scmp.eq.s32.totalorder %s15, 1
    %p106 = por %p104, %p105
    %p107 = scmp.ne.s32.totalorder %s96, %s97
    %p108 = scmp.eq.s32.totalorder %s15, 0
    %p109 = por %p107, %p108
    %p110 = scmp.ne.s32.totalorder %s96, %s97
    %p111 = scmp.eq.s32.totalorder %s16, 1
    %p112 = por %p110, %p111
    %p114 = scmp.ne.s32.totalorder %s97, %s113
    %p115 = scmp.eq.s32.totalorder %s16, 0
    %p116 = por %p114, %p115
    %p117 = scmp.le.s32.totalorder 1, %s10
    %p118 = scmp.lt.s32.totalorder %s10, 3
    %p119 = pnand %p117, %p118
    %p120 = pneg %p119
    // Predicated region
    $region9: #{inception_b_forward.9} parent=5 // pred_check
      _
    $region10: #{inception_b_forward.9} parent=5 // pred_check_branch
      %122 = sbr.rel (%p119) target = $region12
    $region11: #{inception_b_forward.9} parent=5 // pred_region
      %s123 = ssub.s32 %s10, 1
      // Predicated region
      $region13: #{inception_b_forward.9} parent=11 // pred_check
        %p124 = pneg %p57
      $region14: #{inception_b_forward.9} parent=11 // pred_check_branch
        %126 = sbr.rel (%p124) target = $region16
      $region15: #{inception_b_forward.9} parent=11 // pred_region
        _
      $region16: #{inception_b_forward.9} parent=11 // pred_fallthru
        _
    $region12: #{inception_b_forward.9} parent=5 // pred_fallthru
      _
    %p127 = scmp.lt.s32.totalorder %s10, 2
    // Predicated region
    $region17: #{inception_b_forward.9} parent=5 // pred_check
      %p128 = pneg %p127
    $region18: #{inception_b_forward.9} parent=5 // pred_check_branch
      %130 = sbr.rel (%p128) target = $region20
    $region19: #{inception_b_forward.9} parent=5 // pred_region
      // Predicated region
      $region21: #{inception_b_forward.9} parent=19 // pred_check
        %p131 = pneg %p30
      $region22: #{inception_b_forward.9} parent=19 // pred_check_branch
        %133 = sbr.rel (%p131) target = $region24
      $region23: #{inception_b_forward.9} parent=19 // pred_region
        %p134 = scmp.lt.s32.totalorder %s10, 1
        %s135 = scalar_select %p134, %s10, 1
        %s136 = smul.addr %s135, 32
        %s137 = smul.addr %s136, 4
        %s138 = scalar_lea.vmem %s0, %s137
      $region24: #{inception_b_forward.9} parent=19 // pred_fallthru
        _
    $region20: #{inception_b_forward.9} parent=5 // pred_fallthru
      _
    %p139 = scmp.le.s32.totalorder 1, %s10
    %p140 = scmp.lt.s32.totalorder %s10, 3
    %p141 = pnand %p139, %p140
    %p142 = pneg %p141
    // Predicated region
    $region25: #{inception_b_forward.9} parent=5 // pred_check
      _
    $region26: #{inception_b_forward.9} parent=5 // pred_check_branch
      %144 = sbr.rel (%p141) target = $region28
    $region27: #{inception_b_forward.9} parent=5 // pred_region
      %s145 = ssub.s32 %s10, 1
      %p146 = scmp.lt.s32.totalorder %s15, 1
      %s147 = scalar_select %p146, %s15, 1
      %s148 = smul.addr %s147, 32
      %s149 = smul.addr %s148, 4
      %s150 = scalar_lea.vmem %s0, %s149
      %p151 = pneg %p36
      %p152 = pneg %p33
      %p153 = pneg %p57
      %p154 = pneg %p54
      %p155 = pneg %p83
      %p156 = pneg %p80
      %p157 = scmp.lt.s32.totalorder %s15, 1
      %s158 = scalar_select %p157, %s15, 1
      %s159 = smul.addr %s158, 24
      %s160 = smul.addr %s159, 8
      %s161 = scalar_lea.vmem %s2, %s160
      %p162 = pneg %p109
      %p163 = pneg %p106
      %p164 = scmp.lt.s32.totalorder %s15, 1
      %s165 = scalar_select %p164, %s15, 1
      %s166 = smul.addr %s165, 3
      %s167 = smul.addr %s166, 2
      %s168 = scalar_lea.vmem %s3, %s167
      %p169 = scmp.lt.s32.totalorder %s15, 1
      %s170 = scalar_select %p169, %s15, 1
      %s171 = smul.addr %s170, 32
      %s172 = smul.addr %s171, 4
      %s173 = scalar_lea.vmem %s0, %s172
      %p174 = scmp.lt.s32.totalorder %s15, 1
      %s175 = scalar_select %p174, %s15, 1
      %s176 = smul.addr %s175, 24
      %s177 = smul.addr %s176, 8
      %s178 = scalar_lea.vmem %s2, %s177
      %p179 = scmp.lt.s32.totalorder %s15, 1
      %s180 = scalar_select %p179, %s15, 1
      %s181 = smul.addr %s180, 3
      %s182 = smul.addr %s181, 2
      %s183 = scalar_lea.vmem %s3, %s182
      %v185 = vld [vmem:[%s173] sm:$0xf]
      %v186 = vld [vmem:[%s173 + $0x4] sm:$0xf]
      %v187 = vld [vmem:[%s173 + $0x8] sm:$0xf]
      %v188 = vld [vmem:[%s173 + $0xc] sm:$0xf]
      %v189 = vld [vmem:[%s173 + $0x10] sm:$0xf]
      %v190 = vld [vmem:[%s173 + $0x14] sm:$0xf]
      %v191 = vld [vmem:[%s173 + $0x18] sm:$0xf]
      %v192 = vld [vmem:[%s173 + $0x1c] sm:$0xf]
      %v193 = vld [vmem:[%s173 + $0x20] sm:$0xf]
      %v194 = vld [vmem:[%s173 + $0x24] sm:$0xf]
      %v195 = vld [vmem:[%s173 + $0x28] sm:$0xf]
      %v196 = vld [vmem:[%s173 + $0x2c] sm:$0xf]
      %v197 = vld [vmem:[%s173 + $0x30] sm:$0xf]
      %v198 = vld [vmem:[%s173 + $0x34] sm:$0xf]
      %v199 = vld [vmem:[%s173 + $0x38] sm:$0xf]
      %v200 = vld [vmem:[%s173 + $0x3c] sm:$0xf]
      %v201 = vld [vmem:[%s173 + $0x20] sm:$0x1]
      %v202 = vld [vmem:[%s173 + $0x40] sm:$0xf]
      %v203 = vld [vmem:[%s173 + $0x44] sm:$0xf]
      %v204 = vld [vmem:[%s173 + $0x48] sm:$0xf]
      %v205 = vld [vmem:[%s173 + $0x4c] sm:$0xf]
      %v206 = vld [vmem:[%s173 + $0x50] sm:$0xf]
      %v207 = vld [vmem:[%s173 + $0x54] sm:$0xf]
      %v208 = vld [vmem:[%s173 + $0x58] sm:$0xf]
      %v209 = vld [vmem:[%s173 + $0x5c] sm:$0xf]
      %v210 = vld [vmem:[%s173 + $0x60] sm:$0xf]
      %v211 = vld [vmem:[%s173 + $0x64] sm:$0xf]
      %v212 = vld [vmem:[%s173 + $0x68] sm:$0xf]
      %v213 = vld [vmem:[%s173 + $0x6c] sm:$0xf]
      %v214 = vld [vmem:[%s173 + $0x70] sm:$0xf]
      %v215 = vld [vmem:[%s173 + $0x74] sm:$0xf]
      %v216 = vld [vmem:[%s173 + $0x78] sm:$0xf]
      %v217 = vld [vmem:[%s173 + $0x7c] sm:$0xf]
      %v218 = vld [vmem:[%s173 + $0x60] sm:$0x1]
      %v219 = vld [vmem:[%s173 + $0x24] sm:$0x1]
      %v228 = vunpack.c.l.b16 %v185
      %v229 = vunpack.c.l.b16 %v186
      %v230 = vunpack.c.l.b16 %v187
      %v231 = vunpack.c.l.b16 %v188
      %v232 = vunpack.c.l.b16 %v189
      %v233 = vunpack.c.l.b16 %v190
      %v234 = vunpack.c.l.b16 %v191
      %v235 = vunpack.c.l.b16 %v192
      %v236 = vpack.c.b16 %v229, %v228
      %v237 = vpack.c.b16 %v231, %v230
      %v238 = vpack.c.b16 %v233, %v232
      %v239 = vpack.c.b16 %v235, %v234
      %v248 = vunpack.c.l.b16 %v193
      %v249 = vunpack.c.l.b16 %v194
      %v250 = vunpack.c.l.b16 %v195
      %v251 = vunpack.c.l.b16 %v196
      %v252 = vunpack.c.l.b16 %v197
      %v253 = vunpack.c.l.b16 %v198
      %v254 = vunpack.c.l.b16 %v199
      %v255 = vunpack.c.l.b16 %v200
      %v256 = vpack.c.b16 %v249, %v248
      %v257 = vpack.c.b16 %v251, %v250
      %v258 = vpack.c.b16 %v253, %v252
      %v259 = vpack.c.b16 %v255, %v254
      %260 = vrot.lane.b32.xlu0 %v256, 4
      %v261 = vpop.permute.xlu0 %260
      %262 = vrot.lane.b32.xlu0 %v257, 4
      %v263 = vpop.permute.xlu0 %262
      %264 = vrot.lane.b32.xlu0 %v258, 4
      %v265 = vpop.permute.xlu0 %264
      %266 = vrot.lane.b32.xlu0 %v259, 4
      %v267 = vpop.permute.xlu0 %266
      %v269 = vunpack.c.l.b16 %v201
      %v270 = vpack.c.b16 %v269, %v269
      %vm271 = vsmask.f32 7424
      %v273 = vshrl.u32 %v236, 16
      %v275 = vshll.u32 %v236, 16
      %v277 = vrot.slane %v275, 1
      %v278 = vor.u32 %v273, %v277
      %v280 = vshll.u32 %v237, 16
      %v282 = vrot.slane %v280, 1
      %v283 = vsel %vm271, %v278, %v282
      %v284 = vshrl.u32 %v237, 16
      %v286 = vor.u32 %v284, %v282
      %v288 = vshll.u32 %v238, 16
      %v290 = vrot.slane %v288, 1
      %v291 = vsel %vm271, %v286, %v290
      %v292 = vshrl.u32 %v238, 16
      %v294 = vor.u32 %v292, %v290
      %v296 = vshll.u32 %v239, 16
      %v298 = vrot.slane %v296, 1
      %v299 = vsel %vm271, %v294, %v298
      %v300 = vshrl.u32 %v239, 16
      %v302 = vor.u32 %v300, %v298
      %v304 = vshll.u32 %v270, 16
      %v306 = vrot.slane %v304, 1
      %v307 = vsel %vm271, %v302, %v306
      %308 = vrot.lane.b32.xlu0 %v283, 8
      %v309 = vpop.permute.xlu0 %308
      %310 = vrot.lane.b32.xlu0 %v291, 8
      %v311 = vpop.permute.xlu0 %310
      %312 = vrot.lane.b32.xlu0 %v299, 8
      %v313 = vpop.permute.xlu0 %312
      %314 = vrot.lane.b32.xlu0 %v307, 8
      %v315 = vpop.permute.xlu0 %314
      %v324 = vunpack.c.l.b16 %v202
      %v325 = vunpack.c.l.b16 %v203
      %v326 = vunpack.c.l.b16 %v204
      %v327 = vunpack.c.l.b16 %v205
      %v328 = vunpack.c.l.b16 %v206
      %v329 = vunpack.c.l.b16 %v207
      %v330 = vunpack.c.l.b16 %v208
      %v331 = vunpack.c.l.b16 %v209
      %v332 = vpack.c.b16 %v325, %v324
      %v333 = vpack.c.b16 %v327, %v326
      %v334 = vpack.c.b16 %v329, %v328
      %v335 = vpack.c.b16 %v331, %v330
      %336 = vrot.lane.b32.xlu0 %v332, 12
      %v337 = vpop.permute.xlu0 %336
      %338 = vrot.lane.b32.xlu0 %v333, 12
      %v339 = vpop.permute.xlu0 %338
      %340 = vrot.lane.b32.xlu0 %v334, 12
      %v341 = vpop.permute.xlu0 %340
      %342 = vrot.lane.b32.xlu0 %v335, 12
      %v343 = vpop.permute.xlu0 %342
      %v352 = vunpack.c.l.b16 %v210
      %v353 = vunpack.c.l.b16 %v211
      %v354 = vunpack.c.l.b16 %v212
      %v355 = vunpack.c.l.b16 %v213
      %v356 = vunpack.c.l.b16 %v214
      %v357 = vunpack.c.l.b16 %v215
      %v358 = vunpack.c.l.b16 %v216
      %v359 = vunpack.c.l.b16 %v217
      %v360 = vpack.c.b16 %v353, %v352
      %v361 = vpack.c.b16 %v355, %v354
      %v362 = vpack.c.b16 %v357, %v356
      %v363 = vpack.c.b16 %v359, %v358
      %364 = vrot.lane.b32.xlu0 %v360, 16
      %v365 = vpop.permute.xlu0 %364
      %366 = vrot.lane.b32.xlu0 %v361, 16
      %v367 = vpop.permute.xlu0 %366
      %368 = vrot.lane.b32.xlu0 %v362, 16
      %v369 = vpop.permute.xlu0 %368
      %370 = vrot.lane.b32.xlu0 %v363, 16
      %v371 = vpop.permute.xlu0 %370
      %v373 = vunpack.c.l.b16 %v218
      %v374 = vpack.c.b16 %v373, %v373
      %v376 = vshrl.u32 %v332, 16
      %v378 = vshll.u32 %v332, 16
      %v380 = vrot.slane %v378, 1
      %v381 = vor.u32 %v376, %v380
      %v383 = vshll.u32 %v333, 16
      %v385 = vrot.slane %v383, 1
      %v386 = vsel %vm271, %v381, %v385
      %v387 = vshrl.u32 %v333, 16
      %v389 = vor.u32 %v387, %v385
      %v391 = vshll.u32 %v334, 16
      %v393 = vrot.slane %v391, 1
      %v394 = vsel %vm271, %v389, %v393
      %v395 = vshrl.u32 %v334, 16
      %v397 = vor.u32 %v395, %v393
      %v399 = vshll.u32 %v335, 16
      %v401 = vrot.slane %v399, 1
      %v402 = vsel %vm271, %v397, %v401
      %v403 = vshrl.u32 %v335, 16
      %v405 = vor.u32 %v403, %v401
      %v407 = vshll.u32 %v374, 16
      %v409 = vrot.slane %v407, 1
      %v410 = vsel %vm271, %v405, %v409
      %411 = vrot.lane.b32.xlu0 %v386, 20
      %v412 = vpop.permute.xlu0 %411
      %413 = vrot.lane.b32.xlu0 %v394, 20
      %v414 = vpop.permute.xlu0 %413
      %415 = vrot.lane.b32.xlu0 %v402, 20
      %v416 = vpop.permute.xlu0 %415
      %417 = vrot.lane.b32.xlu0 %v410, 20
      %v418 = vpop.permute.xlu0 %417
      %v419 = vpack.c.b16 %v230, %v229
      %v420 = vpack.c.b16 %v232, %v231
      %v421 = vpack.c.b16 %v234, %v233
      %v422 = vpack.c.b16 %v248, %v235
      %423 = vrot.lane.b32.xlu0 %v419, 24
      %v424 = vpop.permute.xlu0 %423
      %425 = vrot.lane.b32.xlu0 %v420, 24
      %v426 = vpop.permute.xlu0 %425
      %427 = vrot.lane.b32.xlu0 %v421, 24
      %v428 = vpop.permute.xlu0 %427
      %429 = vrot.lane.b32.xlu0 %v422, 24
      %v430 = vpop.permute.xlu0 %429
      %v431 = vpack.c.b16 %v250, %v249
      %v432 = vpack.c.b16 %v252, %v251
      %v433 = vpack.c.b16 %v254, %v253
      %v434 = vpack.c.b16 %v324, %v255
      %435 = vrot.lane.b32.xlu0 %v431, 28
      %v436 = vpop.permute.xlu0 %435
      %437 = vrot.lane.b32.xlu0 %v432, 28
      %v438 = vpop.permute.xlu0 %437
      %439 = vrot.lane.b32.xlu0 %v433, 28
      %v440 = vpop.permute.xlu0 %439
      %441 = vrot.lane.b32.xlu0 %v434, 28
      %v442 = vpop.permute.xlu0 %441
      %v444 = vunpack.c.l.b16 %v219
      %v445 = vpack.c.b16 %v444, %v444
      %v447 = vshrl.u32 %v419, 16
      %v449 = vshll.u32 %v419, 16
      %v451 = vrot.slane %v449, 1
      %v452 = vor.u32 %v447, %v451
      %v454 = vshll.u32 %v420, 16
      %v456 = vrot.slane %v454, 1
      %v457 = vsel %vm271, %v452, %v456
      %v458 = vshrl.u32 %v420, 16
      %v460 = vor.u32 %v458, %v456
      %v462 = vshll.u32 %v421, 16
      %v464 = vrot.slane %v462, 1
      %v465 = vsel %vm271, %v460, %v464
      %v466 = vshrl.u32 %v421, 16
      %v468 = vor.u32 %v466, %v464
      %v470 = vshll.u32 %v422, 16
      %v472 = vrot.slane %v470, 1
      %v473 = vsel %vm271, %v468, %v472
      %v474 = vshrl.u32 %v422, 16
      %v476 = vor.u32 %v474, %v472
      %v478 = vshll.u32 %v445, 16
      %v480 = vrot.slane %v478, 1
      %v481 = vsel %vm271, %v476, %v480
      %482 = vrot.lane.b32.xlu0 %v457, 32
      %v483 = vpop.permute.xlu0 %482
      %484 = vrot.lane.b32.xlu0 %v465, 32
      %v485 = vpop.permute.xlu0 %484
      %486 = vrot.lane.b32.xlu0 %v473, 32
      %v487 = vpop.permute.xlu0 %486
      %488 = vrot.lane.b32.xlu0 %v481, 32
      %v489 = vpop.permute.xlu0 %488
      %vm490 = vcmask 31744
      %v492 = vsel %vm490, %v236, %v261
      %v494 = vsel %vm490, %v237, %v263
      %v496 = vsel %vm490, %v238, %v265
      %v498 = vsel %vm490, %v239, %v267
      %vm499 = vcmask 64512
      %v501 = vsel %vm499, %v492, %v309
      %v503 = vsel %vm499, %v494, %v311
      %v505 = vsel %vm499, %v496, %v313
      %v507 = vsel %vm499, %v498, %v315
      %vm508 = vcmask 97280
      %v510 = vsel %vm508, %v501, %v337
      %v512 = vsel %vm508, %v503, %v339
      %v514 = vsel %vm508, %v505, %v341
      %v516 = vsel %vm508, %v507, %v343
      %vm517 = vcmask 130048
      %v519 = vsel %vm517, %v510, %v365
      %v521 = vsel %vm517, %v512, %v367
      %v523 = vsel %vm517, %v514, %v369
      %v525 = vsel %vm517, %v516, %v371
      %vm526 = vcmask 162816
      %v528 = vsel %vm526, %v519, %v412
      %v530 = vsel %vm526, %v521, %v414
      %v532 = vsel %vm526, %v523, %v416
      %v534 = vsel %vm526, %v525, %v418
      %vm535 = vcmask 195584
      %v537 = vsel %vm535, %v528, %v424
      %v539 = vsel %vm535, %v530, %v426
      %v541 = vsel %vm535, %v532, %v428
      %v543 = vsel %vm535, %v534, %v430
      %vm544 = vcmask 228352
      %v546 = vsel %vm544, %v537, %v436
      %v548 = vsel %vm544, %v539, %v438
      %v550 = vsel %vm544, %v541, %v440
      %v552 = vsel %vm544, %v543, %v442
      %vm553 = vcmask 261120
      %v555 = vsel %vm553, %v546, %v483
      %v557 = vsel %vm553, %v548, %v485
      %v559 = vsel %vm553, %v550, %v487
      %v561 = vsel %vm553, %v552, %v489
      %v562 = vld [vmem:[%s1] sm:$0xff]
      %v563 = vld [vmem:[%s1 + $0x8] sm:$0xf]
      %v564 = vld [vmem:[%s1 + $0xc] sm:$0xff]
      %v565 = vld [vmem:[%s1 + $0x14] sm:$0xf]
      %v566 = vld [vmem:[%s1 + $0x18] sm:$0xff]
      %v567 = vld [vmem:[%s1 + $0x20] sm:$0xf]
      %v568 = vld [vmem:[%s1 + $0x24] sm:$0xff]
      %v569 = vld [vmem:[%s1 + $0x2c] sm:$0xf]
      %v570 = vld [vmem:[%s1 + $0x30] sm:$0x33]
      %v571 = vld [vmem:[%s1 + $0x38] sm:$0x3]
      %v582 = vunpack.c.l.b16 %v562
      %v583 = vunpack.c.h.b16 %v562
      %v584 = vunpack.c.l.b16 %v563
      %v585 = vunpack.c.l.b16 %v564
      %v586 = vunpack.c.h.b16 %v564
      %v587 = vunpack.c.l.b16 %v565
      %v588 = vunpack.c.l.b16 %v566
      %v589 = vunpack.c.h.b16 %v566
      %v590 = vunpack.c.l.b16 %v567
      %v591 = vunpack.c.l.b16 %v568
      %v592 = vunpack.c.h.b16 %v568
      %v593 = vunpack.c.l.b16 %v569
      %v594 = vunpack.c.l.b16 %v570
      %v595 = vunpack.c.h.b16 %v570
      %v596 = vunpack.c.l.b16 %v571
      %v597 = vpack.c.b16 %v585, %v582
      %v598 = vpack.c.b16 %v586, %v583
      %v599 = vpack.c.b16 %v587, %v584
      %v600 = vpack.c.b16 %v591, %v588
      %v601 = vpack.c.b16 %v592, %v589
      %v602 = vpack.c.b16 %v593, %v590
      %v603 = vpack.c.b16 %v594, %v594
      %v604 = vpack.c.b16 %v595, %v595
      %v605 = vpack.c.b16 %v596, %v596
      %vm612 = vcmask 293888
      %v613 = vsel %vm612, %v555, 0
      %v615 = vsel %vm612, %v557, 0
      %v617 = vsel %vm612, %v559, 0
      %v619 = vsel %vm612, %v561, 0
      %vm621 = vcmask 1041408
      %v623 = vsel %vm621, %v603, 0
      %v626 = vsel %vm621, %v604, 0
      %v629 = vsel %vm621, %v605, 0
      %631 = vmatprep.subr.bf16.mxu0 0
      %632 = vmatpush1.bf16.msra.mxu0 0
      %633 = vmatprep.subr.bf16.mxu0 0
      %634 = vmatpush1.bf16.msra.mxu0 0
      %635 = vmatprep.subr.bf16.mxu0 0
      %636 = vmatpush1.bf16.msra.mxu0 0
      %637 = vmatprep.subr.bf16.mxu0 0
      %638 = vmatpush1.bf16.msra.mxu0 0
      %639 = vmatprep.subr.bf16.mxu0 0
      %640 = vmatpush1.bf16.msra.mxu0 0
      %641 = vmatprep.subr.bf16.mxu0 %v626
      %642 = vmatpush1.bf16.msra.mxu0 %v623
      %643 = vmatprep.subr.bf16.mxu0 %v601
      %644 = vmatpush1.bf16.msra.mxu0 %v600
      %645 = vmatprep.subr.bf16.mxu0 %v598
      %646 = vmatpush1.bf16.msra.mxu0 %v597
      %647 = vmatprep.subr.bf16.mxu0 0
      %648 = vmatpush2.bf16.msra.mxu0 0
      %649 = vmatprep.subr.bf16.mxu0 0
      %650 = vmatpush2.bf16.msra.mxu0 0
      %651 = vmatprep.subr.bf16.mxu0 0
      %652 = vmatpush2.bf16.msra.mxu0 0
      %653 = vmatprep.subr.bf16.mxu0 0
      %654 = vmatpush2.bf16.msra.mxu0 0
      %655 = vmatprep.subr.bf16.mxu0 0
      %656 = vmatpush2.bf16.msra.mxu0 0
      %657 = vmatprep.subr.bf16.mxu0 0
      %658 = vmatpush2.bf16.msra.mxu0 0
      %659 = vmatprep.subr.bf16.mxu0 0
      %660 = vmatpush2.bf16.msra.mxu0 0
      %661 = vmatprep.subr.bf16.mxu0 0
      %662 = vmatpush2.bf16.msra.mxu0 0
      %663 = vmatprep.mubr.bf16.mxu0 0
      %664 = vmatmul.mubr.bf16.gmra.mxu0 %v613
      %v665 = vpop.f32.mrf.mxu0
      %v666 = vadd.f32 0.0, %v665
      %v667 = vpop.f32.mrf.mxu0
      %v668 = vadd.f32 0.0, %v667
      %v669 = vpop.f32.mrf.mxu0
      %v670 = vadd.f32 0.0, %v669
      %v671 = vpop.f32.mrf.mxu0
      %v672 = vadd.f32 0.0, %v671
      %673 = vmatprep.mubr.bf16.mxu0 0
      %674 = vmatmul.mubr.bf16.gmra.mxu0 %v615
      %v675 = vpop.f32.mrf.mxu0
      %v676 = vadd.f32 0.0, %v675
      %v677 = vpop.f32.mrf.mxu0
      %v678 = vadd.f32 0.0, %v677
      %v679 = vpop.f32.mrf.mxu0
      %v680 = vadd.f32 0.0, %v679
      %v681 = vpop.f32.mrf.mxu0
      %v682 = vadd.f32 0.0, %v681
      %683 = vmatprep.mubr.bf16.mxu0 0
      %684 = vmatmul.mubr.bf16.gmra.mxu0 %v617
      %v685 = vpop.f32.mrf.mxu0
      %v686 = vadd.f32 0.0, %v685
      %v687 = vpop.f32.mrf.mxu0
      %v688 = vadd.f32 0.0, %v687
      %v689 = vpop.f32.mrf.mxu0
      %v690 = vadd.f32 0.0, %v689
      %v691 = vpop.f32.mrf.mxu0
      %v692 = vadd.f32 0.0, %v691
      %693 = vmatprep.mubr.bf16.mxu0 0
      %694 = vmatmul.mubr.bf16.gmra.mxu0 %v619
      %v695 = vpop.f32.mrf.mxu0
      %v696 = vadd.f32 0.0, %v695
      %v697 = vpop.f32.mrf.mxu0
      %v698 = vadd.f32 0.0, %v697
      %v699 = vpop.f32.mrf.mxu0
      %v700 = vadd.f32 0.0, %v699
      %v701 = vpop.f32.mrf.mxu0
      %v702 = vadd.f32 0.0, %v701
      %703 = vdwg.mxu0
      %704 = vmatprep.subr.bf16.mxu0 0
      %705 = vmatpush1.bf16.msra.mxu0 0
      %706 = vmatprep.subr.bf16.mxu0 0
      %707 = vmatpush1.bf16.msra.mxu0 0
      %708 = vmatprep.subr.bf16.mxu0 0
      %709 = vmatpush1.bf16.msra.mxu0 0
      %710 = vmatprep.subr.bf16.mxu0 0
      %711 = vmatpush1.bf16.msra.mxu0 0
      %712 = vmatprep.subr.bf16.mxu0 0
      %713 = vmatpush1.bf16.msra.mxu0 0
      %714 = vmatprep.subr.bf16.mxu0 0
      %715 = vmatpush1.bf16.msra.mxu0 %v629
      %716 = vmatprep.subr.bf16.mxu0 0
      %717 = vmatpush1.bf16.msra.mxu0 %v602
      %718 = vmatprep.subr.bf16.mxu0 0
      %719 = vmatpush1.bf16.msra.mxu0 %v599
      %720 = vmatprep.subr.bf16.mxu0 0
      %721 = vmatpush2.bf16.msra.mxu0 0
      %722 = vmatprep.subr.bf16.mxu0 0
      %723 = vmatpush2.bf16.msra.mxu0 0
      %724 = vmatprep.subr.bf16.mxu0 0
      %725 = vmatpush2.bf16.msra.mxu0 0
      %726 = vmatprep.subr.bf16.mxu0 0
      %727 = vmatpush2.bf16.msra.mxu0 0
      %728 = vmatprep.subr.bf16.mxu0 0
      %729 = vmatpush2.bf16.msra.mxu0 0
      %730 = vmatprep.subr.bf16.mxu0 0
      %731 = vmatpush2.bf16.msra.mxu0 0
      %732 = vmatprep.subr.bf16.mxu0 0
      %733 = vmatpush2.bf16.msra.mxu0 0
      %734 = vmatprep.subr.bf16.mxu0 0
      %735 = vmatpush2.bf16.msra.mxu0 0
      %736 = vmatprep.mubr.bf16.mxu0 0
      %737 = vmatmul.mubr.bf16.gmra.mxu0 %v613
      %v738 = vpop.f32.mrf.mxu0
      %v739 = vadd.f32 0.0, %v738
      %v740 = vpop.f32.mrf.mxu0
      %v741 = vpop.f32.mrf.mxu0
      %v742 = vadd.f32 0.0, %v741
      %v743 = vpop.f32.mrf.mxu0
      %744 = vmatprep.mubr.bf16.mxu0 0
      %745 = vmatmul.mubr.bf16.gmra.mxu0 %v615
      %v746 = vpop.f32.mrf.mxu0
      %v747 = vadd.f32 0.0, %v746
      %v748 = vpop.f32.mrf.mxu0
      %v749 = vpop.f32.mrf.mxu0
      %v750 = vadd.f32 0.0, %v749
      %v751 = vpop.f32.mrf.mxu0
      %752 = vmatprep.mubr.bf16.mxu0 0
      %753 = vmatmul.mubr.bf16.gmra.mxu0 %v617
      %v754 = vpop.f32.mrf.mxu0
      %v755 = vadd.f32 0.0, %v754
      %v756 = vpop.f32.mrf.mxu0
      %v757 = vpop.f32.mrf.mxu0
      %v758 = vadd.f32 0.0, %v757
      %v759 = vpop.f32.mrf.mxu0
      %760 = vmatprep.mubr.bf16.mxu0 0
      %761 = vmatmul.mubr.bf16.gmra.mxu0 %v619
      %v762 = vpop.f32.mrf.mxu0
      %v763 = vadd.f32 0.0, %v762
      %v764 = vpop.f32.mrf.mxu0
      %v765 = vpop.f32.mrf.mxu0
      %v766 = vadd.f32 0.0, %v765
      %v767 = vpop.f32.mrf.mxu0
      %768 = vdwg.mxu0
      %769 = vst [vmem:[%s178] sm:$0xff] %v666
      %770 = vst [vmem:[%s178 + $0x8] sm:$0xff] %v668
      %771 = vst [vmem:[%s178 + $0x10] sm:$0xff] %v739
      %772 = vst [vmem:[%s178 + $0x18] sm:$0xff] %v670
      %773 = vst [vmem:[%s178 + $0x20] sm:$0xff] %v672
      %774 = vst [vmem:[%s178 + $0x28] sm:$0xff] %v742
      %775 = vst [vmem:[%s178 + $0x30] sm:$0xff] %v676
      %776 = vst [vmem:[%s178 + $0x38] sm:$0xff] %v678
      %777 = vst [vmem:[%s178 + $0x40] sm:$0xff] %v747
      %778 = vst [vmem:[%s178 + $0x48] sm:$0xff] %v680
      %779 = vst [vmem:[%s178 + $0x50] sm:$0xff] %v682
      %780 = vst [vmem:[%s178 + $0x58] sm:$0xff] %v750
      %781 = vst [vmem:[%s178 + $0x60] sm:$0xff] %v686
      %782 = vst [vmem:[%s178 + $0x68] sm:$0xff] %v688
      %783 = vst [vmem:[%s178 + $0x70] sm:$0xff] %v755
      %784 = vst [vmem:[%s178 + $0x78] sm:$0xff] %v690
      %785 = vst [vmem:[%s178 + $0x80] sm:$0xff] %v692
      %786 = vst [vmem:[%s178 + $0x88] sm:$0xff] %v758
      %787 = vst [vmem:[%s178 + $0x90] sm:$0xff] %v696
      %788 = vst [vmem:[%s178 + $0x98] sm:$0xff] %v698
      %789 = vst [vmem:[%s178 + $0xa0] sm:$0xff] %v763
      %790 = vst [vmem:[%s178 + $0xa8] sm:$0xff] %v700
      %791 = vst [vmem:[%s178 + $0xb0] sm:$0xff] %v702
      %792 = vst [vmem:[%s178 + $0xb8] sm:$0xff] %v766
      %vm793 = vcmask 1046528
      %v794 = vsel %vm793, %v666, 0.0
      %v795 = vrot.slane %v794, 4
      %v796 = vadd.f32 %v794, %v795
      %v797 = vrot.slane %v796, 2
      %v798 = vadd.f32 %v796, %v797
      %v799 = vrot.slane %v798, 1
      %v800 = vadd.f32 %v798, %v799
      %v801 = vsel %vm793, %v668, 0.0
      %v802 = vrot.slane %v801, 4
      %v803 = vadd.f32 %v801, %v802
      %v804 = vrot.slane %v803, 2
      %v805 = vadd.f32 %v803, %v804
      %v806 = vrot.slane %v805, 1
      %v807 = vadd.f32 %v805, %v806
      %v808 = vsel %vm793, %v739, 0.0
      %v809 = vrot.slane %v808, 4
      %v810 = vadd.f32 %v808, %v809
      %v811 = vrot.slane %v810, 2
      %v812 = vadd.f32 %v810, %v811
      %v813 = vrot.slane %v812, 1
      %v814 = vadd.f32 %v812, %v813
      %v815 = vadd.f32 %v800, 0.0
      %v816 = vadd.f32 %v807, 0.0
      %v817 = vadd.f32 %v814, 0.0
      %v818 = vmul.f32 %v666, %v666
      %v819 = vmul.f32 %v668, %v668
      %v820 = vmul.f32 %v739, %v739
      %v821 = vsel %vm793, %v818, 0.0
      %v822 = vrot.slane %v821, 4
      %v823 = vadd.f32 %v821, %v822
      %v824 = vrot.slane %v823, 2
      %v825 = vadd.f32 %v823, %v824
      %v826 = vrot.slane %v825, 1
      %v827 = vadd.f32 %v825, %v826
      %v828 = vsel %vm793, %v819, 0.0
      %v829 = vrot.slane %v828, 4
      %v830 = vadd.f32 %v828, %v829
      %v831 = vrot.slane %v830, 2
      %v832 = vadd.f32 %v830, %v831
      %v833 = vrot.slane %v832, 1
      %v834 = vadd.f32 %v832, %v833
      %v835 = vsel %vm793, %v820, 0.0
      %v836 = vrot.slane %v835, 4
      %v837 = vadd.f32 %v835, %v836
      %v838 = vrot.slane %v837, 2
      %v839 = vadd.f32 %v837, %v838
      %v840 = vrot.slane %v839, 1
      %v841 = vadd.f32 %v839, %v840
      %v842 = vadd.f32 %v827, 0.0
      %v843 = vadd.f32 %v834, 0.0
      %v844 = vadd.f32 %v841, 0.0
      %v845 = vsel %vm793, %v670, 0.0
      %v846 = vrot.slane %v845, 4
      %v847 = vadd.f32 %v845, %v846
      %v848 = vrot.slane %v847, 2
      %v849 = vadd.f32 %v847, %v848
      %v850 = vrot.slane %v849, 1
      %v851 = vadd.f32 %v849, %v850
      %v852 = vsel %vm793, %v672, 0.0
      %v853 = vrot.slane %v852, 4
      %v854 = vadd.f32 %v852, %v853
      %v855 = vrot.slane %v854, 2
      %v856 = vadd.f32 %v854, %v855
      %v857 = vrot.slane %v856, 1
      %v858 = vadd.f32 %v856, %v857
      %v859 = vsel %vm793, %v742, 0.0
      %v860 = vrot.slane %v859, 4
      %v861 = vadd.f32 %v859, %v860
      %v862 = vrot.slane %v861, 2
      %v863 = vadd.f32 %v861, %v862
      %v864 = vrot.slane %v863, 1
      %v865 = vadd.f32 %v863, %v864
      %v866 = vadd.f32 %v815, %v851
      %v867 = vadd.f32 %v816, %v858
      %v868 = vadd.f32 %v817, %v865
      %v869 = vmul.f32 %v670, %v670
      %v870 = vmul.f32 %v672, %v672
      %v871 = vmul.f32 %v742, %v742
      %v872 = vsel %vm793, %v869, 0.0
      %v873 = vrot.slane %v872, 4
      %v874 = vadd.f32 %v872, %v873
      %v875 = vrot.slane %v874, 2
      %v876 = vadd.f32 %v874, %v875
      %v877 = vrot.slane %v876, 1
      %v878 = vadd.f32 %v876, %v877
      %v879 = vsel %vm793, %v870, 0.0
      %v880 = vrot.slane %v879, 4
      %v881 = vadd.f32 %v879, %v880
      %v882 = vrot.slane %v881, 2
      %v883 = vadd.f32 %v881, %v882
      %v884 = vrot.slane %v883, 1
      %v885 = vadd.f32 %v883, %v884
      %v886 = vsel %vm793, %v871, 0.0
      %v887 = vrot.slane %v886, 4
      %v888 = vadd.f32 %v886, %v887
      %v889 = vrot.slane %v888, 2
      %v890 = vadd.f32 %v888, %v889
      %v891 = vrot.slane %v890, 1
      %v892 = vadd.f32 %v890, %v891
      %v893 = vadd.f32 %v842, %v878
      %v894 = vadd.f32 %v843, %v885
      %v895 = vadd.f32 %v844, %v892
      %v896 = vsel %vm793, %v676, 0.0
      %v897 = vrot.slane %v896, 4
      %v898 = vadd.f32 %v896, %v897
      %v899 = vrot.slane %v898, 2
      %v900 = vadd.f32 %v898, %v899
      %v901 = vrot.slane %v900, 1
      %v902 = vadd.f32 %v900, %v901
      %v903 = vsel %vm793, %v678, 0.0
      %v904 = vrot.slane %v903, 4
      %v905 = vadd.f32 %v903, %v904
      %v906 = vrot.slane %v905, 2
      %v907 = vadd.f32 %v905, %v906
      %v908 = vrot.slane %v907, 1
      %v909 = vadd.f32 %v907, %v908
      %v910 = vsel %vm793, %v747, 0.0
      %v911 = vrot.slane %v910, 4
      %v912 = vadd.f32 %v910, %v911
      %v913 = vrot.slane %v912, 2
      %v914 = vadd.f32 %v912, %v913
      %v915 = vrot.slane %v914, 1
      %v916 = vadd.f32 %v914, %v915
      %v917 = vadd.f32 %v866, %v902
      %v918 = vadd.f32 %v867, %v909
      %v919 = vadd.f32 %v868, %v916
      %v920 = vmul.f32 %v676, %v676
      %v921 = vmul.f32 %v678, %v678
      %v922 = vmul.f32 %v747, %v747
      %v923 = vsel %vm793, %v920, 0.0
      %v924 = vrot.slane %v923, 4
      %v925 = vadd.f32 %v923, %v924
      %v926 = vrot.slane %v925, 2
      %v927 = vadd.f32 %v925, %v926
      %v928 = vrot.slane %v927, 1
      %v929 = vadd.f32 %v927, %v928
      %v930 = vsel %vm793, %v921, 0.0
      %v931 = vrot.slane %v930, 4
      %v932 = vadd.f32 %v930, %v931
      %v933 = vrot.slane %v932, 2
      %v934 = vadd.f32 %v932, %v933
      %v935 = vrot.slane %v934, 1
      %v936 = vadd.f32 %v934, %v935
      %v937 = vsel %vm793, %v922, 0.0
      %v938 = vrot.slane %v937, 4
      %v939 = vadd.f32 %v937, %v938
      %v940 = vrot.slane %v939, 2
      %v941 = vadd.f32 %v939, %v940
      %v942 = vrot.slane %v941, 1
      %v943 = vadd.f32 %v941, %v942
      %v944 = vadd.f32 %v893, %v929
      %v945 = vadd.f32 %v894, %v936
      %v946 = vadd.f32 %v895, %v943
      %v947 = vsel %vm793, %v680, 0.0
      %v948 = vrot.slane %v947, 4
      %v949 = vadd.f32 %v947, %v948
      %v950 = vrot.slane %v949, 2
      %v951 = vadd.f32 %v949, %v950
      %v952 = vrot.slane %v951, 1
      %v953 = vadd.f32 %v951, %v952
      %v954 = vsel %vm793, %v682, 0.0
      %v955 = vrot.slane %v954, 4
      %v956 = vadd.f32 %v954, %v955
      %v957 = vrot.slane %v956, 2
      %v958 = vadd.f32 %v956, %v957
      %v959 = vrot.slane %v958, 1
      %v960 = vadd.f32 %v958, %v959
      %v961 = vsel %vm793, %v750, 0.0
      %v962 = vrot.slane %v961, 4
      %v963 = vadd.f32 %v961, %v962
      %v964 = vrot.slane %v963, 2
      %v965 = vadd.f32 %v963, %v964
      %v966 = vrot.slane %v965, 1
      %v967 = vadd.f32 %v965, %v966
      %v968 = vadd.f32 %v917, %v953
      %v969 = vadd.f32 %v918, %v960
      %v970 = vadd.f32 %v919, %v967
      %v971 = vmul.f32 %v680, %v680
      %v972 = vmul.f32 %v682, %v682
      %v973 = vmul.f32 %v750, %v750
      %v974 = vsel %vm793, %v971, 0.0
      %v975 = vrot.slane %v974, 4
      %v976 = vadd.f32 %v974, %v975
      %v977 = vrot.slane %v976, 2
      %v978 = vadd.f32 %v976, %v977
      %v979 = vrot.slane %v978, 1
      %v980 = vadd.f32 %v978, %v979
      %v981 = vsel %vm793, %v972, 0.0
      %v982 = vrot.slane %v981, 4
      %v983 = vadd.f32 %v981, %v982
      %v984 = vrot.slane %v983, 2
      %v985 = vadd.f32 %v983, %v984
      %v986 = vrot.slane %v985, 1
      %v987 = vadd.f32 %v985, %v986
      %v988 = vsel %vm793, %v973, 0.0
      %v989 = vrot.slane %v988, 4
      %v990 = vadd.f32 %v988, %v989
      %v991 = vrot.slane %v990, 2
      %v992 = vadd.f32 %v990, %v991
      %v993 = vrot.slane %v992, 1
      %v994 = vadd.f32 %v992, %v993
      %v995 = vadd.f32 %v944, %v980
      %v996 = vadd.f32 %v945, %v987
      %v997 = vadd.f32 %v946, %v994
      %v998 = vsel %vm793, %v686, 0.0
      %v999 = vrot.slane %v998, 4
      %v1000 = vadd.f32 %v998, %v999
      %v1001 = vrot.slane %v1000, 2
      %v1002 = vadd.f32 %v1000, %v1001
      %v1003 = vrot.slane %v1002, 1
      %v1004 = vadd.f32 %v1002, %v1003
      %v1005 = vsel %vm793, %v688, 0.0
      %v1006 = vrot.slane %v1005, 4
      %v1007 = vadd.f32 %v1005, %v1006
      %v1008 = vrot.slane %v1007, 2
      %v1009 = vadd.f32 %v1007, %v1008
      %v1010 = vrot.slane %v1009, 1
      %v1011 = vadd.f32 %v1009, %v1010
      %v1012 = vsel %vm793, %v755, 0.0
      %v1013 = vrot.slane %v1012, 4
      %v1014 = vadd.f32 %v1012, %v1013
      %v1015 = vrot.slane %v1014, 2
      %v1016 = vadd.f32 %v1014, %v1015
      %v1017 = vrot.slane %v1016, 1
      %v1018 = vadd.f32 %v1016, %v1017
      %v1019 = vadd.f32 %v968, %v1004
      %v1020 = vadd.f32 %v969, %v1011
      %v1021 = vadd.f32 %v970, %v1018
      %v1022 = vmul.f32 %v686, %v686
      %v1023 = vmul.f32 %v688, %v688
      %v1024 = vmul.f32 %v755, %v755
      %v1025 = vsel %vm793, %v1022, 0.0
      %v1026 = vrot.slane %v1025, 4
      %v1027 = vadd.f32 %v1025, %v1026
      %v1028 = vrot.slane %v1027, 2
      %v1029 = vadd.f32 %v1027, %v1028
      %v1030 = vrot.slane %v1029, 1
      %v1031 = vadd.f32 %v1029, %v1030
      %v1032 = vsel %vm793, %v1023, 0.0
      %v1033 = vrot.slane %v1032, 4
      %v1034 = vadd.f32 %v1032, %v1033
      %v1035 = vrot.slane %v1034, 2
      %v1036 = vadd.f32 %v1034, %v1035
      %v1037 = vrot.slane %v1036, 1
      %v1038 = vadd.f32 %v1036, %v1037
      %v1039 = vsel %vm793, %v1024, 0.0
      %v1040 = vrot.slane %v1039, 4
      %v1041 = vadd.f32 %v1039, %v1040
      %v1042 = vrot.slane %v1041, 2
      %v1043 = vadd.f32 %v1041, %v1042
      %v1044 = vrot.slane %v1043, 1
      %v1045 = vadd.f32 %v1043, %v1044
      %v1046 = vadd.f32 %v995, %v1031
      %v1047 = vadd.f32 %v996, %v1038
      %v1048 = vadd.f32 %v997, %v1045
      %v1049 = vsel %vm793, %v690, 0.0
      %v1050 = vrot.slane %v1049, 4
      %v1051 = vadd.f32 %v1049, %v1050
      %v1052 = vrot.slane %v1051, 2
      %v1053 = vadd.f32 %v1051, %v1052
      %v1054 = vrot.slane %v1053, 1
      %v1055 = vadd.f32 %v1053, %v1054
      %v1056 = vsel %vm793, %v692, 0.0
      %v1057 = vrot.slane %v1056, 4
      %v1058 = vadd.f32 %v1056, %v1057
      %v1059 = vrot.slane %v1058, 2
      %v1060 = vadd.f32 %v1058, %v1059
      %v1061 = vrot.slane %v1060, 1
      %v1062 = vadd.f32 %v1060, %v1061
      %v1063 = vsel %vm793, %v758, 0.0
      %v1064 = vrot.slane %v1063, 4
      %v1065 = vadd.f32 %v1063, %v1064
      %v1066 = vrot.slane %v1065, 2
      %v1067 = vadd.f32 %v1065, %v1066
      %v1068 = vrot.slane %v1067, 1
      %v1069 = vadd.f32 %v1067, %v1068
      %v1070 = vadd.f32 %v1019, %v1055
      %v1071 = vadd.f32 %v1020, %v1062
      %v1072 = vadd.f32 %v1021, %v1069
      %v1073 = vmul.f32 %v690, %v690
      %v1074 = vmul.f32 %v692, %v692
      %v1075 = vmul.f32 %v758, %v758
      %v1076 = vsel %vm793, %v1073, 0.0
      %v1077 = vrot.slane %v1076, 4
      %v1078 = vadd.f32 %v1076, %v1077
      %v1079 = vrot.slane %v1078, 2
      %v1080 = vadd.f32 %v1078, %v1079
      %v1081 = vrot.slane %v1080, 1
      %v1082 = vadd.f32 %v1080, %v1081
      %v1083 = vsel %vm793, %v1074, 0.0
      %v1084 = vrot.slane %v1083, 4
      %v1085 = vadd.f32 %v1083, %v1084
      %v1086 = vrot.slane %v1085, 2
      %v1087 = vadd.f32 %v1085, %v1086
      %v1088 = vrot.slane %v1087, 1
      %v1089 = vadd.f32 %v1087, %v1088
      %v1090 = vsel %vm793, %v1075, 0.0
      %v1091 = vrot.slane %v1090, 4
      %v1092 = vadd.f32 %v1090, %v1091
      %v1093 = vrot.slane %v1092, 2
      %v1094 = vadd.f32 %v1092, %v1093
      %v1095 = vrot.slane %v1094, 1
      %v1096 = vadd.f32 %v1094, %v1095
      %v1097 = vadd.f32 %v1046, %v1082
      %v1098 = vadd.f32 %v1047, %v1089
      %v1099 = vadd.f32 %v1048, %v1096
      %v1100 = vsel %vm793, %v696, 0.0
      %v1101 = vrot.slane %v1100, 4
      %v1102 = vadd.f32 %v1100, %v1101
      %v1103 = vrot.slane %v1102, 2
      %v1104 = vadd.f32 %v1102, %v1103
      %v1105 = vrot.slane %v1104, 1
      %v1106 = vadd.f32 %v1104, %v1105
      %v1107 = vsel %vm793, %v698, 0.0
      %v1108 = vrot.slane %v1107, 4
      %v1109 = vadd.f32 %v1107, %v1108
      %v1110 = vrot.slane %v1109, 2
      %v1111 = vadd.f32 %v1109, %v1110
      %v1112 = vrot.slane %v1111, 1
      %v1113 = vadd.f32 %v1111, %v1112
      %v1114 = vsel %vm793, %v763, 0.0
      %v1115 = vrot.slane %v1114, 4
      %v1116 = vadd.f32 %v1114, %v1115
      %v1117 = vrot.slane %v1116, 2
      %v1118 = vadd.f32 %v1116, %v1117
      %v1119 = vrot.slane %v1118, 1
      %v1120 = vadd.f32 %v1118, %v1119
      %v1121 = vadd.f32 %v1070, %v1106
      %v1122 = vadd.f32 %v1071, %v1113
      %v1123 = vadd.f32 %v1072, %v1120
      %v1124 = vmul.f32 %v696, %v696
      %v1125 = vmul.f32 %v698, %v698
      %v1126 = vmul.f32 %v763, %v763
      %v1127 = vsel %vm793, %v1124, 0.0
      %v1128 = vrot.slane %v1127, 4
      %v1129 = vadd.f32 %v1127, %v1128
      %v1130 = vrot.slane %v1129, 2
      %v1131 = vadd.f32 %v1129, %v1130
      %v1132 = vrot.slane %v1131, 1
      %v1133 = vadd.f32 %v1131, %v1132
      %v1134 = vsel %vm793, %v1125, 0.0
      %v1135 = vrot.slane %v1134, 4
      %v1136 = vadd.f32 %v1134, %v1135
      %v1137 = vrot.slane %v1136, 2
      %v1138 = vadd.f32 %v1136, %v1137
      %v1139 = vrot.slane %v1138, 1
      %v1140 = vadd.f32 %v1138, %v1139
      %v1141 = vsel %vm793, %v1126, 0.0
      %v1142 = vrot.slane %v1141, 4
      %v1143 = vadd.f32 %v1141, %v1142
      %v1144 = vrot.slane %v1143, 2
      %v1145 = vadd.f32 %v1143, %v1144
      %v1146 = vrot.slane %v1145, 1
      %v1147 = vadd.f32 %v1145, %v1146
      %v1148 = vadd.f32 %v1097, %v1133
      %v1149 = vadd.f32 %v1098, %v1140
      %v1150 = vadd.f32 %v1099, %v1147
      %v1154 = vcombine.low %v1121, %v1122
      %v1156 = vunpack.c.l.s4 1966171168
      %v1157 = vunpack.c.0.s8 %v1156
      %v1158 = vlaneseq
      %v1159 = vshrl.u32 %v1158, 7
      %v1160 = vsub.s32 %v1157, %v1159
      %v1161 = vrot.slane %v1154, %v1160
      %v1163 = vunpack.c.l.s4 1966171168
      %v1164 = vunpack.c.0.s8 %v1163
      %v1165 = vlaneseq
      %v1166 = vshrl.u32 %v1165, 7
      %v1167 = vsub.s32 %v1164, %v1166
      %v1168 = vrot.slane %v1123, %v1167
      %v1169 = vcombine.low %v1161, %v1168
      %v1171 = vunpack.c.l.s4 1966171168
      %v1172 = vunpack.c.0.s8 %v1171
      %v1173 = vlaneseq
      %v1174 = vshrl.u32 %v1173, 7
      %v1175 = vsub.s32 %v1172, %v1174
      %v1176 = vrot.slane %v1169, %v1175
      %v1178 = vlaneseq
      %vm1179 = vcmp.ge.s32.totalorder %v1178, 0
      %vm1180 = vcmp.lt.s32.totalorder %v1178, 384
      %vm1181 = vmand %vm1179, %vm1180
      %1182 = vst.msk [vmem:[%s183] ss:$2 sm:$0x7] %vm1181, %v1176
      %v1186 = vcombine.low %v1148, %v1149
      %v1188 = vunpack.c.l.s4 1966171168
      %v1189 = vunpack.c.0.s8 %v1188
      %v1190 = vlaneseq
      %v1191 = vshrl.u32 %v1190, 7
      %v1192 = vsub.s32 %v1189, %v1191
      %v1193 = vrot.slane %v1186, %v1192
      %v1195 = vunpack.c.l.s4 1966171168
      %v1196 = vunpack.c.0.s8 %v1195
      %v1197 = vlaneseq
      %v1198 = vshrl.u32 %v1197, 7
      %v1199 = vsub.s32 %v1196, %v1198
      %v1200 = vrot.slane %v1150, %v1199
      %v1201 = vcombine.low %v1193, %v1200
      %v1203 = vunpack.c.l.s4 1966171168
      %v1204 = vunpack.c.0.s8 %v1203
      %v1205 = vlaneseq
      %v1206 = vshrl.u32 %v1205, 7
      %v1207 = vsub.s32 %v1204, %v1206
      %v1208 = vrot.slane %v1201, %v1207
      %s1210 = scalar_lea.vmem %s183, 1
      %1211 = vst.msk [vmem:[%s1210] ss:$2 sm:$0x7] %vm1181, %v1208
      %p1212 = scmp.lt.s32.totalorder %s15, 1
      %s1213 = scalar_select %p1212, %s15, 1
      %s1214 = smul.addr %s1213, 24
      %s1215 = smul.addr %s1214, 8
      %s1216 = scalar_lea.vmem %s2, %s1215
      %p1217 = scmp.lt.s32.totalorder %s15, 1
      %s1218 = scalar_select %p1217, %s15, 1
      %s1219 = smul.addr %s1218, 3
      %s1220 = smul.addr %s1219, 2
      %s1221 = scalar_lea.vmem %s3, %s1220
      // Predicated region
      $region29: #{inception_b_forward.9} parent=27 // pred_check
        %p1222 = pneg %p80
      $region30: #{inception_b_forward.9} parent=27 // pred_check_branch
        %1224 = sbr.rel (%p1222) target = $region32
      $region31: #{inception_b_forward.9} parent=27 // pred_region
        _
      $region32: #{inception_b_forward.9} parent=27 // pred_fallthru
        _
      // Predicated region
      $region33: #{inception_b_forward.9} parent=27 // pred_check
        %p1225 = pneg %p106
      $region34: #{inception_b_forward.9} parent=27 // pred_check_branch
        %1227 = sbr.rel (%p1225) target = $region36
      $region35: #{inception_b_forward.9} parent=27 // pred_region
        _
      $region36: #{inception_b_forward.9} parent=27 // pred_fallthru
        _
    $region28: #{inception_b_forward.9} parent=5 // pred_fallthru
      _
    %p1228 = scmp.le.s32.totalorder 2, %s10
    // Predicated region
    $region37: #{inception_b_forward.9} parent=5 // pred_check
      %p1229 = pneg %p1228
    $region38: #{inception_b_forward.9} parent=5 // pred_check_branch
      %1231 = sbr.rel (%p1229) target = $region40
    $region39: #{inception_b_forward.9} parent=5 // pred_region
      %s1232 = ssub.s32 %s10, 2
      // Predicated region
      $region41: #{inception_b_forward.9} parent=39 // pred_check
        %p1233 = pneg %p86
      $region42: #{inception_b_forward.9} parent=39 // pred_check_branch
        %1235 = sbr.rel (%p1233) target = $region44
      $region43: #{inception_b_forward.9} parent=39 // pred_region
        %p1236 = scmp.lt.s32.totalorder %s16, 1
        %s1237 = scalar_select %p1236, %s16, 1
        %s1238 = smul.addr %s1237, 24
        %s1239 = smul.addr %s1238, 8
        %s1240 = scalar_lea.vmem %s2, %s1239
      $region44: #{inception_b_forward.9} parent=39 // pred_fallthru
        _
      // Predicated region
      $region45: #{inception_b_forward.9} parent=39 // pred_check
        %p1241 = pneg %p112
      $region46: #{inception_b_forward.9} parent=39 // pred_check_branch
        %1243 = sbr.rel (%p1241) target = $region48
      $region47: #{inception_b_forward.9} parent=39 // pred_region
        %p1244 = scmp.lt.s32.totalorder %s16, 1
        %s1245 = scalar_select %p1244, %s16, 1
        %s1246 = smul.addr %s1245, 3
        %s1247 = smul.addr %s1246, 2
        %s1248 = scalar_lea.vmem %s3, %s1247
      $region48: #{inception_b_forward.9} parent=39 // pred_fallthru
        _
    $region40: #{inception_b_forward.9} parent=5 // pred_fallthru
      _
  $region6: #{inception_b_forward.9} parent=0 // loop_footer
    %s14 = sadd.s32 1, %s10
  $region7: #{inception_b_forward.9} parent=0 // loop_footer_branch
    %9 = sbr.rel target = $region3
  $region8: #{inception_b_forward.9} parent=0 // loop_exit
    _

</llo_original>
